<compile_context>
chip_gen: v5e
topology: v5e:2x2
jax: 0.10.0
libtpu: 0.0.40
codegen_flags: <defaults>
</compile_context>

<pallas_src>
import jax
import jax.numpy as jnp
from jax import lax
from jax.experimental import pallas as pl
from jax.experimental.pallas import tpu as pltpu

_VMEM_LIMIT_BYTES = 64 * 1024 * 1024   # explicit scoped-VMEM budget; tiles here use <20 MiB

# conv2 geometry (28x28 input -> pool1 -> 14x14 activation, 5x5 kernel, pad 2)
_H2 = 14                       # conv2 spatial extent
_WPAD2 = _H2 + 4               # padded width (2 left + 2 right) = 18
_LFLAT2 = 19 * _WPAD2 + 2      # rows of the flattened padded image per batch elem = 344 (8-aligned)
_ROWS2 = 256                   # conv2 output rows computed per image (>= 14*18 = 252, 8-aligned)


# ---------------------------------------------------------------------------
# small helpers: row tiling with explicit padding (never falls back to full-M)
# ---------------------------------------------------------------------------

def _round_up(x, m):
    return (x + m - 1) // m * m


def _row_tile(m, target):
    """Row tile: a multiple of 8 and <= target; callers pad rows to a tile multiple."""
    return min(_round_up(m, 8), _round_up(target, 8))


def _pad_rows(x, rows):
    return jnp.pad(x, ((0, rows - x.shape[0]), (0, 0)))


# ---------------------------------------------------------------------------
# Kernel 1: conv1 (im2col, K=25, Cin=1) + bias + ReLU + 2x2 max-pool, fused
# ---------------------------------------------------------------------------

def _conv1_relu_pool_kernel(p00_ref, p01_ref, p10_ref, p11_ref, w_ref, b_ref, o_ref):
    """o = max over 4 pool candidates of relu(p_ij @ w + b).

    p_ij: (tm, 25) bf16   w: (25, 32) bf16   b: (1, 32) f32   o: (tm, 32) f32
    """
    w = w_ref[...]
    b = b_ref[...]

    def cand(p_ref):
        acc = jnp.dot(p_ref[...], w, preferred_element_type=jnp.float32)
        return jnp.maximum(acc + b, 0.0)           # bias + ReLU kept in f32 (v5e VPU)

    o_ref[...] = jnp.maximum(jnp.maximum(cand(p00_ref), cand(p01_ref)),
                             jnp.maximum(cand(p10_ref), cand(p11_ref)))


def conv1_relu_pool(cands, w, b, *, row_tile_target=512):
    m, k = cands[0].shape
    n = w.shape[1]
    tm = _row_tile(m, row_tile_target)             # >=512-row tiles at real batch sizes
    mp = _round_up(m, tm)
    cands = [_pad_rows(c, mp) for c in cands]
    out = pl.pallas_call(
        _conv1_relu_pool_kernel,
        out_shape=jax.ShapeDtypeStruct((mp, n), jnp.float32),
        grid=(mp // tm,),
        in_specs=[pl.BlockSpec((tm, k), lambda i: (i, 0))] * 4 + [
            pl.BlockSpec((k, n), lambda i: (0, 0)),
            pl.BlockSpec((1, n), lambda i: (0, 0)),
        ],
        out_specs=pl.BlockSpec((tm, n), lambda i: (i, 0)),
        compiler_params=pltpu.CompilerParams(
            dimension_semantics=("parallel",),      # independent row tiles -> v7x megacore
            vmem_limit_bytes=_VMEM_LIMIT_BYTES),
    )(*cands, w, b)
    return out[:m]


# ---------------------------------------------------------------------------
# Kernel 2: conv2 + bias + ReLU with NO im2col (shift-and-accumulate taps)
# ---------------------------------------------------------------------------

def _conv2_relu_kernel(x_ref, w_ref, b_ref, o_ref):
    """5x5 conv as 25 statically row-shifted (256,32)@(32,64) matmuls.

    x_ref: (344, 32) f32  -- one image, padded to (19,18) spatial, row-flattened (+2 pad rows)
    w_ref: (800, 64) bf16 -- rows ordered (kh, kw, cin)
    b_ref: (1, 64)   f32
    o_ref: (256, 64) f32  -- row q = h*18 + w; valid for h<14, w<14, rest discarded
    """
    x = x_ref[...]
    w = w_ref[...]
    acc = jnp.zeros((_ROWS2, 64), jnp.float32)
    for t in range(25):                             # fully unrolled, static shifts
        dh, dw = t // 5, t % 5
        s = dh * _WPAD2 + dw
        a = x[s:s + _ROWS2, :].astype(jnp.bfloat16)
        acc = acc + jnp.dot(a, w[t * 32:(t + 1) * 32, :],
                            preferred_element_type=jnp.float32)
    o_ref[...] = jnp.maximum(acc + b_ref[...], 0.0)


def conv2_relu(y_nhwc, w, b):
    """y_nhwc: (B,14,14,32) f32 -> relu(conv2(y)+b): (B,14,14,64) f32 (no im2col)."""
    bsz = y_nhwc.shape[0]
    xp = jnp.pad(y_nhwc, ((0, 0), (2, 3), (2, 2), (0, 0)))            # (B,19,18,32)
    xf = xp.reshape(bsz, 19 * _WPAD2, 32)
    xf = jnp.pad(xf, ((0, 0), (0, _LFLAT2 - 19 * _WPAD2), (0, 0)))    # (B,344,32)
    xf = xf.reshape(bsz * _LFLAT2, 32)
    out = pl.pallas_call(
        _conv2_relu_kernel,
        out_shape=jax.ShapeDtypeStruct((bsz * _ROWS2, 64), jnp.float32),
        grid=(bsz,),                                # one image per step (independent)
        in_specs=[
            pl.BlockSpec((_LFLAT2, 32), lambda i: (i, 0)),
            pl.BlockSpec((800, 64), lambda i: (0, 0)),
            pl.BlockSpec((1, 64), lambda i: (0, 0)),
        ],
        out_specs=pl.BlockSpec((_ROWS2, 64), lambda i: (i, 0)),
        compiler_params=pltpu.CompilerParams(
            dimension_semantics=("parallel",),      # shard images over v7x TensorCores
            vmem_limit_bytes=_VMEM_LIMIT_BYTES),
    )(xf, w, b)
    y = out.reshape(bsz, _ROWS2, 64)[:, :_H2 * _WPAD2, :]
    return y.reshape(bsz, _H2, _WPAD2, 64)[:, :, :_H2, :]             # drop garbage cols


# ---------------------------------------------------------------------------
# Kernel 3: 2x2 max-pool fused with linear1 -> dropout(identity) -> linear2
# ---------------------------------------------------------------------------

def _pool_mlp_kernel(c00_ref, c01_ref, c10_ref, c11_ref,
                     w1_ref, b1_ref, w2_ref, b2_ref, o_ref):
    """x = max4(candidates); o = (x @ w1 + b1) @ w2 + b2 (output padded to 128 lanes)."""
    x = jnp.maximum(jnp.maximum(c00_ref[...], c01_ref[...]),
                    jnp.maximum(c10_ref[...], c11_ref[...]))          # f32 (tm, 3136)
    h = jnp.dot(x.astype(jnp.bfloat16), w1_ref[...],
                preferred_element_type=jnp.float32) + b1_ref[...]
    # TODO(synk): F.dropout(p=0.4) is train-time stochastic masking; eval semantics = identity.
    o_ref[...] = jnp.dot(h.astype(jnp.bfloat16), w2_ref[...],
                         preferred_element_type=jnp.float32) + b2_ref[...]


def pool_mlp(cands, w1, b1, w2, b2, *, row_tile_target=128):
    m, k = cands[0].shape
    hdim = w1.shape[1]
    n = w2.shape[1]
    tm = _row_tile(m, row_tile_target)              # 4 f32 (tm,3136) inputs -> keep tiles modest
    mp = _round_up(m, tm)
    cands = [_pad_rows(c, mp) for c in cands]
    out = pl.pallas_call(
        _pool_mlp_kernel,
        out_shape=jax.ShapeDtypeStruct((mp, n), jnp.float32),
        grid=(mp // tm,),
        in_specs=[pl.BlockSpec((tm, k), lambda i: (i, 0))] * 4 + [
            pl.BlockSpec((k, hdim), lambda i: (0, 0)),
            pl.BlockSpec((1, hdim), lambda i: (0, 0)),
            pl.BlockSpec((hdim, n), lambda i: (0, 0)),
            pl.BlockSpec((1, n), lambda i: (0, 0)),
        ],
        out_specs=pl.BlockSpec((tm, n), lambda i: (i, 0)),
        compiler_params=pltpu.CompilerParams(
            dimension_semantics=("parallel",),
            vmem_limit_bytes=_VMEM_LIMIT_BYTES),
    )(*cands, w1, b1, w2, b2)
    return out[:m]


# ---------------------------------------------------------------------------
# Plain-JAX glue (layout only): im2col for conv1 (Cin=1, K=25 — tiny)
# ---------------------------------------------------------------------------

def _im2col_conv1(x_nhwc):
    """(B,28,28,1) -> (B,28,28,25); patch channel order (kh, kw, cin)."""
    b, h, w, _ = x_nhwc.shape
    xp = jnp.pad(x_nhwc, ((0, 0), (2, 2), (2, 2), (0, 0)))
    cols = [xp[:, dh:dh + h, dw:dw + w, :] for dh in range(5) for dw in range(5)]
    return jnp.concatenate(cols, axis=-1)


@jax.jit
def cnn_forward(x_nchw, params):
    bsz = x_nchw.shape[0]
    x = jnp.transpose(x_nchw, (0, 2, 3, 1)).astype(jnp.float32)       # NCHW -> NHWC

    # conv1 + ReLU + pool, fully fused (4 pool-candidate matmuls + elementwise max).
    p = _im2col_conv1(x).reshape(bsz, 14, 2, 14, 2, 25)
    cands1 = [p[:, :, i, :, j, :].reshape(bsz * 196, 25).astype(jnp.bfloat16)
              for i in (0, 1) for j in (0, 1)]
    y1 = conv1_relu_pool(cands1, params["w1"], params["b1"])          # (B*196, 32)
    y1 = y1.reshape(bsz, 14, 14, 32)

    # conv2 + ReLU, im2col-free shift-accumulate kernel.
    y2 = conv2_relu(y1, params["w2"], params["b2"])                   # (B,14,14,64)

    # 2x2 pool fused into the MLP kernel: 4 candidates as lane-dense (B,3136) slabs
    # in HWC flatten order, which is exactly the linear1 input layout.
    cands2 = [y2[:, i::2, j::2, :].reshape(bsz, 7 * 7 * 64)
              for i in (0, 1) for j in (0, 1)]
    logits = pool_mlp(cands2, params["wl1"], params["bl1"],
                      params["wl2"], params["bl2"])                   # (B, 128)
    return logits[:, :10]                                             # drop lane padding


# ---------------------------------------------------------------------------
# Deterministic parameters (torch conventions) + conversion to kernel layout
# ---------------------------------------------------------------------------

def make_params():
    ks = jax.random.split(jax.random.PRNGKey(42), 8)
    w1_t = jax.random.normal(ks[0], (32, 1, 5, 5), jnp.float32) / 5.0            # OIHW
    b1 = jax.random.normal(ks[1], (32,), jnp.float32) * 0.1
    w2_t = jax.random.normal(ks[2], (64, 32, 5, 5), jnp.float32) / jnp.sqrt(800.0)
    b2 = jax.random.normal(ks[3], (64,), jnp.float32) * 0.1
    wl1_t = jax.random.normal(ks[4], (256, 3136), jnp.float32) / jnp.sqrt(3136.0)  # (out,in)
    bl1 = jax.random.normal(ks[5], (256,), jnp.float32) * 0.1
    wl2_t = jax.random.normal(ks[6], (10, 256), jnp.float32) / 16.0
    bl2 = jax.random.normal(ks[7], (10,), jnp.float32) * 0.1

    torch_params = dict(w1_t=w1_t, b1=b1, w2_t=w2_t, b2=b2,
                        wl1_t=wl1_t, bl1=bl1, wl2_t=wl2_t, bl2=bl2)

    # linear2 padded to 128 output lanes (zeros) for unmasked stores; sliced to 10 outside.
    wl2_pad = jnp.zeros((256, 128), jnp.float32).at[:, :10].set(wl2_t.T)
    bl2_pad = jnp.zeros((1, 128), jnp.float32).at[:, :10].set(bl2[None, :])

    kernel_params = dict(
        # conv weights: OIHW -> (kh,kw,in,out) -> (kh*kw*in, out); bf16 MXU operands.
        w1=jnp.transpose(w1_t, (2, 3, 1, 0)).reshape(25, 32).astype(jnp.bfloat16),
        b1=b1.reshape(1, 32),
        w2=jnp.transpose(w2_t, (2, 3, 1, 0)).reshape(25 * 32, 64).astype(jnp.bfloat16),
        b2=b2.reshape(1, 64),
        # linear1: torch flattens NCHW (c,h,w); activations flatten HWC -> permute weight.
        wl1=wl1_t.reshape(256, 64, 7, 7).transpose(2, 3, 1, 0).reshape(3136, 256)
            .astype(jnp.bfloat16),
        bl1=bl1.reshape(1, 256),
        wl2=wl2_pad.astype(jnp.bfloat16),
        bl2=bl2_pad,
    )
    return torch_params, kernel_params


# ---------------------------------------------------------------------------
# Pure-JAX reference with exact torch semantics (f32, NCHW conv, CHW flatten)
# ---------------------------------------------------------------------------

def _pool_nchw(y):
    bsz, c, h, w = y.shape
    return y.reshape(bsz, c, h // 2, 2, w // 2, 2).max(axis=(3, 5))


def torch_reference(x_nchw, tp):
    dn = ("NCHW", "OIHW", "NCHW")
    y = lax.conv_general_dilated(x_nchw, tp["w1_t"], (1, 1),
                                 ((2, 2), (2, 2)), dimension_numbers=dn)
    y = jnp.maximum(y + tp["b1"][None, :, None, None], 0.0)
    y = _pool_nchw(y)
    y = lax.conv_general_dilated(y, tp["w2_t"], (1, 1),
                                 ((2, 2), (2, 2)), dimension_numbers=dn)
    y = jnp.maximum(y + tp["b2"][None, :, None, None], 0.0)
    y = _pool_nchw(y)
    flat = y.reshape(y.shape[0], 64 * 7 * 7)
    h = flat @ tp["wl1_t"].T + tp["bl1"]
    # dropout: identity (eval semantics)
    return h @ tp["wl2_t"].T + tp["bl2"]


if __name__ == "__main__":
    torch_params, kernel_params = make_params()

    # MNIST-shaped input (B, 1, 28, 28) so the 7*7*64 flatten in the module is valid.
    x = jax.random.normal(jax.random.PRNGKey(0), (2, 1, 28, 28), jnp.float32)

    out = jax.block_until_ready(cnn_forward(x, kernel_params))
    ref = jax.block_until_ready(torch_reference(x, torch_params))

    assert out.shape == (2, 10), out.shape
    assert bool(jnp.all(jnp.isfinite(out)))
    # bf16 MXU operands (per perf guidance) vs. a pure-f32 reference: allow
    # bf16-level error accumulated across the 4 matmul layers.
    assert jnp.allclose(out, ref, rtol=5e-2, atol=5e-2), (
        f"max abs diff {jnp.max(jnp.abs(out - ref))}")
    print("KERNEL_OK")
</pallas_src>

<mosaic_0001>
module attributes {stable_mosaic.version = 11 : i64} {
  func.func @_conv1_relu_pool_kernel(%arg0: i32, %arg1: memref<392x25xbf16, #tpu.memory_space<vmem>>, %arg2: memref<392x25xbf16, #tpu.memory_space<vmem>>, %arg3: memref<392x25xbf16, #tpu.memory_space<vmem>>, %arg4: memref<392x25xbf16, #tpu.memory_space<vmem>>, %arg5: memref<25x32xbf16, #tpu.memory_space<vmem>>, %arg6: memref<1x32xf32, #tpu.memory_space<vmem>>, %arg7: memref<392x32xf32, #tpu.memory_space<vmem>>) attributes {dimension_semantics = [#tpu.dimension_semantics<parallel>], iteration_bounds = array<i64: 1>, scalar_prefetch = 0 : i64, scratch_operands = 0 : i64, tpu.core_type = #tpu.core_type<tc>, window_params = [{transform_indices = @transform_0, window_bounds = array<i64: 392, 25>}, {transform_indices = @transform_1, window_bounds = array<i64: 392, 25>}, {transform_indices = @transform_2, window_bounds = array<i64: 392, 25>}, {transform_indices = @transform_3, window_bounds = array<i64: 392, 25>}, {pipeline_mode = #tpu.pipeline_mode<synchronous>, transform_indices = @transform_4, window_bounds = array<i64: 25, 32>}, {pipeline_mode = #tpu.pipeline_mode<synchronous>, transform_indices = @transform_5, window_bounds = array<i64: 1, 32>}, {transform_indices = @transform_6, window_bounds = array<i64: 392, 32>}]} {
    %c0 = arith.constant 0 : index
    %c0_0 = arith.constant 0 : index
    %0 = vector.load %arg5[%c0, %c0_0] : memref<25x32xbf16, #tpu.memory_space<vmem>>, vector<25x32xbf16>
    %c0_1 = arith.constant 0 : index
    %c0_2 = arith.constant 0 : index
    %1 = vector.load %arg6[%c0_1, %c0_2] : memref<1x32xf32, #tpu.memory_space<vmem>>, vector<1x32xf32>
    %c0_3 = arith.constant 0 : index
    %c0_4 = arith.constant 0 : index
    %2 = vector.load %arg1[%c0_3, %c0_4] : memref<392x25xbf16, #tpu.memory_space<vmem>>, vector<392x25xbf16>
    %cst = arith.constant dense<0.000000e+00> : vector<392x32xf32>
    %3 = tpu.matmul %2, %0, %cst {dimension_numbers = #tpu.dot_dimension_numbers<[1], [0], [0], [1], [0, 0, 1, 1], [], []>} : vector<392x25xbf16>, vector<25x32xbf16>, vector<392x32xf32> -> vector<392x32xf32>
    %4 = vector.broadcast %1 : vector<1x32xf32> to vector<392x32xf32>
    %5 = arith.addf %3, %4 : vector<392x32xf32>
    %cst_5 = arith.constant 0.000000e+00 : f32
    %6 = vector.broadcast %cst_5 : f32 to vector<392x32xf32>
    %7 = arith.maximumf %5, %6 : vector<392x32xf32>
    %c0_6 = arith.constant 0 : index
    %c0_7 = arith.constant 0 : index
    %8 = vector.load %arg2[%c0_6, %c0_7] : memref<392x25xbf16, #tpu.memory_space<vmem>>, vector<392x25xbf16>
    %cst_8 = arith.constant dense<0.000000e+00> : vector<392x32xf32>
    %9 = tpu.matmul %8, %0, %cst_8 {dimension_numbers = #tpu.dot_dimension_numbers<[1], [0], [0], [1], [0, 0, 1, 1], [], []>} : vector<392x25xbf16>, vector<25x32xbf16>, vector<392x32xf32> -> vector<392x32xf32>
    %10 = vector.broadcast %1 : vector<1x32xf32> to vector<392x32xf32>
    %11 = arith.addf %9, %10 : vector<392x32xf32>
    %cst_9 = arith.constant 0.000000e+00 : f32
    %12 = vector.broadcast %cst_9 : f32 to vector<392x32xf32>
    %13 = arith.maximumf %11, %12 : vector<392x32xf32>
    %14 = arith.maximumf %7, %13 : vector<392x32xf32>
    %c0_10 = arith.constant 0 : index
    %c0_11 = arith.constant 0 : index
    %15 = vector.load %arg3[%c0_10, %c0_11] : memref<392x25xbf16, #tpu.memory_space<vmem>>, vector<392x25xbf16>
    %cst_12 = arith.constant dense<0.000000e+00> : vector<392x32xf32>
    %16 = tpu.matmul %15, %0, %cst_12 {dimension_numbers = #tpu.dot_dimension_numbers<[1], [0], [0], [1], [0, 0, 1, 1], [], []>} : vector<392x25xbf16>, vector<25x32xbf16>, vector<392x32xf32> -> vector<392x32xf32>
    %17 = vector.broadcast %1 : vector<1x32xf32> to vector<392x32xf32>
    %18 = arith.addf %16, %17 : vector<392x32xf32>
    %cst_13 = arith.constant 0.000000e+00 : f32
    %19 = vector.broadcast %cst_13 : f32 to vector<392x32xf32>
    %20 = arith.maximumf %18, %19 : vector<392x32xf32>
    %c0_14 = arith.constant 0 : index
    %c0_15 = arith.constant 0 : index
    %21 = vector.load %arg4[%c0_14, %c0_15] : memref<392x25xbf16, #tpu.memory_space<vmem>>, vector<392x25xbf16>
    %cst_16 = arith.constant dense<0.000000e+00> : vector<392x32xf32>
    %22 = tpu.matmul %21, %0, %cst_16 {dimension_numbers = #tpu.dot_dimension_numbers<[1], [0], [0], [1], [0, 0, 1, 1], [], []>} : vector<392x25xbf16>, vector<25x32xbf16>, vector<392x32xf32> -> vector<392x32xf32>
    %23 = vector.broadcast %1 : vector<1x32xf32> to vector<392x32xf32>
    %24 = arith.addf %22, %23 : vector<392x32xf32>
    %cst_17 = arith.constant 0.000000e+00 : f32
    %25 = vector.broadcast %cst_17 : f32 to vector<392x32xf32>
    %26 = arith.maximumf %24, %25 : vector<392x32xf32>
    %27 = arith.maximumf %20, %26 : vector<392x32xf32>
    %28 = arith.maximumf %14, %27 : vector<392x32xf32>
    %c0_18 = arith.constant 0 : index
    %c0_19 = arith.constant 0 : index
    %29 = vector.load %arg7[%c0_18, %c0_19] : memref<392x32xf32, #tpu.memory_space<vmem>>, vector<392x32xf32>
    tpu.vector_store %arg7[%c0_18, %c0_19], %28 {strides = array<i32>} : memref<392x32xf32, #tpu.memory_space<vmem>>, vector<392x32xf32>,
    return
  }
  func.func @transform_0(%arg0: i32) -> (i32, i32) {
    %c0_i32 = arith.constant 0 : i32
    %c0_i32_0 = arith.constant 0 : i32
    return %arg0, %c0_i32 : i32, i32
  }
  func.func @transform_1(%arg0: i32) -> (i32, i32) {
    %c0_i32 = arith.constant 0 : i32
    %c0_i32_0 = arith.constant 0 : i32
    return %arg0, %c0_i32 : i32, i32
  }
  func.func @transform_2(%arg0: i32) -> (i32, i32) {
    %c0_i32 = arith.constant 0 : i32
    %c0_i32_0 = arith.constant 0 : i32
    return %arg0, %c0_i32 : i32, i32
  }
  func.func @transform_3(%arg0: i32) -> (i32, i32) {
    %c0_i32 = arith.constant 0 : i32
    %c0_i32_0 = arith.constant 0 : i32
    return %arg0, %c0_i32 : i32, i32
  }
  func.func @transform_4(%arg0: i32) -> (i32, i32) {
    %c0_i32 = arith.constant 0 : i32
    %c0_i32_0 = arith.constant 0 : i32
    %c0_i32_1 = arith.constant 0 : i32
    return %c0_i32, %c0_i32_0 : i32, i32
  }
  func.func @transform_5(%arg0: i32) -> (i32, i32) {
    %c0_i32 = arith.constant 0 : i32
    %c0_i32_0 = arith.constant 0 : i32
    %c0_i32_1 = arith.constant 0 : i32
    return %c0_i32, %c0_i32_0 : i32, i32
  }
  func.func @transform_6(%arg0: i32) -> (i32, i32) {
    %c0_i32 = arith.constant 0 : i32
    %c0_i32_0 = arith.constant 0 : i32
    return %arg0, %c0_i32 : i32, i32
  }
}

module attributes {stable_mosaic.version = 11 : i64} {
  func.func @_conv2_relu_kernel(%arg0: i32, %arg1: memref<344x32xf32, #tpu.memory_space<vmem>>, %arg2: memref<800x64xbf16, #tpu.memory_space<vmem>>, %arg3: memref<1x64xf32, #tpu.memory_space<vmem>>, %arg4: memref<256x64xf32, #tpu.memory_space<vmem>>) attributes {dimension_semantics = [#tpu.dimension_semantics<parallel>], iteration_bounds = array<i64: 2>, scalar_prefetch = 0 : i64, scratch_operands = 0 : i64, tpu.core_type = #tpu.core_type<tc>, window_params = [{transform_indices = @transform_0, window_bounds = array<i64: 344, 32>}, {pipeline_mode = #tpu.pipeline_mode<synchronous>, transform_indices = @transform_1, window_bounds = array<i64: 800, 64>}, {pipeline_mode = #tpu.pipeline_mode<synchronous>, transform_indices = @transform_2, window_bounds = array<i64: 1, 64>}, {transform_indices = @transform_3, window_bounds = array<i64: 256, 64>}]} {
    %c0 = arith.constant 0 : index
    %c0_0 = arith.constant 0 : index
    %0 = vector.load %arg1[%c0, %c0_0] : memref<344x32xf32, #tpu.memory_space<vmem>>, vector<344x32xf32>
    %c0_1 = arith.constant 0 : index
    %c0_2 = arith.constant 0 : index
    %1 = vector.load %arg2[%c0_1, %c0_2] : memref<800x64xbf16, #tpu.memory_space<vmem>>, vector<800x64xbf16>
    %cst = arith.constant 0.000000e+00 : f32
    %2 = vector.broadcast %cst : f32 to vector<256x64xf32>
    %3 = vector.extract_strided_slice %0 {offsets = [0, 0], sizes = [256, 32], strides = [1, 1]} : vector<344x32xf32> to vector<256x32xf32>
    %4 = arith.truncf %3 : vector<256x32xf32> to vector<256x32xbf16>
    %5 = vector.extract_strided_slice %1 {offsets = [0, 0], sizes = [32, 64], strides = [1, 1]} : vector<800x64xbf16> to vector<32x64xbf16>
    %cst_3 = arith.constant dense<0.000000e+00> : vector<256x64xf32>
    %6 = tpu.matmul %4, %5, %cst_3 {dimension_numbers = #tpu.dot_dimension_numbers<[1], [0], [0], [1], [0, 0, 1, 1], [], []>} : vector<256x32xbf16>, vector<32x64xbf16>, vector<256x64xf32> -> vector<256x64xf32>
    %7 = arith.addf %2, %6 : vector<256x64xf32>
    %8 = vector.extract_strided_slice %0 {offsets = [1, 0], sizes = [256, 32], strides = [1, 1]} : vector<344x32xf32> to vector<256x32xf32>
    %9 = arith.truncf %8 : vector<256x32xf32> to vector<256x32xbf16>
    %10 = vector.extract_strided_slice %1 {offsets = [32, 0], sizes = [32, 64], strides = [1, 1]} : vector<800x64xbf16> to vector<32x64xbf16>
    %cst_4 = arith.constant dense<0.000000e+00> : vector<256x64xf32>
    %11 = tpu.matmul %9, %10, %cst_4 {dimension_numbers = #tpu.dot_dimension_numbers<[1], [0], [0], [1], [0, 0, 1, 1], [], []>} : vector<256x32xbf16>, vector<32x64xbf16>, vector<256x64xf32> -> vector<256x64xf32>
    %12 = arith.addf %7, %11 : vector<256x64xf32>
    %13 = vector.extract_strided_slice %0 {offsets = [2, 0], sizes = [256, 32], strides = [1, 1]} : vector<344x32xf32> to vector<256x32xf32>
    %14 = arith.truncf %13 : vector<256x32xf32> to vector<256x32xbf16>
    %15 = vector.extract_strided_slice %1 {offsets = [64, 0], sizes = [32, 64], strides = [1, 1]} : vector<800x64xbf16> to vector<32x64xbf16>
    %cst_5 = arith.constant dense<0.000000e+00> : vector<256x64xf32>
    %16 = tpu.matmul %14, %15, %cst_5 {dimension_numbers = #tpu.dot_dimension_numbers<[1], [0], [0], [1], [0, 0, 1, 1], [], []>} : vector<256x32xbf16>, vector<32x64xbf16>, vector<256x64xf32> -> vector<256x64xf32>
    %17 = arith.addf %12, %16 : vector<256x64xf32>
    %18 = vector.extract_strided_slice %0 {offsets = [3, 0], sizes = [256, 32], strides = [1, 1]} : vector<344x32xf32> to vector<256x32xf32>
    %19 = arith.truncf %18 : vector<256x32xf32> to vector<256x32xbf16>
    %20 = vector.extract_strided_slice %1 {offsets = [96, 0], sizes = [32, 64], strides = [1, 1]} : vector<800x64xbf16> to vector<32x64xbf16>
    %cst_6 = arith.constant dense<0.000000e+00> : vector<256x64xf32>
    %21 = tpu.matmul %19, %20, %cst_6 {dimension_numbers = #tpu.dot_dimension_numbers<[1], [0], [0], [1], [0, 0, 1, 1], [], []>} : vector<256x32xbf16>, vector<32x64xbf16>, vector<256x64xf32> -> vector<256x64xf32>
    %22 = arith.addf %17, %21 : vector<256x64xf32>
    %23 = vector.extract_strided_slice %0 {offsets = [4, 0], sizes = [256, 32], strides = [1, 1]} : vector<344x32xf32> to vector<256x32xf32>
    %24 = arith.truncf %23 : vector<256x32xf32> to vector<256x32xbf16>
    %25 = vector.extract_strided_slice %1 {offsets = [128, 0], sizes = [32, 64], strides = [1, 1]} : vector<800x64xbf16> to vector<32x64xbf16>
    %cst_7 = arith.constant dense<0.000000e+00> : vector<256x64xf32>
    %26 = tpu.matmul %24, %25, %cst_7 {dimension_numbers = #tpu.dot_dimension_numbers<[1], [0], [0], [1], [0, 0, 1, 1], [], []>} : vector<256x32xbf16>, vector<32x64xbf16>, vector<256x64xf32> -> vector<256x64xf32>
    %27 = arith.addf %22, %26 : vector<256x64xf32>
    %28 = vector.extract_strided_slice %0 {offsets = [18, 0], sizes = [256, 32], strides = [1, 1]} : vector<344x32xf32> to vector<256x32xf32>
    %29 = arith.truncf %28 : vector<256x32xf32> to vector<256x32xbf16>
    %30 = vector.extract_strided_slice %1 {offsets = [160, 0], sizes = [32, 64], strides = [1, 1]} : vector<800x64xbf16> to vector<32x64xbf16>
    %cst_8 = arith.constant dense<0.000000e+00> : vector<256x64xf32>
    %31 = tpu.matmul %29, %30, %cst_8 {dimension_numbers = #tpu.dot_dimension_numbers<[1], [0], [0], [1], [0, 0, 1, 1], [], []>} : vector<256x32xbf16>, vector<32x64xbf16>, vector<256x64xf32> -> vector<256x64xf32>
    %32 = arith.addf %27, %31 : vector<256x64xf32>
    %33 = vector.extract_strided_slice %0 {offsets = [19, 0], sizes = [256, 32], strides = [1, 1]} : vector<344x32xf32> to vector<256x32xf32>
    %34 = arith.truncf %33 : vector<256x32xf32> to vector<256x32xbf16>
    %35 = vector.extract_strided_slice %1 {offsets = [192, 0], sizes = [32, 64], strides = [1, 1]} : vector<800x64xbf16> to vector<32x64xbf16>
    %cst_9 = arith.constant dense<0.000000e+00> : vector<256x64xf32>
    %36 = tpu.matmul %34, %35, %cst_9 {dimension_numbers = #tpu.dot_dimension_numbers<[1], [0], [0], [1], [0, 0, 1, 1], [], []>} : vector<256x32xbf16>, vector<32x64xbf16>, vector<256x64xf32> -> vector<256x64xf32>
    %37 = arith.addf %32, %36 : vector<256x64xf32>
    %38 = vector.extract_strided_slice %0 {offsets = [20, 0], sizes = [256, 32], strides = [1, 1]} : vector<344x32xf32> to vector<256x32xf32>
    %39 = arith.truncf %38 : vector<256x32xf32> to vector<256x32xbf16>
    %40 = vector.extract_strided_slice %1 {offsets = [224, 0], sizes = [32, 64], strides = [1, 1]} : vector<800x64xbf16> to vector<32x64xbf16>
    %cst_10 = arith.constant dense<0.000000e+00> : vector<256x64xf32>
    %41 = tpu.matmul %39, %40, %cst_10 {dimension_numbers = #tpu.dot_dimension_numbers<[1], [0], [0], [1], [0, 0, 1, 1], [], []>} : vector<256x32xbf16>, vector<32x64xbf16>, vector<256x64xf32> -> vector<256x64xf32>
    %42 = arith.addf %37, %41 : vector<256x64xf32>
    %43 = vector.extract_strided_slice %0 {offsets = [21, 0], sizes = [256, 32], strides = [1, 1]} : vector<344x32xf32> to vector<256x32xf32>
    %44 = arith.truncf %43 : vector<256x32xf32> to vector<256x32xbf16>
    %45 = vector.extract_strided_slice %1 {offsets = [256, 0], sizes = [32, 64], strides = [1, 1]} : vector<800x64xbf16> to vector<32x64xbf16>
    %cst_11 = arith.constant dense<0.000000e+00> : vector<256x64xf32>
    %46 = tpu.matmul %44, %45, %cst_11 {dimension_numbers = #tpu.dot_dimension_numbers<[1], [0], [0], [1], [0, 0, 1, 1], [], []>} : vector<256x32xbf16>, vector<32x64xbf16>, vector<256x64xf32> -> vector<256x64xf32>
    %47 = arith.addf %42, %46 : vector<256x64xf32>
    %48 = vector.extract_strided_slice %0 {offsets = [22, 0], sizes = [256, 32], strides = [1, 1]} : vector<344x32xf32> to vector<256x32xf32>
    %49 = arith.truncf %48 : vector<256x32xf32> to vector<256x32xbf16>
    %50 = vector.extract_strided_slice %1 {offsets = [288, 0], sizes = [32, 64], strides = [1, 1]} : vector<800x64xbf16> to vector<32x64xbf16>
    %cst_12 = arith.constant dense<0.000000e+00> : vector<256x64xf32>
    %51 = tpu.matmul %49, %50, %cst_12 {dimension_numbers = #tpu.dot_dimension_numbers<[1], [0], [0], [1], [0, 0, 1, 1], [], []>} : vector<256x32xbf16>, vector<32x64xbf16>, vector<256x64xf32> -> vector<256x64xf32>
    %52 = arith.addf %47, %51 : vector<256x64xf32>
    %53 = vector.extract_strided_slice %0 {offsets = [36, 0], sizes = [256, 32], strides = [1, 1]} : vector<344x32xf32> to vector<256x32xf32>
    %54 = arith.truncf %53 : vector<256x32xf32> to vector<256x32xbf16>
    %55 = vector.extract_strided_slice %1 {offsets = [320, 0], sizes = [32, 64], strides = [1, 1]} : vector<800x64xbf16> to vector<32x64xbf16>
    %cst_13 = arith.constant dense<0.000000e+00> : vector<256x64xf32>
    %56 = tpu.matmul %54, %55, %cst_13 {dimension_numbers = #tpu.dot_dimension_numbers<[1], [0], [0], [1], [0, 0, 1, 1], [], []>} : vector<256x32xbf16>, vector<32x64xbf16>, vector<256x64xf32> -> vector<256x64xf32>
    %57 = arith.addf %52, %56 : vector<256x64xf32>
    %58 = vector.extract_strided_slice %0 {offsets = [37, 0], sizes = [256, 32], strides = [1, 1]} : vector<344x32xf32> to vector<256x32xf32>
    %59 = arith.truncf %58 : vector<256x32xf32> to vector<256x32xbf16>
    %60 = vector.extract_strided_slice %1 {offsets = [352, 0], sizes = [32, 64], strides = [1, 1]} : vector<800x64xbf16> to vector<32x64xbf16>
    %cst_14 = arith.constant dense<0.000000e+00> : vector<256x64xf32>
    %61 = tpu.matmul %59, %60, %cst_14 {dimension_numbers = #tpu.dot_dimension_numbers<[1], [0], [0], [1], [0, 0, 1, 1], [], []>} : vector<256x32xbf16>, vector<32x64xbf16>, vector<256x64xf32> -> vector<256x64xf32>
    %62 = arith.addf %57, %61 : vector<256x64xf32>
    %63 = vector.extract_strided_slice %0 {offsets = [38, 0], sizes = [256, 32], strides = [1, 1]} : vector<344x32xf32> to vector<256x32xf32>
    %64 = arith.truncf %63 : vector<256x32xf32> to vector<256x32xbf16>
    %65 = vector.extract_strided_slice %1 {offsets = [384, 0], sizes = [32, 64], strides = [1, 1]} : vector<800x64xbf16> to vector<32x64xbf16>
    %cst_15 = arith.constant dense<0.000000e+00> : vector<256x64xf32>
    %66 = tpu.matmul %64, %65, %cst_15 {dimension_numbers = #tpu.dot_dimension_numbers<[1], [0], [0], [1], [0, 0, 1, 1], [], []>} : vector<256x32xbf16>, vector<32x64xbf16>, vector<256x64xf32> -> vector<256x64xf32>
    %67 = arith.addf %62, %66 : vector<256x64xf32>
    %68 = vector.extract_strided_slice %0 {offsets = [39, 0], sizes = [256, 32], strides = [1, 1]} : vector<344x32xf32> to vector<256x32xf32>
    %69 = arith.truncf %68 : vector<256x32xf32> to vector<256x32xbf16>
    %70 = vector.extract_strided_slice %1 {offsets = [416, 0], sizes = [32, 64], strides = [1, 1]} : vector<800x64xbf16> to vector<32x64xbf16>
    %cst_16 = arith.constant dense<0.000000e+00> : vector<256x64xf32>
    %71 = tpu.matmul %69, %70, %cst_16 {dimension_numbers = #tpu.dot_dimension_numbers<[1], [0], [0], [1], [0, 0, 1, 1], [], []>} : vector<256x32xbf16>, vector<32x64xbf16>, vector<256x64xf32> -> vector<256x64xf32>
    %72 = arith.addf %67, %71 : vector<256x64xf32>
    %73 = vector.extract_strided_slice %0 {offsets = [40, 0], sizes = [256, 32], strides = [1, 1]} : vector<344x32xf32> to vector<256x32xf32>
    %74 = arith.truncf %73 : vector<256x32xf32> to vector<256x32xbf16>
    %75 = vector.extract_strided_slice %1 {offsets = [448, 0], sizes = [32, 64], strides = [1, 1]} : vector<800x64xbf16> to vector<32x64xbf16>
    %cst_17 = arith.constant dense<0.000000e+00> : vector<256x64xf32>
    %76 = tpu.matmul %74, %75, %cst_17 {dimension_numbers = #tpu.dot_dimension_numbers<[1], [0], [0], [1], [0, 0, 1, 1], [], []>} : vector<256x32xbf16>, vector<32x64xbf16>, vector<256x64xf32> -> vector<256x64xf32>
    %77 = arith.addf %72, %76 : vector<256x64xf32>
    %78 = vector.extract_strided_slice %0 {offsets = [54, 0], sizes = [256, 32], strides = [1, 1]} : vector<344x32xf32> to vector<256x32xf32>
    %79 = arith.truncf %78 : vector<256x32xf32> to vector<256x32xbf16>
    %80 = vector.extract_strided_slice %1 {offsets = [480, 0], sizes = [32, 64], strides = [1, 1]} : vector<800x64xbf16> to vector<32x64xbf16>
    %cst_18 = arith.constant dense<0.000000e+00> : vector<256x64xf32>
    %81 = tpu.matmul %79, %80, %cst_18 {dimension_numbers = #tpu.dot_dimension_numbers<[1], [0], [0], [1], [0, 0, 1, 1], [], []>} : vector<256x32xbf16>, vector<32x64xbf16>, vector<256x64xf32> -> vector<256x64xf32>
    %82 = arith.addf %77, %81 : vector<256x64xf32>
    %83 = vector.extract_strided_slice %0 {offsets = [55, 0], sizes = [256, 32], strides = [1, 1]} : vector<344x32xf32> to vector<256x32xf32>
    %84 = arith.truncf %83 : vector<256x32xf32> to vector<256x32xbf16>
    %85 = vector.extract_strided_slice %1 {offsets = [512, 0], sizes = [32, 64], strides = [1, 1]} : vector<800x64xbf16> to vector<32x64xbf16>
    %cst_19 = arith.constant dense<0.000000e+00> : vector<256x64xf32>
    %86 = tpu.matmul %84, %85, %cst_19 {dimension_numbers = #tpu.dot_dimension_numbers<[1], [0], [0], [1], [0, 0, 1, 1], [], []>} : vector<256x32xbf16>, vector<32x64xbf16>, vector<256x64xf32> -> vector<256x64xf32>
    %87 = arith.addf %82, %86 : vector<256x64xf32>
    %88 = vector.extract_strided_slice %0 {offsets = [56, 0], sizes = [256, 32], strides = [1, 1]} : vector<344x32xf32> to vector<256x32xf32>
    %89 = arith.truncf %88 : vector<256x32xf32> to vector<256x32xbf16>
    %90 = vector.extract_strided_slice %1 {offsets = [544, 0], sizes = [32, 64], strides = [1, 1]} : vector<800x64xbf16> to vector<32x64xbf16>
    %cst_20 = arith.constant dense<0.000000e+00> : vector<256x64xf32>
    %91 = tpu.matmul %89, %90, %cst_20 {dimension_numbers = #tpu.dot_dimension_numbers<[1], [0], [0], [1], [0, 0, 1, 1], [], []>} : vector<256x32xbf16>, vector<32x64xbf16>, vector<256x64xf32> -> vector<256x64xf32>
    %92 = arith.addf %87, %91 : vector<256x64xf32>
    %93 = vector.extract_strided_slice %0 {offsets = [57, 0], sizes = [256, 32], strides = [1, 1]} : vector<344x32xf32> to vector<256x32xf32>
    %94 = arith.truncf %93 : vector<256x32xf32> to vector<256x32xbf16>
    %95 = vector.extract_strided_slice %1 {offsets = [576, 0], sizes = [32, 64], strides = [1, 1]} : vector<800x64xbf16> to vector<32x64xbf16>
    %cst_21 = arith.constant dense<0.000000e+00> : vector<256x64xf32>
    %96 = tpu.matmul %94, %95, %cst_21 {dimension_numbers = #tpu.dot_dimension_numbers<[1], [0], [0], [1], [0, 0, 1, 1], [], []>} : vector<256x32xbf16>, vector<32x64xbf16>, vector<256x64xf32> -> vector<256x64xf32>
    %97 = arith.addf %92, %96 : vector<256x64xf32>
    %98 = vector.extract_strided_slice %0 {offsets = [58, 0], sizes = [256, 32], strides = [1, 1]} : vector<344x32xf32> to vector<256x32xf32>
    %99 = arith.truncf %98 : vector<256x32xf32> to vector<256x32xbf16>
    %100 = vector.extract_strided_slice %1 {offsets = [608, 0], sizes = [32, 64], strides = [1, 1]} : vector<800x64xbf16> to vector<32x64xbf16>
    %cst_22 = arith.constant dense<0.000000e+00> : vector<256x64xf32>
    %101 = tpu.matmul %99, %100, %cst_22 {dimension_numbers = #tpu.dot_dimension_numbers<[1], [0], [0], [1], [0, 0, 1, 1], [], []>} : vector<256x32xbf16>, vector<32x64xbf16>, vector<256x64xf32> -> vector<256x64xf32>
    %102 = arith.addf %97, %101 : vector<256x64xf32>
    %103 = vector.extract_strided_slice %0 {offsets = [72, 0], sizes = [256, 32], strides = [1, 1]} : vector<344x32xf32> to vector<256x32xf32>
    %104 = arith.truncf %103 : vector<256x32xf32> to vector<256x32xbf16>
    %105 = vector.extract_strided_slice %1 {offsets = [640, 0], sizes = [32, 64], strides = [1, 1]} : vector<800x64xbf16> to vector<32x64xbf16>
    %cst_23 = arith.constant dense<0.000000e+00> : vector<256x64xf32>
    %106 = tpu.matmul %104, %105, %cst_23 {dimension_numbers = #tpu.dot_dimension_numbers<[1], [0], [0], [1], [0, 0, 1, 1], [], []>} : vector<256x32xbf16>, vector<32x64xbf16>, vector<256x64xf32> -> vector<256x64xf32>
    %107 = arith.addf %102, %106 : vector<256x64xf32>
    %108 = vector.extract_strided_slice %0 {offsets = [73, 0], sizes = [256, 32], strides = [1, 1]} : vector<344x32xf32> to vector<256x32xf32>
    %109 = arith.truncf %108 : vector<256x32xf32> to vector<256x32xbf16>
    %110 = vector.extract_strided_slice %1 {offsets = [672, 0], sizes = [32, 64], strides = [1, 1]} : vector<800x64xbf16> to vector<32x64xbf16>
    %cst_24 = arith.constant dense<0.000000e+00> : vector<256x64xf32>
    %111 = tpu.matmul %109, %110, %cst_24 {dimension_numbers = #tpu.dot_dimension_numbers<[1], [0], [0], [1], [0, 0, 1, 1], [], []>} : vector<256x32xbf16>, vector<32x64xbf16>, vector<256x64xf32> -> vector<256x64xf32>
    %112 = arith.addf %107, %111 : vector<256x64xf32>
    %113 = vector.extract_strided_slice %0 {offsets = [74, 0], sizes = [256, 32], strides = [1, 1]} : vector<344x32xf32> to vector<256x32xf32>
    %114 = arith.truncf %113 : vector<256x32xf32> to vector<256x32xbf16>
    %115 = vector.extract_strided_slice %1 {offsets = [704, 0], sizes = [32, 64], strides = [1, 1]} : vector<800x64xbf16> to vector<32x64xbf16>
    %cst_25 = arith.constant dense<0.000000e+00> : vector<256x64xf32>
    %116 = tpu.matmul %114, %115, %cst_25 {dimension_numbers = #tpu.dot_dimension_numbers<[1], [0], [0], [1], [0, 0, 1, 1], [], []>} : vector<256x32xbf16>, vector<32x64xbf16>, vector<256x64xf32> -> vector<256x64xf32>
    %117 = arith.addf %112, %116 : vector<256x64xf32>
    %118 = vector.extract_strided_slice %0 {offsets = [75, 0], sizes = [256, 32], strides = [1, 1]} : vector<344x32xf32> to vector<256x32xf32>
    %119 = arith.truncf %118 : vector<256x32xf32> to vector<256x32xbf16>
    %120 = vector.extract_strided_slice %1 {offsets = [736, 0], sizes = [32, 64], strides = [1, 1]} : vector<800x64xbf16> to vector<32x64xbf16>
    %cst_26 = arith.constant dense<0.000000e+00> : vector<256x64xf32>
    %121 = tpu.matmul %119, %120, %cst_26 {dimension_numbers = #tpu.dot_dimension_numbers<[1], [0], [0], [1], [0, 0, 1, 1], [], []>} : vector<256x32xbf16>, vector<32x64xbf16>, vector<256x64xf32> -> vector<256x64xf32>
    %122 = arith.addf %117, %121 : vector<256x64xf32>
    %123 = vector.extract_strided_slice %0 {offsets = [76, 0], sizes = [256, 32], strides = [1, 1]} : vector<344x32xf32> to vector<256x32xf32>
    %124 = arith.truncf %123 : vector<256x32xf32> to vector<256x32xbf16>
    %125 = vector.extract_strided_slice %1 {offsets = [768, 0], sizes = [32, 64], strides = [1, 1]} : vector<800x64xbf16> to vector<32x64xbf16>
    %cst_27 = arith.constant dense<0.000000e+00> : vector<256x64xf32>
    %126 = tpu.matmul %124, %125, %cst_27 {dimension_numbers = #tpu.dot_dimension_numbers<[1], [0], [0], [1], [0, 0, 1, 1], [], []>} : vector<256x32xbf16>, vector<32x64xbf16>, vector<256x64xf32> -> vector<256x64xf32>
    %127 = arith.addf %122, %126 : vector<256x64xf32>
    %c0_28 = arith.constant 0 : index
    %c0_29 = arith.constant 0 : index
    %128 = vector.load %arg3[%c0_28, %c0_29] : memref<1x64xf32, #tpu.memory_space<vmem>>, vector<1x64xf32>
    %129 = vector.broadcast %128 : vector<1x64xf32> to vector<256x64xf32>
    %130 = arith.addf %127, %129 : vector<256x64xf32>
    %cst_30 = arith.constant 0.000000e+00 : f32
    %131 = vector.broadcast %cst_30 : f32 to vector<256x64xf32>
    %132 = arith.maximumf %130, %131 : vector<256x64xf32>
    %c0_31 = arith.constant 0 : index
    %c0_32 = arith.constant 0 : index
    %133 = vector.load %arg4[%c0_31, %c0_32] : memref<256x64xf32, #tpu.memory_space<vmem>>, vector<256x64xf32>
    tpu.vector_store %arg4[%c0_31, %c0_32], %132 {strides = array<i32>} : memref<256x64xf32, #tpu.memory_space<vmem>>, vector<256x64xf32>,
    return
  }
  func.func @transform_0(%arg0: i32) -> (i32, i32) {
    %c0_i32 = arith.constant 0 : i32
    %c0_i32_0 = arith.constant 0 : i32
    return %arg0, %c0_i32 : i32, i32
  }
  func.func @transform_1(%arg0: i32) -> (i32, i32) {
    %c0_i32 = arith.constant 0 : i32
    %c0_i32_0 = arith.constant 0 : i32
    %c0_i32_1 = arith.constant 0 : i32
    return %c0_i32, %c0_i32_0 : i32, i32
  }
  func.func @transform_2(%arg0: i32) -> (i32, i32) {
    %c0_i32 = arith.constant 0 : i32
    %c0_i32_0 = arith.constant 0 : i32
    %c0_i32_1 = arith.constant 0 : i32
    return %c0_i32, %c0_i32_0 : i32, i32
  }
  func.func @transform_3(%arg0: i32) -> (i32, i32) {
    %c0_i32 = arith.constant 0 : i32
    %c0_i32_0 = arith.constant 0 : i32
    return %arg0, %c0_i32 : i32, i32
  }
}

module attributes {stable_mosaic.version = 11 : i64} {
  func.func @_pool_mlp_kernel(%arg0: i32, %arg1: memref<8x3136xf32, #tpu.memory_space<vmem>>, %arg2: memref<8x3136xf32, #tpu.memory_space<vmem>>, %arg3: memref<8x3136xf32, #tpu.memory_space<vmem>>, %arg4: memref<8x3136xf32, #tpu.memory_space<vmem>>, %arg5: memref<3136x256xbf16, #tpu.memory_space<vmem>>, %arg6: memref<1x256xf32, #tpu.memory_space<vmem>>, %arg7: memref<256x128xbf16, #tpu.memory_space<vmem>>, %arg8: memref<1x128xf32, #tpu.memory_space<vmem>>, %arg9: memref<8x128xf32, #tpu.memory_space<vmem>>) attributes {dimension_semantics = [#tpu.dimension_semantics<parallel>], iteration_bounds = array<i64: 1>, scalar_prefetch = 0 : i64, scratch_operands = 0 : i64, tpu.core_type = #tpu.core_type<tc>, window_params = [{transform_indices = @transform_0, window_bounds = array<i64: 8, 3136>}, {transform_indices = @transform_1, window_bounds = array<i64: 8, 3136>}, {transform_indices = @transform_2, window_bounds = array<i64: 8, 3136>}, {transform_indices = @transform_3, window_bounds = array<i64: 8, 3136>}, {pipeline_mode = #tpu.pipeline_mode<synchronous>, transform_indices = @transform_4, window_bounds = array<i64: 3136, 256>}, {pipeline_mode = #tpu.pipeline_mode<synchronous>, transform_indices = @transform_5, window_bounds = array<i64: 1, 256>}, {pipeline_mode = #tpu.pipeline_mode<synchronous>, transform_indices = @transform_6, window_bounds = array<i64: 256, 128>}, {pipeline_mode = #tpu.pipeline_mode<synchronous>, transform_indices = @transform_7, window_bounds = array<i64: 1, 128>}, {transform_indices = @transform_8, window_bounds = array<i64: 8, 128>}]} {
    %c0 = arith.constant 0 : index
    %c0_0 = arith.constant 0 : index
    %0 = vector.load %arg1[%c0, %c0_0] : memref<8x3136xf32, #tpu.memory_space<vmem>>, vector<8x3136xf32>
    %c0_1 = arith.constant 0 : index
    %c0_2 = arith.constant 0 : index
    %1 = vector.load %arg2[%c0_1, %c0_2] : memref<8x3136xf32, #tpu.memory_space<vmem>>, vector<8x3136xf32>
    %2 = arith.maximumf %0, %1 : vector<8x3136xf32>
    %c0_3 = arith.constant 0 : index
    %c0_4 = arith.constant 0 : index
    %3 = vector.load %arg3[%c0_3, %c0_4] : memref<8x3136xf32, #tpu.memory_space<vmem>>, vector<8x3136xf32>
    %c0_5 = arith.constant 0 : index
    %c0_6 = arith.constant 0 : index
    %4 = vector.load %arg4[%c0_5, %c0_6] : memref<8x3136xf32, #tpu.memory_space<vmem>>, vector<8x3136xf32>
    %5 = arith.maximumf %3, %4 : vector<8x3136xf32>
    %6 = arith.maximumf %2, %5 : vector<8x3136xf32>
    %7 = arith.truncf %6 : vector<8x3136xf32> to vector<8x3136xbf16>
    %c0_7 = arith.constant 0 : index
    %c0_8 = arith.constant 0 : index
    %8 = vector.load %arg5[%c0_7, %c0_8] : memref<3136x256xbf16, #tpu.memory_space<vmem>>, vector<3136x256xbf16>
    %cst = arith.constant dense<0.000000e+00> : vector<8x256xf32>
    %9 = tpu.matmul %7, %8, %cst {dimension_numbers = #tpu.dot_dimension_numbers<[1], [0], [0], [1], [0, 0, 1, 1], [], []>} : vector<8x3136xbf16>, vector<3136x256xbf16>, vector<8x256xf32> -> vector<8x256xf32>
    %c0_9 = arith.constant 0 : index
    %c0_10 = arith.constant 0 : index
    %10 = vector.load %arg6[%c0_9, %c0_10] : memref<1x256xf32, #tpu.memory_space<vmem>>, vector<1x256xf32>
    %11 = vector.broadcast %10 : vector<1x256xf32> to vector<8x256xf32>
    %12 = arith.addf %9, %11 : vector<8x256xf32>
    %13 = arith.truncf %12 : vector<8x256xf32> to vector<8x256xbf16>
    %c0_11 = arith.constant 0 : index
    %c0_12 = arith.constant 0 : index
    %14 = vector.load %arg7[%c0_11, %c0_12] : memref<256x128xbf16, #tpu.memory_space<vmem>>, vector<256x128xbf16>
    %cst_13 = arith.constant dense<0.000000e+00> : vector<8x128xf32>
    %15 = tpu.matmul %13, %14, %cst_13 {dimension_numbers = #tpu.dot_dimension_numbers<[1], [0], [0], [1], [0, 0, 1, 1], [], []>} : vector<8x256xbf16>, vector<256x128xbf16>, vector<8x128xf32> -> vector<8x128xf32>
    %c0_14 = arith.constant 0 : index
    %c0_15 = arith.constant 0 : index
    %16 = vector.load %arg8[%c0_14, %c0_15] : memref<1x128xf32, #tpu.memory_space<vmem>>, vector<1x128xf32>
    %17 = vector.broadcast %16 : vector<1x128xf32> to vector<8x128xf32>
    %18 = arith.addf %15, %17 : vector<8x128xf32>
    %c0_16 = arith.constant 0 : index
    %c0_17 = arith.constant 0 : index
    %19 = vector.load %arg9[%c0_16, %c0_17] : memref<8x128xf32, #tpu.memory_space<vmem>>, vector<8x128xf32>
    tpu.vector_store %arg9[%c0_16, %c0_17], %18 {strides = array<i32>} : memref<8x128xf32, #tpu.memory_space<vmem>>, vector<8x128xf32>,
    return
  }
  func.func @transform_0(%arg0: i32) -> (i32, i32) {
    %c0_i32 = arith.constant 0 : i32
    %c0_i32_0 = arith.constant 0 : i32
    return %arg0, %c0_i32 : i32, i32
  }
  func.func @transform_1(%arg0: i32) -> (i32, i32) {
    %c0_i32 = arith.constant 0 : i32
    %c0_i32_0 = arith.constant 0 : i32
    return %arg0, %c0_i32 : i32, i32
  }
  func.func @transform_2(%arg0: i32) -> (i32, i32) {
    %c0_i32 = arith.constant 0 : i32
    %c0_i32_0 = arith.constant 0 : i32
    return %arg0, %c0_i32 : i32, i32
  }
  func.func @transform_3(%arg0: i32) -> (i32, i32) {
    %c0_i32 = arith.constant 0 : i32
    %c0_i32_0 = arith.constant 0 : i32
    return %arg0, %c0_i32 : i32, i32
  }
  func.func @transform_4(%arg0: i32) -> (i32, i32) {
    %c0_i32 = arith.constant 0 : i32
    %c0_i32_0 = arith.constant 0 : i32
    %c0_i32_1 = arith.constant 0 : i32
    return %c0_i32, %c0_i32_0 : i32, i32
  }
  func.func @transform_5(%arg0: i32) -> (i32, i32) {
    %c0_i32 = arith.constant 0 : i32
    %c0_i32_0 = arith.constant 0 : i32
    %c0_i32_1 = arith.constant 0 : i32
    return %c0_i32, %c0_i32_0 : i32, i32
  }
  func.func @transform_6(%arg0: i32) -> (i32, i32) {
    %c0_i32 = arith.constant 0 : i32
    %c0_i32_0 = arith.constant 0 : i32
    %c0_i32_1 = arith.constant 0 : i32
    return %c0_i32, %c0_i32_0 : i32, i32
  }
  func.func @transform_7(%arg0: i32) -> (i32, i32) {
    %c0_i32 = arith.constant 0 : i32
    %c0_i32_0 = arith.constant 0 : i32
    %c0_i32_1 = arith.constant 0 : i32
    return %c0_i32, %c0_i32_0 : i32, i32
  }
  func.func @transform_8(%arg0: i32) -> (i32, i32) {
    %c0_i32 = arith.constant 0 : i32
    %c0_i32_0 = arith.constant 0 : i32
    return %arg0, %c0_i32 : i32, i32
  }
}

</mosaic_0001>

<llo_original>
// kernel: cnn_forward.3
$region0: #{cnn_forward.3}
  #allocation0 [shape = 'u32[]', space=smem, size = 0x4, offset = 0x4, fixed_abs, tag = 'smem constant byte address 0x4 - core index']
  #allocation1 [shape = 'u32[72,128]{1,0:T(1,128)}', space=vmem, size = 0x9000, scoped, tag = 'internal scratch']
  %s0 = inlined_call_operand.vmem [shape: bf16[392,25], index: 0, kind: input, shape index: {}]
  %s1 = inlined_call_operand.vmem [shape: bf16[392,25], index: 1, kind: input, shape index: {}]
  %s2 = inlined_call_operand.vmem [shape: bf16[392,25], index: 2, kind: input, shape index: {}]
  %s3 = inlined_call_operand.vmem [shape: bf16[392,25], index: 3, kind: input, shape index: {}]
  %s4 = inlined_call_operand.vmem [shape: bf16[25,32], index: 4, kind: input, shape index: {}]
  %s5 = inlined_call_operand.vmem [shape: f32[1,32], index: 5, kind: input, shape index: {}]
  %s6 = inlined_call_operand.vmem [shape: f32[392,32], index: 6, kind: output, shape index: {}]
  %s7 = sld [smem:[#allocation0]]
  $region34: #{cnn_forward.3} parent=0
    _
  %s9 = ssub.s32 1, %s7
  %s10 = scalar_select 0, %s9, %s7
  // Predicated region
  $region2: #{cnn_forward.3} parent=0 // pred_check
    _
  $region3: #{cnn_forward.3} parent=0 // pred_check_branch
    %12 = sbr.rel (0) target = $region5
  $region4: #{cnn_forward.3} parent=0 // pred_region
    _
  $region5: #{cnn_forward.3} parent=0 // pred_fallthru
    _
  // Predicated region
  $region6: #{cnn_forward.3} parent=0 // pred_check
    _
  $region7: #{cnn_forward.3} parent=0 // pred_check_branch
    %14 = sbr.rel (0) target = $region9
  $region8: #{cnn_forward.3} parent=0 // pred_region
    _
  $region9: #{cnn_forward.3} parent=0 // pred_fallthru
    _
  // Predicated region
  $region10: #{cnn_forward.3} parent=0 // pred_check
    _
  $region11: #{cnn_forward.3} parent=0 // pred_check_branch
    %16 = sbr.rel (0) target = $region13
  $region12: #{cnn_forward.3} parent=0 // pred_region
    _
  $region13: #{cnn_forward.3} parent=0 // pred_fallthru
    _
  // Predicated region
  $region14: #{cnn_forward.3} parent=0 // pred_check
    _
  $region15: #{cnn_forward.3} parent=0 // pred_check_branch
    %18 = sbr.rel (0) target = $region17
  $region16: #{cnn_forward.3} parent=0 // pred_region
    _
  $region17: #{cnn_forward.3} parent=0 // pred_fallthru
    _
  // Predicated region
  $region18: #{cnn_forward.3} parent=0 // pred_check
    _
  $region19: #{cnn_forward.3} parent=0 // pred_check_branch
    %20 = sbr.rel (0) target = $region21
  $region20: #{cnn_forward.3} parent=0 // pred_region
    _
  $region21: #{cnn_forward.3} parent=0 // pred_fallthru
    _
  // Predicated region
  $region22: #{cnn_forward.3} parent=0 // pred_check
    _
  $region23: #{cnn_forward.3} parent=0 // pred_check_branch
    %22 = sbr.rel (0) target = $region25
  $region24: #{cnn_forward.3} parent=0 // pred_region
    _
  $region25: #{cnn_forward.3} parent=0 // pred_fallthru
    _
  %v24 = vld [vmem:[%s4] sm:$0xf]
  %v25 = vld [vmem:[%s4 + $0x4] sm:$0xf]
  %v26 = vld [vmem:[%s4 + $0x8] sm:$0xf]
  %v27 = vld [vmem:[%s4 + $0xc] sm:$0x1]
  %v28 = vld [vmem:[%s5] sm:$0x1]
  %v29 = vld [vmem:[%s0] sm:$0xf]
  %v30 = vld [vmem:[%s0 + $0x4] sm:$0xf]
  %v31 = vld [vmem:[%s0 + $0x8] sm:$0xf]
  %v32 = vld [vmem:[%s0 + $0xc] sm:$0xf]
  %v33 = vld [vmem:[%s0 + $0x10] sm:$0xf]
  %v34 = vld [vmem:[%s0 + $0x14] sm:$0xf]
  %v35 = vld [vmem:[%s0 + $0x18] sm:$0xf]
  %v36 = vld [vmem:[%s0 + $0x1c] sm:$0xf]
  %v37 = vld [vmem:[%s0 + $0x20] sm:$0xf]
  %v38 = vld [vmem:[%s0 + $0x24] sm:$0xf]
  %v39 = vld [vmem:[%s0 + $0x28] sm:$0xf]
  %v40 = vld [vmem:[%s0 + $0x2c] sm:$0xf]
  %v41 = vld [vmem:[%s0 + $0x30] sm:$0xf]
  %v42 = vld [vmem:[%s0 + $0x34] sm:$0xf]
  %v43 = vld [vmem:[%s0 + $0x38] sm:$0xf]
  %v44 = vld [vmem:[%s0 + $0x3c] sm:$0xf]
  %v45 = vld [vmem:[%s0 + $0x40] sm:$0xf]
  %v46 = vld [vmem:[%s0 + $0x44] sm:$0xf]
  %v47 = vld [vmem:[%s0 + $0x48] sm:$0xf]
  %v48 = vld [vmem:[%s0 + $0x4c] sm:$0xf]
  %v49 = vld [vmem:[%s0 + $0x50] sm:$0xf]
  %v50 = vld [vmem:[%s0 + $0x54] sm:$0xf]
  %v51 = vld [vmem:[%s0 + $0x58] sm:$0xf]
  %v52 = vld [vmem:[%s0 + $0x5c] sm:$0xf]
  %v53 = vld [vmem:[%s0 + $0x60] sm:$0xf]
  %v54 = vld [vmem:[%s0 + $0x64] sm:$0xf]
  %v55 = vld [vmem:[%s0 + $0x68] sm:$0xf]
  %v56 = vld [vmem:[%s0 + $0x6c] sm:$0xf]
  %v57 = vld [vmem:[%s0 + $0x70] sm:$0xf]
  %v58 = vld [vmem:[%s0 + $0x74] sm:$0xf]
  %v59 = vld [vmem:[%s0 + $0x78] sm:$0xf]
  %v60 = vld [vmem:[%s0 + $0x7c] sm:$0xf]
  %v61 = vld [vmem:[%s0 + $0x80] sm:$0xf]
  %v62 = vld [vmem:[%s0 + $0x84] sm:$0xf]
  %v63 = vld [vmem:[%s0 + $0x88] sm:$0xf]
  %v64 = vld [vmem:[%s0 + $0x8c] sm:$0xf]
  %v65 = vld [vmem:[%s0 + $0x90] sm:$0xf]
  %v66 = vld [vmem:[%s0 + $0x94] sm:$0xf]
  %v67 = vld [vmem:[%s0 + $0x98] sm:$0xf]
  %v68 = vld [vmem:[%s0 + $0x9c] sm:$0xf]
  %v69 = vld [vmem:[%s0 + $0xa0] sm:$0xf]
  %v70 = vld [vmem:[%s0 + $0xa4] sm:$0xf]
  %v71 = vld [vmem:[%s0 + $0xa8] sm:$0xf]
  %v72 = vld [vmem:[%s0 + $0xac] sm:$0xf]
  %v73 = vld [vmem:[%s0 + $0xb0] sm:$0xf]
  %v74 = vld [vmem:[%s0 + $0xb4] sm:$0xf]
  %v75 = vld [vmem:[%s0 + $0xb8] sm:$0xf]
  %v76 = vld [vmem:[%s0 + $0xbc] sm:$0xf]
  %v77 = vld [vmem:[%s0 + $0xc0] sm:$0xf]
  %v79 = vperm.slane %v28, 0
  %v130 = vunpack.c.l.b16 %v29
  %v131 = vunpack.c.l.b16 %v30
  %v132 = vunpack.c.l.b16 %v31
  %v133 = vunpack.c.l.b16 %v32
  %v134 = vunpack.c.l.b16 %v33
  %v135 = vunpack.c.l.b16 %v34
  %v136 = vunpack.c.l.b16 %v35
  %v137 = vunpack.c.l.b16 %v36
  %v138 = vunpack.c.l.b16 %v37
  %v139 = vunpack.c.l.b16 %v38
  %v140 = vunpack.c.l.b16 %v39
  %v141 = vunpack.c.l.b16 %v40
  %v142 = vunpack.c.l.b16 %v41
  %v143 = vunpack.c.l.b16 %v42
  %v144 = vunpack.c.l.b16 %v43
  %v145 = vunpack.c.l.b16 %v44
  %v146 = vunpack.c.l.b16 %v45
  %v147 = vunpack.c.l.b16 %v46
  %v148 = vunpack.c.l.b16 %v47
  %v149 = vunpack.c.l.b16 %v48
  %v150 = vunpack.c.l.b16 %v49
  %v151 = vunpack.c.l.b16 %v50
  %v152 = vunpack.c.l.b16 %v51
  %v153 = vunpack.c.l.b16 %v52
  %v154 = vunpack.c.l.b16 %v53
  %v155 = vunpack.c.l.b16 %v54
  %v156 = vunpack.c.l.b16 %v55
  %v157 = vunpack.c.l.b16 %v56
  %v158 = vunpack.c.l.b16 %v57
  %v159 = vunpack.c.l.b16 %v58
  %v160 = vunpack.c.l.b16 %v59
  %v161 = vunpack.c.l.b16 %v60
  %v162 = vunpack.c.l.b16 %v61
  %v163 = vunpack.c.l.b16 %v62
  %v164 = vunpack.c.l.b16 %v63
  %v165 = vunpack.c.l.b16 %v64
  %v166 = vunpack.c.l.b16 %v65
  %v167 = vunpack.c.l.b16 %v66
  %v168 = vunpack.c.l.b16 %v67
  %v169 = vunpack.c.l.b16 %v68
  %v170 = vunpack.c.l.b16 %v69
  %v171 = vunpack.c.l.b16 %v70
  %v172 = vunpack.c.l.b16 %v71
  %v173 = vunpack.c.l.b16 %v72
  %v174 = vunpack.c.l.b16 %v73
  %v175 = vunpack.c.l.b16 %v74
  %v176 = vunpack.c.l.b16 %v75
  %v177 = vunpack.c.l.b16 %v76
  %v178 = vunpack.c.l.b16 %v77
  %v179 = vpack.c.b16 %v131, %v130
  %v180 = vpack.c.b16 %v133, %v132
  %v181 = vpack.c.b16 %v135, %v134
  %v182 = vpack.c.b16 %v137, %v136
  %v183 = vpack.c.b16 %v139, %v138
  %v184 = vpack.c.b16 %v141, %v140
  %v185 = vpack.c.b16 %v143, %v142
  %v186 = vpack.c.b16 %v145, %v144
  %v187 = vpack.c.b16 %v147, %v146
  %v188 = vpack.c.b16 %v149, %v148
  %v189 = vpack.c.b16 %v151, %v150
  %v190 = vpack.c.b16 %v153, %v152
  %v191 = vpack.c.b16 %v155, %v154
  %v192 = vpack.c.b16 %v157, %v156
  %v193 = vpack.c.b16 %v159, %v158
  %v194 = vpack.c.b16 %v161, %v160
  %v195 = vpack.c.b16 %v163, %v162
  %v196 = vpack.c.b16 %v165, %v164
  %v197 = vpack.c.b16 %v167, %v166
  %v198 = vpack.c.b16 %v169, %v168
  %v199 = vpack.c.b16 %v171, %v170
  %v200 = vpack.c.b16 %v173, %v172
  %v201 = vpack.c.b16 %v175, %v174
  %v202 = vpack.c.b16 %v177, %v176
  %v203 = vpack.c.b16 %v178, %v178
  %v208 = vunpack.c.l.b16 %v24
  %v209 = vunpack.c.l.b16 %v25
  %v210 = vunpack.c.l.b16 %v26
  %v211 = vunpack.c.l.b16 %v27
  %v212 = vpack.c.b16 %v209, %v208
  %v213 = vpack.c.b16 %v211, %v210
  %vm215 = vcmask 203776
  %v217 = vsel %vm215, %v179, 0
  %v220 = vsel %vm215, %v180, 0
  %v223 = vsel %vm215, %v181, 0
  %v226 = vsel %vm215, %v182, 0
  %v229 = vsel %vm215, %v183, 0
  %v232 = vsel %vm215, %v184, 0
  %v235 = vsel %vm215, %v185, 0
  %v238 = vsel %vm215, %v186, 0
  %v241 = vsel %vm215, %v187, 0
  %v244 = vsel %vm215, %v188, 0
  %v247 = vsel %vm215, %v189, 0
  %v250 = vsel %vm215, %v190, 0
  %v253 = vsel %vm215, %v191, 0
  %v256 = vsel %vm215, %v192, 0
  %v259 = vsel %vm215, %v193, 0
  %v262 = vsel %vm215, %v194, 0
  %v265 = vsel %vm215, %v195, 0
  %v268 = vsel %vm215, %v196, 0
  %v271 = vsel %vm215, %v197, 0
  %v274 = vsel %vm215, %v198, 0
  %v277 = vsel %vm215, %v199, 0
  %v280 = vsel %vm215, %v200, 0
  %v283 = vsel %vm215, %v201, 0
  %v286 = vsel %vm215, %v202, 0
  %v289 = vsel %vm215, %v203, 0
  %vm291 = vcmask 1043456
  %vm292 = vcmask 1044480
  %v293 = vsel %vm291, 4294967295, 65535
  %v294 = vsel %vm292, %v293, 0
  %v296 = vand.u32 %v213, %v294
  %298 = vmatpush.bf16.msra.mxu0 0
  %299 = vmatpush.bf16.msra.mxu0 0
  %300 = vmatpush.bf16.msra.mxu0 0
  %301 = vmatpush.bf16.msra.mxu0 0
  %302 = vmatpush.bf16.msra.mxu0 0
  %303 = vmatpush.bf16.msra.mxu0 0
  %304 = vmatpush.bf16.msra.mxu0 %v296
  %305 = vmatpush.bf16.msra.mxu0 %v212
  %306 = vmatmul.bf16.gmra.mxu0 %v217
  %v307 = vpop.f32.mrf.mxu0
  %v308 = vadd.f32 %v79, %v307
  %v309 = vpop.f32.mrf.mxu0
  %v310 = vadd.f32 %v79, %v309
  %311 = vmatmul.bf16.gmra.mxu0 %v220
  %v312 = vpop.f32.mrf.mxu0
  %v313 = vadd.f32 %v79, %v312
  %v314 = vpop.f32.mrf.mxu0
  %v315 = vadd.f32 %v79, %v314
  %316 = vmatmul.bf16.gmra.mxu0 %v223
  %v317 = vpop.f32.mrf.mxu0
  %v318 = vadd.f32 %v79, %v317
  %v319 = vpop.f32.mrf.mxu0
  %v320 = vadd.f32 %v79, %v319
  %321 = vmatmul.bf16.gmra.mxu0 %v226
  %v322 = vpop.f32.mrf.mxu0
  %v323 = vadd.f32 %v79, %v322
  %v324 = vpop.f32.mrf.mxu0
  %v325 = vadd.f32 %v79, %v324
  %326 = vmatmul.bf16.gmra.mxu0 %v229
  %v327 = vpop.f32.mrf.mxu0
  %v328 = vadd.f32 %v79, %v327
  %v329 = vpop.f32.mrf.mxu0
  %v330 = vadd.f32 %v79, %v329
  %331 = vmatmul.bf16.gmra.mxu0 %v232
  %v332 = vpop.f32.mrf.mxu0
  %v333 = vadd.f32 %v79, %v332
  %v334 = vpop.f32.mrf.mxu0
  %v335 = vadd.f32 %v79, %v334
  %336 = vmatmul.bf16.gmra.mxu0 %v235
  %v337 = vpop.f32.mrf.mxu0
  %v338 = vadd.f32 %v79, %v337
  %v339 = vpop.f32.mrf.mxu0
  %v340 = vadd.f32 %v79, %v339
  %341 = vmatmul.bf16.gmra.mxu0 %v238
  %v342 = vpop.f32.mrf.mxu0
  %v343 = vadd.f32 %v79, %v342
  %v344 = vpop.f32.mrf.mxu0
  %v345 = vadd.f32 %v79, %v344
  %346 = vmatmul.bf16.gmra.mxu0 %v241
  %v347 = vpop.f32.mrf.mxu0
  %v348 = vadd.f32 %v79, %v347
  %v349 = vpop.f32.mrf.mxu0
  %v350 = vadd.f32 %v79, %v349
  %351 = vmatmul.bf16.gmra.mxu0 %v244
  %v352 = vpop.f32.mrf.mxu0
  %v353 = vadd.f32 %v79, %v352
  %v354 = vpop.f32.mrf.mxu0
  %v355 = vadd.f32 %v79, %v354
  %356 = vmatmul.bf16.gmra.mxu0 %v247
  %v357 = vpop.f32.mrf.mxu0
  %v358 = vadd.f32 %v79, %v357
  %v359 = vpop.f32.mrf.mxu0
  %v360 = vadd.f32 %v79, %v359
  %361 = vmatmul.bf16.gmra.mxu0 %v250
  %v362 = vpop.f32.mrf.mxu0
  %v363 = vadd.f32 %v79, %v362
  %v364 = vpop.f32.mrf.mxu0
  %v365 = vadd.f32 %v79, %v364
  %366 = vmatmul.bf16.gmra.mxu0 %v253
  %v367 = vpop.f32.mrf.mxu0
  %v368 = vadd.f32 %v79, %v367
  %v369 = vpop.f32.mrf.mxu0
  %v370 = vadd.f32 %v79, %v369
  %371 = vmatmul.bf16.gmra.mxu0 %v256
  %v372 = vpop.f32.mrf.mxu0
  %v373 = vadd.f32 %v79, %v372
  %v374 = vpop.f32.mrf.mxu0
  %v375 = vadd.f32 %v79, %v374
  %376 = vmatmul.bf16.gmra.mxu0 %v259
  %v377 = vpop.f32.mrf.mxu0
  %v378 = vadd.f32 %v79, %v377
  %v379 = vpop.f32.mrf.mxu0
  %v380 = vadd.f32 %v79, %v379
  %381 = vmatmul.bf16.gmra.mxu0 %v262
  %v382 = vpop.f32.mrf.mxu0
  %v383 = vadd.f32 %v79, %v382
  %v384 = vpop.f32.mrf.mxu0
  %v385 = vadd.f32 %v79, %v384
  %386 = vmatmul.bf16.gmra.mxu0 %v265
  %v387 = vpop.f32.mrf.mxu0
  %v388 = vadd.f32 %v79, %v387
  %v389 = vpop.f32.mrf.mxu0
  %v390 = vadd.f32 %v79, %v389
  %391 = vmatmul.bf16.gmra.mxu0 %v268
  %v392 = vpop.f32.mrf.mxu0
  %v393 = vadd.f32 %v79, %v392
  %v394 = vpop.f32.mrf.mxu0
  %v395 = vadd.f32 %v79, %v394
  %396 = vmatmul.bf16.gmra.mxu0 %v271
  %v397 = vpop.f32.mrf.mxu0
  %v398 = vadd.f32 %v79, %v397
  %v399 = vpop.f32.mrf.mxu0
  %v400 = vadd.f32 %v79, %v399
  %401 = vmatmul.bf16.gmra.mxu0 %v274
  %v402 = vpop.f32.mrf.mxu0
  %v403 = vadd.f32 %v79, %v402
  %v404 = vpop.f32.mrf.mxu0
  %v405 = vadd.f32 %v79, %v404
  %406 = vmatmul.bf16.gmra.mxu0 %v277
  %v407 = vpop.f32.mrf.mxu0
  %v408 = vadd.f32 %v79, %v407
  %v409 = vpop.f32.mrf.mxu0
  %v410 = vadd.f32 %v79, %v409
  %411 = vmatmul.bf16.gmra.mxu0 %v280
  %v412 = vpop.f32.mrf.mxu0
  %v413 = vadd.f32 %v79, %v412
  %v414 = vpop.f32.mrf.mxu0
  %v415 = vadd.f32 %v79, %v414
  %416 = vmatmul.bf16.gmra.mxu0 %v283
  %v417 = vpop.f32.mrf.mxu0
  %v418 = vadd.f32 %v79, %v417
  %v419 = vpop.f32.mrf.mxu0
  %v420 = vadd.f32 %v79, %v419
  %421 = vmatmul.bf16.gmra.mxu0 %v286
  %v422 = vpop.f32.mrf.mxu0
  %v423 = vadd.f32 %v79, %v422
  %v424 = vpop.f32.mrf.mxu0
  %v425 = vadd.f32 %v79, %v424
  %426 = vmatmul.bf16.gmra.mxu0 %v289
  %v427 = vpop.f32.mrf.mxu0
  %v428 = vadd.f32 %v79, %v427
  %v429 = vpop.f32.mrf.mxu0
  %430 = vdwg.mxu0
  %v431 = vmax.f32 %v308, 0.0
  %v432 = vmax.f32 %v310, 0.0
  %v433 = vmax.f32 %v313, 0.0
  %v434 = vmax.f32 %v315, 0.0
  %v435 = vmax.f32 %v318, 0.0
  %v436 = vmax.f32 %v320, 0.0
  %v437 = vmax.f32 %v323, 0.0
  %v438 = vmax.f32 %v325, 0.0
  %v439 = vmax.f32 %v328, 0.0
  %v440 = vmax.f32 %v330, 0.0
  %v441 = vmax.f32 %v333, 0.0
  %v442 = vmax.f32 %v335, 0.0
  %v443 = vmax.f32 %v338, 0.0
  %v444 = vmax.f32 %v340, 0.0
  %v445 = vmax.f32 %v343, 0.0
  %v446 = vmax.f32 %v345, 0.0
  %v447 = vmax.f32 %v348, 0.0
  %v448 = vmax.f32 %v350, 0.0
  %v449 = vmax.f32 %v353, 0.0
  %v450 = vmax.f32 %v355, 0.0
  %v451 = vmax.f32 %v358, 0.0
  %v452 = vmax.f32 %v360, 0.0
  %v453 = vmax.f32 %v363, 0.0
  %v454 = vmax.f32 %v365, 0.0
  %v455 = vmax.f32 %v368, 0.0
  %v456 = vmax.f32 %v370, 0.0
  %v457 = vmax.f32 %v373, 0.0
  %v458 = vmax.f32 %v375, 0.0
  %v459 = vmax.f32 %v378, 0.0
  %v460 = vmax.f32 %v380, 0.0
  %v461 = vmax.f32 %v383, 0.0
  %v462 = vmax.f32 %v385, 0.0
  %v463 = vmax.f32 %v388, 0.0
  %v464 = vmax.f32 %v390, 0.0
  %v465 = vmax.f32 %v393, 0.0
  %v466 = vmax.f32 %v395, 0.0
  %v467 = vmax.f32 %v398, 0.0
  %v468 = vmax.f32 %v400, 0.0
  %v469 = vmax.f32 %v403, 0.0
  %v470 = vmax.f32 %v405, 0.0
  %v471 = vmax.f32 %v408, 0.0
  %v472 = vmax.f32 %v410, 0.0
  %v473 = vmax.f32 %v413, 0.0
  %v474 = vmax.f32 %v415, 0.0
  %v475 = vmax.f32 %v418, 0.0
  %v476 = vmax.f32 %v420, 0.0
  %v477 = vmax.f32 %v423, 0.0
  %v478 = vmax.f32 %v425, 0.0
  %v479 = vmax.f32 %v428, 0.0
  %v480 = vld [vmem:[%s1] sm:$0xf]
  %v481 = vld [vmem:[%s1 + $0x4] sm:$0xf]
  %v482 = vld [vmem:[%s1 + $0x8] sm:$0xf]
  %v483 = vld [vmem:[%s1 + $0xc] sm:$0xf]
  %v484 = vld [vmem:[%s1 + $0x10] sm:$0xf]
  %v485 = vld [vmem:[%s1 + $0x14] sm:$0xf]
  %v486 = vld [vmem:[%s1 + $0x18] sm:$0xf]
  %v487 = vld [vmem:[%s1 + $0x1c] sm:$0xf]
  %v488 = vld [vmem:[%s1 + $0x20] sm:$0xf]
  %v489 = vld [vmem:[%s1 + $0x24] sm:$0xf]
  %v490 = vld [vmem:[%s1 + $0x28] sm:$0xf]
  %v491 = vld [vmem:[%s1 + $0x2c] sm:$0xf]
  %v492 = vld [vmem:[%s1 + $0x30] sm:$0xf]
  %v493 = vld [vmem:[%s1 + $0x34] sm:$0xf]
  %v494 = vld [vmem:[%s1 + $0x38] sm:$0xf]
  %v495 = vld [vmem:[%s1 + $0x3c] sm:$0xf]
  %v496 = vld [vmem:[%s1 + $0x40] sm:$0xf]
  %v497 = vld [vmem:[%s1 + $0x44] sm:$0xf]
  %v498 = vld [vmem:[%s1 + $0x48] sm:$0xf]
  %v499 = vld [vmem:[%s1 + $0x4c] sm:$0xf]
  %v500 = vld [vmem:[%s1 + $0x50] sm:$0xf]
  %v501 = vld [vmem:[%s1 + $0x54] sm:$0xf]
  %v502 = vld [vmem:[%s1 + $0x58] sm:$0xf]
  %v503 = vld [vmem:[%s1 + $0x5c] sm:$0xf]
  %v504 = vld [vmem:[%s1 + $0x60] sm:$0xf]
  %v505 = vld [vmem:[%s1 + $0x64] sm:$0xf]
  %v506 = vld [vmem:[%s1 + $0x68] sm:$0xf]
  %v507 = vld [vmem:[%s1 + $0x6c] sm:$0xf]
  %v508 = vld [vmem:[%s1 + $0x70] sm:$0xf]
  %v509 = vld [vmem:[%s1 + $0x74] sm:$0xf]
  %v510 = vld [vmem:[%s1 + $0x78] sm:$0xf]
  %v511 = vld [vmem:[%s1 + $0x7c] sm:$0xf]
  %v512 = vld [vmem:[%s1 + $0x80] sm:$0xf]
  %v513 = vld [vmem:[%s1 + $0x84] sm:$0xf]
  %v514 = vld [vmem:[%s1 + $0x88] sm:$0xf]
  %v515 = vld [vmem:[%s1 + $0x8c] sm:$0xf]
  %v516 = vld [vmem:[%s1 + $0x90] sm:$0xf]
  %v517 = vld [vmem:[%s1 + $0x94] sm:$0xf]
  %v518 = vld [vmem:[%s1 + $0x98] sm:$0xf]
  %v519 = vld [vmem:[%s1 + $0x9c] sm:$0xf]
  %v520 = vld [vmem:[%s1 + $0xa0] sm:$0xf]
  %v521 = vld [vmem:[%s1 + $0xa4] sm:$0xf]
  %v522 = vld [vmem:[%s1 + $0xa8] sm:$0xf]
  %v523 = vld [vmem:[%s1 + $0xac] sm:$0xf]
  %v524 = vld [vmem:[%s1 + $0xb0] sm:$0xf]
  %v525 = vld [vmem:[%s1 + $0xb4] sm:$0xf]
  %v526 = vld [vmem:[%s1 + $0xb8] sm:$0xf]
  %v527 = vld [vmem:[%s1 + $0xbc] sm:$0xf]
  %v528 = vld [vmem:[%s1 + $0xc0] sm:$0xf]
  %v578 = vunpack.c.l.b16 %v480
  %v579 = vunpack.c.l.b16 %v481
  %v580 = vunpack.c.l.b16 %v482
  %v581 = vunpack.c.l.b16 %v483
  %v582 = vunpack.c.l.b16 %v484
  %v583 = vunpack.c.l.b16 %v485
  %v584 = vunpack.c.l.b16 %v486
  %v585 = vunpack.c.l.b16 %v487
  %v586 = vunpack.c.l.b16 %v488
  %v587 = vunpack.c.l.b16 %v489
  %v588 = vunpack.c.l.b16 %v490
  %v589 = vunpack.c.l.b16 %v491
  %v590 = vunpack.c.l.b16 %v492
  %v591 = vunpack.c.l.b16 %v493
  %v592 = vunpack.c.l.b16 %v494
  %v593 = vunpack.c.l.b16 %v495
  %v594 = vunpack.c.l.b16 %v496
  %v595 = vunpack.c.l.b16 %v497
  %v596 = vunpack.c.l.b16 %v498
  %v597 = vunpack.c.l.b16 %v499
  %v598 = vunpack.c.l.b16 %v500
  %v599 = vunpack.c.l.b16 %v501
  %v600 = vunpack.c.l.b16 %v502
  %v601 = vunpack.c.l.b16 %v503
  %v602 = vunpack.c.l.b16 %v504
  %v603 = vunpack.c.l.b16 %v505
  %v604 = vunpack.c.l.b16 %v506
  %v605 = vunpack.c.l.b16 %v507
  %v606 = vunpack.c.l.b16 %v508
  %v607 = vunpack.c.l.b16 %v509
  %v608 = vunpack.c.l.b16 %v510
  %v609 = vunpack.c.l.b16 %v511
  %v610 = vunpack.c.l.b16 %v512
  %v611 = vunpack.c.l.b16 %v513
  %v612 = vunpack.c.l.b16 %v514
  %v613 = vunpack.c.l.b16 %v515
  %v614 = vunpack.c.l.b16 %v516
  %v615 = vunpack.c.l.b16 %v517
  %v616 = vunpack.c.l.b16 %v518
  %v617 = vunpack.c.l.b16 %v519
  %v618 = vunpack.c.l.b16 %v520
  %v619 = vunpack.c.l.b16 %v521
  %v620 = vunpack.c.l.b16 %v522
  %v621 = vunpack.c.l.b16 %v523
  %v622 = vunpack.c.l.b16 %v524
  %v623 = vunpack.c.l.b16 %v525
  %v624 = vunpack.c.l.b16 %v526
  %v625 = vunpack.c.l.b16 %v527
  %v626 = vunpack.c.l.b16 %v528
  %v627 = vpack.c.b16 %v579, %v578
  %v628 = vpack.c.b16 %v581, %v580
  %v629 = vpack.c.b16 %v583, %v582
  %v630 = vpack.c.b16 %v585, %v584
  %v631 = vpack.c.b16 %v587, %v586
  %v632 = vpack.c.b16 %v589, %v588
  %v633 = vpack.c.b16 %v591, %v590
  %v634 = vpack.c.b16 %v593, %v592
  %v635 = vpack.c.b16 %v595, %v594
  %v636 = vpack.c.b16 %v597, %v596
  %v637 = vpack.c.b16 %v599, %v598
  %v638 = vpack.c.b16 %v601, %v600
  %v639 = vpack.c.b16 %v603, %v602
  %v640 = vpack.c.b16 %v605, %v604
  %v641 = vpack.c.b16 %v607, %v606
  %v642 = vpack.c.b16 %v609, %v608
  %v643 = vpack.c.b16 %v611, %v610
  %v644 = vpack.c.b16 %v613, %v612
  %v645 = vpack.c.b16 %v615, %v614
  %v646 = vpack.c.b16 %v617, %v616
  %v647 = vpack.c.b16 %v619, %v618
  %v648 = vpack.c.b16 %v621, %v620
  %v649 = vpack.c.b16 %v623, %v622
  %v650 = vpack.c.b16 %v625, %v624
  %v651 = vpack.c.b16 %v626, %v626
  %v653 = vsel %vm215, %v627, 0
  %v656 = vsel %vm215, %v628, 0
  %v659 = vsel %vm215, %v629, 0
  %v662 = vsel %vm215, %v630, 0
  %v665 = vsel %vm215, %v631, 0
  %v668 = vsel %vm215, %v632, 0
  %v671 = vsel %vm215, %v633, 0
  %v674 = vsel %vm215, %v634, 0
  %v677 = vsel %vm215, %v635, 0
  %v680 = vsel %vm215, %v636, 0
  %v683 = vsel %vm215, %v637, 0
  %v686 = vsel %vm215, %v638, 0
  %v689 = vsel %vm215, %v639, 0
  %v692 = vsel %vm215, %v640, 0
  %v695 = vsel %vm215, %v641, 0
  %v698 = vsel %vm215, %v642, 0
  %v701 = vsel %vm215, %v643, 0
  %v704 = vsel %vm215, %v644, 0
  %v707 = vsel %vm215, %v645, 0
  %v710 = vsel %vm215, %v646, 0
  %v713 = vsel %vm215, %v647, 0
  %v716 = vsel %vm215, %v648, 0
  %v719 = vsel %vm215, %v649, 0
  %v722 = vsel %vm215, %v650, 0
  %v725 = vsel %vm215, %v651, 0
  %727 = vmatpush.bf16.msra.mxu0 0
  %728 = vmatpush.bf16.msra.mxu0 0
  %729 = vmatpush.bf16.msra.mxu0 0
  %730 = vmatpush.bf16.msra.mxu0 0
  %731 = vmatpush.bf16.msra.mxu0 0
  %732 = vmatpush.bf16.msra.mxu0 0
  %733 = vmatpush.bf16.msra.mxu0 %v296
  %734 = vmatpush.bf16.msra.mxu0 %v212
  %735 = vmatmul.bf16.gmra.mxu0 %v653
  %v736 = vpop.f32.mrf.mxu0
  %v737 = vadd.f32 %v79, %v736
  %v738 = vpop.f32.mrf.mxu0
  %v739 = vadd.f32 %v79, %v738
  %740 = vmatmul.bf16.gmra.mxu0 %v656
  %v741 = vpop.f32.mrf.mxu0
  %v742 = vadd.f32 %v79, %v741
  %v743 = vpop.f32.mrf.mxu0
  %v744 = vadd.f32 %v79, %v743
  %745 = vmatmul.bf16.gmra.mxu0 %v659
  %v746 = vpop.f32.mrf.mxu0
  %v747 = vadd.f32 %v79, %v746
  %v748 = vpop.f32.mrf.mxu0
  %v749 = vadd.f32 %v79, %v748
  %750 = vmatmul.bf16.gmra.mxu0 %v662
  %v751 = vpop.f32.mrf.mxu0
  %v752 = vadd.f32 %v79, %v751
  %v753 = vpop.f32.mrf.mxu0
  %v754 = vadd.f32 %v79, %v753
  %755 = vmatmul.bf16.gmra.mxu0 %v665
  %v756 = vpop.f32.mrf.mxu0
  %v757 = vadd.f32 %v79, %v756
  %v758 = vpop.f32.mrf.mxu0
  %v759 = vadd.f32 %v79, %v758
  %760 = vmatmul.bf16.gmra.mxu0 %v668
  %v761 = vpop.f32.mrf.mxu0
  %v762 = vadd.f32 %v79, %v761
  %v763 = vpop.f32.mrf.mxu0
  %v764 = vadd.f32 %v79, %v763
  %765 = vmatmul.bf16.gmra.mxu0 %v671
  %v766 = vpop.f32.mrf.mxu0
  %v767 = vadd.f32 %v79, %v766
  %v768 = vpop.f32.mrf.mxu0
  %v769 = vadd.f32 %v79, %v768
  %770 = vmatmul.bf16.gmra.mxu0 %v674
  %v771 = vpop.f32.mrf.mxu0
  %v772 = vadd.f32 %v79, %v771
  %v773 = vpop.f32.mrf.mxu0
  %v774 = vadd.f32 %v79, %v773
  %775 = vmatmul.bf16.gmra.mxu0 %v677
  %v776 = vpop.f32.mrf.mxu0
  %v777 = vadd.f32 %v79, %v776
  %v778 = vpop.f32.mrf.mxu0
  %v779 = vadd.f32 %v79, %v778
  %780 = vmatmul.bf16.gmra.mxu0 %v680
  %v781 = vpop.f32.mrf.mxu0
  %v782 = vadd.f32 %v79, %v781
  %v783 = vpop.f32.mrf.mxu0
  %v784 = vadd.f32 %v79, %v783
  %785 = vmatmul.bf16.gmra.mxu0 %v683
  %v786 = vpop.f32.mrf.mxu0
  %v787 = vadd.f32 %v79, %v786
  %v788 = vpop.f32.mrf.mxu0
  %v789 = vadd.f32 %v79, %v788
  %790 = vmatmul.bf16.gmra.mxu0 %v686
  %v791 = vpop.f32.mrf.mxu0
  %v792 = vadd.f32 %v79, %v791
  %v793 = vpop.f32.mrf.mxu0
  %v794 = vadd.f32 %v79, %v793
  %795 = vmatmul.bf16.gmra.mxu0 %v689
  %v796 = vpop.f32.mrf.mxu0
  %v797 = vadd.f32 %v79, %v796
  %v798 = vpop.f32.mrf.mxu0
  %v799 = vadd.f32 %v79, %v798
  %800 = vmatmul.bf16.gmra.mxu0 %v692
  %v801 = vpop.f32.mrf.mxu0
  %v802 = vadd.f32 %v79, %v801
  %v803 = vpop.f32.mrf.mxu0
  %v804 = vadd.f32 %v79, %v803
  %805 = vmatmul.bf16.gmra.mxu0 %v695
  %v806 = vpop.f32.mrf.mxu0
  %v807 = vadd.f32 %v79, %v806
  %v808 = vpop.f32.mrf.mxu0
  %v809 = vadd.f32 %v79, %v808
  %810 = vmatmul.bf16.gmra.mxu0 %v698
  %v811 = vpop.f32.mrf.mxu0
  %v812 = vadd.f32 %v79, %v811
  %v813 = vpop.f32.mrf.mxu0
  %v814 = vadd.f32 %v79, %v813
  %815 = vmatmul.bf16.gmra.mxu0 %v701
  %v816 = vpop.f32.mrf.mxu0
  %v817 = vadd.f32 %v79, %v816
  %v818 = vpop.f32.mrf.mxu0
  %v819 = vadd.f32 %v79, %v818
  %820 = vmatmul.bf16.gmra.mxu0 %v704
  %v821 = vpop.f32.mrf.mxu0
  %v822 = vadd.f32 %v79, %v821
  %v823 = vpop.f32.mrf.mxu0
  %v824 = vadd.f32 %v79, %v823
  %825 = vmatmul.bf16.gmra.mxu0 %v707
  %v826 = vpop.f32.mrf.mxu0
  %v827 = vadd.f32 %v79, %v826
  %v828 = vpop.f32.mrf.mxu0
  %v829 = vadd.f32 %v79, %v828
  %830 = vmatmul.bf16.gmra.mxu0 %v710
  %v831 = vpop.f32.mrf.mxu0
  %v832 = vadd.f32 %v79, %v831
  %v833 = vpop.f32.mrf.mxu0
  %v834 = vadd.f32 %v79, %v833
  %835 = vmatmul.bf16.gmra.mxu0 %v713
  %v836 = vpop.f32.mrf.mxu0
  %v837 = vadd.f32 %v79, %v836
  %v838 = vpop.f32.mrf.mxu0
  %v839 = vadd.f32 %v79, %v838
  %840 = vmatmul.bf16.gmra.mxu0 %v716
  %v841 = vpop.f32.mrf.mxu0
  %v842 = vadd.f32 %v79, %v841
  %v843 = vpop.f32.mrf.mxu0
  %v844 = vadd.f32 %v79, %v843
  %845 = vmatmul.bf16.gmra.mxu0 %v719
  %v846 = vpop.f32.mrf.mxu0
  %v847 = vadd.f32 %v79, %v846
  %v848 = vpop.f32.mrf.mxu0
  %v849 = vadd.f32 %v79, %v848
  %850 = vmatmul.bf16.gmra.mxu0 %v722
  %v851 = vpop.f32.mrf.mxu0
  %v852 = vadd.f32 %v79, %v851
  %v853 = vpop.f32.mrf.mxu0
  %v854 = vadd.f32 %v79, %v853
  %855 = vmatmul.bf16.gmra.mxu0 %v725
  %v856 = vpop.f32.mrf.mxu0
  %v857 = vadd.f32 %v79, %v856
  %v858 = vpop.f32.mrf.mxu0
  %859 = vdwg.mxu0
  %v860 = vmax.f32 %v737, 0.0
  %v861 = vmax.f32 %v739, 0.0
  %v862 = vmax.f32 %v742, 0.0
  %v863 = vmax.f32 %v744, 0.0
  %v864 = vmax.f32 %v747, 0.0
  %v865 = vmax.f32 %v749, 0.0
  %v866 = vmax.f32 %v752, 0.0
  %v867 = vmax.f32 %v754, 0.0
  %v868 = vmax.f32 %v757, 0.0
  %v869 = vmax.f32 %v759, 0.0
  %v870 = vmax.f32 %v762, 0.0
  %v871 = vmax.f32 %v764, 0.0
  %v872 = vmax.f32 %v767, 0.0
  %v873 = vmax.f32 %v769, 0.0
  %v874 = vmax.f32 %v772, 0.0
  %v875 = vmax.f32 %v774, 0.0
  %v876 = vmax.f32 %v777, 0.0
  %v877 = vmax.f32 %v779, 0.0
  %v878 = vmax.f32 %v782, 0.0
  %v879 = vmax.f32 %v784, 0.0
  %v880 = vmax.f32 %v787, 0.0
  %v881 = vmax.f32 %v789, 0.0
  %v882 = vmax.f32 %v792, 0.0
  %v883 = vmax.f32 %v794, 0.0
  %v884 = vmax.f32 %v797, 0.0
  %v885 = vmax.f32 %v799, 0.0
  %v886 = vmax.f32 %v802, 0.0
  %v887 = vmax.f32 %v804, 0.0
  %v888 = vmax.f32 %v807, 0.0
  %v889 = vmax.f32 %v809, 0.0
  %v890 = vmax.f32 %v812, 0.0
  %v891 = vmax.f32 %v814, 0.0
  %v892 = vmax.f32 %v817, 0.0
  %v893 = vmax.f32 %v819, 0.0
  %v894 = vmax.f32 %v822, 0.0
  %v895 = vmax.f32 %v824, 0.0
  %v896 = vmax.f32 %v827, 0.0
  %v897 = vmax.f32 %v829, 0.0
  %v898 = vmax.f32 %v832, 0.0
  %v899 = vmax.f32 %v834, 0.0
  %v900 = vmax.f32 %v837, 0.0
  %v901 = vmax.f32 %v839, 0.0
  %v902 = vmax.f32 %v842, 0.0
  %v903 = vmax.f32 %v844, 0.0
  %v904 = vmax.f32 %v847, 0.0
  %v905 = vmax.f32 %v849, 0.0
  %v906 = vmax.f32 %v852, 0.0
  %v907 = vmax.f32 %v854, 0.0
  %v908 = vmax.f32 %v857, 0.0
  %v909 = vmax.f32 %v431, %v860
  %v910 = vmax.f32 %v432, %v861
  %v911 = vmax.f32 %v433, %v862
  %v912 = vmax.f32 %v434, %v863
  %v913 = vmax.f32 %v435, %v864
  %v914 = vmax.f32 %v436, %v865
  %v915 = vmax.f32 %v437, %v866
  %v916 = vmax.f32 %v438, %v867
  %v917 = vmax.f32 %v439, %v868
  %v918 = vmax.f32 %v440, %v869
  %v919 = vmax.f32 %v441, %v870
  %v920 = vmax.f32 %v442, %v871
  %v921 = vmax.f32 %v443, %v872
  %v922 = vmax.f32 %v444, %v873
  %v923 = vmax.f32 %v445, %v874
  %v924 = vmax.f32 %v446, %v875
  %v925 = vmax.f32 %v447, %v876
  %v926 = vmax.f32 %v448, %v877
  %v927 = vmax.f32 %v449, %v878
  %v928 = vmax.f32 %v450, %v879
  %v929 = vmax.f32 %v451, %v880
  %v930 = vmax.f32 %v452, %v881
  %v931 = vmax.f32 %v453, %v882
  %v932 = vmax.f32 %v454, %v883
  %v933 = vmax.f32 %v455, %v884
  %v934 = vmax.f32 %v456, %v885
  %v935 = vmax.f32 %v457, %v886
  %v936 = vmax.f32 %v458, %v887
  %v937 = vmax.f32 %v459, %v888
  %v938 = vmax.f32 %v460, %v889
  %v939 = vmax.f32 %v461, %v890
  %v940 = vmax.f32 %v462, %v891
  %v941 = vmax.f32 %v463, %v892
  %v942 = vmax.f32 %v464, %v893
  %v943 = vmax.f32 %v465, %v894
  %v944 = vmax.f32 %v466, %v895
  %v945 = vmax.f32 %v467, %v896
  %v946 = vmax.f32 %v468, %v897
  %v947 = vmax.f32 %v469, %v898
  %v948 = vmax.f32 %v470, %v899
  %v949 = vmax.f32 %v471, %v900
  %v950 = vmax.f32 %v472, %v901
  %v951 = vmax.f32 %v473, %v902
  %v952 = vmax.f32 %v474, %v903
  %v953 = vmax.f32 %v475, %v904
  %v954 = vmax.f32 %v476, %v905
  %v955 = vmax.f32 %v477, %v906
  %v956 = vmax.f32 %v478, %v907
  %v957 = vmax.f32 %v479, %v908
  %v958 = vld [vmem:[%s2] sm:$0xf]
  %v959 = vld [vmem:[%s2 + $0x4] sm:$0xf]
  %v960 = vld [vmem:[%s2 + $0x8] sm:$0xf]
  %v961 = vld [vmem:[%s2 + $0xc] sm:$0xf]
  %v962 = vld [vmem:[%s2 + $0x10] sm:$0xf]
  %v963 = vld [vmem:[%s2 + $0x14] sm:$0xf]
  %v964 = vld [vmem:[%s2 + $0x18] sm:$0xf]
  %v965 = vld [vmem:[%s2 + $0x1c] sm:$0xf]
  %v966 = vld [vmem:[%s2 + $0x20] sm:$0xf]
  %v967 = vld [vmem:[%s2 + $0x24] sm:$0xf]
  %v968 = vld [vmem:[%s2 + $0x28] sm:$0xf]
  %v969 = vld [vmem:[%s2 + $0x2c] sm:$0xf]
  %v970 = vld [vmem:[%s2 + $0x30] sm:$0xf]
  %v971 = vld [vmem:[%s2 + $0x34] sm:$0xf]
  %v972 = vld [vmem:[%s2 + $0x38] sm:$0xf]
  %v973 = vld [vmem:[%s2 + $0x3c] sm:$0xf]
  %v974 = vld [vmem:[%s2 + $0x40] sm:$0xf]
  %v975 = vld [vmem:[%s2 + $0x44] sm:$0xf]
  %v976 = vld [vmem:[%s2 + $0x48] sm:$0xf]
  %v977 = vld [vmem:[%s2 + $0x4c] sm:$0xf]
  %v978 = vld [vmem:[%s2 + $0x50] sm:$0xf]
  %v979 = vld [vmem:[%s2 + $0x54] sm:$0xf]
  %v980 = vld [vmem:[%s2 + $0x58] sm:$0xf]
  %v981 = vld [vmem:[%s2 + $0x5c] sm:$0xf]
  %v982 = vld [vmem:[%s2 + $0x60] sm:$0xf]
  %v983 = vld [vmem:[%s2 + $0x64] sm:$0xf]
  %v984 = vld [vmem:[%s2 + $0x68] sm:$0xf]
  %v985 = vld [vmem:[%s2 + $0x6c] sm:$0xf]
  %v986 = vld [vmem:[%s2 + $0x70] sm:$0xf]
  %v987 = vld [vmem:[%s2 + $0x74] sm:$0xf]
  %v988 = vld [vmem:[%s2 + $0x78] sm:$0xf]
  %v989 = vld [vmem:[%s2 + $0x7c] sm:$0xf]
  %v990 = vld [vmem:[%s2 + $0x80] sm:$0xf]
  %v991 = vld [vmem:[%s2 + $0x84] sm:$0xf]
  %v992 = vld [vmem:[%s2 + $0x88] sm:$0xf]
  %v993 = vld [vmem:[%s2 + $0x8c] sm:$0xf]
  %v994 = vld [vmem:[%s2 + $0x90] sm:$0xf]
  %v995 = vld [vmem:[%s2 + $0x94] sm:$0xf]
  %v996 = vld [vmem:[%s2 + $0x98] sm:$0xf]
  %v997 = vld [vmem:[%s2 + $0x9c] sm:$0xf]
  %v998 = vld [vmem:[%s2 + $0xa0] sm:$0xf]
  %v999 = vld [vmem:[%s2 + $0xa4] sm:$0xf]
  %v1000 = vld [vmem:[%s2 + $0xa8] sm:$0xf]
  %v1001 = vld [vmem:[%s2 + $0xac] sm:$0xf]
  %v1002 = vld [vmem:[%s2 + $0xb0] sm:$0xf]
  %v1003 = vld [vmem:[%s2 + $0xb4] sm:$0xf]
  %v1004 = vld [vmem:[%s2 + $0xb8] sm:$0xf]
  %v1005 = vld [vmem:[%s2 + $0xbc] sm:$0xf]
  %v1006 = vld [vmem:[%s2 + $0xc0] sm:$0xf]
  %v1056 = vunpack.c.l.b16 %v958
  %v1057 = vunpack.c.l.b16 %v959
  %v1058 = vunpack.c.l.b16 %v960
  %v1059 = vunpack.c.l.b16 %v961
  %v1060 = vunpack.c.l.b16 %v962
  %v1061 = vunpack.c.l.b16 %v963
  %v1062 = vunpack.c.l.b16 %v964
  %v1063 = vunpack.c.l.b16 %v965
  %v1064 = vunpack.c.l.b16 %v966
  %v1065 = vunpack.c.l.b16 %v967
  %v1066 = vunpack.c.l.b16 %v968
  %v1067 = vunpack.c.l.b16 %v969
  %v1068 = vunpack.c.l.b16 %v970
  %v1069 = vunpack.c.l.b16 %v971
  %v1070 = vunpack.c.l.b16 %v972
  %v1071 = vunpack.c.l.b16 %v973
  %v1072 = vunpack.c.l.b16 %v974
  %v1073 = vunpack.c.l.b16 %v975
  %v1074 = vunpack.c.l.b16 %v976
  %v1075 = vunpack.c.l.b16 %v977
  %v1076 = vunpack.c.l.b16 %v978
  %v1077 = vunpack.c.l.b16 %v979
  %v1078 = vunpack.c.l.b16 %v980
  %v1079 = vunpack.c.l.b16 %v981
  %v1080 = vunpack.c.l.b16 %v982
  %v1081 = vunpack.c.l.b16 %v983
  %v1082 = vunpack.c.l.b16 %v984
  %v1083 = vunpack.c.l.b16 %v985
  %v1084 = vunpack.c.l.b16 %v986
  %v1085 = vunpack.c.l.b16 %v987
  %v1086 = vunpack.c.l.b16 %v988
  %v1087 = vunpack.c.l.b16 %v989
  %v1088 = vunpack.c.l.b16 %v990
  %v1089 = vunpack.c.l.b16 %v991
  %v1090 = vunpack.c.l.b16 %v992
  %v1091 = vunpack.c.l.b16 %v993
  %v1092 = vunpack.c.l.b16 %v994
  %v1093 = vunpack.c.l.b16 %v995
  %v1094 = vunpack.c.l.b16 %v996
  %v1095 = vunpack.c.l.b16 %v997
  %v1096 = vunpack.c.l.b16 %v998
  %v1097 = vunpack.c.l.b16 %v999
  %v1098 = vunpack.c.l.b16 %v1000
  %v1099 = vunpack.c.l.b16 %v1001
  %v1100 = vunpack.c.l.b16 %v1002
  %v1101 = vunpack.c.l.b16 %v1003
  %v1102 = vunpack.c.l.b16 %v1004
  %v1103 = vunpack.c.l.b16 %v1005
  %v1104 = vunpack.c.l.b16 %v1006
  %v1105 = vpack.c.b16 %v1057, %v1056
  %v1106 = vpack.c.b16 %v1059, %v1058
  %v1107 = vpack.c.b16 %v1061, %v1060
  %v1108 = vpack.c.b16 %v1063, %v1062
  %v1109 = vpack.c.b16 %v1065, %v1064
  %v1110 = vpack.c.b16 %v1067, %v1066
  %v1111 = vpack.c.b16 %v1069, %v1068
  %v1112 = vpack.c.b16 %v1071, %v1070
  %v1113 = vpack.c.b16 %v1073, %v1072
  %v1114 = vpack.c.b16 %v1075, %v1074
  %v1115 = vpack.c.b16 %v1077, %v1076
  %v1116 = vpack.c.b16 %v1079, %v1078
  %v1117 = vpack.c.b16 %v1081, %v1080
  %v1118 = vpack.c.b16 %v1083, %v1082
  %v1119 = vpack.c.b16 %v1085, %v1084
  %v1120 = vpack.c.b16 %v1087, %v1086
  %v1121 = vpack.c.b16 %v1089, %v1088
  %v1122 = vpack.c.b16 %v1091, %v1090
  %v1123 = vpack.c.b16 %v1093, %v1092
  %v1124 = vpack.c.b16 %v1095, %v1094
  %v1125 = vpack.c.b16 %v1097, %v1096
  %v1126 = vpack.c.b16 %v1099, %v1098
  %v1127 = vpack.c.b16 %v1101, %v1100
  %v1128 = vpack.c.b16 %v1103, %v1102
  %v1129 = vpack.c.b16 %v1104, %v1104
  %v1131 = vsel %vm215, %v1105, 0
  %v1134 = vsel %vm215, %v1106, 0
  %v1137 = vsel %vm215, %v1107, 0
  %v1140 = vsel %vm215, %v1108, 0
  %v1143 = vsel %vm215, %v1109, 0
  %v1146 = vsel %vm215, %v1110, 0
  %v1149 = vsel %vm215, %v1111, 0
  %v1152 = vsel %vm215, %v1112, 0
  %v1155 = vsel %vm215, %v1113, 0
  %v1158 = vsel %vm215, %v1114, 0
  %v1161 = vsel %vm215, %v1115, 0
  %v1164 = vsel %vm215, %v1116, 0
  %v1167 = vsel %vm215, %v1117, 0
  %v1170 = vsel %vm215, %v1118, 0
  %v1173 = vsel %vm215, %v1119, 0
  %v1176 = vsel %vm215, %v1120, 0
  %v1179 = vsel %vm215, %v1121, 0
  %v1182 = vsel %vm215, %v1122, 0
  %v1185 = vsel %vm215, %v1123, 0
  %v1188 = vsel %vm215, %v1124, 0
  %v1191 = vsel %vm215, %v1125, 0
  %v1194 = vsel %vm215, %v1126, 0
  %v1197 = vsel %vm215, %v1127, 0
  %v1200 = vsel %vm215, %v1128, 0
  %v1203 = vsel %vm215, %v1129, 0
  %1205 = vmatpush.bf16.msra.mxu0 0
  %1206 = vmatpush.bf16.msra.mxu0 0
  %1207 = vmatpush.bf16.msra.mxu0 0
  %1208 = vmatpush.bf16.msra.mxu0 0
  %1209 = vmatpush.bf16.msra.mxu0 0
  %1210 = vmatpush.bf16.msra.mxu0 0
  %1211 = vmatpush.bf16.msra.mxu0 %v296
  %1212 = vmatpush.bf16.msra.mxu0 %v212
  %1213 = vmatmul.bf16.gmra.mxu0 %v1131
  %v1214 = vpop.f32.mrf.mxu0
  %v1215 = vadd.f32 %v79, %v1214
  %v1216 = vpop.f32.mrf.mxu0
  %v1217 = vadd.f32 %v79, %v1216
  %1218 = vmatmul.bf16.gmra.mxu0 %v1134
  %v1219 = vpop.f32.mrf.mxu0
  %v1220 = vadd.f32 %v79, %v1219
  %v1221 = vpop.f32.mrf.mxu0
  %v1222 = vadd.f32 %v79, %v1221
  %1223 = vmatmul.bf16.gmra.mxu0 %v1137
  %v1224 = vpop.f32.mrf.mxu0
  %v1225 = vadd.f32 %v79, %v1224
  %v1226 = vpop.f32.mrf.mxu0
  %v1227 = vadd.f32 %v79, %v1226
  %1228 = vmatmul.bf16.gmra.mxu0 %v1140
  %v1229 = vpop.f32.mrf.mxu0
  %v1230 = vadd.f32 %v79, %v1229
  %v1231 = vpop.f32.mrf.mxu0
  %v1232 = vadd.f32 %v79, %v1231
  %1233 = vmatmul.bf16.gmra.mxu0 %v1143
  %v1234 = vpop.f32.mrf.mxu0
  %v1235 = vadd.f32 %v79, %v1234
  %v1236 = vpop.f32.mrf.mxu0
  %v1237 = vadd.f32 %v79, %v1236
  %1238 = vmatmul.bf16.gmra.mxu0 %v1146
  %v1239 = vpop.f32.mrf.mxu0
  %v1240 = vadd.f32 %v79, %v1239
  %v1241 = vpop.f32.mrf.mxu0
  %v1242 = vadd.f32 %v79, %v1241
  %1243 = vmatmul.bf16.gmra.mxu0 %v1149
  %v1244 = vpop.f32.mrf.mxu0
  %v1245 = vadd.f32 %v79, %v1244
  %v1246 = vpop.f32.mrf.mxu0
  %v1247 = vadd.f32 %v79, %v1246
  %1248 = vmatmul.bf16.gmra.mxu0 %v1152
  %v1249 = vpop.f32.mrf.mxu0
  %v1250 = vadd.f32 %v79, %v1249
  %v1251 = vpop.f32.mrf.mxu0
  %v1252 = vadd.f32 %v79, %v1251
  %1253 = vmatmul.bf16.gmra.mxu0 %v1155
  %v1254 = vpop.f32.mrf.mxu0
  %v1255 = vadd.f32 %v79, %v1254
  %v1256 = vpop.f32.mrf.mxu0
  %v1257 = vadd.f32 %v79, %v1256
  %1258 = vmatmul.bf16.gmra.mxu0 %v1158
  %v1259 = vpop.f32.mrf.mxu0
  %v1260 = vadd.f32 %v79, %v1259
  %v1261 = vpop.f32.mrf.mxu0
  %v1262 = vadd.f32 %v79, %v1261
  %1263 = vmatmul.bf16.gmra.mxu0 %v1161
  %v1264 = vpop.f32.mrf.mxu0
  %v1265 = vadd.f32 %v79, %v1264
  %v1266 = vpop.f32.mrf.mxu0
  %v1267 = vadd.f32 %v79, %v1266
  %1268 = vmatmul.bf16.gmra.mxu0 %v1164
  %v1269 = vpop.f32.mrf.mxu0
  %v1270 = vadd.f32 %v79, %v1269
  %v1271 = vpop.f32.mrf.mxu0
  %v1272 = vadd.f32 %v79, %v1271
  %1273 = vmatmul.bf16.gmra.mxu0 %v1167
  %v1274 = vpop.f32.mrf.mxu0
  %v1275 = vadd.f32 %v79, %v1274
  %v1276 = vpop.f32.mrf.mxu0
  %v1277 = vadd.f32 %v79, %v1276
  %1278 = vmatmul.bf16.gmra.mxu0 %v1170
  %v1279 = vpop.f32.mrf.mxu0
  %v1280 = vadd.f32 %v79, %v1279
  %v1281 = vpop.f32.mrf.mxu0
  %v1282 = vadd.f32 %v79, %v1281
  %1283 = vmatmul.bf16.gmra.mxu0 %v1173
  %v1284 = vpop.f32.mrf.mxu0
  %v1285 = vadd.f32 %v79, %v1284
  %v1286 = vpop.f32.mrf.mxu0
  %v1287 = vadd.f32 %v79, %v1286
  %1288 = vmatmul.bf16.gmra.mxu0 %v1176
  %v1289 = vpop.f32.mrf.mxu0
  %v1290 = vadd.f32 %v79, %v1289
  %v1291 = vpop.f32.mrf.mxu0
  %v1292 = vadd.f32 %v79, %v1291
  %1293 = vmatmul.bf16.gmra.mxu0 %v1179
  %v1294 = vpop.f32.mrf.mxu0
  %v1295 = vadd.f32 %v79, %v1294
  %v1296 = vpop.f32.mrf.mxu0
  %v1297 = vadd.f32 %v79, %v1296
  %1298 = vmatmul.bf16.gmra.mxu0 %v1182
  %v1299 = vpop.f32.mrf.mxu0
  %v1300 = vadd.f32 %v79, %v1299
  %v1301 = vpop.f32.mrf.mxu0
  %v1302 = vadd.f32 %v79, %v1301
  %1303 = vmatmul.bf16.gmra.mxu0 %v1185
  %v1304 = vpop.f32.mrf.mxu0
  %v1305 = vadd.f32 %v79, %v1304
  %v1306 = vpop.f32.mrf.mxu0
  %v1307 = vadd.f32 %v79, %v1306
  %1308 = vmatmul.bf16.gmra.mxu0 %v1188
  %v1309 = vpop.f32.mrf.mxu0
  %v1310 = vadd.f32 %v79, %v1309
  %v1311 = vpop.f32.mrf.mxu0
  %v1312 = vadd.f32 %v79, %v1311
  %1313 = vmatmul.bf16.gmra.mxu0 %v1191
  %v1314 = vpop.f32.mrf.mxu0
  %v1315 = vadd.f32 %v79, %v1314
  %v1316 = vpop.f32.mrf.mxu0
  %v1317 = vadd.f32 %v79, %v1316
  %1318 = vmatmul.bf16.gmra.mxu0 %v1194
  %v1319 = vpop.f32.mrf.mxu0
  %v1320 = vadd.f32 %v79, %v1319
  %v1321 = vpop.f32.mrf.mxu0
  %v1322 = vadd.f32 %v79, %v1321
  %1323 = vmatmul.bf16.gmra.mxu0 %v1197
  %v1324 = vpop.f32.mrf.mxu0
  %v1325 = vadd.f32 %v79, %v1324
  %v1326 = vpop.f32.mrf.mxu0
  %v1327 = vadd.f32 %v79, %v1326
  %1328 = vmatmul.bf16.gmra.mxu0 %v1200
  %v1329 = vpop.f32.mrf.mxu0
  %v1330 = vadd.f32 %v79, %v1329
  %v1331 = vpop.f32.mrf.mxu0
  %v1332 = vadd.f32 %v79, %v1331
  %1333 = vmatmul.bf16.gmra.mxu0 %v1203
  %v1334 = vpop.f32.mrf.mxu0
  %v1335 = vadd.f32 %v79, %v1334
  %v1336 = vpop.f32.mrf.mxu0
  %1337 = vdwg.mxu0
  %v1338 = vmax.f32 %v1215, 0.0
  %v1339 = vmax.f32 %v1217, 0.0
  %v1340 = vmax.f32 %v1220, 0.0
  %v1341 = vmax.f32 %v1222, 0.0
  %v1342 = vmax.f32 %v1225, 0.0
  %v1343 = vmax.f32 %v1227, 0.0
  %v1344 = vmax.f32 %v1230, 0.0
  %v1345 = vmax.f32 %v1232, 0.0
  %v1346 = vmax.f32 %v1235, 0.0
  %v1347 = vmax.f32 %v1237, 0.0
  %v1348 = vmax.f32 %v1240, 0.0
  %v1349 = vmax.f32 %v1242, 0.0
  %v1350 = vmax.f32 %v1245, 0.0
  %v1351 = vmax.f32 %v1247, 0.0
  %v1352 = vmax.f32 %v1250, 0.0
  %v1353 = vmax.f32 %v1252, 0.0
  %v1354 = vmax.f32 %v1255, 0.0
  %v1355 = vmax.f32 %v1257, 0.0
  %v1356 = vmax.f32 %v1260, 0.0
  %v1357 = vmax.f32 %v1262, 0.0
  %v1358 = vmax.f32 %v1265, 0.0
  %v1359 = vmax.f32 %v1267, 0.0
  %v1360 = vmax.f32 %v1270, 0.0
  %v1361 = vmax.f32 %v1272, 0.0
  %v1362 = vmax.f32 %v1275, 0.0
  %v1363 = vmax.f32 %v1277, 0.0
  %v1364 = vmax.f32 %v1280, 0.0
  %v1365 = vmax.f32 %v1282, 0.0
  %v1366 = vmax.f32 %v1285, 0.0
  %v1367 = vmax.f32 %v1287, 0.0
  %v1368 = vmax.f32 %v1290, 0.0
  %v1369 = vmax.f32 %v1292, 0.0
  %v1370 = vmax.f32 %v1295, 0.0
  %v1371 = vmax.f32 %v1297, 0.0
  %v1372 = vmax.f32 %v1300, 0.0
  %v1373 = vmax.f32 %v1302, 0.0
  %v1374 = vmax.f32 %v1305, 0.0
  %v1375 = vmax.f32 %v1307, 0.0
  %v1376 = vmax.f32 %v1310, 0.0
  %v1377 = vmax.f32 %v1312, 0.0
  %v1378 = vmax.f32 %v1315, 0.0
  %v1379 = vmax.f32 %v1317, 0.0
  %v1380 = vmax.f32 %v1320, 0.0
  %v1381 = vmax.f32 %v1322, 0.0
  %v1382 = vmax.f32 %v1325, 0.0
  %v1383 = vmax.f32 %v1327, 0.0
  %v1384 = vmax.f32 %v1330, 0.0
  %v1385 = vmax.f32 %v1332, 0.0
  %v1386 = vmax.f32 %v1335, 0.0
  %v1387 = vld [vmem:[%s3] sm:$0xf]
  %v1388 = vld [vmem:[%s3 + $0x4] sm:$0xf]
  %v1389 = vld [vmem:[%s3 + $0x8] sm:$0xf]
  %v1390 = vld [vmem:[%s3 + $0xc] sm:$0xf]
  %v1391 = vld [vmem:[%s3 + $0x10] sm:$0xf]
  %v1392 = vld [vmem:[%s3 + $0x14] sm:$0xf]
  %v1393 = vld [vmem:[%s3 + $0x18] sm:$0xf]
  %v1394 = vld [vmem:[%s3 + $0x1c] sm:$0xf]
  %v1395 = vld [vmem:[%s3 + $0x20] sm:$0xf]
  %v1396 = vld [vmem:[%s3 + $0x24] sm:$0xf]
  %v1397 = vld [vmem:[%s3 + $0x28] sm:$0xf]
  %v1398 = vld [vmem:[%s3 + $0x2c] sm:$0xf]
  %v1399 = vld [vmem:[%s3 + $0x30] sm:$0xf]
  %v1400 = vld [vmem:[%s3 + $0x34] sm:$0xf]
  %v1401 = vld [vmem:[%s3 + $0x38] sm:$0xf]
  %v1402 = vld [vmem:[%s3 + $0x3c] sm:$0xf]
  %v1403 = vld [vmem:[%s3 + $0x40] sm:$0xf]
  %v1404 = vld [vmem:[%s3 + $0x44] sm:$0xf]
  %v1405 = vld [vmem:[%s3 + $0x48] sm:$0xf]
  %v1406 = vld [vmem:[%s3 + $0x4c] sm:$0xf]
  %v1407 = vld [vmem:[%s3 + $0x50] sm:$0xf]
  %v1408 = vld [vmem:[%s3 + $0x54] sm:$0xf]
  %v1409 = vld [vmem:[%s3 + $0x58] sm:$0xf]
  %v1410 = vld [vmem:[%s3 + $0x5c] sm:$0xf]
  %v1411 = vld [vmem:[%s3 + $0x60] sm:$0xf]
  %v1412 = vld [vmem:[%s3 + $0x64] sm:$0xf]
  %v1413 = vld [vmem:[%s3 + $0x68] sm:$0xf]
  %v1414 = vld [vmem:[%s3 + $0x6c] sm:$0xf]
  %v1415 = vld [vmem:[%s3 + $0x70] sm:$0xf]
  %v1416 = vld [vmem:[%s3 + $0x74] sm:$0xf]
  %v1417 = vld [vmem:[%s3 + $0x78] sm:$0xf]
  %v1418 = vld [vmem:[%s3 + $0x7c] sm:$0xf]
  %v1419 = vld [vmem:[%s3 + $0x80] sm:$0xf]
  %v1420 = vld [vmem:[%s3 + $0x84] sm:$0xf]
  %v1421 = vld [vmem:[%s3 + $0x88] sm:$0xf]
  %v1422 = vld [vmem:[%s3 + $0x8c] sm:$0xf]
  %v1423 = vld [vmem:[%s3 + $0x90] sm:$0xf]
  %v1424 = vld [vmem:[%s3 + $0x94] sm:$0xf]
  %v1425 = vld [vmem:[%s3 + $0x98] sm:$0xf]
  %v1426 = vld [vmem:[%s3 + $0x9c] sm:$0xf]
  %v1427 = vld [vmem:[%s3 + $0xa0] sm:$0xf]
  %v1428 = vld [vmem:[%s3 + $0xa4] sm:$0xf]
  %v1429 = vld [vmem:[%s3 + $0xa8] sm:$0xf]
  %v1430 = vld [vmem:[%s3 + $0xac] sm:$0xf]
  %v1431 = vld [vmem:[%s3 + $0xb0] sm:$0xf]
  %v1432 = vld [vmem:[%s3 + $0xb4] sm:$0xf]
  %v1433 = vld [vmem:[%s3 + $0xb8] sm:$0xf]
  %v1434 = vld [vmem:[%s3 + $0xbc] sm:$0xf]
  %v1435 = vld [vmem:[%s3 + $0xc0] sm:$0xf]
  %v1485 = vunpack.c.l.b16 %v1387
  %v1486 = vunpack.c.l.b16 %v1388
  %v1487 = vunpack.c.l.b16 %v1389
  %v1488 = vunpack.c.l.b16 %v1390
  %v1489 = vunpack.c.l.b16 %v1391
  %v1490 = vunpack.c.l.b16 %v1392
  %v1491 = vunpack.c.l.b16 %v1393
  %v1492 = vunpack.c.l.b16 %v1394
  %v1493 = vunpack.c.l.b16 %v1395
  %v1494 = vunpack.c.l.b16 %v1396
  %v1495 = vunpack.c.l.b16 %v1397
  %v1496 = vunpack.c.l.b16 %v1398
  %v1497 = vunpack.c.l.b16 %v1399
  %v1498 = vunpack.c.l.b16 %v1400
  %v1499 = vunpack.c.l.b16 %v1401
  %v1500 = vunpack.c.l.b16 %v1402
  %v1501 = vunpack.c.l.b16 %v1403
  %v1502 = vunpack.c.l.b16 %v1404
  %v1503 = vunpack.c.l.b16 %v1405
  %v1504 = vunpack.c.l.b16 %v1406
  %v1505 = vunpack.c.l.b16 %v1407
  %v1506 = vunpack.c.l.b16 %v1408
  %v1507 = vunpack.c.l.b16 %v1409
  %v1508 = vunpack.c.l.b16 %v1410
  %v1509 = vunpack.c.l.b16 %v1411
  %v1510 = vunpack.c.l.b16 %v1412
  %v1511 = vunpack.c.l.b16 %v1413
  %v1512 = vunpack.c.l.b16 %v1414
  %v1513 = vunpack.c.l.b16 %v1415
  %v1514 = vunpack.c.l.b16 %v1416
  %v1515 = vunpack.c.l.b16 %v1417
  %v1516 = vunpack.c.l.b16 %v1418
  %v1517 = vunpack.c.l.b16 %v1419
  %v1518 = vunpack.c.l.b16 %v1420
  %v1519 = vunpack.c.l.b16 %v1421
  %v1520 = vunpack.c.l.b16 %v1422
  %v1521 = vunpack.c.l.b16 %v1423
  %v1522 = vunpack.c.l.b16 %v1424
  %v1523 = vunpack.c.l.b16 %v1425
  %v1524 = vunpack.c.l.b16 %v1426
  %v1525 = vunpack.c.l.b16 %v1427
  %v1526 = vunpack.c.l.b16 %v1428
  %v1527 = vunpack.c.l.b16 %v1429
  %v1528 = vunpack.c.l.b16 %v1430
  %v1529 = vunpack.c.l.b16 %v1431
  %v1530 = vunpack.c.l.b16 %v1432
  %v1531 = vunpack.c.l.b16 %v1433
  %v1532 = vunpack.c.l.b16 %v1434
  %v1533 = vunpack.c.l.b16 %v1435
  %v1534 = vpack.c.b16 %v1486, %v1485
  %v1535 = vpack.c.b16 %v1488, %v1487
  %v1536 = vpack.c.b16 %v1490, %v1489
  %v1537 = vpack.c.b16 %v1492, %v1491
  %v1538 = vpack.c.b16 %v1494, %v1493
  %v1539 = vpack.c.b16 %v1496, %v1495
  %v1540 = vpack.c.b16 %v1498, %v1497
  %v1541 = vpack.c.b16 %v1500, %v1499
  %v1542 = vpack.c.b16 %v1502, %v1501
  %v1543 = vpack.c.b16 %v1504, %v1503
  %v1544 = vpack.c.b16 %v1506, %v1505
  %v1545 = vpack.c.b16 %v1508, %v1507
  %v1546 = vpack.c.b16 %v1510, %v1509
  %v1547 = vpack.c.b16 %v1512, %v1511
  %v1548 = vpack.c.b16 %v1514, %v1513
  %v1549 = vpack.c.b16 %v1516, %v1515
  %v1550 = vpack.c.b16 %v1518, %v1517
  %v1551 = vpack.c.b16 %v1520, %v1519
  %v1552 = vpack.c.b16 %v1522, %v1521
  %v1553 = vpack.c.b16 %v1524, %v1523
  %v1554 = vpack.c.b16 %v1526, %v1525
  %v1555 = vpack.c.b16 %v1528, %v1527
  %v1556 = vpack.c.b16 %v1530, %v1529
  %v1557 = vpack.c.b16 %v1532, %v1531
  %v1558 = vpack.c.b16 %v1533, %v1533
  %v1560 = vsel %vm215, %v1534, 0
  %v1563 = vsel %vm215, %v1535, 0
  %v1566 = vsel %vm215, %v1536, 0
  %v1569 = vsel %vm215, %v1537, 0
  %v1572 = vsel %vm215, %v1538, 0
  %v1575 = vsel %vm215, %v1539, 0
  %v1578 = vsel %vm215, %v1540, 0
  %v1581 = vsel %vm215, %v1541, 0
  %v1584 = vsel %vm215, %v1542, 0
  %v1587 = vsel %vm215, %v1543, 0
  %v1590 = vsel %vm215, %v1544, 0
  %v1593 = vsel %vm215, %v1545, 0
  %v1596 = vsel %vm215, %v1546, 0
  %v1599 = vsel %vm215, %v1547, 0
  %v1602 = vsel %vm215, %v1548, 0
  %v1605 = vsel %vm215, %v1549, 0
  %v1608 = vsel %vm215, %v1550, 0
  %v1611 = vsel %vm215, %v1551, 0
  %v1614 = vsel %vm215, %v1552, 0
  %v1617 = vsel %vm215, %v1553, 0
  %v1620 = vsel %vm215, %v1554, 0
  %v1623 = vsel %vm215, %v1555, 0
  %v1626 = vsel %vm215, %v1556, 0
  %v1629 = vsel %vm215, %v1557, 0
  %v1632 = vsel %vm215, %v1558, 0
  %1634 = vmatpush.bf16.msra.mxu0 0
  %1635 = vmatpush.bf16.msra.mxu0 0
  %1636 = vmatpush.bf16.msra.mxu0 0
  %1637 = vmatpush.bf16.msra.mxu0 0
  %1638 = vmatpush.bf16.msra.mxu0 0
  %1639 = vmatpush.bf16.msra.mxu0 0
  %1640 = vmatpush.bf16.msra.mxu0 %v296
  %1641 = vmatpush.bf16.msra.mxu0 %v212
  %1642 = vmatmul.bf16.gmra.mxu0 %v1560
  %v1643 = vpop.f32.mrf.mxu0
  %v1644 = vadd.f32 %v79, %v1643
  %v1645 = vpop.f32.mrf.mxu0
  %v1646 = vadd.f32 %v79, %v1645
  %1647 = vmatmul.bf16.gmra.mxu0 %v1563
  %v1648 = vpop.f32.mrf.mxu0
  %v1649 = vadd.f32 %v79, %v1648
  %v1650 = vpop.f32.mrf.mxu0
  %v1651 = vadd.f32 %v79, %v1650
  %1652 = vmatmul.bf16.gmra.mxu0 %v1566
  %v1653 = vpop.f32.mrf.mxu0
  %v1654 = vadd.f32 %v79, %v1653
  %v1655 = vpop.f32.mrf.mxu0
  %v1656 = vadd.f32 %v79, %v1655
  %1657 = vmatmul.bf16.gmra.mxu0 %v1569
  %v1658 = vpop.f32.mrf.mxu0
  %v1659 = vadd.f32 %v79, %v1658
  %v1660 = vpop.f32.mrf.mxu0
  %v1661 = vadd.f32 %v79, %v1660
  %1662 = vmatmul.bf16.gmra.mxu0 %v1572
  %v1663 = vpop.f32.mrf.mxu0
  %v1664 = vadd.f32 %v79, %v1663
  %v1665 = vpop.f32.mrf.mxu0
  %v1666 = vadd.f32 %v79, %v1665
  %1667 = vmatmul.bf16.gmra.mxu0 %v1575
  %v1668 = vpop.f32.mrf.mxu0
  %v1669 = vadd.f32 %v79, %v1668
  %v1670 = vpop.f32.mrf.mxu0
  %v1671 = vadd.f32 %v79, %v1670
  %1672 = vmatmul.bf16.gmra.mxu0 %v1578
  %v1673 = vpop.f32.mrf.mxu0
  %v1674 = vadd.f32 %v79, %v1673
  %v1675 = vpop.f32.mrf.mxu0
  %v1676 = vadd.f32 %v79, %v1675
  %1677 = vmatmul.bf16.gmra.mxu0 %v1581
  %v1678 = vpop.f32.mrf.mxu0
  %v1679 = vadd.f32 %v79, %v1678
  %v1680 = vpop.f32.mrf.mxu0
  %v1681 = vadd.f32 %v79, %v1680
  %1682 = vmatmul.bf16.gmra.mxu0 %v1584
  %v1683 = vpop.f32.mrf.mxu0
  %v1684 = vadd.f32 %v79, %v1683
  %v1685 = vpop.f32.mrf.mxu0
  %v1686 = vadd.f32 %v79, %v1685
  %1687 = vmatmul.bf16.gmra.mxu0 %v1587
  %v1688 = vpop.f32.mrf.mxu0
  %v1689 = vadd.f32 %v79, %v1688
  %v1690 = vpop.f32.mrf.mxu0
  %v1691 = vadd.f32 %v79, %v1690
  %1692 = vmatmul.bf16.gmra.mxu0 %v1590
  %v1693 = vpop.f32.mrf.mxu0
  %v1694 = vadd.f32 %v79, %v1693
  %v1695 = vpop.f32.mrf.mxu0
  %v1696 = vadd.f32 %v79, %v1695
  %1697 = vmatmul.bf16.gmra.mxu0 %v1593
  %v1698 = vpop.f32.mrf.mxu0
  %v1699 = vadd.f32 %v79, %v1698
  %v1700 = vpop.f32.mrf.mxu0
  %v1701 = vadd.f32 %v79, %v1700
  %1702 = vmatmul.bf16.gmra.mxu0 %v1596
  %v1703 = vpop.f32.mrf.mxu0
  %v1704 = vadd.f32 %v79, %v1703
  %v1705 = vpop.f32.mrf.mxu0
  %v1706 = vadd.f32 %v79, %v1705
  %1707 = vmatmul.bf16.gmra.mxu0 %v1599
  %v1708 = vpop.f32.mrf.mxu0
  %v1709 = vadd.f32 %v79, %v1708
  %v1710 = vpop.f32.mrf.mxu0
  %v1711 = vadd.f32 %v79, %v1710
  %1712 = vmatmul.bf16.gmra.mxu0 %v1602
  %v1713 = vpop.f32.mrf.mxu0
  %v1714 = vadd.f32 %v79, %v1713
  %v1715 = vpop.f32.mrf.mxu0
  %v1716 = vadd.f32 %v79, %v1715
  %1717 = vmatmul.bf16.gmra.mxu0 %v1605
  %v1718 = vpop.f32.mrf.mxu0
  %v1719 = vadd.f32 %v79, %v1718
  %v1720 = vpop.f32.mrf.mxu0
  %v1721 = vadd.f32 %v79, %v1720
  %1722 = vmatmul.bf16.gmra.mxu0 %v1608
  %v1723 = vpop.f32.mrf.mxu0
  %v1724 = vadd.f32 %v79, %v1723
  %v1725 = vpop.f32.mrf.mxu0
  %v1726 = vadd.f32 %v79, %v1725
  %1727 = vmatmul.bf16.gmra.mxu0 %v1611
  %v1728 = vpop.f32.mrf.mxu0
  %v1729 = vadd.f32 %v79, %v1728
  %v1730 = vpop.f32.mrf.mxu0
  %v1731 = vadd.f32 %v79, %v1730
  %1732 = vmatmul.bf16.gmra.mxu0 %v1614
  %v1733 = vpop.f32.mrf.mxu0
  %v1734 = vadd.f32 %v79, %v1733
  %v1735 = vpop.f32.mrf.mxu0
  %v1736 = vadd.f32 %v79, %v1735
  %1737 = vmatmul.bf16.gmra.mxu0 %v1617
  %v1738 = vpop.f32.mrf.mxu0
  %v1739 = vadd.f32 %v79, %v1738
  %v1740 = vpop.f32.mrf.mxu0
  %v1741 = vadd.f32 %v79, %v1740
  %1742 = vmatmul.bf16.gmra.mxu0 %v1620
  %v1743 = vpop.f32.mrf.mxu0
  %v1744 = vadd.f32 %v79, %v1743
  %v1745 = vpop.f32.mrf.mxu0
  %v1746 = vadd.f32 %v79, %v1745
  %1747 = vmatmul.bf16.gmra.mxu0 %v1623
  %v1748 = vpop.f32.mrf.mxu0
  %v1749 = vadd.f32 %v79, %v1748
  %v1750 = vpop.f32.mrf.mxu0
  %v1751 = vadd.f32 %v79, %v1750
  %1752 = vmatmul.bf16.gmra.mxu0 %v1626
  %v1753 = vpop.f32.mrf.mxu0
  %v1754 = vadd.f32 %v79, %v1753
  %v1755 = vpop.f32.mrf.mxu0
  %v1756 = vadd.f32 %v79, %v1755
  %1757 = vmatmul.bf16.gmra.mxu0 %v1629
  %v1758 = vpop.f32.mrf.mxu0
  %v1759 = vadd.f32 %v79, %v1758
  %v1760 = vpop.f32.mrf.mxu0
  %v1761 = vadd.f32 %v79, %v1760
  %1762 = vmatmul.bf16.gmra.mxu0 %v1632
  %v1763 = vpop.f32.mrf.mxu0
  %v1764 = vadd.f32 %v79, %v1763
  %v1765 = vpop.f32.mrf.mxu0
  %1766 = vdwg.mxu0
  %v1767 = vmax.f32 %v1644, 0.0
  %v1768 = vmax.f32 %v1646, 0.0
  %v1769 = vmax.f32 %v1649, 0.0
  %v1770 = vmax.f32 %v1651, 0.0
  %v1771 = vmax.f32 %v1654, 0.0
  %v1772 = vmax.f32 %v1656, 0.0
  %v1773 = vmax.f32 %v1659, 0.0
  %v1774 = vmax.f32 %v1661, 0.0
  %v1775 = vmax.f32 %v1664, 0.0
  %v1776 = vmax.f32 %v1666, 0.0
  %v1777 = vmax.f32 %v1669, 0.0
  %v1778 = vmax.f32 %v1671, 0.0
  %v1779 = vmax.f32 %v1674, 0.0
  %v1780 = vmax.f32 %v1676, 0.0
  %v1781 = vmax.f32 %v1679, 0.0
  %v1782 = vmax.f32 %v1681, 0.0
  %v1783 = vmax.f32 %v1684, 0.0
  %v1784 = vmax.f32 %v1686, 0.0
  %v1785 = vmax.f32 %v1689, 0.0
  %v1786 = vmax.f32 %v1691, 0.0
  %v1787 = vmax.f32 %v1694, 0.0
  %v1788 = vmax.f32 %v1696, 0.0
  %v1789 = vmax.f32 %v1699, 0.0
  %v1790 = vmax.f32 %v1701, 0.0
  %v1791 = vmax.f32 %v1704, 0.0
  %v1792 = vmax.f32 %v1706, 0.0
  %v1793 = vmax.f32 %v1709, 0.0
  %v1794 = vmax.f32 %v1711, 0.0
  %v1795 = vmax.f32 %v1714, 0.0
  %v1796 = vmax.f32 %v1716, 0.0
  %v1797 = vmax.f32 %v1719, 0.0
  %v1798 = vmax.f32 %v1721, 0.0
  %v1799 = vmax.f32 %v1724, 0.0
  %v1800 = vmax.f32 %v1726, 0.0
  %v1801 = vmax.f32 %v1729, 0.0
  %v1802 = vmax.f32 %v1731, 0.0
  %v1803 = vmax.f32 %v1734, 0.0
  %v1804 = vmax.f32 %v1736, 0.0
  %v1805 = vmax.f32 %v1739, 0.0
  %v1806 = vmax.f32 %v1741, 0.0
  %v1807 = vmax.f32 %v1744, 0.0
  %v1808 = vmax.f32 %v1746, 0.0
  %v1809 = vmax.f32 %v1749, 0.0
  %v1810 = vmax.f32 %v1751, 0.0
  %v1811 = vmax.f32 %v1754, 0.0
  %v1812 = vmax.f32 %v1756, 0.0
  %v1813 = vmax.f32 %v1759, 0.0
  %v1814 = vmax.f32 %v1761, 0.0
  %v1815 = vmax.f32 %v1764, 0.0
  %v1816 = vmax.f32 %v1338, %v1767
  %v1817 = vmax.f32 %v1339, %v1768
  %v1818 = vmax.f32 %v1340, %v1769
  %v1819 = vmax.f32 %v1341, %v1770
  %v1820 = vmax.f32 %v1342, %v1771
  %v1821 = vmax.f32 %v1343, %v1772
  %v1822 = vmax.f32 %v1344, %v1773
  %v1823 = vmax.f32 %v1345, %v1774
  %v1824 = vmax.f32 %v1346, %v1775
  %v1825 = vmax.f32 %v1347, %v1776
  %v1826 = vmax.f32 %v1348, %v1777
  %v1827 = vmax.f32 %v1349, %v1778
  %v1828 = vmax.f32 %v1350, %v1779
  %v1829 = vmax.f32 %v1351, %v1780
  %v1830 = vmax.f32 %v1352, %v1781
  %v1831 = vmax.f32 %v1353, %v1782
  %v1832 = vmax.f32 %v1354, %v1783
  %v1833 = vmax.f32 %v1355, %v1784
  %v1834 = vmax.f32 %v1356, %v1785
  %v1835 = vmax.f32 %v1357, %v1786
  %v1836 = vmax.f32 %v1358, %v1787
  %v1837 = vmax.f32 %v1359, %v1788
  %v1838 = vmax.f32 %v1360, %v1789
  %v1839 = vmax.f32 %v1361, %v1790
  %v1840 = vmax.f32 %v1362, %v1791
  %v1841 = vmax.f32 %v1363, %v1792
  %v1842 = vmax.f32 %v1364, %v1793
  %v1843 = vmax.f32 %v1365, %v1794
  %v1844 = vmax.f32 %v1366, %v1795
  %v1845 = vmax.f32 %v1367, %v1796
  %v1846 = vmax.f32 %v1368, %v1797
  %v1847 = vmax.f32 %v1369, %v1798
  %v1848 = vmax.f32 %v1370, %v1799
  %v1849 = vmax.f32 %v1371, %v1800
  %v1850 = vmax.f32 %v1372, %v1801
  %v1851 = vmax.f32 %v1373, %v1802
  %v1852 = vmax.f32 %v1374, %v1803
  %v1853 = vmax.f32 %v1375, %v1804
  %v1854 = vmax.f32 %v1376, %v1805
  %v1855 = vmax.f32 %v1377, %v1806
  %v1856 = vmax.f32 %v1378, %v1807
  %v1857 = vmax.f32 %v1379, %v1808
  %v1858 = vmax.f32 %v1380, %v1809
  %v1859 = vmax.f32 %v1381, %v1810
  %v1860 = vmax.f32 %v1382, %v1811
  %v1861 = vmax.f32 %v1383, %v1812
  %v1862 = vmax.f32 %v1384, %v1813
  %v1863 = vmax.f32 %v1385, %v1814
  %v1864 = vmax.f32 %v1386, %v1815
  %v1865 = vmax.f32 %v909, %v1816
  %v1866 = vmax.f32 %v910, %v1817
  %v1867 = vmax.f32 %v911, %v1818
  %v1868 = vmax.f32 %v912, %v1819
  %v1869 = vmax.f32 %v913, %v1820
  %v1870 = vmax.f32 %v914, %v1821
  %v1871 = vmax.f32 %v915, %v1822
  %v1872 = vmax.f32 %v916, %v1823
  %v1873 = vmax.f32 %v917, %v1824
  %v1874 = vmax.f32 %v918, %v1825
  %v1875 = vmax.f32 %v919, %v1826
  %v1876 = vmax.f32 %v920, %v1827
  %v1877 = vmax.f32 %v921, %v1828
  %v1878 = vmax.f32 %v922, %v1829
  %v1879 = vmax.f32 %v923, %v1830
  %v1880 = vmax.f32 %v924, %v1831
  %v1881 = vmax.f32 %v925, %v1832
  %v1882 = vmax.f32 %v926, %v1833
  %v1883 = vmax.f32 %v927, %v1834
  %v1884 = vmax.f32 %v928, %v1835
  %v1885 = vmax.f32 %v929, %v1836
  %v1886 = vmax.f32 %v930, %v1837
  %v1887 = vmax.f32 %v931, %v1838
  %v1888 = vmax.f32 %v932, %v1839
  %v1889 = vmax.f32 %v933, %v1840
  %v1890 = vmax.f32 %v934, %v1841
  %v1891 = vmax.f32 %v935, %v1842
  %v1892 = vmax.f32 %v936, %v1843
  %v1893 = vmax.f32 %v937, %v1844
  %v1894 = vmax.f32 %v938, %v1845
  %v1895 = vmax.f32 %v939, %v1846
  %v1896 = vmax.f32 %v940, %v1847
  %v1897 = vmax.f32 %v941, %v1848
  %v1898 = vmax.f32 %v942, %v1849
  %v1899 = vmax.f32 %v943, %v1850
  %v1900 = vmax.f32 %v944, %v1851
  %v1901 = vmax.f32 %v945, %v1852
  %v1902 = vmax.f32 %v946, %v1853
  %v1903 = vmax.f32 %v947, %v1854
  %v1904 = vmax.f32 %v948, %v1855
  %v1905 = vmax.f32 %v949, %v1856
  %v1906 = vmax.f32 %v950, %v1857
  %v1907 = vmax.f32 %v951, %v1858
  %v1908 = vmax.f32 %v952, %v1859
  %v1909 = vmax.f32 %v953, %v1860
  %v1910 = vmax.f32 %v954, %v1861
  %v1911 = vmax.f32 %v955, %v1862
  %v1912 = vmax.f32 %v956, %v1863
  %v1913 = vmax.f32 %v957, %v1864
  %vm1914 = vcmask 261120
  %1915 = vst.msk [vmem:[%s6] sm:$0xff] %vm1914, %v1865
  %1916 = vst.msk [vmem:[%s6 + $0x8] sm:$0xff] %vm1914, %v1866
  %1917 = vst.msk [vmem:[%s6 + $0x10] sm:$0xff] %vm1914, %v1867
  %1918 = vst.msk [vmem:[%s6 + $0x18] sm:$0xff] %vm1914, %v1868
  %1919 = vst.msk [vmem:[%s6 + $0x20] sm:$0xff] %vm1914, %v1869
  %1920 = vst.msk [vmem:[%s6 + $0x28] sm:$0xff] %vm1914, %v1870
  %1921 = vst.msk [vmem:[%s6 + $0x30] sm:$0xff] %vm1914, %v1871
  %1922 = vst.msk [vmem:[%s6 + $0x38] sm:$0xff] %vm1914, %v1872
  %1923 = vst.msk [vmem:[%s6 + $0x40] sm:$0xff] %vm1914, %v1873
  %1924 = vst.msk [vmem:[%s6 + $0x48] sm:$0xff] %vm1914, %v1874
  %1925 = vst.msk [vmem:[%s6 + $0x50] sm:$0xff] %vm1914, %v1875
  %1926 = vst.msk [vmem:[%s6 + $0x58] sm:$0xff] %vm1914, %v1876
  %1927 = vst.msk [vmem:[%s6 + $0x60] sm:$0xff] %vm1914, %v1877
  %1928 = vst.msk [vmem:[%s6 + $0x68] sm:$0xff] %vm1914, %v1878
  %1929 = vst.msk [vmem:[%s6 + $0x70] sm:$0xff] %vm1914, %v1879
  %1930 = vst.msk [vmem:[%s6 + $0x78] sm:$0xff] %vm1914, %v1880
  %1931 = vst.msk [vmem:[%s6 + $0x80] sm:$0xff] %vm1914, %v1881
  %1932 = vst.msk [vmem:[%s6 + $0x88] sm:$0xff] %vm1914, %v1882
  %1933 = vst.msk [vmem:[%s6 + $0x90] sm:$0xff] %vm1914, %v1883
  %1934 = vst.msk [vmem:[%s6 + $0x98] sm:$0xff] %vm1914, %v1884
  %1935 = vst.msk [vmem:[%s6 + $0xa0] sm:$0xff] %vm1914, %v1885
  %1936 = vst.msk [vmem:[%s6 + $0xa8] sm:$0xff] %vm1914, %v1886
  %1937 = vst.msk [vmem:[%s6 + $0xb0] sm:$0xff] %vm1914, %v1887
  %1938 = vst.msk [vmem:[%s6 + $0xb8] sm:$0xff] %vm1914, %v1888
  %1939 = vst.msk [vmem:[%s6 + $0xc0] sm:$0xff] %vm1914, %v1889
  %1940 = vst.msk [vmem:[%s6 + $0xc8] sm:$0xff] %vm1914, %v1890
  %1941 = vst.msk [vmem:[%s6 + $0xd0] sm:$0xff] %vm1914, %v1891
  %1942 = vst.msk [vmem:[%s6 + $0xd8] sm:$0xff] %vm1914, %v1892
  %1943 = vst.msk [vmem:[%s6 + $0xe0] sm:$0xff] %vm1914, %v1893
  %1944 = vst.msk [vmem:[%s6 + $0xe8] sm:$0xff] %vm1914, %v1894
  %1945 = vst.msk [vmem:[%s6 + $0xf0] sm:$0xff] %vm1914, %v1895
  %1946 = vst.msk [vmem:[%s6 + $0xf8] sm:$0xff] %vm1914, %v1896
  %1947 = vst.msk [vmem:[%s6 + $0x100] sm:$0xff] %vm1914, %v1897
  %1948 = vst.msk [vmem:[%s6 + $0x108] sm:$0xff] %vm1914, %v1898
  %1949 = vst.msk [vmem:[%s6 + $0x110] sm:$0xff] %vm1914, %v1899
  %1950 = vst.msk [vmem:[%s6 + $0x118] sm:$0xff] %vm1914, %v1900
  %1951 = vst.msk [vmem:[%s6 + $0x120] sm:$0xff] %vm1914, %v1901
  %1952 = vst.msk [vmem:[%s6 + $0x128] sm:$0xff] %vm1914, %v1902
  %1953 = vst.msk [vmem:[%s6 + $0x130] sm:$0xff] %vm1914, %v1903
  %1954 = vst.msk [vmem:[%s6 + $0x138] sm:$0xff] %vm1914, %v1904
  %1955 = vst.msk [vmem:[%s6 + $0x140] sm:$0xff] %vm1914, %v1905
  %1956 = vst.msk [vmem:[%s6 + $0x148] sm:$0xff] %vm1914, %v1906
  %1957 = vst.msk [vmem:[%s6 + $0x150] sm:$0xff] %vm1914, %v1907
  %1958 = vst.msk [vmem:[%s6 + $0x158] sm:$0xff] %vm1914, %v1908
  %1959 = vst.msk [vmem:[%s6 + $0x160] sm:$0xff] %vm1914, %v1909
  %1960 = vst.msk [vmem:[%s6 + $0x168] sm:$0xff] %vm1914, %v1910
  %1961 = vst.msk [vmem:[%s6 + $0x170] sm:$0xff] %vm1914, %v1911
  %1962 = vst.msk [vmem:[%s6 + $0x178] sm:$0xff] %vm1914, %v1912
  %1963 = vst.msk [vmem:[%s6 + $0x180] sm:$0xff] %vm1914, %v1913
  // Predicated region
  $region26: #{cnn_forward.3} parent=0 // pred_check
    _
  $region27: #{cnn_forward.3} parent=0 // pred_check_branch
    %1965 = sbr.rel (0) target = $region29
  $region28: #{cnn_forward.3} parent=0 // pred_region
    _
  $region29: #{cnn_forward.3} parent=0 // pred_fallthru
    _
  // Predicated region
  $region30: #{cnn_forward.3} parent=0 // pred_check
    _
  $region31: #{cnn_forward.3} parent=0 // pred_check_branch
    %1967 = sbr.rel (0) target = $region33
  $region32: #{cnn_forward.3} parent=0 // pred_region
    _
  $region33: #{cnn_forward.3} parent=0 // pred_fallthru
    _

// kernel: cnn_forward.5
$region0: #{cnn_forward.5}
  #allocation0 [shape = 'u32[]', space=smem, size = 0x4, offset = 0x4, fixed_abs, tag = 'smem constant byte address 0x4 - core index']
  #allocation1 [shape = 'u32[72,128]{1,0:T(1,128)}', space=vmem, size = 0x9000, scoped, tag = 'internal scratch']
  %s0 = inlined_call_operand.vmem [shape: f32[8,3136], index: 0, kind: input, shape index: {}]
  %s1 = inlined_call_operand.vmem [shape: f32[8,3136], index: 1, kind: input, shape index: {}]
  %s2 = inlined_call_operand.vmem [shape: f32[8,3136], index: 2, kind: input, shape index: {}]
  %s3 = inlined_call_operand.vmem [shape: f32[8,3136], index: 3, kind: input, shape index: {}]
  %s4 = inlined_call_operand.vmem [shape: bf16[3136,256], index: 4, kind: input, shape index: {}]
  %s5 = inlined_call_operand.vmem [shape: f32[1,256], index: 5, kind: input, shape index: {}]
  %s6 = inlined_call_operand.vmem [shape: bf16[256,128], index: 6, kind: input, shape index: {}]
  %s7 = inlined_call_operand.vmem [shape: f32[1,128], index: 7, kind: input, shape index: {}]
  %s8 = inlined_call_operand.vmem [shape: f32[8,128], index: 8, kind: output, shape index: {}]
  %s9 = sld [smem:[#allocation0]]
  $region42: #{cnn_forward.5} parent=0
    _
  %s11 = ssub.s32 1, %s9
  %s12 = scalar_select 0, %s11, %s9
  // Predicated region
  $region2: #{cnn_forward.5} parent=0 // pred_check
    _
  $region3: #{cnn_forward.5} parent=0 // pred_check_branch
    %14 = sbr.rel (0) target = $region5
  $region4: #{cnn_forward.5} parent=0 // pred_region
    _
  $region5: #{cnn_forward.5} parent=0 // pred_fallthru
    _
  // Predicated region
  $region6: #{cnn_forward.5} parent=0 // pred_check
    _
  $region7: #{cnn_forward.5} parent=0 // pred_check_branch
    %16 = sbr.rel (0) target = $region9
  $region8: #{cnn_forward.5} parent=0 // pred_region
    _
  $region9: #{cnn_forward.5} parent=0 // pred_fallthru
    _
  // Predicated region
  $region10: #{cnn_forward.5} parent=0 // pred_check
    _
  $region11: #{cnn_forward.5} parent=0 // pred_check_branch
    %18 = sbr.rel (0) target = $region13
  $region12: #{cnn_forward.5} parent=0 // pred_region
    _
  $region13: #{cnn_forward.5} parent=0 // pred_fallthru
    _
  // Predicated region
  $region14: #{cnn_forward.5} parent=0 // pred_check
    _
  $region15: #{cnn_forward.5} parent=0 // pred_check_branch
    %20 = sbr.rel (0) target = $region17
  $region16: #{cnn_forward.5} parent=0 // pred_region
    _
  $region17: #{cnn_forward.5} parent=0 // pred_fallthru
    _
  // Predicated region
  $region18: #{cnn_forward.5} parent=0 // pred_check
    _
  $region19: #{cnn_forward.5} parent=0 // pred_check_branch
    %22 = sbr.rel (0) target = $region21
  $region20: #{cnn_forward.5} parent=0 // pred_region
    _
  $region21: #{cnn_forward.5} parent=0 // pred_fallthru
    _
  // Predicated region
  $region22: #{cnn_forward.5} parent=0 // pred_check
    _
  $region23: #{cnn_forward.5} parent=0 // pred_check_branch
    %24 = sbr.rel (0) target = $region25
  $region24: #{cnn_forward.5} parent=0 // pred_region
    _
  $region25: #{cnn_forward.5} parent=0 // pred_fallthru
    _
  // Predicated region
  $region26: #{cnn_forward.5} parent=0 // pred_check
    _
  $region27: #{cnn_forward.5} parent=0 // pred_check_branch
    %26 = sbr.rel (0) target = $region29
  $region28: #{cnn_forward.5} parent=0 // pred_region
    _
  $region29: #{cnn_forward.5} parent=0 // pred_fallthru
    _
  // Predicated region
  $region30: #{cnn_forward.5} parent=0 // pred_check
    _
  $region31: #{cnn_forward.5} parent=0 // pred_check_branch
    %28 = sbr.rel (0) target = $region33
  $region32: #{cnn_forward.5} parent=0 // pred_region
    _
  $region33: #{cnn_forward.5} parent=0 // pred_fallthru
    _
  %v30 = vld [vmem:[%s0] sm:$0xff]
  %v31 = vld [vmem:[%s0 + $0x8] sm:$0xff]
  %v32 = vld [vmem:[%s0 + $0x10] sm:$0xff]
  %v33 = vld [vmem:[%s0 + $0x18] sm:$0xff]
  %v34 = vld [vmem:[%s0 + $0x20] sm:$0xff]
  %v35 = vld [vmem:[%s0 + $0x28] sm:$0xff]
  %v36 = vld [vmem:[%s0 + $0x30] sm:$0xff]
  %v37 = vld [vmem:[%s0 + $0x38] sm:$0xff]
  %v38 = vld [vmem:[%s0 + $0x40] sm:$0xff]
  %v39 = vld [vmem:[%s0 + $0x48] sm:$0xff]
  %v40 = vld [vmem:[%s0 + $0x50] sm:$0xff]
  %v41 = vld [vmem:[%s0 + $0x58] sm:$0xff]
  %v42 = vld [vmem:[%s0 + $0x60] sm:$0xff]
  %v43 = vld [vmem:[%s0 + $0x68] sm:$0xff]
  %v44 = vld [vmem:[%s0 + $0x70] sm:$0xff]
  %v45 = vld [vmem:[%s0 + $0x78] sm:$0xff]
  %v46 = vld [vmem:[%s0 + $0x80] sm:$0xff]
  %v47 = vld [vmem:[%s0 + $0x88] sm:$0xff]
  %v48 = vld [vmem:[%s0 + $0x90] sm:$0xff]
  %v49 = vld [vmem:[%s0 + $0x98] sm:$0xff]
  %v50 = vld [vmem:[%s0 + $0xa0] sm:$0xff]
  %v51 = vld [vmem:[%s0 + $0xa8] sm:$0xff]
  %v52 = vld [vmem:[%s0 + $0xb0] sm:$0xff]
  %v53 = vld [vmem:[%s0 + $0xb8] sm:$0xff]
  %v54 = vld [vmem:[%s0 + $0xc0] sm:$0xff]
  %v55 = vld [vmem:[%s1] sm:$0xff]
  %v56 = vld [vmem:[%s1 + $0x8] sm:$0xff]
  %v57 = vld [vmem:[%s1 + $0x10] sm:$0xff]
  %v58 = vld [vmem:[%s1 + $0x18] sm:$0xff]
  %v59 = vld [vmem:[%s1 + $0x20] sm:$0xff]
  %v60 = vld [vmem:[%s1 + $0x28] sm:$0xff]
  %v61 = vld [vmem:[%s1 + $0x30] sm:$0xff]
  %v62 = vld [vmem:[%s1 + $0x38] sm:$0xff]
  %v63 = vld [vmem:[%s1 + $0x40] sm:$0xff]
  %v64 = vld [vmem:[%s1 + $0x48] sm:$0xff]
  %v65 = vld [vmem:[%s1 + $0x50] sm:$0xff]
  %v66 = vld [vmem:[%s1 + $0x58] sm:$0xff]
  %v67 = vld [vmem:[%s1 + $0x60] sm:$0xff]
  %v68 = vld [vmem:[%s1 + $0x68] sm:$0xff]
  %v69 = vld [vmem:[%s1 + $0x70] sm:$0xff]
  %v70 = vld [vmem:[%s1 + $0x78] sm:$0xff]
  %v71 = vld [vmem:[%s1 + $0x80] sm:$0xff]
  %v72 = vld [vmem:[%s1 + $0x88] sm:$0xff]
  %v73 = vld [vmem:[%s1 + $0x90] sm:$0xff]
  %v74 = vld [vmem:[%s1 + $0x98] sm:$0xff]
  %v75 = vld [vmem:[%s1 + $0xa0] sm:$0xff]
  %v76 = vld [vmem:[%s1 + $0xa8] sm:$0xff]
  %v77 = vld [vmem:[%s1 + $0xb0] sm:$0xff]
  %v78 = vld [vmem:[%s1 + $0xb8] sm:$0xff]
  %v79 = vld [vmem:[%s1 + $0xc0] sm:$0xff]
  %v80 = vmax.f32 %v30, %v55
  %v81 = vmax.f32 %v31, %v56
  %v82 = vmax.f32 %v32, %v57
  %v83 = vmax.f32 %v33, %v58
  %v84 = vmax.f32 %v34, %v59
  %v85 = vmax.f32 %v35, %v60
  %v86 = vmax.f32 %v36, %v61
  %v87 = vmax.f32 %v37, %v62
  %v88 = vmax.f32 %v38, %v63
  %v89 = vmax.f32 %v39, %v64
  %v90 = vmax.f32 %v40, %v65
  %v91 = vmax.f32 %v41, %v66
  %v92 = vmax.f32 %v42, %v67
  %v93 = vmax.f32 %v43, %v68
  %v94 = vmax.f32 %v44, %v69
  %v95 = vmax.f32 %v45, %v70
  %v96 = vmax.f32 %v46, %v71
  %v97 = vmax.f32 %v47, %v72
  %v98 = vmax.f32 %v48, %v73
  %v99 = vmax.f32 %v49, %v74
  %v100 = vmax.f32 %v50, %v75
  %v101 = vmax.f32 %v51, %v76
  %v102 = vmax.f32 %v52, %v77
  %v103 = vmax.f32 %v53, %v78
  %v104 = vmax.f32 %v54, %v79
  %v105 = vld [vmem:[%s2] sm:$0xff]
  %v106 = vld [vmem:[%s2 + $0x8] sm:$0xff]
  %v107 = vld [vmem:[%s2 + $0x10] sm:$0xff]
  %v108 = vld [vmem:[%s2 + $0x18] sm:$0xff]
  %v109 = vld [vmem:[%s2 + $0x20] sm:$0xff]
  %v110 = vld [vmem:[%s2 + $0x28] sm:$0xff]
  %v111 = vld [vmem:[%s2 + $0x30] sm:$0xff]
  %v112 = vld [vmem:[%s2 + $0x38] sm:$0xff]
  %v113 = vld [vmem:[%s2 + $0x40] sm:$0xff]
  %v114 = vld [vmem:[%s2 + $0x48] sm:$0xff]
  %v115 = vld [vmem:[%s2 + $0x50] sm:$0xff]
  %v116 = vld [vmem:[%s2 + $0x58] sm:$0xff]
  %v117 = vld [vmem:[%s2 + $0x60] sm:$0xff]
  %v118 = vld [vmem:[%s2 + $0x68] sm:$0xff]
  %v119 = vld [vmem:[%s2 + $0x70] sm:$0xff]
  %v120 = vld [vmem:[%s2 + $0x78] sm:$0xff]
  %v121 = vld [vmem:[%s2 + $0x80] sm:$0xff]
  %v122 = vld [vmem:[%s2 + $0x88] sm:$0xff]
  %v123 = vld [vmem:[%s2 + $0x90] sm:$0xff]
  %v124 = vld [vmem:[%s2 + $0x98] sm:$0xff]
  %v125 = vld [vmem:[%s2 + $0xa0] sm:$0xff]
  %v126 = vld [vmem:[%s2 + $0xa8] sm:$0xff]
  %v127 = vld [vmem:[%s2 + $0xb0] sm:$0xff]
  %v128 = vld [vmem:[%s2 + $0xb8] sm:$0xff]
  %v129 = vld [vmem:[%s2 + $0xc0] sm:$0xff]
  %v130 = vld [vmem:[%s3] sm:$0xff]
  %v131 = vld [vmem:[%s3 + $0x8] sm:$0xff]
  %v132 = vld [vmem:[%s3 + $0x10] sm:$0xff]
  %v133 = vld [vmem:[%s3 + $0x18] sm:$0xff]
  %v134 = vld [vmem:[%s3 + $0x20] sm:$0xff]
  %v135 = vld [vmem:[%s3 + $0x28] sm:$0xff]
  %v136 = vld [vmem:[%s3 + $0x30] sm:$0xff]
  %v137 = vld [vmem:[%s3 + $0x38] sm:$0xff]
  %v138 = vld [vmem:[%s3 + $0x40] sm:$0xff]
  %v139 = vld [vmem:[%s3 + $0x48] sm:$0xff]
  %v140 = vld [vmem:[%s3 + $0x50] sm:$0xff]
  %v141 = vld [vmem:[%s3 + $0x58] sm:$0xff]
  %v142 = vld [vmem:[%s3 + $0x60] sm:$0xff]
  %v143 = vld [vmem:[%s3 + $0x68] sm:$0xff]
  %v144 = vld [vmem:[%s3 + $0x70] sm:$0xff]
  %v145 = vld [vmem:[%s3 + $0x78] sm:$0xff]
  %v146 = vld [vmem:[%s3 + $0x80] sm:$0xff]
  %v147 = vld [vmem:[%s3 + $0x88] sm:$0xff]
  %v148 = vld [vmem:[%s3 + $0x90] sm:$0xff]
  %v149 = vld [vmem:[%s3 + $0x98] sm:$0xff]
  %v150 = vld [vmem:[%s3 + $0xa0] sm:$0xff]
  %v151 = vld [vmem:[%s3 + $0xa8] sm:$0xff]
  %v152 = vld [vmem:[%s3 + $0xb0] sm:$0xff]
  %v153 = vld [vmem:[%s3 + $0xb8] sm:$0xff]
  %v154 = vld [vmem:[%s3 + $0xc0] sm:$0xff]
  %v155 = vmax.f32 %v105, %v130
  %v156 = vmax.f32 %v106, %v131
  %v157 = vmax.f32 %v107, %v132
  %v158 = vmax.f32 %v108, %v133
  %v159 = vmax.f32 %v109, %v134
  %v160 = vmax.f32 %v110, %v135
  %v161 = vmax.f32 %v111, %v136
  %v162 = vmax.f32 %v112, %v137
  %v163 = vmax.f32 %v113, %v138
  %v164 = vmax.f32 %v114, %v139
  %v165 = vmax.f32 %v115, %v140
  %v166 = vmax.f32 %v116, %v141
  %v167 = vmax.f32 %v117, %v142
  %v168 = vmax.f32 %v118, %v143
  %v169 = vmax.f32 %v119, %v144
  %v170 = vmax.f32 %v120, %v145
  %v171 = vmax.f32 %v121, %v146
  %v172 = vmax.f32 %v122, %v147
  %v173 = vmax.f32 %v123, %v148
  %v174 = vmax.f32 %v124, %v149
  %v175 = vmax.f32 %v125, %v150
  %v176 = vmax.f32 %v126, %v151
  %v177 = vmax.f32 %v127, %v152
  %v178 = vmax.f32 %v128, %v153
  %v179 = vmax.f32 %v129, %v154
  %v180 = vmax.f32 %v80, %v155
  %v181 = vmax.f32 %v81, %v156
  %v182 = vmax.f32 %v82, %v157
  %v183 = vmax.f32 %v83, %v158
  %v184 = vmax.f32 %v84, %v159
  %v185 = vmax.f32 %v85, %v160
  %v186 = vmax.f32 %v86, %v161
  %v187 = vmax.f32 %v87, %v162
  %v188 = vmax.f32 %v88, %v163
  %v189 = vmax.f32 %v89, %v164
  %v190 = vmax.f32 %v90, %v165
  %v191 = vmax.f32 %v91, %v166
  %v192 = vmax.f32 %v92, %v167
  %v193 = vmax.f32 %v93, %v168
  %v194 = vmax.f32 %v94, %v169
  %v195 = vmax.f32 %v95, %v170
  %v196 = vmax.f32 %v96, %v171
  %v197 = vmax.f32 %v97, %v172
  %v198 = vmax.f32 %v98, %v173
  %v199 = vmax.f32 %v99, %v174
  %v200 = vmax.f32 %v100, %v175
  %v201 = vmax.f32 %v101, %v176
  %v202 = vmax.f32 %v102, %v177
  %v203 = vmax.f32 %v103, %v178
  %v204 = vmax.f32 %v104, %v179
  %v205 = vpack.c.bf16 %v180, %v180
  %v206 = vpack.c.bf16 %v181, %v181
  %v207 = vpack.c.bf16 %v182, %v182
  %v208 = vpack.c.bf16 %v183, %v183
  %v209 = vpack.c.bf16 %v184, %v184
  %v210 = vpack.c.bf16 %v185, %v185
  %v211 = vpack.c.bf16 %v186, %v186
  %v212 = vpack.c.bf16 %v187, %v187
  %v213 = vpack.c.bf16 %v188, %v188
  %v214 = vpack.c.bf16 %v189, %v189
  %v215 = vpack.c.bf16 %v190, %v190
  %v216 = vpack.c.bf16 %v191, %v191
  %v217 = vpack.c.bf16 %v192, %v192
  %v218 = vpack.c.bf16 %v193, %v193
  %v219 = vpack.c.bf16 %v194, %v194
  %v220 = vpack.c.bf16 %v195, %v195
  %v221 = vpack.c.bf16 %v196, %v196
  %v222 = vpack.c.bf16 %v197, %v197
  %v223 = vpack.c.bf16 %v198, %v198
  %v224 = vpack.c.bf16 %v199, %v199
  %v225 = vpack.c.bf16 %v200, %v200
  %v226 = vpack.c.bf16 %v201, %v201
  %v227 = vpack.c.bf16 %v202, %v202
  %v228 = vpack.c.bf16 %v203, %v203
  %v229 = vpack.c.bf16 %v204, %v204
  %v230 = vld [vmem:[%s4] sm:$0xff]
  %v231 = vld [vmem:[%s4 + $0x8] sm:$0xff]
  %v232 = vld [vmem:[%s4 + $0x10] sm:$0xff]
  %v233 = vld [vmem:[%s4 + $0x18] sm:$0xff]
  %v234 = vld [vmem:[%s4 + $0x20] sm:$0xff]
  %v235 = vld [vmem:[%s4 + $0x28] sm:$0xff]
  %v236 = vld [vmem:[%s4 + $0x30] sm:$0xff]
  %v237 = vld [vmem:[%s4 + $0x38] sm:$0xff]
  %v238 = vld [vmem:[%s4 + $0x40] sm:$0xff]
  %v239 = vld [vmem:[%s4 + $0x48] sm:$0xff]
  %v240 = vld [vmem:[%s4 + $0x50] sm:$0xff]
  %v241 = vld [vmem:[%s4 + $0x58] sm:$0xff]
  %v242 = vld [vmem:[%s4 + $0x60] sm:$0xff]
  %v243 = vld [vmem:[%s4 + $0x68] sm:$0xff]
  %v244 = vld [vmem:[%s4 + $0x70] sm:$0xff]
  %v245 = vld [vmem:[%s4 + $0x78] sm:$0xff]
  %v246 = vld [vmem:[%s4 + $0x80] sm:$0xff]
  %v247 = vld [vmem:[%s4 + $0x88] sm:$0xff]
  %v248 = vld [vmem:[%s4 + $0x90] sm:$0xff]
  %v249 = vld [vmem:[%s4 + $0x98] sm:$0xff]
  %v250 = vld [vmem:[%s4 + $0xa0] sm:$0xff]
  %v251 = vld [vmem:[%s4 + $0xa8] sm:$0xff]
  %v252 = vld [vmem:[%s4 + $0xb0] sm:$0xff]
  %v253 = vld [vmem:[%s4 + $0xb8] sm:$0xff]
  %v254 = vld [vmem:[%s4 + $0xc0] sm:$0xff]
  %v255 = vld [vmem:[%s4 + $0xc8] sm:$0xff]
  %v256 = vld [vmem:[%s4 + $0xd0] sm:$0xff]
  %v257 = vld [vmem:[%s4 + $0xd8] sm:$0xff]
  %v258 = vld [vmem:[%s4 + $0xe0] sm:$0xff]
  %v259 = vld [vmem:[%s4 + $0xe8] sm:$0xff]
  %v260 = vld [vmem:[%s4 + $0xf0] sm:$0xff]
  %v261 = vld [vmem:[%s4 + $0xf8] sm:$0xff]
  %v262 = vld [vmem:[%s4 + $0x100] sm:$0xff]
  %v263 = vld [vmem:[%s4 + $0x108] sm:$0xff]
  %v264 = vld [vmem:[%s4 + $0x110] sm:$0xff]
  %v265 = vld [vmem:[%s4 + $0x118] sm:$0xff]
  %v266 = vld [vmem:[%s4 + $0x120] sm:$0xff]
  %v267 = vld [vmem:[%s4 + $0x128] sm:$0xff]
  %v268 = vld [vmem:[%s4 + $0x130] sm:$0xff]
  %v269 = vld [vmem:[%s4 + $0x138] sm:$0xff]
  %v270 = vld [vmem:[%s4 + $0x140] sm:$0xff]
  %v271 = vld [vmem:[%s4 + $0x148] sm:$0xff]
  %v272 = vld [vmem:[%s4 + $0x150] sm:$0xff]
  %v273 = vld [vmem:[%s4 + $0x158] sm:$0xff]
  %v274 = vld [vmem:[%s4 + $0x160] sm:$0xff]
  %v275 = vld [vmem:[%s4 + $0x168] sm:$0xff]
  %v276 = vld [vmem:[%s4 + $0x170] sm:$0xff]
  %v277 = vld [vmem:[%s4 + $0x178] sm:$0xff]
  %v278 = vld [vmem:[%s4 + $0x180] sm:$0xff]
  %v279 = vld [vmem:[%s4 + $0x188] sm:$0xff]
  %v280 = vld [vmem:[%s4 + $0x190] sm:$0xff]
  %v281 = vld [vmem:[%s4 + $0x198] sm:$0xff]
  %v282 = vld [vmem:[%s4 + $0x1a0] sm:$0xff]
  %v283 = vld [vmem:[%s4 + $0x1a8] sm:$0xff]
  %v284 = vld [vmem:[%s4 + $0x1b0] sm:$0xff]
  %v285 = vld [vmem:[%s4 + $0x1b8] sm:$0xff]
  %v286 = vld [vmem:[%s4 + $0x1c0] sm:$0xff]
  %v287 = vld [vmem:[%s4 + $0x1c8] sm:$0xff]
  %v288 = vld [vmem:[%s4 + $0x1d0] sm:$0xff]
  %v289 = vld [vmem:[%s4 + $0x1d8] sm:$0xff]
  %v290 = vld [vmem:[%s4 + $0x1e0] sm:$0xff]
  %v291 = vld [vmem:[%s4 + $0x1e8] sm:$0xff]
  %v292 = vld [vmem:[%s4 + $0x1f0] sm:$0xff]
  %v293 = vld [vmem:[%s4 + $0x1f8] sm:$0xff]
  %v294 = vld [vmem:[%s4 + $0x200] sm:$0xff]
  %v295 = vld [vmem:[%s4 + $0x208] sm:$0xff]
  %v296 = vld [vmem:[%s4 + $0x210] sm:$0xff]
  %v297 = vld [vmem:[%s4 + $0x218] sm:$0xff]
  %v298 = vld [vmem:[%s4 + $0x220] sm:$0xff]
  %v299 = vld [vmem:[%s4 + $0x228] sm:$0xff]
  %v300 = vld [vmem:[%s4 + $0x230] sm:$0xff]
  %v301 = vld [vmem:[%s4 + $0x238] sm:$0xff]
  %v302 = vld [vmem:[%s4 + $0x240] sm:$0xff]
  %v303 = vld [vmem:[%s4 + $0x248] sm:$0xff]
  %v304 = vld [vmem:[%s4 + $0x250] sm:$0xff]
  %v305 = vld [vmem:[%s4 + $0x258] sm:$0xff]
  %v306 = vld [vmem:[%s4 + $0x260] sm:$0xff]
  %v307 = vld [vmem:[%s4 + $0x268] sm:$0xff]
  %v308 = vld [vmem:[%s4 + $0x270] sm:$0xff]
  %v309 = vld [vmem:[%s4 + $0x278] sm:$0xff]
  %v310 = vld [vmem:[%s4 + $0x280] sm:$0xff]
  %v311 = vld [vmem:[%s4 + $0x288] sm:$0xff]
  %v312 = vld [vmem:[%s4 + $0x290] sm:$0xff]
  %v313 = vld [vmem:[%s4 + $0x298] sm:$0xff]
  %v314 = vld [vmem:[%s4 + $0x2a0] sm:$0xff]
  %v315 = vld [vmem:[%s4 + $0x2a8] sm:$0xff]
  %v316 = vld [vmem:[%s4 + $0x2b0] sm:$0xff]
  %v317 = vld [vmem:[%s4 + $0x2b8] sm:$0xff]
  %v318 = vld [vmem:[%s4 + $0x2c0] sm:$0xff]
  %v319 = vld [vmem:[%s4 + $0x2c8] sm:$0xff]
  %v320 = vld [vmem:[%s4 + $0x2d0] sm:$0xff]
  %v321 = vld [vmem:[%s4 + $0x2d8] sm:$0xff]
  %v322 = vld [vmem:[%s4 + $0x2e0] sm:$0xff]
  %v323 = vld [vmem:[%s4 + $0x2e8] sm:$0xff]
  %v324 = vld [vmem:[%s4 + $0x2f0] sm:$0xff]
  %v325 = vld [vmem:[%s4 + $0x2f8] sm:$0xff]
  %v326 = vld [vmem:[%s4 + $0x300] sm:$0xff]
  %v327 = vld [vmem:[%s4 + $0x308] sm:$0xff]
  %v328 = vld [vmem:[%s4 + $0x310] sm:$0xff]
  %v329 = vld [vmem:[%s4 + $0x318] sm:$0xff]
  %v330 = vld [vmem:[%s4 + $0x320] sm:$0xff]
  %v331 = vld [vmem:[%s4 + $0x328] sm:$0xff]
  %v332 = vld [vmem:[%s4 + $0x330] sm:$0xff]
  %v333 = vld [vmem:[%s4 + $0x338] sm:$0xff]
  %v334 = vld [vmem:[%s4 + $0x340] sm:$0xff]
  %v335 = vld [vmem:[%s4 + $0x348] sm:$0xff]
  %v336 = vld [vmem:[%s4 + $0x350] sm:$0xff]
  %v337 = vld [vmem:[%s4 + $0x358] sm:$0xff]
  %v338 = vld [vmem:[%s4 + $0x360] sm:$0xff]
  %v339 = vld [vmem:[%s4 + $0x368] sm:$0xff]
  %v340 = vld [vmem:[%s4 + $0x370] sm:$0xff]
  %v341 = vld [vmem:[%s4 + $0x378] sm:$0xff]
  %v342 = vld [vmem:[%s4 + $0x380] sm:$0xff]
  %v343 = vld [vmem:[%s4 + $0x388] sm:$0xff]
  %v344 = vld [vmem:[%s4 + $0x390] sm:$0xff]
  %v345 = vld [vmem:[%s4 + $0x398] sm:$0xff]
  %v346 = vld [vmem:[%s4 + $0x3a0] sm:$0xff]
  %v347 = vld [vmem:[%s4 + $0x3a8] sm:$0xff]
  %v348 = vld [vmem:[%s4 + $0x3b0] sm:$0xff]
  %v349 = vld [vmem:[%s4 + $0x3b8] sm:$0xff]
  %v350 = vld [vmem:[%s4 + $0x3c0] sm:$0xff]
  %v351 = vld [vmem:[%s4 + $0x3c8] sm:$0xff]
  %v352 = vld [vmem:[%s4 + $0x3d0] sm:$0xff]
  %v353 = vld [vmem:[%s4 + $0x3d8] sm:$0xff]
  %v354 = vld [vmem:[%s4 + $0x3e0] sm:$0xff]
  %v355 = vld [vmem:[%s4 + $0x3e8] sm:$0xff]
  %v356 = vld [vmem:[%s4 + $0x3f0] sm:$0xff]
  %v357 = vld [vmem:[%s4 + $0x3f8] sm:$0xff]
  %v358 = vld [vmem:[%s4 + $0x400] sm:$0xff]
  %v359 = vld [vmem:[%s4 + $0x408] sm:$0xff]
  %v360 = vld [vmem:[%s4 + $0x410] sm:$0xff]
  %v361 = vld [vmem:[%s4 + $0x418] sm:$0xff]
  %v362 = vld [vmem:[%s4 + $0x420] sm:$0xff]
  %v363 = vld [vmem:[%s4 + $0x428] sm:$0xff]
  %v364 = vld [vmem:[%s4 + $0x430] sm:$0xff]
  %v365 = vld [vmem:[%s4 + $0x438] sm:$0xff]
  %v366 = vld [vmem:[%s4 + $0x440] sm:$0xff]
  %v367 = vld [vmem:[%s4 + $0x448] sm:$0xff]
  %v368 = vld [vmem:[%s4 + $0x450] sm:$0xff]
  %v369 = vld [vmem:[%s4 + $0x458] sm:$0xff]
  %v370 = vld [vmem:[%s4 + $0x460] sm:$0xff]
  %v371 = vld [vmem:[%s4 + $0x468] sm:$0xff]
  %v372 = vld [vmem:[%s4 + $0x470] sm:$0xff]
  %v373 = vld [vmem:[%s4 + $0x478] sm:$0xff]
  %v374 = vld [vmem:[%s4 + $0x480] sm:$0xff]
  %v375 = vld [vmem:[%s4 + $0x488] sm:$0xff]
  %v376 = vld [vmem:[%s4 + $0x490] sm:$0xff]
  %v377 = vld [vmem:[%s4 + $0x498] sm:$0xff]
  %v378 = vld [vmem:[%s4 + $0x4a0] sm:$0xff]
  %v379 = vld [vmem:[%s4 + $0x4a8] sm:$0xff]
  %v380 = vld [vmem:[%s4 + $0x4b0] sm:$0xff]
  %v381 = vld [vmem:[%s4 + $0x4b8] sm:$0xff]
  %v382 = vld [vmem:[%s4 + $0x4c0] sm:$0xff]
  %v383 = vld [vmem:[%s4 + $0x4c8] sm:$0xff]
  %v384 = vld [vmem:[%s4 + $0x4d0] sm:$0xff]
  %v385 = vld [vmem:[%s4 + $0x4d8] sm:$0xff]
  %v386 = vld [vmem:[%s4 + $0x4e0] sm:$0xff]
  %v387 = vld [vmem:[%s4 + $0x4e8] sm:$0xff]
  %v388 = vld [vmem:[%s4 + $0x4f0] sm:$0xff]
  %v389 = vld [vmem:[%s4 + $0x4f8] sm:$0xff]
  %v390 = vld [vmem:[%s4 + $0x500] sm:$0xff]
  %v391 = vld [vmem:[%s4 + $0x508] sm:$0xff]
  %v392 = vld [vmem:[%s4 + $0x510] sm:$0xff]
  %v393 = vld [vmem:[%s4 + $0x518] sm:$0xff]
  %v394 = vld [vmem:[%s4 + $0x520] sm:$0xff]
  %v395 = vld [vmem:[%s4 + $0x528] sm:$0xff]
  %v396 = vld [vmem:[%s4 + $0x530] sm:$0xff]
  %v397 = vld [vmem:[%s4 + $0x538] sm:$0xff]
  %v398 = vld [vmem:[%s4 + $0x540] sm:$0xff]
  %v399 = vld [vmem:[%s4 + $0x548] sm:$0xff]
  %v400 = vld [vmem:[%s4 + $0x550] sm:$0xff]
  %v401 = vld [vmem:[%s4 + $0x558] sm:$0xff]
  %v402 = vld [vmem:[%s4 + $0x560] sm:$0xff]
  %v403 = vld [vmem:[%s4 + $0x568] sm:$0xff]
  %v404 = vld [vmem:[%s4 + $0x570] sm:$0xff]
  %v405 = vld [vmem:[%s4 + $0x578] sm:$0xff]
  %v406 = vld [vmem:[%s4 + $0x580] sm:$0xff]
  %v407 = vld [vmem:[%s4 + $0x588] sm:$0xff]
  %v408 = vld [vmem:[%s4 + $0x590] sm:$0xff]
  %v409 = vld [vmem:[%s4 + $0x598] sm:$0xff]
  %v410 = vld [vmem:[%s4 + $0x5a0] sm:$0xff]
  %v411 = vld [vmem:[%s4 + $0x5a8] sm:$0xff]
  %v412 = vld [vmem:[%s4 + $0x5b0] sm:$0xff]
  %v413 = vld [vmem:[%s4 + $0x5b8] sm:$0xff]
  %v414 = vld [vmem:[%s4 + $0x5c0] sm:$0xff]
  %v415 = vld [vmem:[%s4 + $0x5c8] sm:$0xff]
  %v416 = vld [vmem:[%s4 + $0x5d0] sm:$0xff]
  %v417 = vld [vmem:[%s4 + $0x5d8] sm:$0xff]
  %v418 = vld [vmem:[%s4 + $0x5e0] sm:$0xff]
  %v419 = vld [vmem:[%s4 + $0x5e8] sm:$0xff]
  %v420 = vld [vmem:[%s4 + $0x5f0] sm:$0xff]
  %v421 = vld [vmem:[%s4 + $0x5f8] sm:$0xff]
  %v422 = vld [vmem:[%s4 + $0x600] sm:$0xff]
  %v423 = vld [vmem:[%s4 + $0x608] sm:$0xff]
  %v424 = vld [vmem:[%s4 + $0x610] sm:$0xff]
  %v425 = vld [vmem:[%s4 + $0x618] sm:$0xff]
  %v426 = vld [vmem:[%s4 + $0x620] sm:$0xff]
  %v427 = vld [vmem:[%s4 + $0x628] sm:$0xff]
  %v428 = vld [vmem:[%s4 + $0x630] sm:$0xff]
  %v429 = vld [vmem:[%s4 + $0x638] sm:$0xff]
  %v430 = vld [vmem:[%s4 + $0x640] sm:$0xff]
  %v431 = vld [vmem:[%s4 + $0x648] sm:$0xff]
  %v432 = vld [vmem:[%s4 + $0x650] sm:$0xff]
  %v433 = vld [vmem:[%s4 + $0x658] sm:$0xff]
  %v434 = vld [vmem:[%s4 + $0x660] sm:$0xff]
  %v435 = vld [vmem:[%s4 + $0x668] sm:$0xff]
  %v436 = vld [vmem:[%s4 + $0x670] sm:$0xff]
  %v437 = vld [vmem:[%s4 + $0x678] sm:$0xff]
  %v438 = vld [vmem:[%s4 + $0x680] sm:$0xff]
  %v439 = vld [vmem:[%s4 + $0x688] sm:$0xff]
  %v440 = vld [vmem:[%s4 + $0x690] sm:$0xff]
  %v441 = vld [vmem:[%s4 + $0x698] sm:$0xff]
  %v442 = vld [vmem:[%s4 + $0x6a0] sm:$0xff]
  %v443 = vld [vmem:[%s4 + $0x6a8] sm:$0xff]
  %v444 = vld [vmem:[%s4 + $0x6b0] sm:$0xff]
  %v445 = vld [vmem:[%s4 + $0x6b8] sm:$0xff]
  %v446 = vld [vmem:[%s4 + $0x6c0] sm:$0xff]
  %v447 = vld [vmem:[%s4 + $0x6c8] sm:$0xff]
  %v448 = vld [vmem:[%s4 + $0x6d0] sm:$0xff]
  %v449 = vld [vmem:[%s4 + $0x6d8] sm:$0xff]
  %v450 = vld [vmem:[%s4 + $0x6e0] sm:$0xff]
  %v451 = vld [vmem:[%s4 + $0x6e8] sm:$0xff]
  %v452 = vld [vmem:[%s4 + $0x6f0] sm:$0xff]
  %v453 = vld [vmem:[%s4 + $0x6f8] sm:$0xff]
  %v454 = vld [vmem:[%s4 + $0x700] sm:$0xff]
  %v455 = vld [vmem:[%s4 + $0x708] sm:$0xff]
  %v456 = vld [vmem:[%s4 + $0x710] sm:$0xff]
  %v457 = vld [vmem:[%s4 + $0x718] sm:$0xff]
  %v458 = vld [vmem:[%s4 + $0x720] sm:$0xff]
  %v459 = vld [vmem:[%s4 + $0x728] sm:$0xff]
  %v460 = vld [vmem:[%s4 + $0x730] sm:$0xff]
  %v461 = vld [vmem:[%s4 + $0x738] sm:$0xff]
  %v462 = vld [vmem:[%s4 + $0x740] sm:$0xff]
  %v463 = vld [vmem:[%s4 + $0x748] sm:$0xff]
  %v464 = vld [vmem:[%s4 + $0x750] sm:$0xff]
  %v465 = vld [vmem:[%s4 + $0x758] sm:$0xff]
  %v466 = vld [vmem:[%s4 + $0x760] sm:$0xff]
  %v467 = vld [vmem:[%s4 + $0x768] sm:$0xff]
  %v468 = vld [vmem:[%s4 + $0x770] sm:$0xff]
  %v469 = vld [vmem:[%s4 + $0x778] sm:$0xff]
  %v470 = vld [vmem:[%s4 + $0x780] sm:$0xff]
  %v471 = vld [vmem:[%s4 + $0x788] sm:$0xff]
  %v472 = vld [vmem:[%s4 + $0x790] sm:$0xff]
  %v473 = vld [vmem:[%s4 + $0x798] sm:$0xff]
  %v474 = vld [vmem:[%s4 + $0x7a0] sm:$0xff]
  %v475 = vld [vmem:[%s4 + $0x7a8] sm:$0xff]
  %v476 = vld [vmem:[%s4 + $0x7b0] sm:$0xff]
  %v477 = vld [vmem:[%s4 + $0x7b8] sm:$0xff]
  %v478 = vld [vmem:[%s4 + $0x7c0] sm:$0xff]
  %v479 = vld [vmem:[%s4 + $0x7c8] sm:$0xff]
  %v480 = vld [vmem:[%s4 + $0x7d0] sm:$0xff]
  %v481 = vld [vmem:[%s4 + $0x7d8] sm:$0xff]
  %v482 = vld [vmem:[%s4 + $0x7e0] sm:$0xff]
  %v483 = vld [vmem:[%s4 + $0x7e8] sm:$0xff]
  %v484 = vld [vmem:[%s4 + $0x7f0] sm:$0xff]
  %v485 = vld [vmem:[%s4 + $0x7f8] sm:$0xff]
  %v486 = vld [vmem:[%s4 + $0x800] sm:$0xff]
  %v487 = vld [vmem:[%s4 + $0x808] sm:$0xff]
  %v488 = vld [vmem:[%s4 + $0x810] sm:$0xff]
  %v489 = vld [vmem:[%s4 + $0x818] sm:$0xff]
  %v490 = vld [vmem:[%s4 + $0x820] sm:$0xff]
  %v491 = vld [vmem:[%s4 + $0x828] sm:$0xff]
  %v492 = vld [vmem:[%s4 + $0x830] sm:$0xff]
  %v493 = vld [vmem:[%s4 + $0x838] sm:$0xff]
  %v494 = vld [vmem:[%s4 + $0x840] sm:$0xff]
  %v495 = vld [vmem:[%s4 + $0x848] sm:$0xff]
  %v496 = vld [vmem:[%s4 + $0x850] sm:$0xff]
  %v497 = vld [vmem:[%s4 + $0x858] sm:$0xff]
  %v498 = vld [vmem:[%s4 + $0x860] sm:$0xff]
  %v499 = vld [vmem:[%s4 + $0x868] sm:$0xff]
  %v500 = vld [vmem:[%s4 + $0x870] sm:$0xff]
  %v501 = vld [vmem:[%s4 + $0x878] sm:$0xff]
  %v502 = vld [vmem:[%s4 + $0x880] sm:$0xff]
  %v503 = vld [vmem:[%s4 + $0x888] sm:$0xff]
  %v504 = vld [vmem:[%s4 + $0x890] sm:$0xff]
  %v505 = vld [vmem:[%s4 + $0x898] sm:$0xff]
  %v506 = vld [vmem:[%s4 + $0x8a0] sm:$0xff]
  %v507 = vld [vmem:[%s4 + $0x8a8] sm:$0xff]
  %v508 = vld [vmem:[%s4 + $0x8b0] sm:$0xff]
  %v509 = vld [vmem:[%s4 + $0x8b8] sm:$0xff]
  %v510 = vld [vmem:[%s4 + $0x8c0] sm:$0xff]
  %v511 = vld [vmem:[%s4 + $0x8c8] sm:$0xff]
  %v512 = vld [vmem:[%s4 + $0x8d0] sm:$0xff]
  %v513 = vld [vmem:[%s4 + $0x8d8] sm:$0xff]
  %v514 = vld [vmem:[%s4 + $0x8e0] sm:$0xff]
  %v515 = vld [vmem:[%s4 + $0x8e8] sm:$0xff]
  %v516 = vld [vmem:[%s4 + $0x8f0] sm:$0xff]
  %v517 = vld [vmem:[%s4 + $0x8f8] sm:$0xff]
  %v518 = vld [vmem:[%s4 + $0x900] sm:$0xff]
  %v519 = vld [vmem:[%s4 + $0x908] sm:$0xff]
  %v520 = vld [vmem:[%s4 + $0x910] sm:$0xff]
  %v521 = vld [vmem:[%s4 + $0x918] sm:$0xff]
  %v522 = vld [vmem:[%s4 + $0x920] sm:$0xff]
  %v523 = vld [vmem:[%s4 + $0x928] sm:$0xff]
  %v524 = vld [vmem:[%s4 + $0x930] sm:$0xff]
  %v525 = vld [vmem:[%s4 + $0x938] sm:$0xff]
  %v526 = vld [vmem:[%s4 + $0x940] sm:$0xff]
  %v527 = vld [vmem:[%s4 + $0x948] sm:$0xff]
  %v528 = vld [vmem:[%s4 + $0x950] sm:$0xff]
  %v529 = vld [vmem:[%s4 + $0x958] sm:$0xff]
  %v530 = vld [vmem:[%s4 + $0x960] sm:$0xff]
  %v531 = vld [vmem:[%s4 + $0x968] sm:$0xff]
  %v532 = vld [vmem:[%s4 + $0x970] sm:$0xff]
  %v533 = vld [vmem:[%s4 + $0x978] sm:$0xff]
  %v534 = vld [vmem:[%s4 + $0x980] sm:$0xff]
  %v535 = vld [vmem:[%s4 + $0x988] sm:$0xff]
  %v536 = vld [vmem:[%s4 + $0x990] sm:$0xff]
  %v537 = vld [vmem:[%s4 + $0x998] sm:$0xff]
  %v538 = vld [vmem:[%s4 + $0x9a0] sm:$0xff]
  %v539 = vld [vmem:[%s4 + $0x9a8] sm:$0xff]
  %v540 = vld [vmem:[%s4 + $0x9b0] sm:$0xff]
  %v541 = vld [vmem:[%s4 + $0x9b8] sm:$0xff]
  %v542 = vld [vmem:[%s4 + $0x9c0] sm:$0xff]
  %v543 = vld [vmem:[%s4 + $0x9c8] sm:$0xff]
  %v544 = vld [vmem:[%s4 + $0x9d0] sm:$0xff]
  %v545 = vld [vmem:[%s4 + $0x9d8] sm:$0xff]
  %v546 = vld [vmem:[%s4 + $0x9e0] sm:$0xff]
  %v547 = vld [vmem:[%s4 + $0x9e8] sm:$0xff]
  %v548 = vld [vmem:[%s4 + $0x9f0] sm:$0xff]
  %v549 = vld [vmem:[%s4 + $0x9f8] sm:$0xff]
  %v550 = vld [vmem:[%s4 + $0xa00] sm:$0xff]
  %v551 = vld [vmem:[%s4 + $0xa08] sm:$0xff]
  %v552 = vld [vmem:[%s4 + $0xa10] sm:$0xff]
  %v553 = vld [vmem:[%s4 + $0xa18] sm:$0xff]
  %v554 = vld [vmem:[%s4 + $0xa20] sm:$0xff]
  %v555 = vld [vmem:[%s4 + $0xa28] sm:$0xff]
  %v556 = vld [vmem:[%s4 + $0xa30] sm:$0xff]
  %v557 = vld [vmem:[%s4 + $0xa38] sm:$0xff]
  %v558 = vld [vmem:[%s4 + $0xa40] sm:$0xff]
  %v559 = vld [vmem:[%s4 + $0xa48] sm:$0xff]
  %v560 = vld [vmem:[%s4 + $0xa50] sm:$0xff]
  %v561 = vld [vmem:[%s4 + $0xa58] sm:$0xff]
  %v562 = vld [vmem:[%s4 + $0xa60] sm:$0xff]
  %v563 = vld [vmem:[%s4 + $0xa68] sm:$0xff]
  %v564 = vld [vmem:[%s4 + $0xa70] sm:$0xff]
  %v565 = vld [vmem:[%s4 + $0xa78] sm:$0xff]
  %v566 = vld [vmem:[%s4 + $0xa80] sm:$0xff]
  %v567 = vld [vmem:[%s4 + $0xa88] sm:$0xff]
  %v568 = vld [vmem:[%s4 + $0xa90] sm:$0xff]
  %v569 = vld [vmem:[%s4 + $0xa98] sm:$0xff]
  %v570 = vld [vmem:[%s4 + $0xaa0] sm:$0xff]
  %v571 = vld [vmem:[%s4 + $0xaa8] sm:$0xff]
  %v572 = vld [vmem:[%s4 + $0xab0] sm:$0xff]
  %v573 = vld [vmem:[%s4 + $0xab8] sm:$0xff]
  %v574 = vld [vmem:[%s4 + $0xac0] sm:$0xff]
  %v575 = vld [vmem:[%s4 + $0xac8] sm:$0xff]
  %v576 = vld [vmem:[%s4 + $0xad0] sm:$0xff]
  %v577 = vld [vmem:[%s4 + $0xad8] sm:$0xff]
  %v578 = vld [vmem:[%s4 + $0xae0] sm:$0xff]
  %v579 = vld [vmem:[%s4 + $0xae8] sm:$0xff]
  %v580 = vld [vmem:[%s4 + $0xaf0] sm:$0xff]
  %v581 = vld [vmem:[%s4 + $0xaf8] sm:$0xff]
  %v582 = vld [vmem:[%s4 + $0xb00] sm:$0xff]
  %v583 = vld [vmem:[%s4 + $0xb08] sm:$0xff]
  %v584 = vld [vmem:[%s4 + $0xb10] sm:$0xff]
  %v585 = vld [vmem:[%s4 + $0xb18] sm:$0xff]
  %v586 = vld [vmem:[%s4 + $0xb20] sm:$0xff]
  %v587 = vld [vmem:[%s4 + $0xb28] sm:$0xff]
  %v588 = vld [vmem:[%s4 + $0xb30] sm:$0xff]
  %v589 = vld [vmem:[%s4 + $0xb38] sm:$0xff]
  %v590 = vld [vmem:[%s4 + $0xb40] sm:$0xff]
  %v591 = vld [vmem:[%s4 + $0xb48] sm:$0xff]
  %v592 = vld [vmem:[%s4 + $0xb50] sm:$0xff]
  %v593 = vld [vmem:[%s4 + $0xb58] sm:$0xff]
  %v594 = vld [vmem:[%s4 + $0xb60] sm:$0xff]
  %v595 = vld [vmem:[%s4 + $0xb68] sm:$0xff]
  %v596 = vld [vmem:[%s4 + $0xb70] sm:$0xff]
  %v597 = vld [vmem:[%s4 + $0xb78] sm:$0xff]
  %v598 = vld [vmem:[%s4 + $0xb80] sm:$0xff]
  %v599 = vld [vmem:[%s4 + $0xb88] sm:$0xff]
  %v600 = vld [vmem:[%s4 + $0xb90] sm:$0xff]
  %v601 = vld [vmem:[%s4 + $0xb98] sm:$0xff]
  %v602 = vld [vmem:[%s4 + $0xba0] sm:$0xff]
  %v603 = vld [vmem:[%s4 + $0xba8] sm:$0xff]
  %v604 = vld [vmem:[%s4 + $0xbb0] sm:$0xff]
  %v605 = vld [vmem:[%s4 + $0xbb8] sm:$0xff]
  %v606 = vld [vmem:[%s4 + $0xbc0] sm:$0xff]
  %v607 = vld [vmem:[%s4 + $0xbc8] sm:$0xff]
  %v608 = vld [vmem:[%s4 + $0xbd0] sm:$0xff]
  %v609 = vld [vmem:[%s4 + $0xbd8] sm:$0xff]
  %v610 = vld [vmem:[%s4 + $0xbe0] sm:$0xff]
  %v611 = vld [vmem:[%s4 + $0xbe8] sm:$0xff]
  %v612 = vld [vmem:[%s4 + $0xbf0] sm:$0xff]
  %v613 = vld [vmem:[%s4 + $0xbf8] sm:$0xff]
  %v614 = vld [vmem:[%s4 + $0xc00] sm:$0xff]
  %v615 = vld [vmem:[%s4 + $0xc08] sm:$0xff]
  %v616 = vld [vmem:[%s4 + $0xc10] sm:$0xff]
  %v617 = vld [vmem:[%s4 + $0xc18] sm:$0xff]
  %v618 = vld [vmem:[%s4 + $0xc20] sm:$0xff]
  %v619 = vld [vmem:[%s4 + $0xc28] sm:$0xff]
  %v620 = vld [vmem:[%s4 + $0xc30] sm:$0xff]
  %v621 = vld [vmem:[%s4 + $0xc38] sm:$0xff]
  %v622 = vld [vmem:[%s5] sm:$0x3]
  %v624 = vperm.slane %v622, 0
  %v625 = vperm.slane %v622, 1
  %v1020 = vunpack.c.l.b16 %v230
  %v1021 = vunpack.c.h.b16 %v230
  %v1022 = vunpack.c.l.b16 %v231
  %v1023 = vunpack.c.h.b16 %v231
  %v1024 = vunpack.c.l.b16 %v232
  %v1025 = vunpack.c.h.b16 %v232
  %v1026 = vunpack.c.l.b16 %v233
  %v1027 = vunpack.c.h.b16 %v233
  %v1028 = vunpack.c.l.b16 %v234
  %v1029 = vunpack.c.h.b16 %v234
  %v1030 = vunpack.c.l.b16 %v235
  %v1031 = vunpack.c.h.b16 %v235
  %v1032 = vunpack.c.l.b16 %v236
  %v1033 = vunpack.c.h.b16 %v236
  %v1034 = vunpack.c.l.b16 %v237
  %v1035 = vunpack.c.h.b16 %v237
  %v1036 = vunpack.c.l.b16 %v238
  %v1037 = vunpack.c.h.b16 %v238
  %v1038 = vunpack.c.l.b16 %v239
  %v1039 = vunpack.c.h.b16 %v239
  %v1040 = vunpack.c.l.b16 %v240
  %v1041 = vunpack.c.h.b16 %v240
  %v1042 = vunpack.c.l.b16 %v241
  %v1043 = vunpack.c.h.b16 %v241
  %v1044 = vunpack.c.l.b16 %v242
  %v1045 = vunpack.c.h.b16 %v242
  %v1046 = vunpack.c.l.b16 %v243
  %v1047 = vunpack.c.h.b16 %v243
  %v1048 = vunpack.c.l.b16 %v244
  %v1049 = vunpack.c.h.b16 %v244
  %v1050 = vunpack.c.l.b16 %v245
  %v1051 = vunpack.c.h.b16 %v245
  %v1052 = vunpack.c.l.b16 %v246
  %v1053 = vunpack.c.h.b16 %v246
  %v1054 = vunpack.c.l.b16 %v247
  %v1055 = vunpack.c.h.b16 %v247
  %v1056 = vunpack.c.l.b16 %v248
  %v1057 = vunpack.c.h.b16 %v248
  %v1058 = vunpack.c.l.b16 %v249
  %v1059 = vunpack.c.h.b16 %v249
  %v1060 = vunpack.c.l.b16 %v250
  %v1061 = vunpack.c.h.b16 %v250
  %v1062 = vunpack.c.l.b16 %v251
  %v1063 = vunpack.c.h.b16 %v251
  %v1064 = vunpack.c.l.b16 %v252
  %v1065 = vunpack.c.h.b16 %v252
  %v1066 = vunpack.c.l.b16 %v253
  %v1067 = vunpack.c.h.b16 %v253
  %v1068 = vunpack.c.l.b16 %v254
  %v1069 = vunpack.c.h.b16 %v254
  %v1070 = vunpack.c.l.b16 %v255
  %v1071 = vunpack.c.h.b16 %v255
  %v1072 = vunpack.c.l.b16 %v256
  %v1073 = vunpack.c.h.b16 %v256
  %v1074 = vunpack.c.l.b16 %v257
  %v1075 = vunpack.c.h.b16 %v257
  %v1076 = vunpack.c.l.b16 %v258
  %v1077 = vunpack.c.h.b16 %v258
  %v1078 = vunpack.c.l.b16 %v259
  %v1079 = vunpack.c.h.b16 %v259
  %v1080 = vunpack.c.l.b16 %v260
  %v1081 = vunpack.c.h.b16 %v260
  %v1082 = vunpack.c.l.b16 %v261
  %v1083 = vunpack.c.h.b16 %v261
  %v1084 = vunpack.c.l.b16 %v262
  %v1085 = vunpack.c.h.b16 %v262
  %v1086 = vunpack.c.l.b16 %v263
  %v1087 = vunpack.c.h.b16 %v263
  %v1088 = vunpack.c.l.b16 %v264
  %v1089 = vunpack.c.h.b16 %v264
  %v1090 = vunpack.c.l.b16 %v265
  %v1091 = vunpack.c.h.b16 %v265
  %v1092 = vunpack.c.l.b16 %v266
  %v1093 = vunpack.c.h.b16 %v266
  %v1094 = vunpack.c.l.b16 %v267
  %v1095 = vunpack.c.h.b16 %v267
  %v1096 = vunpack.c.l.b16 %v268
  %v1097 = vunpack.c.h.b16 %v268
  %v1098 = vunpack.c.l.b16 %v269
  %v1099 = vunpack.c.h.b16 %v269
  %v1100 = vunpack.c.l.b16 %v270
  %v1101 = vunpack.c.h.b16 %v270
  %v1102 = vunpack.c.l.b16 %v271
  %v1103 = vunpack.c.h.b16 %v271
  %v1104 = vunpack.c.l.b16 %v272
  %v1105 = vunpack.c.h.b16 %v272
  %v1106 = vunpack.c.l.b16 %v273
  %v1107 = vunpack.c.h.b16 %v273
  %v1108 = vunpack.c.l.b16 %v274
  %v1109 = vunpack.c.h.b16 %v274
  %v1110 = vunpack.c.l.b16 %v275
  %v1111 = vunpack.c.h.b16 %v275
  %v1112 = vunpack.c.l.b16 %v276
  %v1113 = vunpack.c.h.b16 %v276
  %v1114 = vunpack.c.l.b16 %v277
  %v1115 = vunpack.c.h.b16 %v277
  %v1116 = vunpack.c.l.b16 %v278
  %v1117 = vunpack.c.h.b16 %v278
  %v1118 = vunpack.c.l.b16 %v279
  %v1119 = vunpack.c.h.b16 %v279
  %v1120 = vunpack.c.l.b16 %v280
  %v1121 = vunpack.c.h.b16 %v280
  %v1122 = vunpack.c.l.b16 %v281
  %v1123 = vunpack.c.h.b16 %v281
  %v1124 = vunpack.c.l.b16 %v282
  %v1125 = vunpack.c.h.b16 %v282
  %v1126 = vunpack.c.l.b16 %v283
  %v1127 = vunpack.c.h.b16 %v283
  %v1128 = vunpack.c.l.b16 %v284
  %v1129 = vunpack.c.h.b16 %v284
  %v1130 = vunpack.c.l.b16 %v285
  %v1131 = vunpack.c.h.b16 %v285
  %v1132 = vunpack.c.l.b16 %v286
  %v1133 = vunpack.c.h.b16 %v286
  %v1134 = vunpack.c.l.b16 %v287
  %v1135 = vunpack.c.h.b16 %v287
  %v1136 = vunpack.c.l.b16 %v288
  %v1137 = vunpack.c.h.b16 %v288
  %v1138 = vunpack.c.l.b16 %v289
  %v1139 = vunpack.c.h.b16 %v289
  %v1140 = vunpack.c.l.b16 %v290
  %v1141 = vunpack.c.h.b16 %v290
  %v1142 = vunpack.c.l.b16 %v291
  %v1143 = vunpack.c.h.b16 %v291
  %v1144 = vunpack.c.l.b16 %v292
  %v1145 = vunpack.c.h.b16 %v292
  %v1146 = vunpack.c.l.b16 %v293
  %v1147 = vunpack.c.h.b16 %v293
  %v1148 = vunpack.c.l.b16 %v294
  %v1149 = vunpack.c.h.b16 %v294
  %v1150 = vunpack.c.l.b16 %v295
  %v1151 = vunpack.c.h.b16 %v295
  %v1152 = vunpack.c.l.b16 %v296
  %v1153 = vunpack.c.h.b16 %v296
  %v1154 = vunpack.c.l.b16 %v297
  %v1155 = vunpack.c.h.b16 %v297
  %v1156 = vunpack.c.l.b16 %v298
  %v1157 = vunpack.c.h.b16 %v298
  %v1158 = vunpack.c.l.b16 %v299
  %v1159 = vunpack.c.h.b16 %v299
  %v1160 = vunpack.c.l.b16 %v300
  %v1161 = vunpack.c.h.b16 %v300
  %v1162 = vunpack.c.l.b16 %v301
  %v1163 = vunpack.c.h.b16 %v301
  %v1164 = vunpack.c.l.b16 %v302
  %v1165 = vunpack.c.h.b16 %v302
  %v1166 = vunpack.c.l.b16 %v303
  %v1167 = vunpack.c.h.b16 %v303
  %v1168 = vunpack.c.l.b16 %v304
  %v1169 = vunpack.c.h.b16 %v304
  %v1170 = vunpack.c.l.b16 %v305
  %v1171 = vunpack.c.h.b16 %v305
  %v1172 = vunpack.c.l.b16 %v306
  %v1173 = vunpack.c.h.b16 %v306
  %v1174 = vunpack.c.l.b16 %v307
  %v1175 = vunpack.c.h.b16 %v307
  %v1176 = vunpack.c.l.b16 %v308
  %v1177 = vunpack.c.h.b16 %v308
  %v1178 = vunpack.c.l.b16 %v309
  %v1179 = vunpack.c.h.b16 %v309
  %v1180 = vunpack.c.l.b16 %v310
  %v1181 = vunpack.c.h.b16 %v310
  %v1182 = vunpack.c.l.b16 %v311
  %v1183 = vunpack.c.h.b16 %v311
  %v1184 = vunpack.c.l.b16 %v312
  %v1185 = vunpack.c.h.b16 %v312
  %v1186 = vunpack.c.l.b16 %v313
  %v1187 = vunpack.c.h.b16 %v313
  %v1188 = vunpack.c.l.b16 %v314
  %v1189 = vunpack.c.h.b16 %v314
  %v1190 = vunpack.c.l.b16 %v315
  %v1191 = vunpack.c.h.b16 %v315
  %v1192 = vunpack.c.l.b16 %v316
  %v1193 = vunpack.c.h.b16 %v316
  %v1194 = vunpack.c.l.b16 %v317
  %v1195 = vunpack.c.h.b16 %v317
  %v1196 = vunpack.c.l.b16 %v318
  %v1197 = vunpack.c.h.b16 %v318
  %v1198 = vunpack.c.l.b16 %v319
  %v1199 = vunpack.c.h.b16 %v319
  %v1200 = vunpack.c.l.b16 %v320
  %v1201 = vunpack.c.h.b16 %v320
  %v1202 = vunpack.c.l.b16 %v321
  %v1203 = vunpack.c.h.b16 %v321
  %v1204 = vunpack.c.l.b16 %v322
  %v1205 = vunpack.c.h.b16 %v322
  %v1206 = vunpack.c.l.b16 %v323
  %v1207 = vunpack.c.h.b16 %v323
  %v1208 = vunpack.c.l.b16 %v324
  %v1209 = vunpack.c.h.b16 %v324
  %v1210 = vunpack.c.l.b16 %v325
  %v1211 = vunpack.c.h.b16 %v325
  %v1212 = vunpack.c.l.b16 %v326
  %v1213 = vunpack.c.h.b16 %v326
  %v1214 = vunpack.c.l.b16 %v327
  %v1215 = vunpack.c.h.b16 %v327
  %v1216 = vunpack.c.l.b16 %v328
  %v1217 = vunpack.c.h.b16 %v328
  %v1218 = vunpack.c.l.b16 %v329
  %v1219 = vunpack.c.h.b16 %v329
  %v1220 = vunpack.c.l.b16 %v330
  %v1221 = vunpack.c.h.b16 %v330
  %v1222 = vunpack.c.l.b16 %v331
  %v1223 = vunpack.c.h.b16 %v331
  %v1224 = vunpack.c.l.b16 %v332
  %v1225 = vunpack.c.h.b16 %v332
  %v1226 = vunpack.c.l.b16 %v333
  %v1227 = vunpack.c.h.b16 %v333
  %v1228 = vunpack.c.l.b16 %v334
  %v1229 = vunpack.c.h.b16 %v334
  %v1230 = vunpack.c.l.b16 %v335
  %v1231 = vunpack.c.h.b16 %v335
  %v1232 = vunpack.c.l.b16 %v336
  %v1233 = vunpack.c.h.b16 %v336
  %v1234 = vunpack.c.l.b16 %v337
  %v1235 = vunpack.c.h.b16 %v337
  %v1236 = vunpack.c.l.b16 %v338
  %v1237 = vunpack.c.h.b16 %v338
  %v1238 = vunpack.c.l.b16 %v339
  %v1239 = vunpack.c.h.b16 %v339
  %v1240 = vunpack.c.l.b16 %v340
  %v1241 = vunpack.c.h.b16 %v340
  %v1242 = vunpack.c.l.b16 %v341
  %v1243 = vunpack.c.h.b16 %v341
  %v1244 = vunpack.c.l.b16 %v342
  %v1245 = vunpack.c.h.b16 %v342
  %v1246 = vunpack.c.l.b16 %v343
  %v1247 = vunpack.c.h.b16 %v343
  %v1248 = vunpack.c.l.b16 %v344
  %v1249 = vunpack.c.h.b16 %v344
  %v1250 = vunpack.c.l.b16 %v345
  %v1251 = vunpack.c.h.b16 %v345
  %v1252 = vunpack.c.l.b16 %v346
  %v1253 = vunpack.c.h.b16 %v346
  %v1254 = vunpack.c.l.b16 %v347
  %v1255 = vunpack.c.h.b16 %v347
  %v1256 = vunpack.c.l.b16 %v348
  %v1257 = vunpack.c.h.b16 %v348
  %v1258 = vunpack.c.l.b16 %v349
  %v1259 = vunpack.c.h.b16 %v349
  %v1260 = vunpack.c.l.b16 %v350
  %v1261 = vunpack.c.h.b16 %v350
  %v1262 = vunpack.c.l.b16 %v351
  %v1263 = vunpack.c.h.b16 %v351
  %v1264 = vunpack.c.l.b16 %v352
  %v1265 = vunpack.c.h.b16 %v352
  %v1266 = vunpack.c.l.b16 %v353
  %v1267 = vunpack.c.h.b16 %v353
  %v1268 = vunpack.c.l.b16 %v354
  %v1269 = vunpack.c.h.b16 %v354
  %v1270 = vunpack.c.l.b16 %v355
  %v1271 = vunpack.c.h.b16 %v355
  %v1272 = vunpack.c.l.b16 %v356
  %v1273 = vunpack.c.h.b16 %v356
  %v1274 = vunpack.c.l.b16 %v357
  %v1275 = vunpack.c.h.b16 %v357
  %v1276 = vunpack.c.l.b16 %v358
  %v1277 = vunpack.c.h.b16 %v358
  %v1278 = vunpack.c.l.b16 %v359
  %v1279 = vunpack.c.h.b16 %v359
  %v1280 = vunpack.c.l.b16 %v360
  %v1281 = vunpack.c.h.b16 %v360
  %v1282 = vunpack.c.l.b16 %v361
  %v1283 = vunpack.c.h.b16 %v361
  %v1284 = vunpack.c.l.b16 %v362
  %v1285 = vunpack.c.h.b16 %v362
  %v1286 = vunpack.c.l.b16 %v363
  %v1287 = vunpack.c.h.b16 %v363
  %v1288 = vunpack.c.l.b16 %v364
  %v1289 = vunpack.c.h.b16 %v364
  %v1290 = vunpack.c.l.b16 %v365
  %v1291 = vunpack.c.h.b16 %v365
  %v1292 = vunpack.c.l.b16 %v366
  %v1293 = vunpack.c.h.b16 %v366
  %v1294 = vunpack.c.l.b16 %v367
  %v1295 = vunpack.c.h.b16 %v367
  %v1296 = vunpack.c.l.b16 %v368
  %v1297 = vunpack.c.h.b16 %v368
  %v1298 = vunpack.c.l.b16 %v369
  %v1299 = vunpack.c.h.b16 %v369
  %v1300 = vunpack.c.l.b16 %v370
  %v1301 = vunpack.c.h.b16 %v370
  %v1302 = vunpack.c.l.b16 %v371
  %v1303 = vunpack.c.h.b16 %v371
  %v1304 = vunpack.c.l.b16 %v372
  %v1305 = vunpack.c.h.b16 %v372
  %v1306 = vunpack.c.l.b16 %v373
  %v1307 = vunpack.c.h.b16 %v373
  %v1308 = vunpack.c.l.b16 %v374
  %v1309 = vunpack.c.h.b16 %v374
  %v1310 = vunpack.c.l.b16 %v375
  %v1311 = vunpack.c.h.b16 %v375
  %v1312 = vunpack.c.l.b16 %v376
  %v1313 = vunpack.c.h.b16 %v376
  %v1314 = vunpack.c.l.b16 %v377
  %v1315 = vunpack.c.h.b16 %v377
  %v1316 = vunpack.c.l.b16 %v378
  %v1317 = vunpack.c.h.b16 %v378
  %v1318 = vunpack.c.l.b16 %v379
  %v1319 = vunpack.c.h.b16 %v379
  %v1320 = vunpack.c.l.b16 %v380
  %v1321 = vunpack.c.h.b16 %v380
  %v1322 = vunpack.c.l.b16 %v381
  %v1323 = vunpack.c.h.b16 %v381
  %v1324 = vunpack.c.l.b16 %v382
  %v1325 = vunpack.c.h.b16 %v382
  %v1326 = vunpack.c.l.b16 %v383
  %v1327 = vunpack.c.h.b16 %v383
  %v1328 = vunpack.c.l.b16 %v384
  %v1329 = vunpack.c.h.b16 %v384
  %v1330 = vunpack.c.l.b16 %v385
  %v1331 = vunpack.c.h.b16 %v385
  %v1332 = vunpack.c.l.b16 %v386
  %v1333 = vunpack.c.h.b16 %v386
  %v1334 = vunpack.c.l.b16 %v387
  %v1335 = vunpack.c.h.b16 %v387
  %v1336 = vunpack.c.l.b16 %v388
  %v1337 = vunpack.c.h.b16 %v388
  %v1338 = vunpack.c.l.b16 %v389
  %v1339 = vunpack.c.h.b16 %v389
  %v1340 = vunpack.c.l.b16 %v390
  %v1341 = vunpack.c.h.b16 %v390
  %v1342 = vunpack.c.l.b16 %v391
  %v1343 = vunpack.c.h.b16 %v391
  %v1344 = vunpack.c.l.b16 %v392
  %v1345 = vunpack.c.h.b16 %v392
  %v1346 = vunpack.c.l.b16 %v393
  %v1347 = vunpack.c.h.b16 %v393
  %v1348 = vunpack.c.l.b16 %v394
  %v1349 = vunpack.c.h.b16 %v394
  %v1350 = vunpack.c.l.b16 %v395
  %v1351 = vunpack.c.h.b16 %v395
  %v1352 = vunpack.c.l.b16 %v396
  %v1353 = vunpack.c.h.b16 %v396
  %v1354 = vunpack.c.l.b16 %v397
  %v1355 = vunpack.c.h.b16 %v397
  %v1356 = vunpack.c.l.b16 %v398
  %v1357 = vunpack.c.h.b16 %v398
  %v1358 = vunpack.c.l.b16 %v399
  %v1359 = vunpack.c.h.b16 %v399
  %v1360 = vunpack.c.l.b16 %v400
  %v1361 = vunpack.c.h.b16 %v400
  %v1362 = vunpack.c.l.b16 %v401
  %v1363 = vunpack.c.h.b16 %v401
  %v1364 = vunpack.c.l.b16 %v402
  %v1365 = vunpack.c.h.b16 %v402
  %v1366 = vunpack.c.l.b16 %v403
  %v1367 = vunpack.c.h.b16 %v403
  %v1368 = vunpack.c.l.b16 %v404
  %v1369 = vunpack.c.h.b16 %v404
  %v1370 = vunpack.c.l.b16 %v405
  %v1371 = vunpack.c.h.b16 %v405
  %v1372 = vunpack.c.l.b16 %v406
  %v1373 = vunpack.c.h.b16 %v406
  %v1374 = vunpack.c.l.b16 %v407
  %v1375 = vunpack.c.h.b16 %v407
  %v1376 = vunpack.c.l.b16 %v408
  %v1377 = vunpack.c.h.b16 %v408
  %v1378 = vunpack.c.l.b16 %v409
  %v1379 = vunpack.c.h.b16 %v409
  %v1380 = vunpack.c.l.b16 %v410
  %v1381 = vunpack.c.h.b16 %v410
  %v1382 = vunpack.c.l.b16 %v411
  %v1383 = vunpack.c.h.b16 %v411
  %v1384 = vunpack.c.l.b16 %v412
  %v1385 = vunpack.c.h.b16 %v412
  %v1386 = vunpack.c.l.b16 %v413
  %v1387 = vunpack.c.h.b16 %v413
  %v1388 = vunpack.c.l.b16 %v414
  %v1389 = vunpack.c.h.b16 %v414
  %v1390 = vunpack.c.l.b16 %v415
  %v1391 = vunpack.c.h.b16 %v415
  %v1392 = vunpack.c.l.b16 %v416
  %v1393 = vunpack.c.h.b16 %v416
  %v1394 = vunpack.c.l.b16 %v417
  %v1395 = vunpack.c.h.b16 %v417
  %v1396 = vunpack.c.l.b16 %v418
  %v1397 = vunpack.c.h.b16 %v418
  %v1398 = vunpack.c.l.b16 %v419
  %v1399 = vunpack.c.h.b16 %v419
  %v1400 = vunpack.c.l.b16 %v420
  %v1401 = vunpack.c.h.b16 %v420
  %v1402 = vunpack.c.l.b16 %v421
  %v1403 = vunpack.c.h.b16 %v421
  %v1404 = vunpack.c.l.b16 %v422
  %v1405 = vunpack.c.h.b16 %v422
  %v1406 = vunpack.c.l.b16 %v423
  %v1407 = vunpack.c.h.b16 %v423
  %v1408 = vunpack.c.l.b16 %v424
  %v1409 = vunpack.c.h.b16 %v424
  %v1410 = vunpack.c.l.b16 %v425
  %v1411 = vunpack.c.h.b16 %v425
  %v1412 = vunpack.c.l.b16 %v426
  %v1413 = vunpack.c.h.b16 %v426
  %v1414 = vunpack.c.l.b16 %v427
  %v1415 = vunpack.c.h.b16 %v427
  %v1416 = vunpack.c.l.b16 %v428
  %v1417 = vunpack.c.h.b16 %v428
  %v1418 = vunpack.c.l.b16 %v429
  %v1419 = vunpack.c.h.b16 %v429
  %v1420 = vunpack.c.l.b16 %v430
  %v1421 = vunpack.c.h.b16 %v430
  %v1422 = vunpack.c.l.b16 %v431
  %v1423 = vunpack.c.h.b16 %v431
  %v1424 = vunpack.c.l.b16 %v432
  %v1425 = vunpack.c.h.b16 %v432
  %v1426 = vunpack.c.l.b16 %v433
  %v1427 = vunpack.c.h.b16 %v433
  %v1428 = vunpack.c.l.b16 %v434
  %v1429 = vunpack.c.h.b16 %v434
  %v1430 = vunpack.c.l.b16 %v435
  %v1431 = vunpack.c.h.b16 %v435
  %v1432 = vunpack.c.l.b16 %v436
  %v1433 = vunpack.c.h.b16 %v436
  %v1434 = vunpack.c.l.b16 %v437
  %v1435 = vunpack.c.h.b16 %v437
  %v1436 = vunpack.c.l.b16 %v438
  %v1437 = vunpack.c.h.b16 %v438
  %v1438 = vunpack.c.l.b16 %v439
  %v1439 = vunpack.c.h.b16 %v439
  %v1440 = vunpack.c.l.b16 %v440
  %v1441 = vunpack.c.h.b16 %v440
  %v1442 = vunpack.c.l.b16 %v441
  %v1443 = vunpack.c.h.b16 %v441
  %v1444 = vunpack.c.l.b16 %v442
  %v1445 = vunpack.c.h.b16 %v442
  %v1446 = vunpack.c.l.b16 %v443
  %v1447 = vunpack.c.h.b16 %v443
  %v1448 = vunpack.c.l.b16 %v444
  %v1449 = vunpack.c.h.b16 %v444
  %v1450 = vunpack.c.l.b16 %v445
  %v1451 = vunpack.c.h.b16 %v445
  %v1452 = vunpack.c.l.b16 %v446
  %v1453 = vunpack.c.h.b16 %v446
  %v1454 = vunpack.c.l.b16 %v447
  %v1455 = vunpack.c.h.b16 %v447
  %v1456 = vunpack.c.l.b16 %v448
  %v1457 = vunpack.c.h.b16 %v448
  %v1458 = vunpack.c.l.b16 %v449
  %v1459 = vunpack.c.h.b16 %v449
  %v1460 = vunpack.c.l.b16 %v450
  %v1461 = vunpack.c.h.b16 %v450
  %v1462 = vunpack.c.l.b16 %v451
  %v1463 = vunpack.c.h.b16 %v451
  %v1464 = vunpack.c.l.b16 %v452
  %v1465 = vunpack.c.h.b16 %v452
  %v1466 = vunpack.c.l.b16 %v453
  %v1467 = vunpack.c.h.b16 %v453
  %v1468 = vunpack.c.l.b16 %v454
  %v1469 = vunpack.c.h.b16 %v454
  %v1470 = vunpack.c.l.b16 %v455
  %v1471 = vunpack.c.h.b16 %v455
  %v1472 = vunpack.c.l.b16 %v456
  %v1473 = vunpack.c.h.b16 %v456
  %v1474 = vunpack.c.l.b16 %v457
  %v1475 = vunpack.c.h.b16 %v457
  %v1476 = vunpack.c.l.b16 %v458
  %v1477 = vunpack.c.h.b16 %v458
  %v1478 = vunpack.c.l.b16 %v459
  %v1479 = vunpack.c.h.b16 %v459
  %v1480 = vunpack.c.l.b16 %v460
  %v1481 = vunpack.c.h.b16 %v460
  %v1482 = vunpack.c.l.b16 %v461
  %v1483 = vunpack.c.h.b16 %v461
  %v1484 = vunpack.c.l.b16 %v462
  %v1485 = vunpack.c.h.b16 %v462
  %v1486 = vunpack.c.l.b16 %v463
  %v1487 = vunpack.c.h.b16 %v463
  %v1488 = vunpack.c.l.b16 %v464
  %v1489 = vunpack.c.h.b16 %v464
  %v1490 = vunpack.c.l.b16 %v465
  %v1491 = vunpack.c.h.b16 %v465
  %v1492 = vunpack.c.l.b16 %v466
  %v1493 = vunpack.c.h.b16 %v466
  %v1494 = vunpack.c.l.b16 %v467
  %v1495 = vunpack.c.h.b16 %v467
  %v1496 = vunpack.c.l.b16 %v468
  %v1497 = vunpack.c.h.b16 %v468
  %v1498 = vunpack.c.l.b16 %v469
  %v1499 = vunpack.c.h.b16 %v469
  %v1500 = vunpack.c.l.b16 %v470
  %v1501 = vunpack.c.h.b16 %v470
  %v1502 = vunpack.c.l.b16 %v471
  %v1503 = vunpack.c.h.b16 %v471
  %v1504 = vunpack.c.l.b16 %v472
  %v1505 = vunpack.c.h.b16 %v472
  %v1506 = vunpack.c.l.b16 %v473
  %v1507 = vunpack.c.h.b16 %v473
  %v1508 = vunpack.c.l.b16 %v474
  %v1509 = vunpack.c.h.b16 %v474
  %v1510 = vunpack.c.l.b16 %v475
  %v1511 = vunpack.c.h.b16 %v475
  %v1512 = vunpack.c.l.b16 %v476
  %v1513 = vunpack.c.h.b16 %v476
  %v1514 = vunpack.c.l.b16 %v477
  %v1515 = vunpack.c.h.b16 %v477
  %v1516 = vunpack.c.l.b16 %v478
  %v1517 = vunpack.c.h.b16 %v478
  %v1518 = vunpack.c.l.b16 %v479
  %v1519 = vunpack.c.h.b16 %v479
  %v1520 = vunpack.c.l.b16 %v480
  %v1521 = vunpack.c.h.b16 %v480
  %v1522 = vunpack.c.l.b16 %v481
  %v1523 = vunpack.c.h.b16 %v481
  %v1524 = vunpack.c.l.b16 %v482
  %v1525 = vunpack.c.h.b16 %v482
  %v1526 = vunpack.c.l.b16 %v483
  %v1527 = vunpack.c.h.b16 %v483
  %v1528 = vunpack.c.l.b16 %v484
  %v1529 = vunpack.c.h.b16 %v484
  %v1530 = vunpack.c.l.b16 %v485
  %v1531 = vunpack.c.h.b16 %v485
  %v1532 = vunpack.c.l.b16 %v486
  %v1533 = vunpack.c.h.b16 %v486
  %v1534 = vunpack.c.l.b16 %v487
  %v1535 = vunpack.c.h.b16 %v487
  %v1536 = vunpack.c.l.b16 %v488
  %v1537 = vunpack.c.h.b16 %v488
  %v1538 = vunpack.c.l.b16 %v489
  %v1539 = vunpack.c.h.b16 %v489
  %v1540 = vunpack.c.l.b16 %v490
  %v1541 = vunpack.c.h.b16 %v490
  %v1542 = vunpack.c.l.b16 %v491
  %v1543 = vunpack.c.h.b16 %v491
  %v1544 = vunpack.c.l.b16 %v492
  %v1545 = vunpack.c.h.b16 %v492
  %v1546 = vunpack.c.l.b16 %v493
  %v1547 = vunpack.c.h.b16 %v493
  %v1548 = vunpack.c.l.b16 %v494
  %v1549 = vunpack.c.h.b16 %v494
  %v1550 = vunpack.c.l.b16 %v495
  %v1551 = vunpack.c.h.b16 %v495
  %v1552 = vunpack.c.l.b16 %v496
  %v1553 = vunpack.c.h.b16 %v496
  %v1554 = vunpack.c.l.b16 %v497
  %v1555 = vunpack.c.h.b16 %v497
  %v1556 = vunpack.c.l.b16 %v498
  %v1557 = vunpack.c.h.b16 %v498
  %v1558 = vunpack.c.l.b16 %v499
  %v1559 = vunpack.c.h.b16 %v499
  %v1560 = vunpack.c.l.b16 %v500
  %v1561 = vunpack.c.h.b16 %v500
  %v1562 = vunpack.c.l.b16 %v501
  %v1563 = vunpack.c.h.b16 %v501
  %v1564 = vunpack.c.l.b16 %v502
  %v1565 = vunpack.c.h.b16 %v502
  %v1566 = vunpack.c.l.b16 %v503
  %v1567 = vunpack.c.h.b16 %v503
  %v1568 = vunpack.c.l.b16 %v504
  %v1569 = vunpack.c.h.b16 %v504
  %v1570 = vunpack.c.l.b16 %v505
  %v1571 = vunpack.c.h.b16 %v505
  %v1572 = vunpack.c.l.b16 %v506
  %v1573 = vunpack.c.h.b16 %v506
  %v1574 = vunpack.c.l.b16 %v507
  %v1575 = vunpack.c.h.b16 %v507
  %v1576 = vunpack.c.l.b16 %v508
  %v1577 = vunpack.c.h.b16 %v508
  %v1578 = vunpack.c.l.b16 %v509
  %v1579 = vunpack.c.h.b16 %v509
  %v1580 = vunpack.c.l.b16 %v510
  %v1581 = vunpack.c.h.b16 %v510
  %v1582 = vunpack.c.l.b16 %v511
  %v1583 = vunpack.c.h.b16 %v511
  %v1584 = vunpack.c.l.b16 %v512
  %v1585 = vunpack.c.h.b16 %v512
  %v1586 = vunpack.c.l.b16 %v513
  %v1587 = vunpack.c.h.b16 %v513
  %v1588 = vunpack.c.l.b16 %v514
  %v1589 = vunpack.c.h.b16 %v514
  %v1590 = vunpack.c.l.b16 %v515
  %v1591 = vunpack.c.h.b16 %v515
  %v1592 = vunpack.c.l.b16 %v516
  %v1593 = vunpack.c.h.b16 %v516
  %v1594 = vunpack.c.l.b16 %v517
  %v1595 = vunpack.c.h.b16 %v517
  %v1596 = vunpack.c.l.b16 %v518
  %v1597 = vunpack.c.h.b16 %v518
  %v1598 = vunpack.c.l.b16 %v519
  %v1599 = vunpack.c.h.b16 %v519
  %v1600 = vunpack.c.l.b16 %v520
  %v1601 = vunpack.c.h.b16 %v520
  %v1602 = vunpack.c.l.b16 %v521
  %v1603 = vunpack.c.h.b16 %v521
  %v1604 = vunpack.c.l.b16 %v522
  %v1605 = vunpack.c.h.b16 %v522
  %v1606 = vunpack.c.l.b16 %v523
  %v1607 = vunpack.c.h.b16 %v523
  %v1608 = vunpack.c.l.b16 %v524
  %v1609 = vunpack.c.h.b16 %v524
  %v1610 = vunpack.c.l.b16 %v525
  %v1611 = vunpack.c.h.b16 %v525
  %v1612 = vunpack.c.l.b16 %v526
  %v1613 = vunpack.c.h.b16 %v526
  %v1614 = vunpack.c.l.b16 %v527
  %v1615 = vunpack.c.h.b16 %v527
  %v1616 = vunpack.c.l.b16 %v528
  %v1617 = vunpack.c.h.b16 %v528
  %v1618 = vunpack.c.l.b16 %v529
  %v1619 = vunpack.c.h.b16 %v529
  %v1620 = vunpack.c.l.b16 %v530
  %v1621 = vunpack.c.h.b16 %v530
  %v1622 = vunpack.c.l.b16 %v531
  %v1623 = vunpack.c.h.b16 %v531
  %v1624 = vunpack.c.l.b16 %v532
  %v1625 = vunpack.c.h.b16 %v532
  %v1626 = vunpack.c.l.b16 %v533
  %v1627 = vunpack.c.h.b16 %v533
  %v1628 = vunpack.c.l.b16 %v534
  %v1629 = vunpack.c.h.b16 %v534
  %v1630 = vunpack.c.l.b16 %v535
  %v1631 = vunpack.c.h.b16 %v535
  %v1632 = vunpack.c.l.b16 %v536
  %v1633 = vunpack.c.h.b16 %v536
  %v1634 = vunpack.c.l.b16 %v537
  %v1635 = vunpack.c.h.b16 %v537
  %v1636 = vunpack.c.l.b16 %v538
  %v1637 = vunpack.c.h.b16 %v538
  %v1638 = vunpack.c.l.b16 %v539
  %v1639 = vunpack.c.h.b16 %v539
  %v1640 = vunpack.c.l.b16 %v540
  %v1641 = vunpack.c.h.b16 %v540
  %v1642 = vunpack.c.l.b16 %v541
  %v1643 = vunpack.c.h.b16 %v541
  %v1644 = vunpack.c.l.b16 %v542
  %v1645 = vunpack.c.h.b16 %v542
  %v1646 = vunpack.c.l.b16 %v543
  %v1647 = vunpack.c.h.b16 %v543
  %v1648 = vunpack.c.l.b16 %v544
  %v1649 = vunpack.c.h.b16 %v544
  %v1650 = vunpack.c.l.b16 %v545
  %v1651 = vunpack.c.h.b16 %v545
  %v1652 = vunpack.c.l.b16 %v546
  %v1653 = vunpack.c.h.b16 %v546
  %v1654 = vunpack.c.l.b16 %v547
  %v1655 = vunpack.c.h.b16 %v547
  %v1656 = vunpack.c.l.b16 %v548
  %v1657 = vunpack.c.h.b16 %v548
  %v1658 = vunpack.c.l.b16 %v549
  %v1659 = vunpack.c.h.b16 %v549
  %v1660 = vunpack.c.l.b16 %v550
  %v1661 = vunpack.c.h.b16 %v550
  %v1662 = vunpack.c.l.b16 %v551
  %v1663 = vunpack.c.h.b16 %v551
  %v1664 = vunpack.c.l.b16 %v552
  %v1665 = vunpack.c.h.b16 %v552
  %v1666 = vunpack.c.l.b16 %v553
  %v1667 = vunpack.c.h.b16 %v553
  %v1668 = vunpack.c.l.b16 %v554
  %v1669 = vunpack.c.h.b16 %v554
  %v1670 = vunpack.c.l.b16 %v555
  %v1671 = vunpack.c.h.b16 %v555
  %v1672 = vunpack.c.l.b16 %v556
  %v1673 = vunpack.c.h.b16 %v556
  %v1674 = vunpack.c.l.b16 %v557
  %v1675 = vunpack.c.h.b16 %v557
  %v1676 = vunpack.c.l.b16 %v558
  %v1677 = vunpack.c.h.b16 %v558
  %v1678 = vunpack.c.l.b16 %v559
  %v1679 = vunpack.c.h.b16 %v559
  %v1680 = vunpack.c.l.b16 %v560
  %v1681 = vunpack.c.h.b16 %v560
  %v1682 = vunpack.c.l.b16 %v561
  %v1683 = vunpack.c.h.b16 %v561
  %v1684 = vunpack.c.l.b16 %v562
  %v1685 = vunpack.c.h.b16 %v562
  %v1686 = vunpack.c.l.b16 %v563
  %v1687 = vunpack.c.h.b16 %v563
  %v1688 = vunpack.c.l.b16 %v564
  %v1689 = vunpack.c.h.b16 %v564
  %v1690 = vunpack.c.l.b16 %v565
  %v1691 = vunpack.c.h.b16 %v565
  %v1692 = vunpack.c.l.b16 %v566
  %v1693 = vunpack.c.h.b16 %v566
  %v1694 = vunpack.c.l.b16 %v567
  %v1695 = vunpack.c.h.b16 %v567
  %v1696 = vunpack.c.l.b16 %v568
  %v1697 = vunpack.c.h.b16 %v568
  %v1698 = vunpack.c.l.b16 %v569
  %v1699 = vunpack.c.h.b16 %v569
  %v1700 = vunpack.c.l.b16 %v570
  %v1701 = vunpack.c.h.b16 %v570
  %v1702 = vunpack.c.l.b16 %v571
  %v1703 = vunpack.c.h.b16 %v571
  %v1704 = vunpack.c.l.b16 %v572
  %v1705 = vunpack.c.h.b16 %v572
  %v1706 = vunpack.c.l.b16 %v573
  %v1707 = vunpack.c.h.b16 %v573
  %v1708 = vunpack.c.l.b16 %v574
  %v1709 = vunpack.c.h.b16 %v574
  %v1710 = vunpack.c.l.b16 %v575
  %v1711 = vunpack.c.h.b16 %v575
  %v1712 = vunpack.c.l.b16 %v576
  %v1713 = vunpack.c.h.b16 %v576
  %v1714 = vunpack.c.l.b16 %v577
  %v1715 = vunpack.c.h.b16 %v577
  %v1716 = vunpack.c.l.b16 %v578
  %v1717 = vunpack.c.h.b16 %v578
  %v1718 = vunpack.c.l.b16 %v579
  %v1719 = vunpack.c.h.b16 %v579
  %v1720 = vunpack.c.l.b16 %v580
  %v1721 = vunpack.c.h.b16 %v580
  %v1722 = vunpack.c.l.b16 %v581
  %v1723 = vunpack.c.h.b16 %v581
  %v1724 = vunpack.c.l.b16 %v582
  %v1725 = vunpack.c.h.b16 %v582
  %v1726 = vunpack.c.l.b16 %v583
  %v1727 = vunpack.c.h.b16 %v583
  %v1728 = vunpack.c.l.b16 %v584
  %v1729 = vunpack.c.h.b16 %v584
  %v1730 = vunpack.c.l.b16 %v585
  %v1731 = vunpack.c.h.b16 %v585
  %v1732 = vunpack.c.l.b16 %v586
  %v1733 = vunpack.c.h.b16 %v586
  %v1734 = vunpack.c.l.b16 %v587
  %v1735 = vunpack.c.h.b16 %v587
  %v1736 = vunpack.c.l.b16 %v588
  %v1737 = vunpack.c.h.b16 %v588
  %v1738 = vunpack.c.l.b16 %v589
  %v1739 = vunpack.c.h.b16 %v589
  %v1740 = vunpack.c.l.b16 %v590
  %v1741 = vunpack.c.h.b16 %v590
  %v1742 = vunpack.c.l.b16 %v591
  %v1743 = vunpack.c.h.b16 %v591
  %v1744 = vunpack.c.l.b16 %v592
  %v1745 = vunpack.c.h.b16 %v592
  %v1746 = vunpack.c.l.b16 %v593
  %v1747 = vunpack.c.h.b16 %v593
  %v1748 = vunpack.c.l.b16 %v594
  %v1749 = vunpack.c.h.b16 %v594
  %v1750 = vunpack.c.l.b16 %v595
  %v1751 = vunpack.c.h.b16 %v595
  %v1752 = vunpack.c.l.b16 %v596
  %v1753 = vunpack.c.h.b16 %v596
  %v1754 = vunpack.c.l.b16 %v597
  %v1755 = vunpack.c.h.b16 %v597
  %v1756 = vunpack.c.l.b16 %v598
  %v1757 = vunpack.c.h.b16 %v598
  %v1758 = vunpack.c.l.b16 %v599
  %v1759 = vunpack.c.h.b16 %v599
  %v1760 = vunpack.c.l.b16 %v600
  %v1761 = vunpack.c.h.b16 %v600
  %v1762 = vunpack.c.l.b16 %v601
  %v1763 = vunpack.c.h.b16 %v601
  %v1764 = vunpack.c.l.b16 %v602
  %v1765 = vunpack.c.h.b16 %v602
  %v1766 = vunpack.c.l.b16 %v603
  %v1767 = vunpack.c.h.b16 %v603
  %v1768 = vunpack.c.l.b16 %v604
  %v1769 = vunpack.c.h.b16 %v604
  %v1770 = vunpack.c.l.b16 %v605
  %v1771 = vunpack.c.h.b16 %v605
  %v1772 = vunpack.c.l.b16 %v606
  %v1773 = vunpack.c.h.b16 %v606
  %v1774 = vunpack.c.l.b16 %v607
  %v1775 = vunpack.c.h.b16 %v607
  %v1776 = vunpack.c.l.b16 %v608
  %v1777 = vunpack.c.h.b16 %v608
  %v1778 = vunpack.c.l.b16 %v609
  %v1779 = vunpack.c.h.b16 %v609
  %v1780 = vunpack.c.l.b16 %v610
  %v1781 = vunpack.c.h.b16 %v610
  %v1782 = vunpack.c.l.b16 %v611
  %v1783 = vunpack.c.h.b16 %v611
  %v1784 = vunpack.c.l.b16 %v612
  %v1785 = vunpack.c.h.b16 %v612
  %v1786 = vunpack.c.l.b16 %v613
  %v1787 = vunpack.c.h.b16 %v613
  %v1788 = vunpack.c.l.b16 %v614
  %v1789 = vunpack.c.h.b16 %v614
  %v1790 = vunpack.c.l.b16 %v615
  %v1791 = vunpack.c.h.b16 %v615
  %v1792 = vunpack.c.l.b16 %v616
  %v1793 = vunpack.c.h.b16 %v616
  %v1794 = vunpack.c.l.b16 %v617
  %v1795 = vunpack.c.h.b16 %v617
  %v1796 = vunpack.c.l.b16 %v618
  %v1797 = vunpack.c.h.b16 %v618
  %v1798 = vunpack.c.l.b16 %v619
  %v1799 = vunpack.c.h.b16 %v619
  %v1800 = vunpack.c.l.b16 %v620
  %v1801 = vunpack.c.h.b16 %v620
  %v1802 = vunpack.c.l.b16 %v621
  %v1803 = vunpack.c.h.b16 %v621
  %v1804 = vpack.c.b16 %v1022, %v1020
  %v1805 = vpack.c.b16 %v1023, %v1021
  %v1806 = vpack.c.b16 %v1026, %v1024
  %v1807 = vpack.c.b16 %v1027, %v1025
  %v1808 = vpack.c.b16 %v1030, %v1028
  %v1809 = vpack.c.b16 %v1031, %v1029
  %v1810 = vpack.c.b16 %v1034, %v1032
  %v1811 = vpack.c.b16 %v1035, %v1033
  %v1812 = vpack.c.b16 %v1038, %v1036
  %v1813 = vpack.c.b16 %v1039, %v1037
  %v1814 = vpack.c.b16 %v1042, %v1040
  %v1815 = vpack.c.b16 %v1043, %v1041
  %v1816 = vpack.c.b16 %v1046, %v1044
  %v1817 = vpack.c.b16 %v1047, %v1045
  %v1818 = vpack.c.b16 %v1050, %v1048
  %v1819 = vpack.c.b16 %v1051, %v1049
  %v1820 = vpack.c.b16 %v1054, %v1052
  %v1821 = vpack.c.b16 %v1055, %v1053
  %v1822 = vpack.c.b16 %v1058, %v1056
  %v1823 = vpack.c.b16 %v1059, %v1057
  %v1824 = vpack.c.b16 %v1062, %v1060
  %v1825 = vpack.c.b16 %v1063, %v1061
  %v1826 = vpack.c.b16 %v1066, %v1064
  %v1827 = vpack.c.b16 %v1067, %v1065
  %v1828 = vpack.c.b16 %v1070, %v1068
  %v1829 = vpack.c.b16 %v1071, %v1069
  %v1830 = vpack.c.b16 %v1074, %v1072
  %v1831 = vpack.c.b16 %v1075, %v1073
  %v1832 = vpack.c.b16 %v1078, %v1076
  %v1833 = vpack.c.b16 %v1079, %v1077
  %v1834 = vpack.c.b16 %v1082, %v1080
  %v1835 = vpack.c.b16 %v1083, %v1081
  %v1836 = vpack.c.b16 %v1086, %v1084
  %v1837 = vpack.c.b16 %v1087, %v1085
  %v1838 = vpack.c.b16 %v1090, %v1088
  %v1839 = vpack.c.b16 %v1091, %v1089
  %v1840 = vpack.c.b16 %v1094, %v1092
  %v1841 = vpack.c.b16 %v1095, %v1093
  %v1842 = vpack.c.b16 %v1098, %v1096
  %v1843 = vpack.c.b16 %v1099, %v1097
  %v1844 = vpack.c.b16 %v1102, %v1100
  %v1845 = vpack.c.b16 %v1103, %v1101
  %v1846 = vpack.c.b16 %v1106, %v1104
  %v1847 = vpack.c.b16 %v1107, %v1105
  %v1848 = vpack.c.b16 %v1110, %v1108
  %v1849 = vpack.c.b16 %v1111, %v1109
  %v1850 = vpack.c.b16 %v1114, %v1112
  %v1851 = vpack.c.b16 %v1115, %v1113
  %v1852 = vpack.c.b16 %v1118, %v1116
  %v1853 = vpack.c.b16 %v1119, %v1117
  %v1854 = vpack.c.b16 %v1122, %v1120
  %v1855 = vpack.c.b16 %v1123, %v1121
  %v1856 = vpack.c.b16 %v1126, %v1124
  %v1857 = vpack.c.b16 %v1127, %v1125
  %v1858 = vpack.c.b16 %v1130, %v1128
  %v1859 = vpack.c.b16 %v1131, %v1129
  %v1860 = vpack.c.b16 %v1134, %v1132
  %v1861 = vpack.c.b16 %v1135, %v1133
  %v1862 = vpack.c.b16 %v1138, %v1136
  %v1863 = vpack.c.b16 %v1139, %v1137
  %v1864 = vpack.c.b16 %v1142, %v1140
  %v1865 = vpack.c.b16 %v1143, %v1141
  %v1866 = vpack.c.b16 %v1146, %v1144
  %v1867 = vpack.c.b16 %v1147, %v1145
  %v1868 = vpack.c.b16 %v1150, %v1148
  %v1869 = vpack.c.b16 %v1151, %v1149
  %v1870 = vpack.c.b16 %v1154, %v1152
  %v1871 = vpack.c.b16 %v1155, %v1153
  %v1872 = vpack.c.b16 %v1158, %v1156
  %v1873 = vpack.c.b16 %v1159, %v1157
  %v1874 = vpack.c.b16 %v1162, %v1160
  %v1875 = vpack.c.b16 %v1163, %v1161
  %v1876 = vpack.c.b16 %v1166, %v1164
  %v1877 = vpack.c.b16 %v1167, %v1165
  %v1878 = vpack.c.b16 %v1170, %v1168
  %v1879 = vpack.c.b16 %v1171, %v1169
  %v1880 = vpack.c.b16 %v1174, %v1172
  %v1881 = vpack.c.b16 %v1175, %v1173
  %v1882 = vpack.c.b16 %v1178, %v1176
  %v1883 = vpack.c.b16 %v1179, %v1177
  %v1884 = vpack.c.b16 %v1182, %v1180
  %v1885 = vpack.c.b16 %v1183, %v1181
  %v1886 = vpack.c.b16 %v1186, %v1184
  %v1887 = vpack.c.b16 %v1187, %v1185
  %v1888 = vpack.c.b16 %v1190, %v1188
  %v1889 = vpack.c.b16 %v1191, %v1189
  %v1890 = vpack.c.b16 %v1194, %v1192
  %v1891 = vpack.c.b16 %v1195, %v1193
  %v1892 = vpack.c.b16 %v1198, %v1196
  %v1893 = vpack.c.b16 %v1199, %v1197
  %v1894 = vpack.c.b16 %v1202, %v1200
  %v1895 = vpack.c.b16 %v1203, %v1201
  %v1896 = vpack.c.b16 %v1206, %v1204
  %v1897 = vpack.c.b16 %v1207, %v1205
  %v1898 = vpack.c.b16 %v1210, %v1208
  %v1899 = vpack.c.b16 %v1211, %v1209
  %v1900 = vpack.c.b16 %v1214, %v1212
  %v1901 = vpack.c.b16 %v1215, %v1213
  %v1902 = vpack.c.b16 %v1218, %v1216
  %v1903 = vpack.c.b16 %v1219, %v1217
  %v1904 = vpack.c.b16 %v1222, %v1220
  %v1905 = vpack.c.b16 %v1223, %v1221
  %v1906 = vpack.c.b16 %v1226, %v1224
  %v1907 = vpack.c.b16 %v1227, %v1225
  %v1908 = vpack.c.b16 %v1230, %v1228
  %v1909 = vpack.c.b16 %v1231, %v1229
  %v1910 = vpack.c.b16 %v1234, %v1232
  %v1911 = vpack.c.b16 %v1235, %v1233
  %v1912 = vpack.c.b16 %v1238, %v1236
  %v1913 = vpack.c.b16 %v1239, %v1237
  %v1914 = vpack.c.b16 %v1242, %v1240
  %v1915 = vpack.c.b16 %v1243, %v1241
  %v1916 = vpack.c.b16 %v1246, %v1244
  %v1917 = vpack.c.b16 %v1247, %v1245
  %v1918 = vpack.c.b16 %v1250, %v1248
  %v1919 = vpack.c.b16 %v1251, %v1249
  %v1920 = vpack.c.b16 %v1254, %v1252
  %v1921 = vpack.c.b16 %v1255, %v1253
  %v1922 = vpack.c.b16 %v1258, %v1256
  %v1923 = vpack.c.b16 %v1259, %v1257
  %v1924 = vpack.c.b16 %v1262, %v1260
  %v1925 = vpack.c.b16 %v1263, %v1261
  %v1926 = vpack.c.b16 %v1266, %v1264
  %v1927 = vpack.c.b16 %v1267, %v1265
  %v1928 = vpack.c.b16 %v1270, %v1268
  %v1929 = vpack.c.b16 %v1271, %v1269
  %v1930 = vpack.c.b16 %v1274, %v1272
  %v1931 = vpack.c.b16 %v1275, %v1273
  %v1932 = vpack.c.b16 %v1278, %v1276
  %v1933 = vpack.c.b16 %v1279, %v1277
  %v1934 = vpack.c.b16 %v1282, %v1280
  %v1935 = vpack.c.b16 %v1283, %v1281
  %v1936 = vpack.c.b16 %v1286, %v1284
  %v1937 = vpack.c.b16 %v1287, %v1285
  %v1938 = vpack.c.b16 %v1290, %v1288
  %v1939 = vpack.c.b16 %v1291, %v1289
  %v1940 = vpack.c.b16 %v1294, %v1292
  %v1941 = vpack.c.b16 %v1295, %v1293
  %v1942 = vpack.c.b16 %v1298, %v1296
  %v1943 = vpack.c.b16 %v1299, %v1297
  %v1944 = vpack.c.b16 %v1302, %v1300
  %v1945 = vpack.c.b16 %v1303, %v1301
  %v1946 = vpack.c.b16 %v1306, %v1304
  %v1947 = vpack.c.b16 %v1307, %v1305
  %v1948 = vpack.c.b16 %v1310, %v1308
  %v1949 = vpack.c.b16 %v1311, %v1309
  %v1950 = vpack.c.b16 %v1314, %v1312
  %v1951 = vpack.c.b16 %v1315, %v1313
  %v1952 = vpack.c.b16 %v1318, %v1316
  %v1953 = vpack.c.b16 %v1319, %v1317
  %v1954 = vpack.c.b16 %v1322, %v1320
  %v1955 = vpack.c.b16 %v1323, %v1321
  %v1956 = vpack.c.b16 %v1326, %v1324
  %v1957 = vpack.c.b16 %v1327, %v1325
  %v1958 = vpack.c.b16 %v1330, %v1328
  %v1959 = vpack.c.b16 %v1331, %v1329
  %v1960 = vpack.c.b16 %v1334, %v1332
  %v1961 = vpack.c.b16 %v1335, %v1333
  %v1962 = vpack.c.b16 %v1338, %v1336
  %v1963 = vpack.c.b16 %v1339, %v1337
  %v1964 = vpack.c.b16 %v1342, %v1340
  %v1965 = vpack.c.b16 %v1343, %v1341
  %v1966 = vpack.c.b16 %v1346, %v1344
  %v1967 = vpack.c.b16 %v1347, %v1345
  %v1968 = vpack.c.b16 %v1350, %v1348
  %v1969 = vpack.c.b16 %v1351, %v1349
  %v1970 = vpack.c.b16 %v1354, %v1352
  %v1971 = vpack.c.b16 %v1355, %v1353
  %v1972 = vpack.c.b16 %v1358, %v1356
  %v1973 = vpack.c.b16 %v1359, %v1357
  %v1974 = vpack.c.b16 %v1362, %v1360
  %v1975 = vpack.c.b16 %v1363, %v1361
  %v1976 = vpack.c.b16 %v1366, %v1364
  %v1977 = vpack.c.b16 %v1367, %v1365
  %v1978 = vpack.c.b16 %v1370, %v1368
  %v1979 = vpack.c.b16 %v1371, %v1369
  %v1980 = vpack.c.b16 %v1374, %v1372
  %v1981 = vpack.c.b16 %v1375, %v1373
  %v1982 = vpack.c.b16 %v1378, %v1376
  %v1983 = vpack.c.b16 %v1379, %v1377
  %v1984 = vpack.c.b16 %v1382, %v1380
  %v1985 = vpack.c.b16 %v1383, %v1381
  %v1986 = vpack.c.b16 %v1386, %v1384
  %v1987 = vpack.c.b16 %v1387, %v1385
  %v1988 = vpack.c.b16 %v1390, %v1388
  %v1989 = vpack.c.b16 %v1391, %v1389
  %v1990 = vpack.c.b16 %v1394, %v1392
  %v1991 = vpack.c.b16 %v1395, %v1393
  %v1992 = vpack.c.b16 %v1398, %v1396
  %v1993 = vpack.c.b16 %v1399, %v1397
  %v1994 = vpack.c.b16 %v1402, %v1400
  %v1995 = vpack.c.b16 %v1403, %v1401
  %v1996 = vpack.c.b16 %v1406, %v1404
  %v1997 = vpack.c.b16 %v1407, %v1405
  %v1998 = vpack.c.b16 %v1410, %v1408
  %v1999 = vpack.c.b16 %v1411, %v1409
  %v2000 = vpack.c.b16 %v1414, %v1412
  %v2001 = vpack.c.b16 %v1415, %v1413
  %v2002 = vpack.c.b16 %v1418, %v1416
  %v2003 = vpack.c.b16 %v1419, %v1417
  %v2004 = vpack.c.b16 %v1422, %v1420
  %v2005 = vpack.c.b16 %v1423, %v1421
  %v2006 = vpack.c.b16 %v1426, %v1424
  %v2007 = vpack.c.b16 %v1427, %v1425
  %v2008 = vpack.c.b16 %v1430, %v1428
  %v2009 = vpack.c.b16 %v1431, %v1429
  %v2010 = vpack.c.b16 %v1434, %v1432
  %v2011 = vpack.c.b16 %v1435, %v1433
  %v2012 = vpack.c.b16 %v1438, %v1436
  %v2013 = vpack.c.b16 %v1439, %v1437
  %v2014 = vpack.c.b16 %v1442, %v1440
  %v2015 = vpack.c.b16 %v1443, %v1441
  %v2016 = vpack.c.b16 %v1446, %v1444
  %v2017 = vpack.c.b16 %v1447, %v1445
  %v2018 = vpack.c.b16 %v1450, %v1448
  %v2019 = vpack.c.b16 %v1451, %v1449
  %v2020 = vpack.c.b16 %v1454, %v1452
  %v2021 = vpack.c.b16 %v1455, %v1453
  %v2022 = vpack.c.b16 %v1458, %v1456
  %v2023 = vpack.c.b16 %v1459, %v1457
  %v2024 = vpack.c.b16 %v1462, %v1460
  %v2025 = vpack.c.b16 %v1463, %v1461
  %v2026 = vpack.c.b16 %v1466, %v1464
  %v2027 = vpack.c.b16 %v1467, %v1465
  %v2028 = vpack.c.b16 %v1470, %v1468
  %v2029 = vpack.c.b16 %v1471, %v1469
  %v2030 = vpack.c.b16 %v1474, %v1472
  %v2031 = vpack.c.b16 %v1475, %v1473
  %v2032 = vpack.c.b16 %v1478, %v1476
  %v2033 = vpack.c.b16 %v1479, %v1477
  %v2034 = vpack.c.b16 %v1482, %v1480
  %v2035 = vpack.c.b16 %v1483, %v1481
  %v2036 = vpack.c.b16 %v1486, %v1484
  %v2037 = vpack.c.b16 %v1487, %v1485
  %v2038 = vpack.c.b16 %v1490, %v1488
  %v2039 = vpack.c.b16 %v1491, %v1489
  %v2040 = vpack.c.b16 %v1494, %v1492
  %v2041 = vpack.c.b16 %v1495, %v1493
  %v2042 = vpack.c.b16 %v1498, %v1496
  %v2043 = vpack.c.b16 %v1499, %v1497
  %v2044 = vpack.c.b16 %v1502, %v1500
  %v2045 = vpack.c.b16 %v1503, %v1501
  %v2046 = vpack.c.b16 %v1506, %v1504
  %v2047 = vpack.c.b16 %v1507, %v1505
  %v2048 = vpack.c.b16 %v1510, %v1508
  %v2049 = vpack.c.b16 %v1511, %v1509
  %v2050 = vpack.c.b16 %v1514, %v1512
  %v2051 = vpack.c.b16 %v1515, %v1513
  %v2052 = vpack.c.b16 %v1518, %v1516
  %v2053 = vpack.c.b16 %v1519, %v1517
  %v2054 = vpack.c.b16 %v1522, %v1520
  %v2055 = vpack.c.b16 %v1523, %v1521
  %v2056 = vpack.c.b16 %v1526, %v1524
  %v2057 = vpack.c.b16 %v1527, %v1525
  %v2058 = vpack.c.b16 %v1530, %v1528
  %v2059 = vpack.c.b16 %v1531, %v1529
  %v2060 = vpack.c.b16 %v1534, %v1532
  %v2061 = vpack.c.b16 %v1535, %v1533
  %v2062 = vpack.c.b16 %v1538, %v1536
  %v2063 = vpack.c.b16 %v1539, %v1537
  %v2064 = vpack.c.b16 %v1542, %v1540
  %v2065 = vpack.c.b16 %v1543, %v1541
  %v2066 = vpack.c.b16 %v1546, %v1544
  %v2067 = vpack.c.b16 %v1547, %v1545
  %v2068 = vpack.c.b16 %v1550, %v1548
  %v2069 = vpack.c.b16 %v1551, %v1549
  %v2070 = vpack.c.b16 %v1554, %v1552
  %v2071 = vpack.c.b16 %v1555, %v1553
  %v2072 = vpack.c.b16 %v1558, %v1556
  %v2073 = vpack.c.b16 %v1559, %v1557
  %v2074 = vpack.c.b16 %v1562, %v1560
  %v2075 = vpack.c.b16 %v1563, %v1561
  %v2076 = vpack.c.b16 %v1566, %v1564
  %v2077 = vpack.c.b16 %v1567, %v1565
  %v2078 = vpack.c.b16 %v1570, %v1568
  %v2079 = vpack.c.b16 %v1571, %v1569
  %v2080 = vpack.c.b16 %v1574, %v1572
  %v2081 = vpack.c.b16 %v1575, %v1573
  %v2082 = vpack.c.b16 %v1578, %v1576
  %v2083 = vpack.c.b16 %v1579, %v1577
  %v2084 = vpack.c.b16 %v1582, %v1580
  %v2085 = vpack.c.b16 %v1583, %v1581
  %v2086 = vpack.c.b16 %v1586, %v1584
  %v2087 = vpack.c.b16 %v1587, %v1585
  %v2088 = vpack.c.b16 %v1590, %v1588
  %v2089 = vpack.c.b16 %v1591, %v1589
  %v2090 = vpack.c.b16 %v1594, %v1592
  %v2091 = vpack.c.b16 %v1595, %v1593
  %v2092 = vpack.c.b16 %v1598, %v1596
  %v2093 = vpack.c.b16 %v1599, %v1597
  %v2094 = vpack.c.b16 %v1602, %v1600
  %v2095 = vpack.c.b16 %v1603, %v1601
  %v2096 = vpack.c.b16 %v1606, %v1604
  %v2097 = vpack.c.b16 %v1607, %v1605
  %v2098 = vpack.c.b16 %v1610, %v1608
  %v2099 = vpack.c.b16 %v1611, %v1609
  %v2100 = vpack.c.b16 %v1614, %v1612
  %v2101 = vpack.c.b16 %v1615, %v1613
  %v2102 = vpack.c.b16 %v1618, %v1616
  %v2103 = vpack.c.b16 %v1619, %v1617
  %v2104 = vpack.c.b16 %v1622, %v1620
  %v2105 = vpack.c.b16 %v1623, %v1621
  %v2106 = vpack.c.b16 %v1626, %v1624
  %v2107 = vpack.c.b16 %v1627, %v1625
  %v2108 = vpack.c.b16 %v1630, %v1628
  %v2109 = vpack.c.b16 %v1631, %v1629
  %v2110 = vpack.c.b16 %v1634, %v1632
  %v2111 = vpack.c.b16 %v1635, %v1633
  %v2112 = vpack.c.b16 %v1638, %v1636
  %v2113 = vpack.c.b16 %v1639, %v1637
  %v2114 = vpack.c.b16 %v1642, %v1640
  %v2115 = vpack.c.b16 %v1643, %v1641
  %v2116 = vpack.c.b16 %v1646, %v1644
  %v2117 = vpack.c.b16 %v1647, %v1645
  %v2118 = vpack.c.b16 %v1650, %v1648
  %v2119 = vpack.c.b16 %v1651, %v1649
  %v2120 = vpack.c.b16 %v1654, %v1652
  %v2121 = vpack.c.b16 %v1655, %v1653
  %v2122 = vpack.c.b16 %v1658, %v1656
  %v2123 = vpack.c.b16 %v1659, %v1657
  %v2124 = vpack.c.b16 %v1662, %v1660
  %v2125 = vpack.c.b16 %v1663, %v1661
  %v2126 = vpack.c.b16 %v1666, %v1664
  %v2127 = vpack.c.b16 %v1667, %v1665
  %v2128 = vpack.c.b16 %v1670, %v1668
  %v2129 = vpack.c.b16 %v1671, %v1669
  %v2130 = vpack.c.b16 %v1674, %v1672
  %v2131 = vpack.c.b16 %v1675, %v1673
  %v2132 = vpack.c.b16 %v1678, %v1676
  %v2133 = vpack.c.b16 %v1679, %v1677
  %v2134 = vpack.c.b16 %v1682, %v1680
  %v2135 = vpack.c.b16 %v1683, %v1681
  %v2136 = vpack.c.b16 %v1686, %v1684
  %v2137 = vpack.c.b16 %v1687, %v1685
  %v2138 = vpack.c.b16 %v1690, %v1688
  %v2139 = vpack.c.b16 %v1691, %v1689
  %v2140 = vpack.c.b16 %v1694, %v1692
  %v2141 = vpack.c.b16 %v1695, %v1693
  %v2142 = vpack.c.b16 %v1698, %v1696
  %v2143 = vpack.c.b16 %v1699, %v1697
  %v2144 = vpack.c.b16 %v1702, %v1700
  %v2145 = vpack.c.b16 %v1703, %v1701
  %v2146 = vpack.c.b16 %v1706, %v1704
  %v2147 = vpack.c.b16 %v1707, %v1705
  %v2148 = vpack.c.b16 %v1710, %v1708
  %v2149 = vpack.c.b16 %v1711, %v1709
  %v2150 = vpack.c.b16 %v1714, %v1712
  %v2151 = vpack.c.b16 %v1715, %v1713
  %v2152 = vpack.c.b16 %v1718, %v1716
  %v2153 = vpack.c.b16 %v1719, %v1717
  %v2154 = vpack.c.b16 %v1722, %v1720
  %v2155 = vpack.c.b16 %v1723, %v1721
  %v2156 = vpack.c.b16 %v1726, %v1724
  %v2157 = vpack.c.b16 %v1727, %v1725
  %v2158 = vpack.c.b16 %v1730, %v1728
  %v2159 = vpack.c.b16 %v1731, %v1729
  %v2160 = vpack.c.b16 %v1734, %v1732
  %v2161 = vpack.c.b16 %v1735, %v1733
  %v2162 = vpack.c.b16 %v1738, %v1736
  %v2163 = vpack.c.b16 %v1739, %v1737
  %v2164 = vpack.c.b16 %v1742, %v1740
  %v2165 = vpack.c.b16 %v1743, %v1741
  %v2166 = vpack.c.b16 %v1746, %v1744
  %v2167 = vpack.c.b16 %v1747, %v1745
  %v2168 = vpack.c.b16 %v1750, %v1748
  %v2169 = vpack.c.b16 %v1751, %v1749
  %v2170 = vpack.c.b16 %v1754, %v1752
  %v2171 = vpack.c.b16 %v1755, %v1753
  %v2172 = vpack.c.b16 %v1758, %v1756
  %v2173 = vpack.c.b16 %v1759, %v1757
  %v2174 = vpack.c.b16 %v1762, %v1760
  %v2175 = vpack.c.b16 %v1763, %v1761
  %v2176 = vpack.c.b16 %v1766, %v1764
  %v2177 = vpack.c.b16 %v1767, %v1765
  %v2178 = vpack.c.b16 %v1770, %v1768
  %v2179 = vpack.c.b16 %v1771, %v1769
  %v2180 = vpack.c.b16 %v1774, %v1772
  %v2181 = vpack.c.b16 %v1775, %v1773
  %v2182 = vpack.c.b16 %v1778, %v1776
  %v2183 = vpack.c.b16 %v1779, %v1777
  %v2184 = vpack.c.b16 %v1782, %v1780
  %v2185 = vpack.c.b16 %v1783, %v1781
  %v2186 = vpack.c.b16 %v1786, %v1784
  %v2187 = vpack.c.b16 %v1787, %v1785
  %v2188 = vpack.c.b16 %v1790, %v1788
  %v2189 = vpack.c.b16 %v1791, %v1789
  %v2190 = vpack.c.b16 %v1794, %v1792
  %v2191 = vpack.c.b16 %v1795, %v1793
  %v2192 = vpack.c.b16 %v1798, %v1796
  %v2193 = vpack.c.b16 %v1799, %v1797
  %v2194 = vpack.c.b16 %v1802, %v1800
  %v2195 = vpack.c.b16 %v1803, %v1801
  %vm2588 = vcmask 523264
  %v2590 = vsel %vm2588, %v229, 0
  %2592 = vmatpush.bf16.msra.mxu0 %v1818
  %2593 = vmatpush.bf16.msra.mxu0 %v1816
  %2594 = vmatpush.bf16.msra.mxu0 %v1814
  %2595 = vmatpush.bf16.msra.mxu0 %v1812
  %2596 = vmatpush.bf16.msra.mxu0 %v1810
  %2597 = vmatpush.bf16.msra.mxu0 %v1808
  %2598 = vmatpush.bf16.msra.mxu0 %v1806
  %2599 = vmatpush.bf16.msra.mxu0 %v1804
  %2600 = vmatmul.bf16.gmra.mxu0 %v205
  %v2601 = vpop.f32.mrf.mxu0
  %v2602 = vadd.f32 %v624, %v2601
  %v2603 = vpop.f32.mrf.mxu0
  %2604 = vdwg.mxu0
  %2605 = vmatpush.bf16.msra.mxu0 %v1834
  %2606 = vmatpush.bf16.msra.mxu0 %v1832
  %2607 = vmatpush.bf16.msra.mxu0 %v1830
  %2608 = vmatpush.bf16.msra.mxu0 %v1828
  %2609 = vmatpush.bf16.msra.mxu0 %v1826
  %2610 = vmatpush.bf16.msra.mxu0 %v1824
  %2611 = vmatpush.bf16.msra.mxu0 %v1822
  %2612 = vmatpush.bf16.msra.mxu0 %v1820
  %2613 = vmatmul.bf16.gmra.mxu0 %v206
  %v2614 = vpop.f32.mrf.mxu0
  %v2615 = vadd.f32 %v2602, %v2614
  %v2616 = vpop.f32.mrf.mxu0
  %2617 = vdwg.mxu0
  %2618 = vmatpush.bf16.msra.mxu0 %v1850
  %2619 = vmatpush.bf16.msra.mxu0 %v1848
  %2620 = vmatpush.bf16.msra.mxu0 %v1846
  %2621 = vmatpush.bf16.msra.mxu0 %v1844
  %2622 = vmatpush.bf16.msra.mxu0 %v1842
  %2623 = vmatpush.bf16.msra.mxu0 %v1840
  %2624 = vmatpush.bf16.msra.mxu0 %v1838
  %2625 = vmatpush.bf16.msra.mxu0 %v1836
  %2626 = vmatmul.bf16.gmra.mxu0 %v207
  %v2627 = vpop.f32.mrf.mxu0
  %v2628 = vadd.f32 %v2615, %v2627
  %v2629 = vpop.f32.mrf.mxu0
  %2630 = vdwg.mxu0
  %2631 = vmatpush.bf16.msra.mxu0 %v1866
  %2632 = vmatpush.bf16.msra.mxu0 %v1864
  %2633 = vmatpush.bf16.msra.mxu0 %v1862
  %2634 = vmatpush.bf16.msra.mxu0 %v1860
  %2635 = vmatpush.bf16.msra.mxu0 %v1858
  %2636 = vmatpush.bf16.msra.mxu0 %v1856
  %2637 = vmatpush.bf16.msra.mxu0 %v1854
  %2638 = vmatpush.bf16.msra.mxu0 %v1852
  %2639 = vmatmul.bf16.gmra.mxu0 %v208
  %v2640 = vpop.f32.mrf.mxu0
  %v2641 = vadd.f32 %v2628, %v2640
  %v2642 = vpop.f32.mrf.mxu0
  %2643 = vdwg.mxu0
  %2644 = vmatpush.bf16.msra.mxu0 %v1882
  %2645 = vmatpush.bf16.msra.mxu0 %v1880
  %2646 = vmatpush.bf16.msra.mxu0 %v1878
  %2647 = vmatpush.bf16.msra.mxu0 %v1876
  %2648 = vmatpush.bf16.msra.mxu0 %v1874
  %2649 = vmatpush.bf16.msra.mxu0 %v1872
  %2650 = vmatpush.bf16.msra.mxu0 %v1870
  %2651 = vmatpush.bf16.msra.mxu0 %v1868
  %2652 = vmatmul.bf16.gmra.mxu0 %v209
  %v2653 = vpop.f32.mrf.mxu0
  %v2654 = vadd.f32 %v2641, %v2653
  %v2655 = vpop.f32.mrf.mxu0
  %2656 = vdwg.mxu0
  %2657 = vmatpush.bf16.msra.mxu0 %v1898
  %2658 = vmatpush.bf16.msra.mxu0 %v1896
  %2659 = vmatpush.bf16.msra.mxu0 %v1894
  %2660 = vmatpush.bf16.msra.mxu0 %v1892
  %2661 = vmatpush.bf16.msra.mxu0 %v1890
  %2662 = vmatpush.bf16.msra.mxu0 %v1888
  %2663 = vmatpush.bf16.msra.mxu0 %v1886
  %2664 = vmatpush.bf16.msra.mxu0 %v1884
  %2665 = vmatmul.bf16.gmra.mxu0 %v210
  %v2666 = vpop.f32.mrf.mxu0
  %v2667 = vadd.f32 %v2654, %v2666
  %v2668 = vpop.f32.mrf.mxu0
  %2669 = vdwg.mxu0
  %2670 = vmatpush.bf16.msra.mxu0 %v1914
  %2671 = vmatpush.bf16.msra.mxu0 %v1912
  %2672 = vmatpush.bf16.msra.mxu0 %v1910
  %2673 = vmatpush.bf16.msra.mxu0 %v1908
  %2674 = vmatpush.bf16.msra.mxu0 %v1906
  %2675 = vmatpush.bf16.msra.mxu0 %v1904
  %2676 = vmatpush.bf16.msra.mxu0 %v1902
  %2677 = vmatpush.bf16.msra.mxu0 %v1900
  %2678 = vmatmul.bf16.gmra.mxu0 %v211
  %v2679 = vpop.f32.mrf.mxu0
  %v2680 = vadd.f32 %v2667, %v2679
  %v2681 = vpop.f32.mrf.mxu0
  %2682 = vdwg.mxu0
  %2683 = vmatpush.bf16.msra.mxu0 %v1930
  %2684 = vmatpush.bf16.msra.mxu0 %v1928
  %2685 = vmatpush.bf16.msra.mxu0 %v1926
  %2686 = vmatpush.bf16.msra.mxu0 %v1924
  %2687 = vmatpush.bf16.msra.mxu0 %v1922
  %2688 = vmatpush.bf16.msra.mxu0 %v1920
  %2689 = vmatpush.bf16.msra.mxu0 %v1918
  %2690 = vmatpush.bf16.msra.mxu0 %v1916
  %2691 = vmatmul.bf16.gmra.mxu0 %v212
  %v2692 = vpop.f32.mrf.mxu0
  %v2693 = vadd.f32 %v2680, %v2692
  %v2694 = vpop.f32.mrf.mxu0
  %2695 = vdwg.mxu0
  %2696 = vmatpush.bf16.msra.mxu0 %v1946
  %2697 = vmatpush.bf16.msra.mxu0 %v1944
  %2698 = vmatpush.bf16.msra.mxu0 %v1942
  %2699 = vmatpush.bf16.msra.mxu0 %v1940
  %2700 = vmatpush.bf16.msra.mxu0 %v1938
  %2701 = vmatpush.bf16.msra.mxu0 %v1936
  %2702 = vmatpush.bf16.msra.mxu0 %v1934
  %2703 = vmatpush.bf16.msra.mxu0 %v1932
  %2704 = vmatmul.bf16.gmra.mxu0 %v213
  %v2705 = vpop.f32.mrf.mxu0
  %v2706 = vadd.f32 %v2693, %v2705
  %v2707 = vpop.f32.mrf.mxu0
  %2708 = vdwg.mxu0
  %2709 = vmatpush.bf16.msra.mxu0 %v1962
  %2710 = vmatpush.bf16.msra.mxu0 %v1960
  %2711 = vmatpush.bf16.msra.mxu0 %v1958
  %2712 = vmatpush.bf16.msra.mxu0 %v1956
  %2713 = vmatpush.bf16.msra.mxu0 %v1954
  %2714 = vmatpush.bf16.msra.mxu0 %v1952
  %2715 = vmatpush.bf16.msra.mxu0 %v1950
  %2716 = vmatpush.bf16.msra.mxu0 %v1948
  %2717 = vmatmul.bf16.gmra.mxu0 %v214
  %v2718 = vpop.f32.mrf.mxu0
  %v2719 = vadd.f32 %v2706, %v2718
  %v2720 = vpop.f32.mrf.mxu0
  %2721 = vdwg.mxu0
  %2722 = vmatpush.bf16.msra.mxu0 %v1978
  %2723 = vmatpush.bf16.msra.mxu0 %v1976
  %2724 = vmatpush.bf16.msra.mxu0 %v1974
  %2725 = vmatpush.bf16.msra.mxu0 %v1972
  %2726 = vmatpush.bf16.msra.mxu0 %v1970
  %2727 = vmatpush.bf16.msra.mxu0 %v1968
  %2728 = vmatpush.bf16.msra.mxu0 %v1966
  %2729 = vmatpush.bf16.msra.mxu0 %v1964
  %2730 = vmatmul.bf16.gmra.mxu0 %v215
  %v2731 = vpop.f32.mrf.mxu0
  %v2732 = vadd.f32 %v2719, %v2731
  %v2733 = vpop.f32.mrf.mxu0
  %2734 = vdwg.mxu0
  %2735 = vmatpush.bf16.msra.mxu0 %v1994
  %2736 = vmatpush.bf16.msra.mxu0 %v1992
  %2737 = vmatpush.bf16.msra.mxu0 %v1990
  %2738 = vmatpush.bf16.msra.mxu0 %v1988
  %2739 = vmatpush.bf16.msra.mxu0 %v1986
  %2740 = vmatpush.bf16.msra.mxu0 %v1984
  %2741 = vmatpush.bf16.msra.mxu0 %v1982
  %2742 = vmatpush.bf16.msra.mxu0 %v1980
  %2743 = vmatmul.bf16.gmra.mxu0 %v216
  %v2744 = vpop.f32.mrf.mxu0
  %v2745 = vadd.f32 %v2732, %v2744
  %v2746 = vpop.f32.mrf.mxu0
  %2747 = vdwg.mxu0
  %2748 = vmatpush.bf16.msra.mxu0 %v2010
  %2749 = vmatpush.bf16.msra.mxu0 %v2008
  %2750 = vmatpush.bf16.msra.mxu0 %v2006
  %2751 = vmatpush.bf16.msra.mxu0 %v2004
  %2752 = vmatpush.bf16.msra.mxu0 %v2002
  %2753 = vmatpush.bf16.msra.mxu0 %v2000
  %2754 = vmatpush.bf16.msra.mxu0 %v1998
  %2755 = vmatpush.bf16.msra.mxu0 %v1996
  %2756 = vmatmul.bf16.gmra.mxu0 %v217
  %v2757 = vpop.f32.mrf.mxu0
  %v2758 = vadd.f32 %v2745, %v2757
  %v2759 = vpop.f32.mrf.mxu0
  %2760 = vdwg.mxu0
  %2761 = vmatpush.bf16.msra.mxu0 %v2026
  %2762 = vmatpush.bf16.msra.mxu0 %v2024
  %2763 = vmatpush.bf16.msra.mxu0 %v2022
  %2764 = vmatpush.bf16.msra.mxu0 %v2020
  %2765 = vmatpush.bf16.msra.mxu0 %v2018
  %2766 = vmatpush.bf16.msra.mxu0 %v2016
  %2767 = vmatpush.bf16.msra.mxu0 %v2014
  %2768 = vmatpush.bf16.msra.mxu0 %v2012
  %2769 = vmatmul.bf16.gmra.mxu0 %v218
  %v2770 = vpop.f32.mrf.mxu0
  %v2771 = vadd.f32 %v2758, %v2770
  %v2772 = vpop.f32.mrf.mxu0
  %2773 = vdwg.mxu0
  %2774 = vmatpush.bf16.msra.mxu0 %v2042
  %2775 = vmatpush.bf16.msra.mxu0 %v2040
  %2776 = vmatpush.bf16.msra.mxu0 %v2038
  %2777 = vmatpush.bf16.msra.mxu0 %v2036
  %2778 = vmatpush.bf16.msra.mxu0 %v2034
  %2779 = vmatpush.bf16.msra.mxu0 %v2032
  %2780 = vmatpush.bf16.msra.mxu0 %v2030
  %2781 = vmatpush.bf16.msra.mxu0 %v2028
  %2782 = vmatmul.bf16.gmra.mxu0 %v219
  %v2783 = vpop.f32.mrf.mxu0
  %v2784 = vadd.f32 %v2771, %v2783
  %v2785 = vpop.f32.mrf.mxu0
  %2786 = vdwg.mxu0
  %2787 = vmatpush.bf16.msra.mxu0 %v2058
  %2788 = vmatpush.bf16.msra.mxu0 %v2056
  %2789 = vmatpush.bf16.msra.mxu0 %v2054
  %2790 = vmatpush.bf16.msra.mxu0 %v2052
  %2791 = vmatpush.bf16.msra.mxu0 %v2050
  %2792 = vmatpush.bf16.msra.mxu0 %v2048
  %2793 = vmatpush.bf16.msra.mxu0 %v2046
  %2794 = vmatpush.bf16.msra.mxu0 %v2044
  %2795 = vmatmul.bf16.gmra.mxu0 %v220
  %v2796 = vpop.f32.mrf.mxu0
  %v2797 = vadd.f32 %v2784, %v2796
  %v2798 = vpop.f32.mrf.mxu0
  %2799 = vdwg.mxu0
  %2800 = vmatpush.bf16.msra.mxu0 %v2074
  %2801 = vmatpush.bf16.msra.mxu0 %v2072
  %2802 = vmatpush.bf16.msra.mxu0 %v2070
  %2803 = vmatpush.bf16.msra.mxu0 %v2068
  %2804 = vmatpush.bf16.msra.mxu0 %v2066
  %2805 = vmatpush.bf16.msra.mxu0 %v2064
  %2806 = vmatpush.bf16.msra.mxu0 %v2062
  %2807 = vmatpush.bf16.msra.mxu0 %v2060
  %2808 = vmatmul.bf16.gmra.mxu0 %v221
  %v2809 = vpop.f32.mrf.mxu0
  %v2810 = vadd.f32 %v2797, %v2809
  %v2811 = vpop.f32.mrf.mxu0
  %2812 = vdwg.mxu0
  %2813 = vmatpush.bf16.msra.mxu0 %v2090
  %2814 = vmatpush.bf16.msra.mxu0 %v2088
  %2815 = vmatpush.bf16.msra.mxu0 %v2086
  %2816 = vmatpush.bf16.msra.mxu0 %v2084
  %2817 = vmatpush.bf16.msra.mxu0 %v2082
  %2818 = vmatpush.bf16.msra.mxu0 %v2080
  %2819 = vmatpush.bf16.msra.mxu0 %v2078
  %2820 = vmatpush.bf16.msra.mxu0 %v2076
  %2821 = vmatmul.bf16.gmra.mxu0 %v222
  %v2822 = vpop.f32.mrf.mxu0
  %v2823 = vadd.f32 %v2810, %v2822
  %v2824 = vpop.f32.mrf.mxu0
  %2825 = vdwg.mxu0
  %2826 = vmatpush.bf16.msra.mxu0 %v2106
  %2827 = vmatpush.bf16.msra.mxu0 %v2104
  %2828 = vmatpush.bf16.msra.mxu0 %v2102
  %2829 = vmatpush.bf16.msra.mxu0 %v2100
  %2830 = vmatpush.bf16.msra.mxu0 %v2098
  %2831 = vmatpush.bf16.msra.mxu0 %v2096
  %2832 = vmatpush.bf16.msra.mxu0 %v2094
  %2833 = vmatpush.bf16.msra.mxu0 %v2092
  %2834 = vmatmul.bf16.gmra.mxu0 %v223
  %v2835 = vpop.f32.mrf.mxu0
  %v2836 = vadd.f32 %v2823, %v2835
  %v2837 = vpop.f32.mrf.mxu0
  %2838 = vdwg.mxu0
  %2839 = vmatpush.bf16.msra.mxu0 %v2122
  %2840 = vmatpush.bf16.msra.mxu0 %v2120
  %2841 = vmatpush.bf16.msra.mxu0 %v2118
  %2842 = vmatpush.bf16.msra.mxu0 %v2116
  %2843 = vmatpush.bf16.msra.mxu0 %v2114
  %2844 = vmatpush.bf16.msra.mxu0 %v2112
  %2845 = vmatpush.bf16.msra.mxu0 %v2110
  %2846 = vmatpush.bf16.msra.mxu0 %v2108
  %2847 = vmatmul.bf16.gmra.mxu0 %v224
  %v2848 = vpop.f32.mrf.mxu0
  %v2849 = vadd.f32 %v2836, %v2848
  %v2850 = vpop.f32.mrf.mxu0
  %2851 = vdwg.mxu0
  %2852 = vmatpush.bf16.msra.mxu0 %v2138
  %2853 = vmatpush.bf16.msra.mxu0 %v2136
  %2854 = vmatpush.bf16.msra.mxu0 %v2134
  %2855 = vmatpush.bf16.msra.mxu0 %v2132
  %2856 = vmatpush.bf16.msra.mxu0 %v2130
  %2857 = vmatpush.bf16.msra.mxu0 %v2128
  %2858 = vmatpush.bf16.msra.mxu0 %v2126
  %2859 = vmatpush.bf16.msra.mxu0 %v2124
  %2860 = vmatmul.bf16.gmra.mxu0 %v225
  %v2861 = vpop.f32.mrf.mxu0
  %v2862 = vadd.f32 %v2849, %v2861
  %v2863 = vpop.f32.mrf.mxu0
  %2864 = vdwg.mxu0
  %2865 = vmatpush.bf16.msra.mxu0 %v2154
  %2866 = vmatpush.bf16.msra.mxu0 %v2152
  %2867 = vmatpush.bf16.msra.mxu0 %v2150
  %2868 = vmatpush.bf16.msra.mxu0 %v2148
  %2869 = vmatpush.bf16.msra.mxu0 %v2146
  %2870 = vmatpush.bf16.msra.mxu0 %v2144
  %2871 = vmatpush.bf16.msra.mxu0 %v2142
  %2872 = vmatpush.bf16.msra.mxu0 %v2140
  %2873 = vmatmul.bf16.gmra.mxu0 %v226
  %v2874 = vpop.f32.mrf.mxu0
  %v2875 = vadd.f32 %v2862, %v2874
  %v2876 = vpop.f32.mrf.mxu0
  %2877 = vdwg.mxu0
  %2878 = vmatpush.bf16.msra.mxu0 %v2170
  %2879 = vmatpush.bf16.msra.mxu0 %v2168
  %2880 = vmatpush.bf16.msra.mxu0 %v2166
  %2881 = vmatpush.bf16.msra.mxu0 %v2164
  %2882 = vmatpush.bf16.msra.mxu0 %v2162
  %2883 = vmatpush.bf16.msra.mxu0 %v2160
  %2884 = vmatpush.bf16.msra.mxu0 %v2158
  %2885 = vmatpush.bf16.msra.mxu0 %v2156
  %2886 = vmatmul.bf16.gmra.mxu0 %v227
  %v2887 = vpop.f32.mrf.mxu0
  %v2888 = vadd.f32 %v2875, %v2887
  %v2889 = vpop.f32.mrf.mxu0
  %2890 = vdwg.mxu0
  %2891 = vmatpush.bf16.msra.mxu0 %v2186
  %2892 = vmatpush.bf16.msra.mxu0 %v2184
  %2893 = vmatpush.bf16.msra.mxu0 %v2182
  %2894 = vmatpush.bf16.msra.mxu0 %v2180
  %2895 = vmatpush.bf16.msra.mxu0 %v2178
  %2896 = vmatpush.bf16.msra.mxu0 %v2176
  %2897 = vmatpush.bf16.msra.mxu0 %v2174
  %2898 = vmatpush.bf16.msra.mxu0 %v2172
  %2899 = vmatmul.bf16.gmra.mxu0 %v228
  %v2900 = vpop.f32.mrf.mxu0
  %v2901 = vadd.f32 %v2888, %v2900
  %v2902 = vpop.f32.mrf.mxu0
  %2903 = vdwg.mxu0
  %2904 = vmatpush.bf16.msra.mxu0 0
  %2905 = vmatpush.bf16.msra.mxu0 0
  %2906 = vmatpush.bf16.msra.mxu0 0
  %2907 = vmatpush.bf16.msra.mxu0 0
  %2908 = vmatpush.bf16.msra.mxu0 %v2194
  %2909 = vmatpush.bf16.msra.mxu0 %v2192
  %2910 = vmatpush.bf16.msra.mxu0 %v2190
  %2911 = vmatpush.bf16.msra.mxu0 %v2188
  %2912 = vmatmul.bf16.gmra.mxu0 %v2590
  %v2913 = vpop.f32.mrf.mxu0
  %v2914 = vadd.f32 %v2901, %v2913
  %v2915 = vpop.f32.mrf.mxu0
  %2916 = vdwg.mxu0
  %2917 = vmatpush.bf16.msra.mxu0 %v1819
  %2918 = vmatpush.bf16.msra.mxu0 %v1817
  %2919 = vmatpush.bf16.msra.mxu0 %v1815
  %2920 = vmatpush.bf16.msra.mxu0 %v1813
  %2921 = vmatpush.bf16.msra.mxu0 %v1811
  %2922 = vmatpush.bf16.msra.mxu0 %v1809
  %2923 = vmatpush.bf16.msra.mxu0 %v1807
  %2924 = vmatpush.bf16.msra.mxu0 %v1805
  %2925 = vmatmul.bf16.gmra.mxu0 %v205
  %v2926 = vpop.f32.mrf.mxu0
  %v2927 = vadd.f32 %v625, %v2926
  %v2928 = vpop.f32.mrf.mxu0
  %2929 = vdwg.mxu0
  %2930 = vmatpush.bf16.msra.mxu0 %v1835
  %2931 = vmatpush.bf16.msra.mxu0 %v1833
  %2932 = vmatpush.bf16.msra.mxu0 %v1831
  %2933 = vmatpush.bf16.msra.mxu0 %v1829
  %2934 = vmatpush.bf16.msra.mxu0 %v1827
  %2935 = vmatpush.bf16.msra.mxu0 %v1825
  %2936 = vmatpush.bf16.msra.mxu0 %v1823
  %2937 = vmatpush.bf16.msra.mxu0 %v1821
  %2938 = vmatmul.bf16.gmra.mxu0 %v206
  %v2939 = vpop.f32.mrf.mxu0
  %v2940 = vadd.f32 %v2927, %v2939
  %v2941 = vpop.f32.mrf.mxu0
  %2942 = vdwg.mxu0
  %2943 = vmatpush.bf16.msra.mxu0 %v1851
  %2944 = vmatpush.bf16.msra.mxu0 %v1849
  %2945 = vmatpush.bf16.msra.mxu0 %v1847
  %2946 = vmatpush.bf16.msra.mxu0 %v1845
  %2947 = vmatpush.bf16.msra.mxu0 %v1843
  %2948 = vmatpush.bf16.msra.mxu0 %v1841
  %2949 = vmatpush.bf16.msra.mxu0 %v1839
  %2950 = vmatpush.bf16.msra.mxu0 %v1837
  %2951 = vmatmul.bf16.gmra.mxu0 %v207
  %v2952 = vpop.f32.mrf.mxu0
  %v2953 = vadd.f32 %v2940, %v2952
  %v2954 = vpop.f32.mrf.mxu0
  %2955 = vdwg.mxu0
  %2956 = vmatpush.bf16.msra.mxu0 %v1867
  %2957 = vmatpush.bf16.msra.mxu0 %v1865
  %2958 = vmatpush.bf16.msra.mxu0 %v1863
  %2959 = vmatpush.bf16.msra.mxu0 %v1861
  %2960 = vmatpush.bf16.msra.mxu0 %v1859
  %2961 = vmatpush.bf16.msra.mxu0 %v1857
  %2962 = vmatpush.bf16.msra.mxu0 %v1855
  %2963 = vmatpush.bf16.msra.mxu0 %v1853
  %2964 = vmatmul.bf16.gmra.mxu0 %v208
  %v2965 = vpop.f32.mrf.mxu0
  %v2966 = vadd.f32 %v2953, %v2965
  %v2967 = vpop.f32.mrf.mxu0
  %2968 = vdwg.mxu0
  %2969 = vmatpush.bf16.msra.mxu0 %v1883
  %2970 = vmatpush.bf16.msra.mxu0 %v1881
  %2971 = vmatpush.bf16.msra.mxu0 %v1879
  %2972 = vmatpush.bf16.msra.mxu0 %v1877
  %2973 = vmatpush.bf16.msra.mxu0 %v1875
  %2974 = vmatpush.bf16.msra.mxu0 %v1873
  %2975 = vmatpush.bf16.msra.mxu0 %v1871
  %2976 = vmatpush.bf16.msra.mxu0 %v1869
  %2977 = vmatmul.bf16.gmra.mxu0 %v209
  %v2978 = vpop.f32.mrf.mxu0
  %v2979 = vadd.f32 %v2966, %v2978
  %v2980 = vpop.f32.mrf.mxu0
  %2981 = vdwg.mxu0
  %2982 = vmatpush.bf16.msra.mxu0 %v1899
  %2983 = vmatpush.bf16.msra.mxu0 %v1897
  %2984 = vmatpush.bf16.msra.mxu0 %v1895
  %2985 = vmatpush.bf16.msra.mxu0 %v1893
  %2986 = vmatpush.bf16.msra.mxu0 %v1891
  %2987 = vmatpush.bf16.msra.mxu0 %v1889
  %2988 = vmatpush.bf16.msra.mxu0 %v1887
  %2989 = vmatpush.bf16.msra.mxu0 %v1885
  %2990 = vmatmul.bf16.gmra.mxu0 %v210
  %v2991 = vpop.f32.mrf.mxu0
  %v2992 = vadd.f32 %v2979, %v2991
  %v2993 = vpop.f32.mrf.mxu0
  %2994 = vdwg.mxu0
  %2995 = vmatpush.bf16.msra.mxu0 %v1915
  %2996 = vmatpush.bf16.msra.mxu0 %v1913
  %2997 = vmatpush.bf16.msra.mxu0 %v1911
  %2998 = vmatpush.bf16.msra.mxu0 %v1909
  %2999 = vmatpush.bf16.msra.mxu0 %v1907
  %3000 = vmatpush.bf16.msra.mxu0 %v1905
  %3001 = vmatpush.bf16.msra.mxu0 %v1903
  %3002 = vmatpush.bf16.msra.mxu0 %v1901
  %3003 = vmatmul.bf16.gmra.mxu0 %v211
  %v3004 = vpop.f32.mrf.mxu0
  %v3005 = vadd.f32 %v2992, %v3004
  %v3006 = vpop.f32.mrf.mxu0
  %3007 = vdwg.mxu0
  %3008 = vmatpush.bf16.msra.mxu0 %v1931
  %3009 = vmatpush.bf16.msra.mxu0 %v1929
  %3010 = vmatpush.bf16.msra.mxu0 %v1927
  %3011 = vmatpush.bf16.msra.mxu0 %v1925
  %3012 = vmatpush.bf16.msra.mxu0 %v1923
  %3013 = vmatpush.bf16.msra.mxu0 %v1921
  %3014 = vmatpush.bf16.msra.mxu0 %v1919
  %3015 = vmatpush.bf16.msra.mxu0 %v1917
  %3016 = vmatmul.bf16.gmra.mxu0 %v212
  %v3017 = vpop.f32.mrf.mxu0
  %v3018 = vadd.f32 %v3005, %v3017
  %v3019 = vpop.f32.mrf.mxu0
  %3020 = vdwg.mxu0
  %3021 = vmatpush.bf16.msra.mxu0 %v1947
  %3022 = vmatpush.bf16.msra.mxu0 %v1945
  %3023 = vmatpush.bf16.msra.mxu0 %v1943
  %3024 = vmatpush.bf16.msra.mxu0 %v1941
  %3025 = vmatpush.bf16.msra.mxu0 %v1939
  %3026 = vmatpush.bf16.msra.mxu0 %v1937
  %3027 = vmatpush.bf16.msra.mxu0 %v1935
  %3028 = vmatpush.bf16.msra.mxu0 %v1933
  %3029 = vmatmul.bf16.gmra.mxu0 %v213
  %v3030 = vpop.f32.mrf.mxu0
  %v3031 = vadd.f32 %v3018, %v3030
  %v3032 = vpop.f32.mrf.mxu0
  %3033 = vdwg.mxu0
  %3034 = vmatpush.bf16.msra.mxu0 %v1963
  %3035 = vmatpush.bf16.msra.mxu0 %v1961
  %3036 = vmatpush.bf16.msra.mxu0 %v1959
  %3037 = vmatpush.bf16.msra.mxu0 %v1957
  %3038 = vmatpush.bf16.msra.mxu0 %v1955
  %3039 = vmatpush.bf16.msra.mxu0 %v1953
  %3040 = vmatpush.bf16.msra.mxu0 %v1951
  %3041 = vmatpush.bf16.msra.mxu0 %v1949
  %3042 = vmatmul.bf16.gmra.mxu0 %v214
  %v3043 = vpop.f32.mrf.mxu0
  %v3044 = vadd.f32 %v3031, %v3043
  %v3045 = vpop.f32.mrf.mxu0
  %3046 = vdwg.mxu0
  %3047 = vmatpush.bf16.msra.mxu0 %v1979
  %3048 = vmatpush.bf16.msra.mxu0 %v1977
  %3049 = vmatpush.bf16.msra.mxu0 %v1975
  %3050 = vmatpush.bf16.msra.mxu0 %v1973
  %3051 = vmatpush.bf16.msra.mxu0 %v1971
  %3052 = vmatpush.bf16.msra.mxu0 %v1969
  %3053 = vmatpush.bf16.msra.mxu0 %v1967
  %3054 = vmatpush.bf16.msra.mxu0 %v1965
  %3055 = vmatmul.bf16.gmra.mxu0 %v215
  %v3056 = vpop.f32.mrf.mxu0
  %v3057 = vadd.f32 %v3044, %v3056
  %v3058 = vpop.f32.mrf.mxu0
  %3059 = vdwg.mxu0
  %3060 = vmatpush.bf16.msra.mxu0 %v1995
  %3061 = vmatpush.bf16.msra.mxu0 %v1993
  %3062 = vmatpush.bf16.msra.mxu0 %v1991
  %3063 = vmatpush.bf16.msra.mxu0 %v1989
  %3064 = vmatpush.bf16.msra.mxu0 %v1987
  %3065 = vmatpush.bf16.msra.mxu0 %v1985
  %3066 = vmatpush.bf16.msra.mxu0 %v1983
  %3067 = vmatpush.bf16.msra.mxu0 %v1981
  %3068 = vmatmul.bf16.gmra.mxu0 %v216
  %v3069 = vpop.f32.mrf.mxu0
  %v3070 = vadd.f32 %v3057, %v3069
  %v3071 = vpop.f32.mrf.mxu0
  %3072 = vdwg.mxu0
  %3073 = vmatpush.bf16.msra.mxu0 %v2011
  %3074 = vmatpush.bf16.msra.mxu0 %v2009
  %3075 = vmatpush.bf16.msra.mxu0 %v2007
  %3076 = vmatpush.bf16.msra.mxu0 %v2005
  %3077 = vmatpush.bf16.msra.mxu0 %v2003
  %3078 = vmatpush.bf16.msra.mxu0 %v2001
  %3079 = vmatpush.bf16.msra.mxu0 %v1999
  %3080 = vmatpush.bf16.msra.mxu0 %v1997
  %3081 = vmatmul.bf16.gmra.mxu0 %v217
  %v3082 = vpop.f32.mrf.mxu0
  %v3083 = vadd.f32 %v3070, %v3082
  %v3084 = vpop.f32.mrf.mxu0
  %3085 = vdwg.mxu0
  %3086 = vmatpush.bf16.msra.mxu0 %v2027
  %3087 = vmatpush.bf16.msra.mxu0 %v2025
  %3088 = vmatpush.bf16.msra.mxu0 %v2023
  %3089 = vmatpush.bf16.msra.mxu0 %v2021
  %3090 = vmatpush.bf16.msra.mxu0 %v2019
  %3091 = vmatpush.bf16.msra.mxu0 %v2017
  %3092 = vmatpush.bf16.msra.mxu0 %v2015
  %3093 = vmatpush.bf16.msra.mxu0 %v2013
  %3094 = vmatmul.bf16.gmra.mxu0 %v218
  %v3095 = vpop.f32.mrf.mxu0
  %v3096 = vadd.f32 %v3083, %v3095
  %v3097 = vpop.f32.mrf.mxu0
  %3098 = vdwg.mxu0
  %3099 = vmatpush.bf16.msra.mxu0 %v2043
  %3100 = vmatpush.bf16.msra.mxu0 %v2041
  %3101 = vmatpush.bf16.msra.mxu0 %v2039
  %3102 = vmatpush.bf16.msra.mxu0 %v2037
  %3103 = vmatpush.bf16.msra.mxu0 %v2035
  %3104 = vmatpush.bf16.msra.mxu0 %v2033
  %3105 = vmatpush.bf16.msra.mxu0 %v2031
  %3106 = vmatpush.bf16.msra.mxu0 %v2029
  %3107 = vmatmul.bf16.gmra.mxu0 %v219
  %v3108 = vpop.f32.mrf.mxu0
  %v3109 = vadd.f32 %v3096, %v3108
  %v3110 = vpop.f32.mrf.mxu0
  %3111 = vdwg.mxu0
  %3112 = vmatpush.bf16.msra.mxu0 %v2059
  %3113 = vmatpush.bf16.msra.mxu0 %v2057
  %3114 = vmatpush.bf16.msra.mxu0 %v2055
  %3115 = vmatpush.bf16.msra.mxu0 %v2053
  %3116 = vmatpush.bf16.msra.mxu0 %v2051
  %3117 = vmatpush.bf16.msra.mxu0 %v2049
  %3118 = vmatpush.bf16.msra.mxu0 %v2047
  %3119 = vmatpush.bf16.msra.mxu0 %v2045
  %3120 = vmatmul.bf16.gmra.mxu0 %v220
  %v3121 = vpop.f32.mrf.mxu0
  %v3122 = vadd.f32 %v3109, %v3121
  %v3123 = vpop.f32.mrf.mxu0
  %3124 = vdwg.mxu0
  %3125 = vmatpush.bf16.msra.mxu0 %v2075
  %3126 = vmatpush.bf16.msra.mxu0 %v2073
  %3127 = vmatpush.bf16.msra.mxu0 %v2071
  %3128 = vmatpush.bf16.msra.mxu0 %v2069
  %3129 = vmatpush.bf16.msra.mxu0 %v2067
  %3130 = vmatpush.bf16.msra.mxu0 %v2065
  %3131 = vmatpush.bf16.msra.mxu0 %v2063
  %3132 = vmatpush.bf16.msra.mxu0 %v2061
  %3133 = vmatmul.bf16.gmra.mxu0 %v221
  %v3134 = vpop.f32.mrf.mxu0
  %v3135 = vadd.f32 %v3122, %v3134
  %v3136 = vpop.f32.mrf.mxu0
  %3137 = vdwg.mxu0
  %3138 = vmatpush.bf16.msra.mxu0 %v2091
  %3139 = vmatpush.bf16.msra.mxu0 %v2089
  %3140 = vmatpush.bf16.msra.mxu0 %v2087
  %3141 = vmatpush.bf16.msra.mxu0 %v2085
  %3142 = vmatpush.bf16.msra.mxu0 %v2083
  %3143 = vmatpush.bf16.msra.mxu0 %v2081
  %3144 = vmatpush.bf16.msra.mxu0 %v2079
  %3145 = vmatpush.bf16.msra.mxu0 %v2077
  %3146 = vmatmul.bf16.gmra.mxu0 %v222
  %v3147 = vpop.f32.mrf.mxu0
  %v3148 = vadd.f32 %v3135, %v3147
  %v3149 = vpop.f32.mrf.mxu0
  %3150 = vdwg.mxu0
  %3151 = vmatpush.bf16.msra.mxu0 %v2107
  %3152 = vmatpush.bf16.msra.mxu0 %v2105
  %3153 = vmatpush.bf16.msra.mxu0 %v2103
  %3154 = vmatpush.bf16.msra.mxu0 %v2101
  %3155 = vmatpush.bf16.msra.mxu0 %v2099
  %3156 = vmatpush.bf16.msra.mxu0 %v2097
  %3157 = vmatpush.bf16.msra.mxu0 %v2095
  %3158 = vmatpush.bf16.msra.mxu0 %v2093
  %3159 = vmatmul.bf16.gmra.mxu0 %v223
  %v3160 = vpop.f32.mrf.mxu0
  %v3161 = vadd.f32 %v3148, %v3160
  %v3162 = vpop.f32.mrf.mxu0
  %3163 = vdwg.mxu0
  %3164 = vmatpush.bf16.msra.mxu0 %v2123
  %3165 = vmatpush.bf16.msra.mxu0 %v2121
  %3166 = vmatpush.bf16.msra.mxu0 %v2119
  %3167 = vmatpush.bf16.msra.mxu0 %v2117
  %3168 = vmatpush.bf16.msra.mxu0 %v2115
  %3169 = vmatpush.bf16.msra.mxu0 %v2113
  %3170 = vmatpush.bf16.msra.mxu0 %v2111
  %3171 = vmatpush.bf16.msra.mxu0 %v2109
  %3172 = vmatmul.bf16.gmra.mxu0 %v224
  %v3173 = vpop.f32.mrf.mxu0
  %v3174 = vadd.f32 %v3161, %v3173
  %v3175 = vpop.f32.mrf.mxu0
  %3176 = vdwg.mxu0
  %3177 = vmatpush.bf16.msra.mxu0 %v2139
  %3178 = vmatpush.bf16.msra.mxu0 %v2137
  %3179 = vmatpush.bf16.msra.mxu0 %v2135
  %3180 = vmatpush.bf16.msra.mxu0 %v2133
  %3181 = vmatpush.bf16.msra.mxu0 %v2131
  %3182 = vmatpush.bf16.msra.mxu0 %v2129
  %3183 = vmatpush.bf16.msra.mxu0 %v2127
  %3184 = vmatpush.bf16.msra.mxu0 %v2125
  %3185 = vmatmul.bf16.gmra.mxu0 %v225
  %v3186 = vpop.f32.mrf.mxu0
  %v3187 = vadd.f32 %v3174, %v3186
  %v3188 = vpop.f32.mrf.mxu0
  %3189 = vdwg.mxu0
  %3190 = vmatpush.bf16.msra.mxu0 %v2155
  %3191 = vmatpush.bf16.msra.mxu0 %v2153
  %3192 = vmatpush.bf16.msra.mxu0 %v2151
  %3193 = vmatpush.bf16.msra.mxu0 %v2149
  %3194 = vmatpush.bf16.msra.mxu0 %v2147
  %3195 = vmatpush.bf16.msra.mxu0 %v2145
  %3196 = vmatpush.bf16.msra.mxu0 %v2143
  %3197 = vmatpush.bf16.msra.mxu0 %v2141
  %3198 = vmatmul.bf16.gmra.mxu0 %v226
  %v3199 = vpop.f32.mrf.mxu0
  %v3200 = vadd.f32 %v3187, %v3199
  %v3201 = vpop.f32.mrf.mxu0
  %3202 = vdwg.mxu0
  %3203 = vmatpush.bf16.msra.mxu0 %v2171
  %3204 = vmatpush.bf16.msra.mxu0 %v2169
  %3205 = vmatpush.bf16.msra.mxu0 %v2167
  %3206 = vmatpush.bf16.msra.mxu0 %v2165
  %3207 = vmatpush.bf16.msra.mxu0 %v2163
  %3208 = vmatpush.bf16.msra.mxu0 %v2161
  %3209 = vmatpush.bf16.msra.mxu0 %v2159
  %3210 = vmatpush.bf16.msra.mxu0 %v2157
  %3211 = vmatmul.bf16.gmra.mxu0 %v227
  %v3212 = vpop.f32.mrf.mxu0
  %v3213 = vadd.f32 %v3200, %v3212
  %v3214 = vpop.f32.mrf.mxu0
  %3215 = vdwg.mxu0
  %3216 = vmatpush.bf16.msra.mxu0 %v2187
  %3217 = vmatpush.bf16.msra.mxu0 %v2185
  %3218 = vmatpush.bf16.msra.mxu0 %v2183
  %3219 = vmatpush.bf16.msra.mxu0 %v2181
  %3220 = vmatpush.bf16.msra.mxu0 %v2179
  %3221 = vmatpush.bf16.msra.mxu0 %v2177
  %3222 = vmatpush.bf16.msra.mxu0 %v2175
  %3223 = vmatpush.bf16.msra.mxu0 %v2173
  %3224 = vmatmul.bf16.gmra.mxu0 %v228
  %v3225 = vpop.f32.mrf.mxu0
  %v3226 = vadd.f32 %v3213, %v3225
  %v3227 = vpop.f32.mrf.mxu0
  %3228 = vdwg.mxu0
  %3229 = vmatpush.bf16.msra.mxu0 0
  %3230 = vmatpush.bf16.msra.mxu0 0
  %3231 = vmatpush.bf16.msra.mxu0 0
  %3232 = vmatpush.bf16.msra.mxu0 0
  %3233 = vmatpush.bf16.msra.mxu0 %v2195
  %3234 = vmatpush.bf16.msra.mxu0 %v2193
  %3235 = vmatpush.bf16.msra.mxu0 %v2191
  %3236 = vmatpush.bf16.msra.mxu0 %v2189
  %3237 = vmatmul.bf16.gmra.mxu0 %v2590
  %v3238 = vpop.f32.mrf.mxu0
  %v3239 = vadd.f32 %v3226, %v3238
  %v3240 = vpop.f32.mrf.mxu0
  %3241 = vdwg.mxu0
  %v3242 = vpack.c.bf16 %v2914, %v2914
  %v3243 = vpack.c.bf16 %v3239, %v3239
  %v3244 = vld [vmem:[%s6] sm:$0xf]
  %v3245 = vld [vmem:[%s6 + $0x4] sm:$0xf]
  %v3246 = vld [vmem:[%s6 + $0x8] sm:$0xf]
  %v3247 = vld [vmem:[%s6 + $0xc] sm:$0xf]
  %v3248 = vld [vmem:[%s6 + $0x10] sm:$0xf]
  %v3249 = vld [vmem:[%s6 + $0x14] sm:$0xf]
  %v3250 = vld [vmem:[%s6 + $0x18] sm:$0xf]
  %v3251 = vld [vmem:[%s6 + $0x1c] sm:$0xf]
  %v3252 = vld [vmem:[%s6 + $0x20] sm:$0xf]
  %v3253 = vld [vmem:[%s6 + $0x24] sm:$0xf]
  %v3254 = vld [vmem:[%s6 + $0x28] sm:$0xf]
  %v3255 = vld [vmem:[%s6 + $0x2c] sm:$0xf]
  %v3256 = vld [vmem:[%s6 + $0x30] sm:$0xf]
  %v3257 = vld [vmem:[%s6 + $0x34] sm:$0xf]
  %v3258 = vld [vmem:[%s6 + $0x38] sm:$0xf]
  %v3259 = vld [vmem:[%s6 + $0x3c] sm:$0xf]
  %v3260 = vld [vmem:[%s6 + $0x40] sm:$0xf]
  %v3261 = vld [vmem:[%s6 + $0x44] sm:$0xf]
  %v3262 = vld [vmem:[%s6 + $0x48] sm:$0xf]
  %v3263 = vld [vmem:[%s6 + $0x4c] sm:$0xf]
  %v3264 = vld [vmem:[%s6 + $0x50] sm:$0xf]
  %v3265 = vld [vmem:[%s6 + $0x54] sm:$0xf]
  %v3266 = vld [vmem:[%s6 + $0x58] sm:$0xf]
  %v3267 = vld [vmem:[%s6 + $0x5c] sm:$0xf]
  %v3268 = vld [vmem:[%s6 + $0x60] sm:$0xf]
  %v3269 = vld [vmem:[%s6 + $0x64] sm:$0xf]
  %v3270 = vld [vmem:[%s6 + $0x68] sm:$0xf]
  %v3271 = vld [vmem:[%s6 + $0x6c] sm:$0xf]
  %v3272 = vld [vmem:[%s6 + $0x70] sm:$0xf]
  %v3273 = vld [vmem:[%s6 + $0x74] sm:$0xf]
  %v3274 = vld [vmem:[%s6 + $0x78] sm:$0xf]
  %v3275 = vld [vmem:[%s6 + $0x7c] sm:$0xf]
  %v3276 = vld [vmem:[%s7] sm:$0x1]
  %v3278 = vperm.slane %v3276, 0
  %v3312 = vunpack.c.l.b16 %v3244
  %v3313 = vunpack.c.l.b16 %v3245
  %v3314 = vunpack.c.l.b16 %v3246
  %v3315 = vunpack.c.l.b16 %v3247
  %v3316 = vunpack.c.l.b16 %v3248
  %v3317 = vunpack.c.l.b16 %v3249
  %v3318 = vunpack.c.l.b16 %v3250
  %v3319 = vunpack.c.l.b16 %v3251
  %v3320 = vunpack.c.l.b16 %v3252
  %v3321 = vunpack.c.l.b16 %v3253
  %v3322 = vunpack.c.l.b16 %v3254
  %v3323 = vunpack.c.l.b16 %v3255
  %v3324 = vunpack.c.l.b16 %v3256
  %v3325 = vunpack.c.l.b16 %v3257
  %v3326 = vunpack.c.l.b16 %v3258
  %v3327 = vunpack.c.l.b16 %v3259
  %v3328 = vunpack.c.l.b16 %v3260
  %v3329 = vunpack.c.l.b16 %v3261
  %v3330 = vunpack.c.l.b16 %v3262
  %v3331 = vunpack.c.l.b16 %v3263
  %v3332 = vunpack.c.l.b16 %v3264
  %v3333 = vunpack.c.l.b16 %v3265
  %v3334 = vunpack.c.l.b16 %v3266
  %v3335 = vunpack.c.l.b16 %v3267
  %v3336 = vunpack.c.l.b16 %v3268
  %v3337 = vunpack.c.l.b16 %v3269
  %v3338 = vunpack.c.l.b16 %v3270
  %v3339 = vunpack.c.l.b16 %v3271
  %v3340 = vunpack.c.l.b16 %v3272
  %v3341 = vunpack.c.l.b16 %v3273
  %v3342 = vunpack.c.l.b16 %v3274
  %v3343 = vunpack.c.l.b16 %v3275
  %v3344 = vpack.c.b16 %v3313, %v3312
  %v3345 = vpack.c.b16 %v3315, %v3314
  %v3346 = vpack.c.b16 %v3317, %v3316
  %v3347 = vpack.c.b16 %v3319, %v3318
  %v3348 = vpack.c.b16 %v3321, %v3320
  %v3349 = vpack.c.b16 %v3323, %v3322
  %v3350 = vpack.c.b16 %v3325, %v3324
  %v3351 = vpack.c.b16 %v3327, %v3326
  %v3352 = vpack.c.b16 %v3329, %v3328
  %v3353 = vpack.c.b16 %v3331, %v3330
  %v3354 = vpack.c.b16 %v3333, %v3332
  %v3355 = vpack.c.b16 %v3335, %v3334
  %v3356 = vpack.c.b16 %v3337, %v3336
  %v3357 = vpack.c.b16 %v3339, %v3338
  %v3358 = vpack.c.b16 %v3341, %v3340
  %v3359 = vpack.c.b16 %v3343, %v3342
  %3376 = vmatpush.bf16.msra.mxu0 %v3351
  %3377 = vmatpush.bf16.msra.mxu0 %v3350
  %3378 = vmatpush.bf16.msra.mxu0 %v3349
  %3379 = vmatpush.bf16.msra.mxu0 %v3348
  %3380 = vmatpush.bf16.msra.mxu0 %v3347
  %3381 = vmatpush.bf16.msra.mxu0 %v3346
  %3382 = vmatpush.bf16.msra.mxu0 %v3345
  %3383 = vmatpush.bf16.msra.mxu0 %v3344
  %3384 = vmatmul.bf16.gmra.mxu0 %v3242
  %v3385 = vpop.f32.mrf.mxu0
  %v3386 = vadd.f32 %v3278, %v3385
  %v3387 = vpop.f32.mrf.mxu0
  %3388 = vdwg.mxu0
  %3389 = vmatpush.bf16.msra.mxu0 %v3359
  %3390 = vmatpush.bf16.msra.mxu0 %v3358
  %3391 = vmatpush.bf16.msra.mxu0 %v3357
  %3392 = vmatpush.bf16.msra.mxu0 %v3356
  %3393 = vmatpush.bf16.msra.mxu0 %v3355
  %3394 = vmatpush.bf16.msra.mxu0 %v3354
  %3395 = vmatpush.bf16.msra.mxu0 %v3353
  %3396 = vmatpush.bf16.msra.mxu0 %v3352
  %3397 = vmatmul.bf16.gmra.mxu0 %v3243
  %v3398 = vpop.f32.mrf.mxu0
  %v3399 = vadd.f32 %v3386, %v3398
  %v3400 = vpop.f32.mrf.mxu0
  %3401 = vdwg.mxu0
  %3402 = vst [vmem:[%s8] sm:$0xff] %v3399
  // Predicated region
  $region34: #{cnn_forward.5} parent=0 // pred_check
    _
  $region35: #{cnn_forward.5} parent=0 // pred_check_branch
    %3404 = sbr.rel (0) target = $region37
  $region36: #{cnn_forward.5} parent=0 // pred_region
    _
  $region37: #{cnn_forward.5} parent=0 // pred_fallthru
    _
  // Predicated region
  $region38: #{cnn_forward.5} parent=0 // pred_check
    _
  $region39: #{cnn_forward.5} parent=0 // pred_check_branch
    %3406 = sbr.rel (0) target = $region41
  $region40: #{cnn_forward.5} parent=0 // pred_region
    _
  $region41: #{cnn_forward.5} parent=0 // pred_fallthru
    _

// kernel: cnn_forward.4
$region0: #{cnn_forward.4}
  #allocation0 [shape = 'u32[]', space=smem, size = 0x4, offset = 0x4, fixed_abs, tag = 'smem constant byte address 0x4 - core index']
  #allocation1 [shape = 'u32[72,128]{1,0:T(1,128)}', space=vmem, size = 0x9000, scoped, tag = 'internal scratch']
  %s0 = inlined_call_operand.vmem [shape: f32[688,32], index: 0, kind: input, shape index: {}]
  %s1 = inlined_call_operand.vmem [shape: bf16[800,64], index: 1, kind: input, shape index: {}]
  %s2 = inlined_call_operand.vmem [shape: f32[1,64], index: 2, kind: input, shape index: {}]
  %s3 = inlined_call_operand.vmem [shape: f32[512,64], index: 3, kind: output, shape index: {}]
  %s4 = sld [smem:[#allocation0]]
  $region45: #{cnn_forward.4} parent=0
    _
  %s6 = ssub.s32 1, %s4
  %s7 = scalar_select 0, %s6, %s4
  loop: start=0, step=1, limit=4
  $region2: #{cnn_forward.4} parent=0 // loop_pre_header
    _
  $region3: #{cnn_forward.4} parent=0 // loop_header
    %s9 = sphi 0, %s13
    %p10 = scmp.ge.s32.totalorder %s9, 4
    %s19 = sphi 0, %s21
    %s22 = sphi 0, %s19
    %s23 = sphi 0, %s22
    %s39 = sphi 0, %s23
    %s43 = sphi 0, %s43
    %s45 = sphi 0, %s43
    %s46 = sphi 0, %s45
    %s60 = sphi 0, %s46
    %s64 = sphi 0, %s64
    %s66 = sphi 0, %s64
    %s67 = sphi 0, %s66
    %s81 = sphi 0, %s67
    %s87 = sphi 0, %s89
    %s90 = sphi 0, %s87
    %s91 = sphi 0, %s90
    %s107 = sphi 0, %s91
  $region4: #{cnn_forward.4} parent=0 // loop_header_branch
    %12 = sbr.rel (%p10) target = $region8
  $region5: #{cnn_forward.4} parent=0 // loop_body
    %s14 = ssub.s32 %s9, 1
    %s15 = ssub.s32 %s9, 2
    %s16 = sadd.s32 %s9, 1
    %s17 = ssub.s32 %s9, %s16
    %p18 = scmp.eq.s32.totalorder %s17, 0
    %s20 = sadd.s32 %s19, 1
    %s21 = scalar_select %p18, %s19, %s20
    %p24 = pneg %p18
    %p25 = scmp.eq.s32.totalorder %s9, 1
    %p26 = por %p24, %p25
    %p27 = scmp.ne.s32.totalorder %s19, %s22
    %p28 = scmp.eq.s32.totalorder %s9, 0
    %p29 = por %p27, %p28
    %p30 = scmp.ne.s32.totalorder %s19, %s22
    %p31 = scmp.eq.s32.totalorder %s14, 1
    %p32 = por %p30, %p31
    %p33 = scmp.ne.s32.totalorder %s22, %s23
    %p34 = scmp.eq.s32.totalorder %s14, 0
    %p35 = por %p33, %p34
    %p36 = scmp.ne.s32.totalorder %s22, %s23
    %p37 = scmp.eq.s32.totalorder %s15, 1
    %p38 = por %p36, %p37
    %p40 = scmp.ne.s32.totalorder %s23, %s39
    %p41 = scmp.eq.s32.totalorder %s15, 0
    %p42 = por %p40, %p41
    %s44 = sadd.s32 %s43, 1
    %p47 = scmp.eq.s32.totalorder %s9, 1
    %p48 = scmp.ne.s32.totalorder %s43, %s45
    %p49 = scmp.eq.s32.totalorder %s9, 0
    %p50 = por %p48, %p49
    %p51 = scmp.ne.s32.totalorder %s43, %s45
    %p52 = scmp.eq.s32.totalorder %s14, 1
    %p53 = por %p51, %p52
    %p54 = scmp.ne.s32.totalorder %s45, %s46
    %p55 = scmp.eq.s32.totalorder %s14, 0
    %p56 = por %p54, %p55
    %p57 = scmp.ne.s32.totalorder %s45, %s46
    %p58 = scmp.eq.s32.totalorder %s15, 1
    %p59 = por %p57, %p58
    %p61 = scmp.ne.s32.totalorder %s46, %s60
    %p62 = scmp.eq.s32.totalorder %s15, 0
    %p63 = por %p61, %p62
    %s65 = sadd.s32 %s64, 1
    %p68 = scmp.eq.s32.totalorder %s9, 1
    %p69 = scmp.ne.s32.totalorder %s64, %s66
    %p70 = scmp.eq.s32.totalorder %s9, 0
    %p71 = por %p69, %p70
    %p72 = scmp.ne.s32.totalorder %s64, %s66
    %p73 = scmp.eq.s32.totalorder %s14, 1
    %p74 = por %p72, %p73
    %p75 = scmp.ne.s32.totalorder %s66, %s67
    %p76 = scmp.eq.s32.totalorder %s14, 0
    %p77 = por %p75, %p76
    %p78 = scmp.ne.s32.totalorder %s66, %s67
    %p79 = scmp.eq.s32.totalorder %s15, 1
    %p80 = por %p78, %p79
    %p82 = scmp.ne.s32.totalorder %s67, %s81
    %p83 = scmp.eq.s32.totalorder %s15, 0
    %p84 = por %p82, %p83
    %s85 = ssub.s32 %s9, %s16
    %p86 = scmp.eq.s32.totalorder %s85, 0
    %s88 = sadd.s32 %s87, 1
    %s89 = scalar_select %p86, %s87, %s88
    %p92 = pneg %p86
    %p93 = scmp.eq.s32.totalorder %s9, 1
    %p94 = por %p92, %p93
    %p95 = scmp.ne.s32.totalorder %s87, %s90
    %p96 = scmp.eq.s32.totalorder %s9, 0
    %p97 = por %p95, %p96
    %p98 = scmp.ne.s32.totalorder %s87, %s90
    %p99 = scmp.eq.s32.totalorder %s14, 1
    %p100 = por %p98, %p99
    %p101 = scmp.ne.s32.totalorder %s90, %s91
    %p102 = scmp.eq.s32.totalorder %s14, 0
    %p103 = por %p101, %p102
    %p104 = scmp.ne.s32.totalorder %s90, %s91
    %p105 = scmp.eq.s32.totalorder %s15, 1
    %p106 = por %p104, %p105
    %p108 = scmp.ne.s32.totalorder %s91, %s107
    %p109 = scmp.eq.s32.totalorder %s15, 0
    %p110 = por %p108, %p109
    %p111 = scmp.le.s32.totalorder 1, %s9
    %p112 = scmp.lt.s32.totalorder %s9, 3
    %p113 = pnand %p111, %p112
    %p114 = pneg %p113
    // Predicated region
    $region9: #{cnn_forward.4} parent=5 // pred_check
      _
    $region10: #{cnn_forward.4} parent=5 // pred_check_branch
      %116 = sbr.rel (%p113) target = $region12
    $region11: #{cnn_forward.4} parent=5 // pred_region
      %s117 = ssub.s32 %s9, 1
      // Predicated region
      $region13: #{cnn_forward.4} parent=11 // pred_check
        %p118 = pneg %p56
      $region14: #{cnn_forward.4} parent=11 // pred_check_branch
        %120 = sbr.rel (%p118) target = $region16
      $region15: #{cnn_forward.4} parent=11 // pred_region
        _
      $region16: #{cnn_forward.4} parent=11 // pred_fallthru
        _
      // Predicated region
      $region17: #{cnn_forward.4} parent=11 // pred_check
        %p121 = pneg %p77
      $region18: #{cnn_forward.4} parent=11 // pred_check_branch
        %123 = sbr.rel (%p121) target = $region20
      $region19: #{cnn_forward.4} parent=11 // pred_region
        _
      $region20: #{cnn_forward.4} parent=11 // pred_fallthru
        _
    $region12: #{cnn_forward.4} parent=5 // pred_fallthru
      _
    %p124 = scmp.lt.s32.totalorder %s9, 2
    // Predicated region
    $region21: #{cnn_forward.4} parent=5 // pred_check
      %p125 = pneg %p124
    $region22: #{cnn_forward.4} parent=5 // pred_check_branch
      %127 = sbr.rel (%p125) target = $region24
    $region23: #{cnn_forward.4} parent=5 // pred_region
      // Predicated region
      $region25: #{cnn_forward.4} parent=23 // pred_check
        %p128 = pneg %p29
      $region26: #{cnn_forward.4} parent=23 // pred_check_branch
        %130 = sbr.rel (%p128) target = $region28
      $region27: #{cnn_forward.4} parent=23 // pred_region
        %s131 = smul.u32 43, %s9
        %p132 = scmp.lt.s32.totalorder %s131, 85
        %s133 = scalar_select %p132, %s131, 85
        %s134 = smul.addr %s133, 8
        %s135 = scalar_lea.vmem %s0, %s134
        %s136 = smul.u32 43, %s9
      $region28: #{cnn_forward.4} parent=23 // pred_fallthru
        _
    $region24: #{cnn_forward.4} parent=5 // pred_fallthru
      _
    %p137 = scmp.le.s32.totalorder 1, %s9
    %p138 = scmp.lt.s32.totalorder %s9, 3
    %p139 = pnand %p137, %p138
    %p140 = pneg %p139
    // Predicated region
    $region29: #{cnn_forward.4} parent=5 // pred_check
      _
    $region30: #{cnn_forward.4} parent=5 // pred_check_branch
      %142 = sbr.rel (%p139) target = $region32
    $region31: #{cnn_forward.4} parent=5 // pred_region
      %s143 = ssub.s32 %s9, 1
      %s144 = smul.u32 43, %s14
      %p145 = scmp.lt.s32.totalorder %s144, 85
      %s146 = scalar_select %p145, %s144, 85
      %s147 = smul.addr %s146, 8
      %s148 = scalar_lea.vmem %s0, %s147
      %p149 = pneg %p35
      %p150 = pneg %p32
      %p151 = pneg %p56
      %p152 = pneg %p53
      %p153 = pneg %p77
      %p154 = pneg %p74
      %p155 = pneg %p103
      %p156 = pneg %p100
      %s157 = smul.u32 32, %s14
      %p158 = scmp.lt.s32.totalorder %s157, 63
      %s159 = scalar_select %p158, %s157, 63
      %s160 = smul.addr %s159, 8
      %s161 = scalar_lea.vmem %s3, %s160
      %s162 = smul.u32 43, %s14
      %p163 = scmp.lt.s32.totalorder %s162, 85
      %s164 = scalar_select %p163, %s162, 85
      %s165 = smul.addr %s164, 8
      %s166 = scalar_lea.vmem %s0, %s165
      %s167 = smul.u32 43, %s14
      %s168 = smul.u32 32, %s14
      %p169 = scmp.lt.s32.totalorder %s168, 63
      %s170 = scalar_select %p169, %s168, 63
      %s171 = smul.addr %s170, 8
      %s172 = scalar_lea.vmem %s3, %s171
      %s173 = smul.u32 32, %s14
      %v175 = vld [vmem:[%s166] sm:$0xff]
      %v176 = vld [vmem:[%s166 + $0x8] sm:$0xff]
      %v177 = vld [vmem:[%s166 + $0x10] sm:$0xff]
      %v178 = vld [vmem:[%s166 + $0x18] sm:$0xff]
      %v179 = vld [vmem:[%s166 + $0x20] sm:$0xff]
      %v180 = vld [vmem:[%s166 + $0x28] sm:$0xff]
      %v181 = vld [vmem:[%s166 + $0x30] sm:$0xff]
      %v182 = vld [vmem:[%s166 + $0x38] sm:$0xff]
      %v183 = vld [vmem:[%s166 + $0x40] sm:$0xff]
      %v184 = vld [vmem:[%s166 + $0x48] sm:$0xff]
      %v185 = vld [vmem:[%s166 + $0x50] sm:$0xff]
      %v186 = vld [vmem:[%s166 + $0x58] sm:$0xff]
      %v187 = vld [vmem:[%s166 + $0x60] sm:$0xff]
      %v188 = vld [vmem:[%s166 + $0x68] sm:$0xff]
      %v189 = vld [vmem:[%s166 + $0x70] sm:$0xff]
      %v190 = vld [vmem:[%s166 + $0x78] sm:$0xff]
      %v191 = vld [vmem:[%s166 + $0x80] sm:$0xff]
      %v192 = vld [vmem:[%s166 + $0x88] sm:$0xff]
      %v193 = vld [vmem:[%s166 + $0x90] sm:$0xff]
      %v194 = vld [vmem:[%s166 + $0x98] sm:$0xff]
      %v195 = vld [vmem:[%s166 + $0xa0] sm:$0xff]
      %v196 = vld [vmem:[%s166 + $0xa8] sm:$0xff]
      %v197 = vld [vmem:[%s166 + $0xb0] sm:$0xff]
      %v198 = vld [vmem:[%s166 + $0xb8] sm:$0xff]
      %v199 = vld [vmem:[%s166 + $0xc0] sm:$0xff]
      %v200 = vld [vmem:[%s166 + $0xc8] sm:$0xff]
      %v201 = vld [vmem:[%s166 + $0xd0] sm:$0xff]
      %v202 = vld [vmem:[%s166 + $0xd8] sm:$0xff]
      %v203 = vld [vmem:[%s166 + $0xe0] sm:$0xff]
      %v204 = vld [vmem:[%s166 + $0xe8] sm:$0xff]
      %v205 = vld [vmem:[%s166 + $0xf0] sm:$0xff]
      %v206 = vld [vmem:[%s166 + $0xf8] sm:$0xff]
      %v207 = vld [vmem:[%s166 + $0x100] sm:$0xff]
      %v208 = vld [vmem:[%s166 + $0x108] sm:$0xff]
      %v209 = vld [vmem:[%s166 + $0x110] sm:$0xff]
      %v210 = vld [vmem:[%s166 + $0x118] sm:$0xff]
      %v211 = vld [vmem:[%s166 + $0x120] sm:$0xff]
      %v212 = vld [vmem:[%s166 + $0x128] sm:$0xff]
      %v213 = vld [vmem:[%s166 + $0x130] sm:$0xff]
      %v214 = vld [vmem:[%s166 + $0x138] sm:$0xff]
      %v215 = vld [vmem:[%s166 + $0x140] sm:$0xff]
      %v216 = vld [vmem:[%s166 + $0x148] sm:$0xff]
      %v217 = vld [vmem:[%s1] sm:$0xf]
      %v218 = vld [vmem:[%s1 + $0x4] sm:$0xf]
      %v219 = vld [vmem:[%s1 + $0x8] sm:$0xf]
      %v220 = vld [vmem:[%s1 + $0xc] sm:$0xf]
      %v221 = vld [vmem:[%s1 + $0x10] sm:$0xf]
      %v222 = vld [vmem:[%s1 + $0x14] sm:$0xf]
      %v223 = vld [vmem:[%s1 + $0x18] sm:$0xf]
      %v224 = vld [vmem:[%s1 + $0x1c] sm:$0xf]
      %v225 = vld [vmem:[%s1 + $0x20] sm:$0xf]
      %v226 = vld [vmem:[%s1 + $0x24] sm:$0xf]
      %v227 = vld [vmem:[%s1 + $0x28] sm:$0xf]
      %v228 = vld [vmem:[%s1 + $0x2c] sm:$0xf]
      %v229 = vld [vmem:[%s1 + $0x30] sm:$0xf]
      %v230 = vld [vmem:[%s1 + $0x34] sm:$0xf]
      %v231 = vld [vmem:[%s1 + $0x38] sm:$0xf]
      %v232 = vld [vmem:[%s1 + $0x3c] sm:$0xf]
      %v233 = vld [vmem:[%s1 + $0x40] sm:$0xf]
      %v234 = vld [vmem:[%s1 + $0x44] sm:$0xf]
      %v235 = vld [vmem:[%s1 + $0x48] sm:$0xf]
      %v236 = vld [vmem:[%s1 + $0x4c] sm:$0xf]
      %v237 = vld [vmem:[%s1 + $0x50] sm:$0xf]
      %v238 = vld [vmem:[%s1 + $0x54] sm:$0xf]
      %v239 = vld [vmem:[%s1 + $0x58] sm:$0xf]
      %v240 = vld [vmem:[%s1 + $0x5c] sm:$0xf]
      %v241 = vld [vmem:[%s1 + $0x60] sm:$0xf]
      %v242 = vld [vmem:[%s1 + $0x64] sm:$0xf]
      %v243 = vld [vmem:[%s1 + $0x68] sm:$0xf]
      %v244 = vld [vmem:[%s1 + $0x6c] sm:$0xf]
      %v245 = vld [vmem:[%s1 + $0x70] sm:$0xf]
      %v246 = vld [vmem:[%s1 + $0x74] sm:$0xf]
      %v247 = vld [vmem:[%s1 + $0x78] sm:$0xf]
      %v248 = vld [vmem:[%s1 + $0x7c] sm:$0xf]
      %v249 = vld [vmem:[%s1 + $0x80] sm:$0xf]
      %v250 = vld [vmem:[%s1 + $0x84] sm:$0xf]
      %v251 = vld [vmem:[%s1 + $0x88] sm:$0xf]
      %v252 = vld [vmem:[%s1 + $0x8c] sm:$0xf]
      %v253 = vld [vmem:[%s1 + $0x90] sm:$0xf]
      %v254 = vld [vmem:[%s1 + $0x94] sm:$0xf]
      %v255 = vld [vmem:[%s1 + $0x98] sm:$0xf]
      %v256 = vld [vmem:[%s1 + $0x9c] sm:$0xf]
      %v257 = vld [vmem:[%s1 + $0xa0] sm:$0xf]
      %v258 = vld [vmem:[%s1 + $0xa4] sm:$0xf]
      %v259 = vld [vmem:[%s1 + $0xa8] sm:$0xf]
      %v260 = vld [vmem:[%s1 + $0xac] sm:$0xf]
      %v261 = vld [vmem:[%s1 + $0xb0] sm:$0xf]
      %v262 = vld [vmem:[%s1 + $0xb4] sm:$0xf]
      %v263 = vld [vmem:[%s1 + $0xb8] sm:$0xf]
      %v264 = vld [vmem:[%s1 + $0xbc] sm:$0xf]
      %v265 = vld [vmem:[%s1 + $0xc0] sm:$0xf]
      %v266 = vld [vmem:[%s1 + $0xc4] sm:$0xf]
      %v267 = vld [vmem:[%s1 + $0xc8] sm:$0xf]
      %v268 = vld [vmem:[%s1 + $0xcc] sm:$0xf]
      %v269 = vld [vmem:[%s1 + $0xd0] sm:$0xf]
      %v270 = vld [vmem:[%s1 + $0xd4] sm:$0xf]
      %v271 = vld [vmem:[%s1 + $0xd8] sm:$0xf]
      %v272 = vld [vmem:[%s1 + $0xdc] sm:$0xf]
      %v273 = vld [vmem:[%s1 + $0xe0] sm:$0xf]
      %v274 = vld [vmem:[%s1 + $0xe4] sm:$0xf]
      %v275 = vld [vmem:[%s1 + $0xe8] sm:$0xf]
      %v276 = vld [vmem:[%s1 + $0xec] sm:$0xf]
      %v277 = vld [vmem:[%s1 + $0xf0] sm:$0xf]
      %v278 = vld [vmem:[%s1 + $0xf4] sm:$0xf]
      %v279 = vld [vmem:[%s1 + $0xf8] sm:$0xf]
      %v280 = vld [vmem:[%s1 + $0xfc] sm:$0xf]
      %v281 = vld [vmem:[%s1 + $0x100] sm:$0xf]
      %v282 = vld [vmem:[%s1 + $0x104] sm:$0xf]
      %v283 = vld [vmem:[%s1 + $0x108] sm:$0xf]
      %v284 = vld [vmem:[%s1 + $0x10c] sm:$0xf]
      %v285 = vld [vmem:[%s1 + $0x110] sm:$0xf]
      %v286 = vld [vmem:[%s1 + $0x114] sm:$0xf]
      %v287 = vld [vmem:[%s1 + $0x118] sm:$0xf]
      %v288 = vld [vmem:[%s1 + $0x11c] sm:$0xf]
      %v289 = vld [vmem:[%s1 + $0x120] sm:$0xf]
      %v290 = vld [vmem:[%s1 + $0x124] sm:$0xf]
      %v291 = vld [vmem:[%s1 + $0x128] sm:$0xf]
      %v292 = vld [vmem:[%s1 + $0x12c] sm:$0xf]
      %v293 = vld [vmem:[%s1 + $0x130] sm:$0xf]
      %v294 = vld [vmem:[%s1 + $0x134] sm:$0xf]
      %v295 = vld [vmem:[%s1 + $0x138] sm:$0xf]
      %v296 = vld [vmem:[%s1 + $0x13c] sm:$0xf]
      %v297 = vld [vmem:[%s1 + $0x140] sm:$0xf]
      %v298 = vld [vmem:[%s1 + $0x144] sm:$0xf]
      %v299 = vld [vmem:[%s1 + $0x148] sm:$0xf]
      %v300 = vld [vmem:[%s1 + $0x14c] sm:$0xf]
      %v301 = vld [vmem:[%s1 + $0x150] sm:$0xf]
      %v302 = vld [vmem:[%s1 + $0x154] sm:$0xf]
      %v303 = vld [vmem:[%s1 + $0x158] sm:$0xf]
      %v304 = vld [vmem:[%s1 + $0x15c] sm:$0xf]
      %v305 = vld [vmem:[%s1 + $0x160] sm:$0xf]
      %v306 = vld [vmem:[%s1 + $0x164] sm:$0xf]
      %v307 = vld [vmem:[%s1 + $0x168] sm:$0xf]
      %v308 = vld [vmem:[%s1 + $0x16c] sm:$0xf]
      %v309 = vld [vmem:[%s1 + $0x170] sm:$0xf]
      %v310 = vld [vmem:[%s1 + $0x174] sm:$0xf]
      %v311 = vld [vmem:[%s1 + $0x178] sm:$0xf]
      %v312 = vld [vmem:[%s1 + $0x17c] sm:$0xf]
      %v313 = vld [vmem:[%s1 + $0x180] sm:$0xf]
      %v314 = vld [vmem:[%s1 + $0x184] sm:$0xf]
      %v315 = vld [vmem:[%s1 + $0x188] sm:$0xf]
      %v316 = vld [vmem:[%s1 + $0x18c] sm:$0xf]
      %v317 = vpack.c.bf16 %v176, %v175
      %v318 = vpack.c.bf16 %v178, %v177
      %v319 = vpack.c.bf16 %v180, %v179
      %v320 = vpack.c.bf16 %v182, %v181
      %v321 = vpack.c.bf16 %v184, %v183
      %v322 = vpack.c.bf16 %v186, %v185
      %v323 = vpack.c.bf16 %v188, %v187
      %v324 = vpack.c.bf16 %v190, %v189
      %v325 = vpack.c.bf16 %v192, %v191
      %v326 = vpack.c.bf16 %v194, %v193
      %v327 = vpack.c.bf16 %v196, %v195
      %v328 = vpack.c.bf16 %v198, %v197
      %v329 = vpack.c.bf16 %v200, %v199
      %v330 = vpack.c.bf16 %v202, %v201
      %v331 = vpack.c.bf16 %v204, %v203
      %v332 = vpack.c.bf16 %v206, %v205
      %v333 = vpack.c.bf16 %v207, %v207
      %vm334 = vsmask.f32 7424
      %v336 = vshrl.u32 %v317, 16
      %v338 = vshll.u32 %v317, 16
      %v340 = vrot.slane %v338, 1
      %v341 = vor.u32 %v336, %v340
      %v343 = vshll.u32 %v318, 16
      %v345 = vrot.slane %v343, 1
      %v346 = vsel %vm334, %v341, %v345
      %v347 = vshrl.u32 %v318, 16
      %v349 = vor.u32 %v347, %v345
      %v351 = vshll.u32 %v319, 16
      %v353 = vrot.slane %v351, 1
      %v354 = vsel %vm334, %v349, %v353
      %v355 = vshrl.u32 %v319, 16
      %v357 = vor.u32 %v355, %v353
      %v359 = vshll.u32 %v320, 16
      %v361 = vrot.slane %v359, 1
      %v362 = vsel %vm334, %v357, %v361
      %v363 = vshrl.u32 %v320, 16
      %v365 = vor.u32 %v363, %v361
      %v367 = vshll.u32 %v321, 16
      %v369 = vrot.slane %v367, 1
      %v370 = vsel %vm334, %v365, %v369
      %v371 = vshrl.u32 %v321, 16
      %v373 = vor.u32 %v371, %v369
      %v375 = vshll.u32 %v322, 16
      %v377 = vrot.slane %v375, 1
      %v378 = vsel %vm334, %v373, %v377
      %v379 = vshrl.u32 %v322, 16
      %v381 = vor.u32 %v379, %v377
      %v383 = vshll.u32 %v323, 16
      %v385 = vrot.slane %v383, 1
      %v386 = vsel %vm334, %v381, %v385
      %v387 = vshrl.u32 %v323, 16
      %v389 = vor.u32 %v387, %v385
      %v391 = vshll.u32 %v324, 16
      %v393 = vrot.slane %v391, 1
      %v394 = vsel %vm334, %v389, %v393
      %v395 = vshrl.u32 %v324, 16
      %v397 = vor.u32 %v395, %v393
      %v399 = vshll.u32 %v325, 16
      %v401 = vrot.slane %v399, 1
      %v402 = vsel %vm334, %v397, %v401
      %v403 = vshrl.u32 %v325, 16
      %v405 = vor.u32 %v403, %v401
      %v407 = vshll.u32 %v326, 16
      %v409 = vrot.slane %v407, 1
      %v410 = vsel %vm334, %v405, %v409
      %v411 = vshrl.u32 %v326, 16
      %v413 = vor.u32 %v411, %v409
      %v415 = vshll.u32 %v327, 16
      %v417 = vrot.slane %v415, 1
      %v418 = vsel %vm334, %v413, %v417
      %v419 = vshrl.u32 %v327, 16
      %v421 = vor.u32 %v419, %v417
      %v423 = vshll.u32 %v328, 16
      %v425 = vrot.slane %v423, 1
      %v426 = vsel %vm334, %v421, %v425
      %v427 = vshrl.u32 %v328, 16
      %v429 = vor.u32 %v427, %v425
      %v431 = vshll.u32 %v329, 16
      %v433 = vrot.slane %v431, 1
      %v434 = vsel %vm334, %v429, %v433
      %v435 = vshrl.u32 %v329, 16
      %v437 = vor.u32 %v435, %v433
      %v439 = vshll.u32 %v330, 16
      %v441 = vrot.slane %v439, 1
      %v442 = vsel %vm334, %v437, %v441
      %v443 = vshrl.u32 %v330, 16
      %v445 = vor.u32 %v443, %v441
      %v447 = vshll.u32 %v331, 16
      %v449 = vrot.slane %v447, 1
      %v450 = vsel %vm334, %v445, %v449
      %v451 = vshrl.u32 %v331, 16
      %v453 = vor.u32 %v451, %v449
      %v455 = vshll.u32 %v332, 16
      %v457 = vrot.slane %v455, 1
      %v458 = vsel %vm334, %v453, %v457
      %v459 = vshrl.u32 %v332, 16
      %v461 = vor.u32 %v459, %v457
      %v463 = vshll.u32 %v333, 16
      %v465 = vrot.slane %v463, 1
      %v466 = vsel %vm334, %v461, %v465
      %v471 = vunpack.c.l.b16 %v221
      %v472 = vunpack.c.l.b16 %v222
      %v473 = vunpack.c.l.b16 %v223
      %v474 = vunpack.c.l.b16 %v224
      %v475 = vpack.c.b16 %v472, %v471
      %v476 = vpack.c.b16 %v474, %v473
      %vm479 = vcmask 261120
      %v481 = vsel %vm479, %v346, 0
      %v484 = vsel %vm479, %v354, 0
      %v487 = vsel %vm479, %v362, 0
      %v490 = vsel %vm479, %v370, 0
      %v493 = vsel %vm479, %v378, 0
      %v496 = vsel %vm479, %v386, 0
      %v499 = vsel %vm479, %v394, 0
      %v502 = vsel %vm479, %v402, 0
      %v505 = vsel %vm479, %v410, 0
      %v508 = vsel %vm479, %v418, 0
      %v511 = vsel %vm479, %v426, 0
      %v514 = vsel %vm479, %v434, 0
      %v517 = vsel %vm479, %v442, 0
      %v520 = vsel %vm479, %v450, 0
      %v523 = vsel %vm479, %v458, 0
      %v526 = vsel %vm479, %v466, 0
      %528 = vmatpush.bf16.msra.mxu0 0
      %529 = vmatpush.bf16.msra.mxu0 0
      %530 = vmatpush.bf16.msra.mxu0 0
      %531 = vmatpush.bf16.msra.mxu0 0
      %532 = vmatpush.bf16.msra.mxu0 0
      %533 = vmatpush.bf16.msra.mxu0 0
      %534 = vmatpush.bf16.msra.mxu0 %v476
      %535 = vmatpush.bf16.msra.mxu0 %v475
      %536 = vmatmul.bf16.gmra.mxu0 %v481
      %v537 = vpop.f32.mrf.mxu0
      %v538 = vadd.f32 0.0, %v537
      %v539 = vpop.f32.mrf.mxu0
      %v540 = vadd.f32 0.0, %v539
      %541 = vmatmul.bf16.gmra.mxu0 %v484
      %v542 = vpop.f32.mrf.mxu0
      %v543 = vadd.f32 0.0, %v542
      %v544 = vpop.f32.mrf.mxu0
      %v545 = vadd.f32 0.0, %v544
      %546 = vmatmul.bf16.gmra.mxu0 %v487
      %v547 = vpop.f32.mrf.mxu0
      %v548 = vadd.f32 0.0, %v547
      %v549 = vpop.f32.mrf.mxu0
      %v550 = vadd.f32 0.0, %v549
      %551 = vmatmul.bf16.gmra.mxu0 %v490
      %v552 = vpop.f32.mrf.mxu0
      %v553 = vadd.f32 0.0, %v552
      %v554 = vpop.f32.mrf.mxu0
      %v555 = vadd.f32 0.0, %v554
      %556 = vmatmul.bf16.gmra.mxu0 %v493
      %v557 = vpop.f32.mrf.mxu0
      %v558 = vadd.f32 0.0, %v557
      %v559 = vpop.f32.mrf.mxu0
      %v560 = vadd.f32 0.0, %v559
      %561 = vmatmul.bf16.gmra.mxu0 %v496
      %v562 = vpop.f32.mrf.mxu0
      %v563 = vadd.f32 0.0, %v562
      %v564 = vpop.f32.mrf.mxu0
      %v565 = vadd.f32 0.0, %v564
      %566 = vmatmul.bf16.gmra.mxu0 %v499
      %v567 = vpop.f32.mrf.mxu0
      %v568 = vadd.f32 0.0, %v567
      %v569 = vpop.f32.mrf.mxu0
      %v570 = vadd.f32 0.0, %v569
      %571 = vmatmul.bf16.gmra.mxu0 %v502
      %v572 = vpop.f32.mrf.mxu0
      %v573 = vadd.f32 0.0, %v572
      %v574 = vpop.f32.mrf.mxu0
      %v575 = vadd.f32 0.0, %v574
      %576 = vmatmul.bf16.gmra.mxu0 %v505
      %v577 = vpop.f32.mrf.mxu0
      %v578 = vadd.f32 0.0, %v577
      %v579 = vpop.f32.mrf.mxu0
      %v580 = vadd.f32 0.0, %v579
      %581 = vmatmul.bf16.gmra.mxu0 %v508
      %v582 = vpop.f32.mrf.mxu0
      %v583 = vadd.f32 0.0, %v582
      %v584 = vpop.f32.mrf.mxu0
      %v585 = vadd.f32 0.0, %v584
      %586 = vmatmul.bf16.gmra.mxu0 %v511
      %v587 = vpop.f32.mrf.mxu0
      %v588 = vadd.f32 0.0, %v587
      %v589 = vpop.f32.mrf.mxu0
      %v590 = vadd.f32 0.0, %v589
      %591 = vmatmul.bf16.gmra.mxu0 %v514
      %v592 = vpop.f32.mrf.mxu0
      %v593 = vadd.f32 0.0, %v592
      %v594 = vpop.f32.mrf.mxu0
      %v595 = vadd.f32 0.0, %v594
      %596 = vmatmul.bf16.gmra.mxu0 %v517
      %v597 = vpop.f32.mrf.mxu0
      %v598 = vadd.f32 0.0, %v597
      %v599 = vpop.f32.mrf.mxu0
      %v600 = vadd.f32 0.0, %v599
      %601 = vmatmul.bf16.gmra.mxu0 %v520
      %v602 = vpop.f32.mrf.mxu0
      %v603 = vadd.f32 0.0, %v602
      %v604 = vpop.f32.mrf.mxu0
      %v605 = vadd.f32 0.0, %v604
      %606 = vmatmul.bf16.gmra.mxu0 %v523
      %v607 = vpop.f32.mrf.mxu0
      %v608 = vadd.f32 0.0, %v607
      %v609 = vpop.f32.mrf.mxu0
      %v610 = vadd.f32 0.0, %v609
      %611 = vmatmul.bf16.gmra.mxu0 %v526
      %v612 = vpop.f32.mrf.mxu0
      %v613 = vadd.f32 0.0, %v612
      %v614 = vpop.f32.mrf.mxu0
      %v615 = vadd.f32 0.0, %v614
      %616 = vdwg.mxu0
      %v621 = vunpack.c.l.b16 %v217
      %v622 = vunpack.c.l.b16 %v218
      %v623 = vunpack.c.l.b16 %v219
      %v624 = vunpack.c.l.b16 %v220
      %v625 = vpack.c.b16 %v622, %v621
      %v626 = vpack.c.b16 %v624, %v623
      %v629 = vsel %vm479, %v317, 0
      %v631 = vsel %vm479, %v318, 0
      %v633 = vsel %vm479, %v319, 0
      %v635 = vsel %vm479, %v320, 0
      %v637 = vsel %vm479, %v321, 0
      %v639 = vsel %vm479, %v322, 0
      %v641 = vsel %vm479, %v323, 0
      %v643 = vsel %vm479, %v324, 0
      %v645 = vsel %vm479, %v325, 0
      %v647 = vsel %vm479, %v326, 0
      %v649 = vsel %vm479, %v327, 0
      %v651 = vsel %vm479, %v328, 0
      %v653 = vsel %vm479, %v329, 0
      %v655 = vsel %vm479, %v330, 0
      %v657 = vsel %vm479, %v331, 0
      %v659 = vsel %vm479, %v332, 0
      %661 = vmatpush.bf16.msra.mxu0 0
      %662 = vmatpush.bf16.msra.mxu0 0
      %663 = vmatpush.bf16.msra.mxu0 0
      %664 = vmatpush.bf16.msra.mxu0 0
      %665 = vmatpush.bf16.msra.mxu0 0
      %666 = vmatpush.bf16.msra.mxu0 0
      %667 = vmatpush.bf16.msra.mxu0 %v626
      %668 = vmatpush.bf16.msra.mxu0 %v625
      %669 = vmatmul.bf16.gmra.mxu0 %v629
      %v670 = vpop.f32.mrf.mxu0
      %v671 = vadd.f32 %v538, %v670
      %v672 = vpop.f32.mrf.mxu0
      %v673 = vadd.f32 %v540, %v672
      %674 = vmatmul.bf16.gmra.mxu0 %v631
      %v675 = vpop.f32.mrf.mxu0
      %v676 = vadd.f32 %v543, %v675
      %v677 = vpop.f32.mrf.mxu0
      %v678 = vadd.f32 %v545, %v677
      %679 = vmatmul.bf16.gmra.mxu0 %v633
      %v680 = vpop.f32.mrf.mxu0
      %v681 = vadd.f32 %v548, %v680
      %v682 = vpop.f32.mrf.mxu0
      %v683 = vadd.f32 %v550, %v682
      %684 = vmatmul.bf16.gmra.mxu0 %v635
      %v685 = vpop.f32.mrf.mxu0
      %v686 = vadd.f32 %v553, %v685
      %v687 = vpop.f32.mrf.mxu0
      %v688 = vadd.f32 %v555, %v687
      %689 = vmatmul.bf16.gmra.mxu0 %v637
      %v690 = vpop.f32.mrf.mxu0
      %v691 = vadd.f32 %v558, %v690
      %v692 = vpop.f32.mrf.mxu0
      %v693 = vadd.f32 %v560, %v692
      %694 = vmatmul.bf16.gmra.mxu0 %v639
      %v695 = vpop.f32.mrf.mxu0
      %v696 = vadd.f32 %v563, %v695
      %v697 = vpop.f32.mrf.mxu0
      %v698 = vadd.f32 %v565, %v697
      %699 = vmatmul.bf16.gmra.mxu0 %v641
      %v700 = vpop.f32.mrf.mxu0
      %v701 = vadd.f32 %v568, %v700
      %v702 = vpop.f32.mrf.mxu0
      %v703 = vadd.f32 %v570, %v702
      %704 = vmatmul.bf16.gmra.mxu0 %v643
      %v705 = vpop.f32.mrf.mxu0
      %v706 = vadd.f32 %v573, %v705
      %v707 = vpop.f32.mrf.mxu0
      %v708 = vadd.f32 %v575, %v707
      %709 = vmatmul.bf16.gmra.mxu0 %v645
      %v710 = vpop.f32.mrf.mxu0
      %v711 = vadd.f32 %v578, %v710
      %v712 = vpop.f32.mrf.mxu0
      %v713 = vadd.f32 %v580, %v712
      %714 = vmatmul.bf16.gmra.mxu0 %v647
      %v715 = vpop.f32.mrf.mxu0
      %v716 = vadd.f32 %v583, %v715
      %v717 = vpop.f32.mrf.mxu0
      %v718 = vadd.f32 %v585, %v717
      %719 = vmatmul.bf16.gmra.mxu0 %v649
      %v720 = vpop.f32.mrf.mxu0
      %v721 = vadd.f32 %v588, %v720
      %v722 = vpop.f32.mrf.mxu0
      %v723 = vadd.f32 %v590, %v722
      %724 = vmatmul.bf16.gmra.mxu0 %v651
      %v725 = vpop.f32.mrf.mxu0
      %v726 = vadd.f32 %v593, %v725
      %v727 = vpop.f32.mrf.mxu0
      %v728 = vadd.f32 %v595, %v727
      %729 = vmatmul.bf16.gmra.mxu0 %v653
      %v730 = vpop.f32.mrf.mxu0
      %v731 = vadd.f32 %v598, %v730
      %v732 = vpop.f32.mrf.mxu0
      %v733 = vadd.f32 %v600, %v732
      %734 = vmatmul.bf16.gmra.mxu0 %v655
      %v735 = vpop.f32.mrf.mxu0
      %v736 = vadd.f32 %v603, %v735
      %v737 = vpop.f32.mrf.mxu0
      %v738 = vadd.f32 %v605, %v737
      %739 = vmatmul.bf16.gmra.mxu0 %v657
      %v740 = vpop.f32.mrf.mxu0
      %v741 = vadd.f32 %v608, %v740
      %v742 = vpop.f32.mrf.mxu0
      %v743 = vadd.f32 %v610, %v742
      %744 = vmatmul.bf16.gmra.mxu0 %v659
      %v745 = vpop.f32.mrf.mxu0
      %v746 = vadd.f32 %v613, %v745
      %v747 = vpop.f32.mrf.mxu0
      %v748 = vadd.f32 %v615, %v747
      %749 = vdwg.mxu0
      %vm767 = vcmask 1046528
      %v768 = vrot.slane %v317, 1
      %v769 = vrot.slane %v318, 1
      %v770 = vsel %vm767, %v768, %v769
      %v771 = vrot.slane %v319, 1
      %v772 = vsel %vm767, %v769, %v771
      %v773 = vrot.slane %v320, 1
      %v774 = vsel %vm767, %v771, %v773
      %v775 = vrot.slane %v321, 1
      %v776 = vsel %vm767, %v773, %v775
      %v777 = vrot.slane %v322, 1
      %v778 = vsel %vm767, %v775, %v777
      %v779 = vrot.slane %v323, 1
      %v780 = vsel %vm767, %v777, %v779
      %v781 = vrot.slane %v324, 1
      %v782 = vsel %vm767, %v779, %v781
      %v783 = vrot.slane %v325, 1
      %v784 = vsel %vm767, %v781, %v783
      %v785 = vrot.slane %v326, 1
      %v786 = vsel %vm767, %v783, %v785
      %v787 = vrot.slane %v327, 1
      %v788 = vsel %vm767, %v785, %v787
      %v789 = vrot.slane %v328, 1
      %v790 = vsel %vm767, %v787, %v789
      %v791 = vrot.slane %v329, 1
      %v792 = vsel %vm767, %v789, %v791
      %v793 = vrot.slane %v330, 1
      %v794 = vsel %vm767, %v791, %v793
      %v795 = vrot.slane %v331, 1
      %v796 = vsel %vm767, %v793, %v795
      %v797 = vrot.slane %v332, 1
      %v798 = vsel %vm767, %v795, %v797
      %v799 = vrot.slane %v333, 1
      %v800 = vsel %vm767, %v797, %v799
      %v805 = vunpack.c.l.b16 %v225
      %v806 = vunpack.c.l.b16 %v226
      %v807 = vunpack.c.l.b16 %v227
      %v808 = vunpack.c.l.b16 %v228
      %v809 = vpack.c.b16 %v806, %v805
      %v810 = vpack.c.b16 %v808, %v807
      %v814 = vsel %vm479, %v770, 0
      %v817 = vsel %vm479, %v772, 0
      %v820 = vsel %vm479, %v774, 0
      %v823 = vsel %vm479, %v776, 0
      %v826 = vsel %vm479, %v778, 0
      %v829 = vsel %vm479, %v780, 0
      %v832 = vsel %vm479, %v782, 0
      %v835 = vsel %vm479, %v784, 0
      %v838 = vsel %vm479, %v786, 0
      %v841 = vsel %vm479, %v788, 0
      %v844 = vsel %vm479, %v790, 0
      %v847 = vsel %vm479, %v792, 0
      %v850 = vsel %vm479, %v794, 0
      %v853 = vsel %vm479, %v796, 0
      %v856 = vsel %vm479, %v798, 0
      %v859 = vsel %vm479, %v800, 0
      %861 = vmatpush.bf16.msra.mxu0 0
      %862 = vmatpush.bf16.msra.mxu0 0
      %863 = vmatpush.bf16.msra.mxu0 0
      %864 = vmatpush.bf16.msra.mxu0 0
      %865 = vmatpush.bf16.msra.mxu0 0
      %866 = vmatpush.bf16.msra.mxu0 0
      %867 = vmatpush.bf16.msra.mxu0 %v810
      %868 = vmatpush.bf16.msra.mxu0 %v809
      %869 = vmatmul.bf16.gmra.mxu0 %v814
      %v870 = vpop.f32.mrf.mxu0
      %v871 = vadd.f32 0.0, %v870
      %v872 = vpop.f32.mrf.mxu0
      %v873 = vadd.f32 0.0, %v872
      %874 = vmatmul.bf16.gmra.mxu0 %v817
      %v875 = vpop.f32.mrf.mxu0
      %v876 = vadd.f32 0.0, %v875
      %v877 = vpop.f32.mrf.mxu0
      %v878 = vadd.f32 0.0, %v877
      %879 = vmatmul.bf16.gmra.mxu0 %v820
      %v880 = vpop.f32.mrf.mxu0
      %v881 = vadd.f32 0.0, %v880
      %v882 = vpop.f32.mrf.mxu0
      %v883 = vadd.f32 0.0, %v882
      %884 = vmatmul.bf16.gmra.mxu0 %v823
      %v885 = vpop.f32.mrf.mxu0
      %v886 = vadd.f32 0.0, %v885
      %v887 = vpop.f32.mrf.mxu0
      %v888 = vadd.f32 0.0, %v887
      %889 = vmatmul.bf16.gmra.mxu0 %v826
      %v890 = vpop.f32.mrf.mxu0
      %v891 = vadd.f32 0.0, %v890
      %v892 = vpop.f32.mrf.mxu0
      %v893 = vadd.f32 0.0, %v892
      %894 = vmatmul.bf16.gmra.mxu0 %v829
      %v895 = vpop.f32.mrf.mxu0
      %v896 = vadd.f32 0.0, %v895
      %v897 = vpop.f32.mrf.mxu0
      %v898 = vadd.f32 0.0, %v897
      %899 = vmatmul.bf16.gmra.mxu0 %v832
      %v900 = vpop.f32.mrf.mxu0
      %v901 = vadd.f32 0.0, %v900
      %v902 = vpop.f32.mrf.mxu0
      %v903 = vadd.f32 0.0, %v902
      %904 = vmatmul.bf16.gmra.mxu0 %v835
      %v905 = vpop.f32.mrf.mxu0
      %v906 = vadd.f32 0.0, %v905
      %v907 = vpop.f32.mrf.mxu0
      %v908 = vadd.f32 0.0, %v907
      %909 = vmatmul.bf16.gmra.mxu0 %v838
      %v910 = vpop.f32.mrf.mxu0
      %v911 = vadd.f32 0.0, %v910
      %v912 = vpop.f32.mrf.mxu0
      %v913 = vadd.f32 0.0, %v912
      %914 = vmatmul.bf16.gmra.mxu0 %v841
      %v915 = vpop.f32.mrf.mxu0
      %v916 = vadd.f32 0.0, %v915
      %v917 = vpop.f32.mrf.mxu0
      %v918 = vadd.f32 0.0, %v917
      %919 = vmatmul.bf16.gmra.mxu0 %v844
      %v920 = vpop.f32.mrf.mxu0
      %v921 = vadd.f32 0.0, %v920
      %v922 = vpop.f32.mrf.mxu0
      %v923 = vadd.f32 0.0, %v922
      %924 = vmatmul.bf16.gmra.mxu0 %v847
      %v925 = vpop.f32.mrf.mxu0
      %v926 = vadd.f32 0.0, %v925
      %v927 = vpop.f32.mrf.mxu0
      %v928 = vadd.f32 0.0, %v927
      %929 = vmatmul.bf16.gmra.mxu0 %v850
      %v930 = vpop.f32.mrf.mxu0
      %v931 = vadd.f32 0.0, %v930
      %v932 = vpop.f32.mrf.mxu0
      %v933 = vadd.f32 0.0, %v932
      %934 = vmatmul.bf16.gmra.mxu0 %v853
      %v935 = vpop.f32.mrf.mxu0
      %v936 = vadd.f32 0.0, %v935
      %v937 = vpop.f32.mrf.mxu0
      %v938 = vadd.f32 0.0, %v937
      %939 = vmatmul.bf16.gmra.mxu0 %v856
      %v940 = vpop.f32.mrf.mxu0
      %v941 = vadd.f32 0.0, %v940
      %v942 = vpop.f32.mrf.mxu0
      %v943 = vadd.f32 0.0, %v942
      %944 = vmatmul.bf16.gmra.mxu0 %v859
      %v945 = vpop.f32.mrf.mxu0
      %v946 = vadd.f32 0.0, %v945
      %v947 = vpop.f32.mrf.mxu0
      %v948 = vadd.f32 0.0, %v947
      %949 = vdwg.mxu0
      %v950 = vadd.f32 %v671, %v871
      %v951 = vadd.f32 %v673, %v873
      %v952 = vadd.f32 %v676, %v876
      %v953 = vadd.f32 %v678, %v878
      %v954 = vadd.f32 %v681, %v881
      %v955 = vadd.f32 %v683, %v883
      %v956 = vadd.f32 %v686, %v886
      %v957 = vadd.f32 %v688, %v888
      %v958 = vadd.f32 %v691, %v891
      %v959 = vadd.f32 %v693, %v893
      %v960 = vadd.f32 %v696, %v896
      %v961 = vadd.f32 %v698, %v898
      %v962 = vadd.f32 %v701, %v901
      %v963 = vadd.f32 %v703, %v903
      %v964 = vadd.f32 %v706, %v906
      %v965 = vadd.f32 %v708, %v908
      %v966 = vadd.f32 %v711, %v911
      %v967 = vadd.f32 %v713, %v913
      %v968 = vadd.f32 %v716, %v916
      %v969 = vadd.f32 %v718, %v918
      %v970 = vadd.f32 %v721, %v921
      %v971 = vadd.f32 %v723, %v923
      %v972 = vadd.f32 %v726, %v926
      %v973 = vadd.f32 %v728, %v928
      %v974 = vadd.f32 %v731, %v931
      %v975 = vadd.f32 %v733, %v933
      %v976 = vadd.f32 %v736, %v936
      %v977 = vadd.f32 %v738, %v938
      %v978 = vadd.f32 %v741, %v941
      %v979 = vadd.f32 %v743, %v943
      %v980 = vadd.f32 %v746, %v946
      %v981 = vadd.f32 %v748, %v948
      %vm982 = vsmask.f32 6400
      %v983 = vrot.slane %v336, 1
      %v984 = vrot.slane %v338, 2
      %v985 = vor.u32 %v983, %v984
      %v986 = vrot.slane %v347, 1
      %v987 = vrot.slane %v343, 2
      %v988 = vor.u32 %v986, %v987
      %v989 = vsel %vm982, %v985, %v988
      %v990 = vrot.slane %v355, 1
      %v991 = vrot.slane %v351, 2
      %v992 = vor.u32 %v990, %v991
      %v993 = vsel %vm982, %v988, %v992
      %v994 = vrot.slane %v363, 1
      %v995 = vrot.slane %v359, 2
      %v996 = vor.u32 %v994, %v995
      %v997 = vsel %vm982, %v992, %v996
      %v998 = vrot.slane %v371, 1
      %v999 = vrot.slane %v367, 2
      %v1000 = vor.u32 %v998, %v999
      %v1001 = vsel %vm982, %v996, %v1000
      %v1002 = vrot.slane %v379, 1
      %v1003 = vrot.slane %v375, 2
      %v1004 = vor.u32 %v1002, %v1003
      %v1005 = vsel %vm982, %v1000, %v1004
      %v1006 = vrot.slane %v387, 1
      %v1007 = vrot.slane %v383, 2
      %v1008 = vor.u32 %v1006, %v1007
      %v1009 = vsel %vm982, %v1004, %v1008
      %v1010 = vrot.slane %v395, 1
      %v1011 = vrot.slane %v391, 2
      %v1012 = vor.u32 %v1010, %v1011
      %v1013 = vsel %vm982, %v1008, %v1012
      %v1014 = vrot.slane %v403, 1
      %v1015 = vrot.slane %v399, 2
      %v1016 = vor.u32 %v1014, %v1015
      %v1017 = vsel %vm982, %v1012, %v1016
      %v1018 = vrot.slane %v411, 1
      %v1019 = vrot.slane %v407, 2
      %v1020 = vor.u32 %v1018, %v1019
      %v1021 = vsel %vm982, %v1016, %v1020
      %v1022 = vrot.slane %v419, 1
      %v1023 = vrot.slane %v415, 2
      %v1024 = vor.u32 %v1022, %v1023
      %v1025 = vsel %vm982, %v1020, %v1024
      %v1026 = vrot.slane %v427, 1
      %v1027 = vrot.slane %v423, 2
      %v1028 = vor.u32 %v1026, %v1027
      %v1029 = vsel %vm982, %v1024, %v1028
      %v1030 = vrot.slane %v435, 1
      %v1031 = vrot.slane %v431, 2
      %v1032 = vor.u32 %v1030, %v1031
      %v1033 = vsel %vm982, %v1028, %v1032
      %v1034 = vrot.slane %v443, 1
      %v1035 = vrot.slane %v439, 2
      %v1036 = vor.u32 %v1034, %v1035
      %v1037 = vsel %vm982, %v1032, %v1036
      %v1038 = vrot.slane %v451, 1
      %v1039 = vrot.slane %v447, 2
      %v1040 = vor.u32 %v1038, %v1039
      %v1041 = vsel %vm982, %v1036, %v1040
      %v1042 = vrot.slane %v459, 1
      %v1043 = vrot.slane %v455, 2
      %v1044 = vor.u32 %v1042, %v1043
      %v1045 = vsel %vm982, %v1040, %v1044
      %v1046 = vshrl.u32 %v333, 16
      %v1048 = vrot.slane %v1046, 1
      %v1049 = vrot.slane %v463, 2
      %v1050 = vor.u32 %v1048, %v1049
      %v1051 = vsel %vm982, %v1044, %v1050
      %v1056 = vunpack.c.l.b16 %v229
      %v1057 = vunpack.c.l.b16 %v230
      %v1058 = vunpack.c.l.b16 %v231
      %v1059 = vunpack.c.l.b16 %v232
      %v1060 = vpack.c.b16 %v1057, %v1056
      %v1061 = vpack.c.b16 %v1059, %v1058
      %v1065 = vsel %vm479, %v989, 0
      %v1068 = vsel %vm479, %v993, 0
      %v1071 = vsel %vm479, %v997, 0
      %v1074 = vsel %vm479, %v1001, 0
      %v1077 = vsel %vm479, %v1005, 0
      %v1080 = vsel %vm479, %v1009, 0
      %v1083 = vsel %vm479, %v1013, 0
      %v1086 = vsel %vm479, %v1017, 0
      %v1089 = vsel %vm479, %v1021, 0
      %v1092 = vsel %vm479, %v1025, 0
      %v1095 = vsel %vm479, %v1029, 0
      %v1098 = vsel %vm479, %v1033, 0
      %v1101 = vsel %vm479, %v1037, 0
      %v1104 = vsel %vm479, %v1041, 0
      %v1107 = vsel %vm479, %v1045, 0
      %v1110 = vsel %vm479, %v1051, 0
      %1112 = vmatpush.bf16.msra.mxu0 0
      %1113 = vmatpush.bf16.msra.mxu0 0
      %1114 = vmatpush.bf16.msra.mxu0 0
      %1115 = vmatpush.bf16.msra.mxu0 0
      %1116 = vmatpush.bf16.msra.mxu0 0
      %1117 = vmatpush.bf16.msra.mxu0 0
      %1118 = vmatpush.bf16.msra.mxu0 %v1061
      %1119 = vmatpush.bf16.msra.mxu0 %v1060
      %1120 = vmatmul.bf16.gmra.mxu0 %v1065
      %v1121 = vpop.f32.mrf.mxu0
      %v1122 = vadd.f32 0.0, %v1121
      %v1123 = vpop.f32.mrf.mxu0
      %v1124 = vadd.f32 0.0, %v1123
      %1125 = vmatmul.bf16.gmra.mxu0 %v1068
      %v1126 = vpop.f32.mrf.mxu0
      %v1127 = vadd.f32 0.0, %v1126
      %v1128 = vpop.f32.mrf.mxu0
      %v1129 = vadd.f32 0.0, %v1128
      %1130 = vmatmul.bf16.gmra.mxu0 %v1071
      %v1131 = vpop.f32.mrf.mxu0
      %v1132 = vadd.f32 0.0, %v1131
      %v1133 = vpop.f32.mrf.mxu0
      %v1134 = vadd.f32 0.0, %v1133
      %1135 = vmatmul.bf16.gmra.mxu0 %v1074
      %v1136 = vpop.f32.mrf.mxu0
      %v1137 = vadd.f32 0.0, %v1136
      %v1138 = vpop.f32.mrf.mxu0
      %v1139 = vadd.f32 0.0, %v1138
      %1140 = vmatmul.bf16.gmra.mxu0 %v1077
      %v1141 = vpop.f32.mrf.mxu0
      %v1142 = vadd.f32 0.0, %v1141
      %v1143 = vpop.f32.mrf.mxu0
      %v1144 = vadd.f32 0.0, %v1143
      %1145 = vmatmul.bf16.gmra.mxu0 %v1080
      %v1146 = vpop.f32.mrf.mxu0
      %v1147 = vadd.f32 0.0, %v1146
      %v1148 = vpop.f32.mrf.mxu0
      %v1149 = vadd.f32 0.0, %v1148
      %1150 = vmatmul.bf16.gmra.mxu0 %v1083
      %v1151 = vpop.f32.mrf.mxu0
      %v1152 = vadd.f32 0.0, %v1151
      %v1153 = vpop.f32.mrf.mxu0
      %v1154 = vadd.f32 0.0, %v1153
      %1155 = vmatmul.bf16.gmra.mxu0 %v1086
      %v1156 = vpop.f32.mrf.mxu0
      %v1157 = vadd.f32 0.0, %v1156
      %v1158 = vpop.f32.mrf.mxu0
      %v1159 = vadd.f32 0.0, %v1158
      %1160 = vmatmul.bf16.gmra.mxu0 %v1089
      %v1161 = vpop.f32.mrf.mxu0
      %v1162 = vadd.f32 0.0, %v1161
      %v1163 = vpop.f32.mrf.mxu0
      %v1164 = vadd.f32 0.0, %v1163
      %1165 = vmatmul.bf16.gmra.mxu0 %v1092
      %v1166 = vpop.f32.mrf.mxu0
      %v1167 = vadd.f32 0.0, %v1166
      %v1168 = vpop.f32.mrf.mxu0
      %v1169 = vadd.f32 0.0, %v1168
      %1170 = vmatmul.bf16.gmra.mxu0 %v1095
      %v1171 = vpop.f32.mrf.mxu0
      %v1172 = vadd.f32 0.0, %v1171
      %v1173 = vpop.f32.mrf.mxu0
      %v1174 = vadd.f32 0.0, %v1173
      %1175 = vmatmul.bf16.gmra.mxu0 %v1098
      %v1176 = vpop.f32.mrf.mxu0
      %v1177 = vadd.f32 0.0, %v1176
      %v1178 = vpop.f32.mrf.mxu0
      %v1179 = vadd.f32 0.0, %v1178
      %1180 = vmatmul.bf16.gmra.mxu0 %v1101
      %v1181 = vpop.f32.mrf.mxu0
      %v1182 = vadd.f32 0.0, %v1181
      %v1183 = vpop.f32.mrf.mxu0
      %v1184 = vadd.f32 0.0, %v1183
      %1185 = vmatmul.bf16.gmra.mxu0 %v1104
      %v1186 = vpop.f32.mrf.mxu0
      %v1187 = vadd.f32 0.0, %v1186
      %v1188 = vpop.f32.mrf.mxu0
      %v1189 = vadd.f32 0.0, %v1188
      %1190 = vmatmul.bf16.gmra.mxu0 %v1107
      %v1191 = vpop.f32.mrf.mxu0
      %v1192 = vadd.f32 0.0, %v1191
      %v1193 = vpop.f32.mrf.mxu0
      %v1194 = vadd.f32 0.0, %v1193
      %1195 = vmatmul.bf16.gmra.mxu0 %v1110
      %v1196 = vpop.f32.mrf.mxu0
      %v1197 = vadd.f32 0.0, %v1196
      %v1198 = vpop.f32.mrf.mxu0
      %v1199 = vadd.f32 0.0, %v1198
      %1200 = vdwg.mxu0
      %v1201 = vadd.f32 %v950, %v1122
      %v1202 = vadd.f32 %v951, %v1124
      %v1203 = vadd.f32 %v952, %v1127
      %v1204 = vadd.f32 %v953, %v1129
      %v1205 = vadd.f32 %v954, %v1132
      %v1206 = vadd.f32 %v955, %v1134
      %v1207 = vadd.f32 %v956, %v1137
      %v1208 = vadd.f32 %v957, %v1139
      %v1209 = vadd.f32 %v958, %v1142
      %v1210 = vadd.f32 %v959, %v1144
      %v1211 = vadd.f32 %v960, %v1147
      %v1212 = vadd.f32 %v961, %v1149
      %v1213 = vadd.f32 %v962, %v1152
      %v1214 = vadd.f32 %v963, %v1154
      %v1215 = vadd.f32 %v964, %v1157
      %v1216 = vadd.f32 %v965, %v1159
      %v1217 = vadd.f32 %v966, %v1162
      %v1218 = vadd.f32 %v967, %v1164
      %v1219 = vadd.f32 %v968, %v1167
      %v1220 = vadd.f32 %v969, %v1169
      %v1221 = vadd.f32 %v970, %v1172
      %v1222 = vadd.f32 %v971, %v1174
      %v1223 = vadd.f32 %v972, %v1177
      %v1224 = vadd.f32 %v973, %v1179
      %v1225 = vadd.f32 %v974, %v1182
      %v1226 = vadd.f32 %v975, %v1184
      %v1227 = vadd.f32 %v976, %v1187
      %v1228 = vadd.f32 %v977, %v1189
      %v1229 = vadd.f32 %v978, %v1192
      %v1230 = vadd.f32 %v979, %v1194
      %v1231 = vadd.f32 %v980, %v1197
      %v1232 = vadd.f32 %v981, %v1199
      %vm1233 = vcmask 1045504
      %v1234 = vrot.slane %v317, 2
      %v1235 = vrot.slane %v318, 2
      %v1236 = vsel %vm1233, %v1234, %v1235
      %v1237 = vrot.slane %v319, 2
      %v1238 = vsel %vm1233, %v1235, %v1237
      %v1239 = vrot.slane %v320, 2
      %v1240 = vsel %vm1233, %v1237, %v1239
      %v1241 = vrot.slane %v321, 2
      %v1242 = vsel %vm1233, %v1239, %v1241
      %v1243 = vrot.slane %v322, 2
      %v1244 = vsel %vm1233, %v1241, %v1243
      %v1245 = vrot.slane %v323, 2
      %v1246 = vsel %vm1233, %v1243, %v1245
      %v1247 = vrot.slane %v324, 2
      %v1248 = vsel %vm1233, %v1245, %v1247
      %v1249 = vrot.slane %v325, 2
      %v1250 = vsel %vm1233, %v1247, %v1249
      %v1251 = vrot.slane %v326, 2
      %v1252 = vsel %vm1233, %v1249, %v1251
      %v1253 = vrot.slane %v327, 2
      %v1254 = vsel %vm1233, %v1251, %v1253
      %v1255 = vrot.slane %v328, 2
      %v1256 = vsel %vm1233, %v1253, %v1255
      %v1257 = vrot.slane %v329, 2
      %v1258 = vsel %vm1233, %v1255, %v1257
      %v1259 = vrot.slane %v330, 2
      %v1260 = vsel %vm1233, %v1257, %v1259
      %v1261 = vrot.slane %v331, 2
      %v1262 = vsel %vm1233, %v1259, %v1261
      %v1263 = vrot.slane %v332, 2
      %v1264 = vsel %vm1233, %v1261, %v1263
      %v1265 = vrot.slane %v333, 2
      %v1266 = vsel %vm1233, %v1263, %v1265
      %v1271 = vunpack.c.l.b16 %v233
      %v1272 = vunpack.c.l.b16 %v234
      %v1273 = vunpack.c.l.b16 %v235
      %v1274 = vunpack.c.l.b16 %v236
      %v1275 = vpack.c.b16 %v1272, %v1271
      %v1276 = vpack.c.b16 %v1274, %v1273
      %v1280 = vsel %vm479, %v1236, 0
      %v1283 = vsel %vm479, %v1238, 0
      %v1286 = vsel %vm479, %v1240, 0
      %v1289 = vsel %vm479, %v1242, 0
      %v1292 = vsel %vm479, %v1244, 0
      %v1295 = vsel %vm479, %v1246, 0
      %v1298 = vsel %vm479, %v1248, 0
      %v1301 = vsel %vm479, %v1250, 0
      %v1304 = vsel %vm479, %v1252, 0
      %v1307 = vsel %vm479, %v1254, 0
      %v1310 = vsel %vm479, %v1256, 0
      %v1313 = vsel %vm479, %v1258, 0
      %v1316 = vsel %vm479, %v1260, 0
      %v1319 = vsel %vm479, %v1262, 0
      %v1322 = vsel %vm479, %v1264, 0
      %v1325 = vsel %vm479, %v1266, 0
      %1327 = vmatpush.bf16.msra.mxu0 0
      %1328 = vmatpush.bf16.msra.mxu0 0
      %1329 = vmatpush.bf16.msra.mxu0 0
      %1330 = vmatpush.bf16.msra.mxu0 0
      %1331 = vmatpush.bf16.msra.mxu0 0
      %1332 = vmatpush.bf16.msra.mxu0 0
      %1333 = vmatpush.bf16.msra.mxu0 %v1276
      %1334 = vmatpush.bf16.msra.mxu0 %v1275
      %1335 = vmatmul.bf16.gmra.mxu0 %v1280
      %v1336 = vpop.f32.mrf.mxu0
      %v1337 = vadd.f32 0.0, %v1336
      %v1338 = vpop.f32.mrf.mxu0
      %v1339 = vadd.f32 0.0, %v1338
      %1340 = vmatmul.bf16.gmra.mxu0 %v1283
      %v1341 = vpop.f32.mrf.mxu0
      %v1342 = vadd.f32 0.0, %v1341
      %v1343 = vpop.f32.mrf.mxu0
      %v1344 = vadd.f32 0.0, %v1343
      %1345 = vmatmul.bf16.gmra.mxu0 %v1286
      %v1346 = vpop.f32.mrf.mxu0
      %v1347 = vadd.f32 0.0, %v1346
      %v1348 = vpop.f32.mrf.mxu0
      %v1349 = vadd.f32 0.0, %v1348
      %1350 = vmatmul.bf16.gmra.mxu0 %v1289
      %v1351 = vpop.f32.mrf.mxu0
      %v1352 = vadd.f32 0.0, %v1351
      %v1353 = vpop.f32.mrf.mxu0
      %v1354 = vadd.f32 0.0, %v1353
      %1355 = vmatmul.bf16.gmra.mxu0 %v1292
      %v1356 = vpop.f32.mrf.mxu0
      %v1357 = vadd.f32 0.0, %v1356
      %v1358 = vpop.f32.mrf.mxu0
      %v1359 = vadd.f32 0.0, %v1358
      %1360 = vmatmul.bf16.gmra.mxu0 %v1295
      %v1361 = vpop.f32.mrf.mxu0
      %v1362 = vadd.f32 0.0, %v1361
      %v1363 = vpop.f32.mrf.mxu0
      %v1364 = vadd.f32 0.0, %v1363
      %1365 = vmatmul.bf16.gmra.mxu0 %v1298
      %v1366 = vpop.f32.mrf.mxu0
      %v1367 = vadd.f32 0.0, %v1366
      %v1368 = vpop.f32.mrf.mxu0
      %v1369 = vadd.f32 0.0, %v1368
      %1370 = vmatmul.bf16.gmra.mxu0 %v1301
      %v1371 = vpop.f32.mrf.mxu0
      %v1372 = vadd.f32 0.0, %v1371
      %v1373 = vpop.f32.mrf.mxu0
      %v1374 = vadd.f32 0.0, %v1373
      %1375 = vmatmul.bf16.gmra.mxu0 %v1304
      %v1376 = vpop.f32.mrf.mxu0
      %v1377 = vadd.f32 0.0, %v1376
      %v1378 = vpop.f32.mrf.mxu0
      %v1379 = vadd.f32 0.0, %v1378
      %1380 = vmatmul.bf16.gmra.mxu0 %v1307
      %v1381 = vpop.f32.mrf.mxu0
      %v1382 = vadd.f32 0.0, %v1381
      %v1383 = vpop.f32.mrf.mxu0
      %v1384 = vadd.f32 0.0, %v1383
      %1385 = vmatmul.bf16.gmra.mxu0 %v1310
      %v1386 = vpop.f32.mrf.mxu0
      %v1387 = vadd.f32 0.0, %v1386
      %v1388 = vpop.f32.mrf.mxu0
      %v1389 = vadd.f32 0.0, %v1388
      %1390 = vmatmul.bf16.gmra.mxu0 %v1313
      %v1391 = vpop.f32.mrf.mxu0
      %v1392 = vadd.f32 0.0, %v1391
      %v1393 = vpop.f32.mrf.mxu0
      %v1394 = vadd.f32 0.0, %v1393
      %1395 = vmatmul.bf16.gmra.mxu0 %v1316
      %v1396 = vpop.f32.mrf.mxu0
      %v1397 = vadd.f32 0.0, %v1396
      %v1398 = vpop.f32.mrf.mxu0
      %v1399 = vadd.f32 0.0, %v1398
      %1400 = vmatmul.bf16.gmra.mxu0 %v1319
      %v1401 = vpop.f32.mrf.mxu0
      %v1402 = vadd.f32 0.0, %v1401
      %v1403 = vpop.f32.mrf.mxu0
      %v1404 = vadd.f32 0.0, %v1403
      %1405 = vmatmul.bf16.gmra.mxu0 %v1322
      %v1406 = vpop.f32.mrf.mxu0
      %v1407 = vadd.f32 0.0, %v1406
      %v1408 = vpop.f32.mrf.mxu0
      %v1409 = vadd.f32 0.0, %v1408
      %1410 = vmatmul.bf16.gmra.mxu0 %v1325
      %v1411 = vpop.f32.mrf.mxu0
      %v1412 = vadd.f32 0.0, %v1411
      %v1413 = vpop.f32.mrf.mxu0
      %v1414 = vadd.f32 0.0, %v1413
      %1415 = vdwg.mxu0
      %v1416 = vadd.f32 %v1201, %v1337
      %v1417 = vadd.f32 %v1202, %v1339
      %v1418 = vadd.f32 %v1203, %v1342
      %v1419 = vadd.f32 %v1204, %v1344
      %v1420 = vadd.f32 %v1205, %v1347
      %v1421 = vadd.f32 %v1206, %v1349
      %v1422 = vadd.f32 %v1207, %v1352
      %v1423 = vadd.f32 %v1208, %v1354
      %v1424 = vadd.f32 %v1209, %v1357
      %v1425 = vadd.f32 %v1210, %v1359
      %v1426 = vadd.f32 %v1211, %v1362
      %v1427 = vadd.f32 %v1212, %v1364
      %v1428 = vadd.f32 %v1213, %v1367
      %v1429 = vadd.f32 %v1214, %v1369
      %v1430 = vadd.f32 %v1215, %v1372
      %v1431 = vadd.f32 %v1216, %v1374
      %v1432 = vadd.f32 %v1217, %v1377
      %v1433 = vadd.f32 %v1218, %v1379
      %v1434 = vadd.f32 %v1219, %v1382
      %v1435 = vadd.f32 %v1220, %v1384
      %v1436 = vadd.f32 %v1221, %v1387
      %v1437 = vadd.f32 %v1222, %v1389
      %v1438 = vadd.f32 %v1223, %v1392
      %v1439 = vadd.f32 %v1224, %v1394
      %v1440 = vadd.f32 %v1225, %v1397
      %v1441 = vadd.f32 %v1226, %v1399
      %v1442 = vadd.f32 %v1227, %v1402
      %v1443 = vadd.f32 %v1228, %v1404
      %v1444 = vadd.f32 %v1229, %v1407
      %v1445 = vadd.f32 %v1230, %v1409
      %v1446 = vadd.f32 %v1231, %v1412
      %v1447 = vadd.f32 %v1232, %v1414
      %v1448 = vpack.c.bf16 %v208, %v207
      %v1449 = vpack.c.bf16 %v209, %v209
      %v1452 = vrot.slane %v1448, 1
      %v1453 = vsel %vm767, %v797, %v1452
      %v1454 = vrot.slane %v1449, 1
      %v1455 = vsel %vm767, %v1452, %v1454
      %v1460 = vunpack.c.l.b16 %v237
      %v1461 = vunpack.c.l.b16 %v238
      %v1462 = vunpack.c.l.b16 %v239
      %v1463 = vunpack.c.l.b16 %v240
      %v1464 = vpack.c.b16 %v1461, %v1460
      %v1465 = vpack.c.b16 %v1463, %v1462
      %v1469 = vsel %vm479, %v1453, 0
      %v1472 = vsel %vm479, %v1455, 0
      %1474 = vmatpush.bf16.msra.mxu0 0
      %1475 = vmatpush.bf16.msra.mxu0 0
      %1476 = vmatpush.bf16.msra.mxu0 0
      %1477 = vmatpush.bf16.msra.mxu0 0
      %1478 = vmatpush.bf16.msra.mxu0 0
      %1479 = vmatpush.bf16.msra.mxu0 0
      %1480 = vmatpush.bf16.msra.mxu0 %v1465
      %1481 = vmatpush.bf16.msra.mxu0 %v1464
      %1482 = vmatmul.bf16.gmra.mxu0 %v817
      %v1483 = vpop.f32.mrf.mxu0
      %v1484 = vadd.f32 0.0, %v1483
      %v1485 = vpop.f32.mrf.mxu0
      %v1486 = vadd.f32 0.0, %v1485
      %1487 = vmatmul.bf16.gmra.mxu0 %v820
      %v1488 = vpop.f32.mrf.mxu0
      %v1489 = vadd.f32 0.0, %v1488
      %v1490 = vpop.f32.mrf.mxu0
      %v1491 = vadd.f32 0.0, %v1490
      %1492 = vmatmul.bf16.gmra.mxu0 %v823
      %v1493 = vpop.f32.mrf.mxu0
      %v1494 = vadd.f32 0.0, %v1493
      %v1495 = vpop.f32.mrf.mxu0
      %v1496 = vadd.f32 0.0, %v1495
      %1497 = vmatmul.bf16.gmra.mxu0 %v826
      %v1498 = vpop.f32.mrf.mxu0
      %v1499 = vadd.f32 0.0, %v1498
      %v1500 = vpop.f32.mrf.mxu0
      %v1501 = vadd.f32 0.0, %v1500
      %1502 = vmatmul.bf16.gmra.mxu0 %v829
      %v1503 = vpop.f32.mrf.mxu0
      %v1504 = vadd.f32 0.0, %v1503
      %v1505 = vpop.f32.mrf.mxu0
      %v1506 = vadd.f32 0.0, %v1505
      %1507 = vmatmul.bf16.gmra.mxu0 %v832
      %v1508 = vpop.f32.mrf.mxu0
      %v1509 = vadd.f32 0.0, %v1508
      %v1510 = vpop.f32.mrf.mxu0
      %v1511 = vadd.f32 0.0, %v1510
      %1512 = vmatmul.bf16.gmra.mxu0 %v835
      %v1513 = vpop.f32.mrf.mxu0
      %v1514 = vadd.f32 0.0, %v1513
      %v1515 = vpop.f32.mrf.mxu0
      %v1516 = vadd.f32 0.0, %v1515
      %1517 = vmatmul.bf16.gmra.mxu0 %v838
      %v1518 = vpop.f32.mrf.mxu0
      %v1519 = vadd.f32 0.0, %v1518
      %v1520 = vpop.f32.mrf.mxu0
      %v1521 = vadd.f32 0.0, %v1520
      %1522 = vmatmul.bf16.gmra.mxu0 %v841
      %v1523 = vpop.f32.mrf.mxu0
      %v1524 = vadd.f32 0.0, %v1523
      %v1525 = vpop.f32.mrf.mxu0
      %v1526 = vadd.f32 0.0, %v1525
      %1527 = vmatmul.bf16.gmra.mxu0 %v844
      %v1528 = vpop.f32.mrf.mxu0
      %v1529 = vadd.f32 0.0, %v1528
      %v1530 = vpop.f32.mrf.mxu0
      %v1531 = vadd.f32 0.0, %v1530
      %1532 = vmatmul.bf16.gmra.mxu0 %v847
      %v1533 = vpop.f32.mrf.mxu0
      %v1534 = vadd.f32 0.0, %v1533
      %v1535 = vpop.f32.mrf.mxu0
      %v1536 = vadd.f32 0.0, %v1535
      %1537 = vmatmul.bf16.gmra.mxu0 %v850
      %v1538 = vpop.f32.mrf.mxu0
      %v1539 = vadd.f32 0.0, %v1538
      %v1540 = vpop.f32.mrf.mxu0
      %v1541 = vadd.f32 0.0, %v1540
      %1542 = vmatmul.bf16.gmra.mxu0 %v853
      %v1543 = vpop.f32.mrf.mxu0
      %v1544 = vadd.f32 0.0, %v1543
      %v1545 = vpop.f32.mrf.mxu0
      %v1546 = vadd.f32 0.0, %v1545
      %1547 = vmatmul.bf16.gmra.mxu0 %v856
      %v1548 = vpop.f32.mrf.mxu0
      %v1549 = vadd.f32 0.0, %v1548
      %v1550 = vpop.f32.mrf.mxu0
      %v1551 = vadd.f32 0.0, %v1550
      %1552 = vmatmul.bf16.gmra.mxu0 %v1469
      %v1553 = vpop.f32.mrf.mxu0
      %v1554 = vadd.f32 0.0, %v1553
      %v1555 = vpop.f32.mrf.mxu0
      %v1556 = vadd.f32 0.0, %v1555
      %1557 = vmatmul.bf16.gmra.mxu0 %v1472
      %v1558 = vpop.f32.mrf.mxu0
      %v1559 = vadd.f32 0.0, %v1558
      %v1560 = vpop.f32.mrf.mxu0
      %v1561 = vadd.f32 0.0, %v1560
      %1562 = vdwg.mxu0
      %v1563 = vadd.f32 %v1416, %v1484
      %v1564 = vadd.f32 %v1417, %v1486
      %v1565 = vadd.f32 %v1418, %v1489
      %v1566 = vadd.f32 %v1419, %v1491
      %v1567 = vadd.f32 %v1420, %v1494
      %v1568 = vadd.f32 %v1421, %v1496
      %v1569 = vadd.f32 %v1422, %v1499
      %v1570 = vadd.f32 %v1423, %v1501
      %v1571 = vadd.f32 %v1424, %v1504
      %v1572 = vadd.f32 %v1425, %v1506
      %v1573 = vadd.f32 %v1426, %v1509
      %v1574 = vadd.f32 %v1427, %v1511
      %v1575 = vadd.f32 %v1428, %v1514
      %v1576 = vadd.f32 %v1429, %v1516
      %v1577 = vadd.f32 %v1430, %v1519
      %v1578 = vadd.f32 %v1431, %v1521
      %v1579 = vadd.f32 %v1432, %v1524
      %v1580 = vadd.f32 %v1433, %v1526
      %v1581 = vadd.f32 %v1434, %v1529
      %v1582 = vadd.f32 %v1435, %v1531
      %v1583 = vadd.f32 %v1436, %v1534
      %v1584 = vadd.f32 %v1437, %v1536
      %v1585 = vadd.f32 %v1438, %v1539
      %v1586 = vadd.f32 %v1439, %v1541
      %v1587 = vadd.f32 %v1440, %v1544
      %v1588 = vadd.f32 %v1441, %v1546
      %v1589 = vadd.f32 %v1442, %v1549
      %v1590 = vadd.f32 %v1443, %v1551
      %v1591 = vadd.f32 %v1444, %v1554
      %v1592 = vadd.f32 %v1445, %v1556
      %v1593 = vadd.f32 %v1446, %v1559
      %v1594 = vadd.f32 %v1447, %v1561
      %v1596 = vshrl.u32 %v1448, 16
      %v1598 = vrot.slane %v1596, 1
      %v1599 = vshll.u32 %v1448, 16
      %v1601 = vrot.slane %v1599, 2
      %v1602 = vor.u32 %v1598, %v1601
      %v1603 = vsel %vm982, %v1044, %v1602
      %v1605 = vshrl.u32 %v1449, 16
      %v1607 = vrot.slane %v1605, 1
      %v1608 = vshll.u32 %v1449, 16
      %v1610 = vrot.slane %v1608, 2
      %v1611 = vor.u32 %v1607, %v1610
      %v1612 = vsel %vm982, %v1602, %v1611
      %v1617 = vunpack.c.l.b16 %v241
      %v1618 = vunpack.c.l.b16 %v242
      %v1619 = vunpack.c.l.b16 %v243
      %v1620 = vunpack.c.l.b16 %v244
      %v1621 = vpack.c.b16 %v1618, %v1617
      %v1622 = vpack.c.b16 %v1620, %v1619
      %v1626 = vsel %vm479, %v1603, 0
      %v1629 = vsel %vm479, %v1612, 0
      %1631 = vmatpush.bf16.msra.mxu0 0
      %1632 = vmatpush.bf16.msra.mxu0 0
      %1633 = vmatpush.bf16.msra.mxu0 0
      %1634 = vmatpush.bf16.msra.mxu0 0
      %1635 = vmatpush.bf16.msra.mxu0 0
      %1636 = vmatpush.bf16.msra.mxu0 0
      %1637 = vmatpush.bf16.msra.mxu0 %v1622
      %1638 = vmatpush.bf16.msra.mxu0 %v1621
      %1639 = vmatmul.bf16.gmra.mxu0 %v1068
      %v1640 = vpop.f32.mrf.mxu0
      %v1641 = vadd.f32 0.0, %v1640
      %v1642 = vpop.f32.mrf.mxu0
      %v1643 = vadd.f32 0.0, %v1642
      %1644 = vmatmul.bf16.gmra.mxu0 %v1071
      %v1645 = vpop.f32.mrf.mxu0
      %v1646 = vadd.f32 0.0, %v1645
      %v1647 = vpop.f32.mrf.mxu0
      %v1648 = vadd.f32 0.0, %v1647
      %1649 = vmatmul.bf16.gmra.mxu0 %v1074
      %v1650 = vpop.f32.mrf.mxu0
      %v1651 = vadd.f32 0.0, %v1650
      %v1652 = vpop.f32.mrf.mxu0
      %v1653 = vadd.f32 0.0, %v1652
      %1654 = vmatmul.bf16.gmra.mxu0 %v1077
      %v1655 = vpop.f32.mrf.mxu0
      %v1656 = vadd.f32 0.0, %v1655
      %v1657 = vpop.f32.mrf.mxu0
      %v1658 = vadd.f32 0.0, %v1657
      %1659 = vmatmul.bf16.gmra.mxu0 %v1080
      %v1660 = vpop.f32.mrf.mxu0
      %v1661 = vadd.f32 0.0, %v1660
      %v1662 = vpop.f32.mrf.mxu0
      %v1663 = vadd.f32 0.0, %v1662
      %1664 = vmatmul.bf16.gmra.mxu0 %v1083
      %v1665 = vpop.f32.mrf.mxu0
      %v1666 = vadd.f32 0.0, %v1665
      %v1667 = vpop.f32.mrf.mxu0
      %v1668 = vadd.f32 0.0, %v1667
      %1669 = vmatmul.bf16.gmra.mxu0 %v1086
      %v1670 = vpop.f32.mrf.mxu0
      %v1671 = vadd.f32 0.0, %v1670
      %v1672 = vpop.f32.mrf.mxu0
      %v1673 = vadd.f32 0.0, %v1672
      %1674 = vmatmul.bf16.gmra.mxu0 %v1089
      %v1675 = vpop.f32.mrf.mxu0
      %v1676 = vadd.f32 0.0, %v1675
      %v1677 = vpop.f32.mrf.mxu0
      %v1678 = vadd.f32 0.0, %v1677
      %1679 = vmatmul.bf16.gmra.mxu0 %v1092
      %v1680 = vpop.f32.mrf.mxu0
      %v1681 = vadd.f32 0.0, %v1680
      %v1682 = vpop.f32.mrf.mxu0
      %v1683 = vadd.f32 0.0, %v1682
      %1684 = vmatmul.bf16.gmra.mxu0 %v1095
      %v1685 = vpop.f32.mrf.mxu0
      %v1686 = vadd.f32 0.0, %v1685
      %v1687 = vpop.f32.mrf.mxu0
      %v1688 = vadd.f32 0.0, %v1687
      %1689 = vmatmul.bf16.gmra.mxu0 %v1098
      %v1690 = vpop.f32.mrf.mxu0
      %v1691 = vadd.f32 0.0, %v1690
      %v1692 = vpop.f32.mrf.mxu0
      %v1693 = vadd.f32 0.0, %v1692
      %1694 = vmatmul.bf16.gmra.mxu0 %v1101
      %v1695 = vpop.f32.mrf.mxu0
      %v1696 = vadd.f32 0.0, %v1695
      %v1697 = vpop.f32.mrf.mxu0
      %v1698 = vadd.f32 0.0, %v1697
      %1699 = vmatmul.bf16.gmra.mxu0 %v1104
      %v1700 = vpop.f32.mrf.mxu0
      %v1701 = vadd.f32 0.0, %v1700
      %v1702 = vpop.f32.mrf.mxu0
      %v1703 = vadd.f32 0.0, %v1702
      %1704 = vmatmul.bf16.gmra.mxu0 %v1107
      %v1705 = vpop.f32.mrf.mxu0
      %v1706 = vadd.f32 0.0, %v1705
      %v1707 = vpop.f32.mrf.mxu0
      %v1708 = vadd.f32 0.0, %v1707
      %1709 = vmatmul.bf16.gmra.mxu0 %v1626
      %v1710 = vpop.f32.mrf.mxu0
      %v1711 = vadd.f32 0.0, %v1710
      %v1712 = vpop.f32.mrf.mxu0
      %v1713 = vadd.f32 0.0, %v1712
      %1714 = vmatmul.bf16.gmra.mxu0 %v1629
      %v1715 = vpop.f32.mrf.mxu0
      %v1716 = vadd.f32 0.0, %v1715
      %v1717 = vpop.f32.mrf.mxu0
      %v1718 = vadd.f32 0.0, %v1717
      %1719 = vdwg.mxu0
      %v1720 = vadd.f32 %v1563, %v1641
      %v1721 = vadd.f32 %v1564, %v1643
      %v1722 = vadd.f32 %v1565, %v1646
      %v1723 = vadd.f32 %v1566, %v1648
      %v1724 = vadd.f32 %v1567, %v1651
      %v1725 = vadd.f32 %v1568, %v1653
      %v1726 = vadd.f32 %v1569, %v1656
      %v1727 = vadd.f32 %v1570, %v1658
      %v1728 = vadd.f32 %v1571, %v1661
      %v1729 = vadd.f32 %v1572, %v1663
      %v1730 = vadd.f32 %v1573, %v1666
      %v1731 = vadd.f32 %v1574, %v1668
      %v1732 = vadd.f32 %v1575, %v1671
      %v1733 = vadd.f32 %v1576, %v1673
      %v1734 = vadd.f32 %v1577, %v1676
      %v1735 = vadd.f32 %v1578, %v1678
      %v1736 = vadd.f32 %v1579, %v1681
      %v1737 = vadd.f32 %v1580, %v1683
      %v1738 = vadd.f32 %v1581, %v1686
      %v1739 = vadd.f32 %v1582, %v1688
      %v1740 = vadd.f32 %v1583, %v1691
      %v1741 = vadd.f32 %v1584, %v1693
      %v1742 = vadd.f32 %v1585, %v1696
      %v1743 = vadd.f32 %v1586, %v1698
      %v1744 = vadd.f32 %v1587, %v1701
      %v1745 = vadd.f32 %v1588, %v1703
      %v1746 = vadd.f32 %v1589, %v1706
      %v1747 = vadd.f32 %v1590, %v1708
      %v1748 = vadd.f32 %v1591, %v1711
      %v1749 = vadd.f32 %v1592, %v1713
      %v1750 = vadd.f32 %v1593, %v1716
      %v1751 = vadd.f32 %v1594, %v1718
      %v1752 = vrot.slane %v1448, 2
      %v1753 = vsel %vm1233, %v1263, %v1752
      %v1754 = vrot.slane %v1449, 2
      %v1755 = vsel %vm1233, %v1752, %v1754
      %v1760 = vunpack.c.l.b16 %v245
      %v1761 = vunpack.c.l.b16 %v246
      %v1762 = vunpack.c.l.b16 %v247
      %v1763 = vunpack.c.l.b16 %v248
      %v1764 = vpack.c.b16 %v1761, %v1760
      %v1765 = vpack.c.b16 %v1763, %v1762
      %v1769 = vsel %vm479, %v1753, 0
      %v1772 = vsel %vm479, %v1755, 0
      %1774 = vmatpush.bf16.msra.mxu0 0
      %1775 = vmatpush.bf16.msra.mxu0 0
      %1776 = vmatpush.bf16.msra.mxu0 0
      %1777 = vmatpush.bf16.msra.mxu0 0
      %1778 = vmatpush.bf16.msra.mxu0 0
      %1779 = vmatpush.bf16.msra.mxu0 0
      %1780 = vmatpush.bf16.msra.mxu0 %v1765
      %1781 = vmatpush.bf16.msra.mxu0 %v1764
      %1782 = vmatmul.bf16.gmra.mxu0 %v1283
      %v1783 = vpop.f32.mrf.mxu0
      %v1784 = vadd.f32 0.0, %v1783
      %v1785 = vpop.f32.mrf.mxu0
      %v1786 = vadd.f32 0.0, %v1785
      %1787 = vmatmul.bf16.gmra.mxu0 %v1286
      %v1788 = vpop.f32.mrf.mxu0
      %v1789 = vadd.f32 0.0, %v1788
      %v1790 = vpop.f32.mrf.mxu0
      %v1791 = vadd.f32 0.0, %v1790
      %1792 = vmatmul.bf16.gmra.mxu0 %v1289
      %v1793 = vpop.f32.mrf.mxu0
      %v1794 = vadd.f32 0.0, %v1793
      %v1795 = vpop.f32.mrf.mxu0
      %v1796 = vadd.f32 0.0, %v1795
      %1797 = vmatmul.bf16.gmra.mxu0 %v1292
      %v1798 = vpop.f32.mrf.mxu0
      %v1799 = vadd.f32 0.0, %v1798
      %v1800 = vpop.f32.mrf.mxu0
      %v1801 = vadd.f32 0.0, %v1800
      %1802 = vmatmul.bf16.gmra.mxu0 %v1295
      %v1803 = vpop.f32.mrf.mxu0
      %v1804 = vadd.f32 0.0, %v1803
      %v1805 = vpop.f32.mrf.mxu0
      %v1806 = vadd.f32 0.0, %v1805
      %1807 = vmatmul.bf16.gmra.mxu0 %v1298
      %v1808 = vpop.f32.mrf.mxu0
      %v1809 = vadd.f32 0.0, %v1808
      %v1810 = vpop.f32.mrf.mxu0
      %v1811 = vadd.f32 0.0, %v1810
      %1812 = vmatmul.bf16.gmra.mxu0 %v1301
      %v1813 = vpop.f32.mrf.mxu0
      %v1814 = vadd.f32 0.0, %v1813
      %v1815 = vpop.f32.mrf.mxu0
      %v1816 = vadd.f32 0.0, %v1815
      %1817 = vmatmul.bf16.gmra.mxu0 %v1304
      %v1818 = vpop.f32.mrf.mxu0
      %v1819 = vadd.f32 0.0, %v1818
      %v1820 = vpop.f32.mrf.mxu0
      %v1821 = vadd.f32 0.0, %v1820
      %1822 = vmatmul.bf16.gmra.mxu0 %v1307
      %v1823 = vpop.f32.mrf.mxu0
      %v1824 = vadd.f32 0.0, %v1823
      %v1825 = vpop.f32.mrf.mxu0
      %v1826 = vadd.f32 0.0, %v1825
      %1827 = vmatmul.bf16.gmra.mxu0 %v1310
      %v1828 = vpop.f32.mrf.mxu0
      %v1829 = vadd.f32 0.0, %v1828
      %v1830 = vpop.f32.mrf.mxu0
      %v1831 = vadd.f32 0.0, %v1830
      %1832 = vmatmul.bf16.gmra.mxu0 %v1313
      %v1833 = vpop.f32.mrf.mxu0
      %v1834 = vadd.f32 0.0, %v1833
      %v1835 = vpop.f32.mrf.mxu0
      %v1836 = vadd.f32 0.0, %v1835
      %1837 = vmatmul.bf16.gmra.mxu0 %v1316
      %v1838 = vpop.f32.mrf.mxu0
      %v1839 = vadd.f32 0.0, %v1838
      %v1840 = vpop.f32.mrf.mxu0
      %v1841 = vadd.f32 0.0, %v1840
      %1842 = vmatmul.bf16.gmra.mxu0 %v1319
      %v1843 = vpop.f32.mrf.mxu0
      %v1844 = vadd.f32 0.0, %v1843
      %v1845 = vpop.f32.mrf.mxu0
      %v1846 = vadd.f32 0.0, %v1845
      %1847 = vmatmul.bf16.gmra.mxu0 %v1322
      %v1848 = vpop.f32.mrf.mxu0
      %v1849 = vadd.f32 0.0, %v1848
      %v1850 = vpop.f32.mrf.mxu0
      %v1851 = vadd.f32 0.0, %v1850
      %1852 = vmatmul.bf16.gmra.mxu0 %v1769
      %v1853 = vpop.f32.mrf.mxu0
      %v1854 = vadd.f32 0.0, %v1853
      %v1855 = vpop.f32.mrf.mxu0
      %v1856 = vadd.f32 0.0, %v1855
      %1857 = vmatmul.bf16.gmra.mxu0 %v1772
      %v1858 = vpop.f32.mrf.mxu0
      %v1859 = vadd.f32 0.0, %v1858
      %v1860 = vpop.f32.mrf.mxu0
      %v1861 = vadd.f32 0.0, %v1860
      %1862 = vdwg.mxu0
      %v1863 = vadd.f32 %v1720, %v1784
      %v1864 = vadd.f32 %v1721, %v1786
      %v1865 = vadd.f32 %v1722, %v1789
      %v1866 = vadd.f32 %v1723, %v1791
      %v1867 = vadd.f32 %v1724, %v1794
      %v1868 = vadd.f32 %v1725, %v1796
      %v1869 = vadd.f32 %v1726, %v1799
      %v1870 = vadd.f32 %v1727, %v1801
      %v1871 = vadd.f32 %v1728, %v1804
      %v1872 = vadd.f32 %v1729, %v1806
      %v1873 = vadd.f32 %v1730, %v1809
      %v1874 = vadd.f32 %v1731, %v1811
      %v1875 = vadd.f32 %v1732, %v1814
      %v1876 = vadd.f32 %v1733, %v1816
      %v1877 = vadd.f32 %v1734, %v1819
      %v1878 = vadd.f32 %v1735, %v1821
      %v1879 = vadd.f32 %v1736, %v1824
      %v1880 = vadd.f32 %v1737, %v1826
      %v1881 = vadd.f32 %v1738, %v1829
      %v1882 = vadd.f32 %v1739, %v1831
      %v1883 = vadd.f32 %v1740, %v1834
      %v1884 = vadd.f32 %v1741, %v1836
      %v1885 = vadd.f32 %v1742, %v1839
      %v1886 = vadd.f32 %v1743, %v1841
      %v1887 = vadd.f32 %v1744, %v1844
      %v1888 = vadd.f32 %v1745, %v1846
      %v1889 = vadd.f32 %v1746, %v1849
      %v1890 = vadd.f32 %v1747, %v1851
      %v1891 = vadd.f32 %v1748, %v1854
      %v1892 = vadd.f32 %v1749, %v1856
      %v1893 = vadd.f32 %v1750, %v1859
      %v1894 = vadd.f32 %v1751, %v1861
      %vm1895 = vsmask.f32 5376
      %v1896 = vrot.slane %v347, 2
      %v1897 = vrot.slane %v343, 3
      %v1898 = vor.u32 %v1896, %v1897
      %v1899 = vrot.slane %v355, 2
      %v1900 = vrot.slane %v351, 3
      %v1901 = vor.u32 %v1899, %v1900
      %v1902 = vsel %vm1895, %v1898, %v1901
      %v1903 = vrot.slane %v363, 2
      %v1904 = vrot.slane %v359, 3
      %v1905 = vor.u32 %v1903, %v1904
      %v1906 = vsel %vm1895, %v1901, %v1905
      %v1907 = vrot.slane %v371, 2
      %v1908 = vrot.slane %v367, 3
      %v1909 = vor.u32 %v1907, %v1908
      %v1910 = vsel %vm1895, %v1905, %v1909
      %v1911 = vrot.slane %v379, 2
      %v1912 = vrot.slane %v375, 3
      %v1913 = vor.u32 %v1911, %v1912
      %v1914 = vsel %vm1895, %v1909, %v1913
      %v1915 = vrot.slane %v387, 2
      %v1916 = vrot.slane %v383, 3
      %v1917 = vor.u32 %v1915, %v1916
      %v1918 = vsel %vm1895, %v1913, %v1917
      %v1919 = vrot.slane %v395, 2
      %v1920 = vrot.slane %v391, 3
      %v1921 = vor.u32 %v1919, %v1920
      %v1922 = vsel %vm1895, %v1917, %v1921
      %v1923 = vrot.slane %v403, 2
      %v1924 = vrot.slane %v399, 3
      %v1925 = vor.u32 %v1923, %v1924
      %v1926 = vsel %vm1895, %v1921, %v1925
      %v1927 = vrot.slane %v411, 2
      %v1928 = vrot.slane %v407, 3
      %v1929 = vor.u32 %v1927, %v1928
      %v1930 = vsel %vm1895, %v1925, %v1929
      %v1931 = vrot.slane %v419, 2
      %v1932 = vrot.slane %v415, 3
      %v1933 = vor.u32 %v1931, %v1932
      %v1934 = vsel %vm1895, %v1929, %v1933
      %v1935 = vrot.slane %v427, 2
      %v1936 = vrot.slane %v423, 3
      %v1937 = vor.u32 %v1935, %v1936
      %v1938 = vsel %vm1895, %v1933, %v1937
      %v1939 = vrot.slane %v435, 2
      %v1940 = vrot.slane %v431, 3
      %v1941 = vor.u32 %v1939, %v1940
      %v1942 = vsel %vm1895, %v1937, %v1941
      %v1943 = vrot.slane %v443, 2
      %v1944 = vrot.slane %v439, 3
      %v1945 = vor.u32 %v1943, %v1944
      %v1946 = vsel %vm1895, %v1941, %v1945
      %v1947 = vrot.slane %v451, 2
      %v1948 = vrot.slane %v447, 3
      %v1949 = vor.u32 %v1947, %v1948
      %v1950 = vsel %vm1895, %v1945, %v1949
      %v1951 = vrot.slane %v459, 2
      %v1952 = vrot.slane %v455, 3
      %v1953 = vor.u32 %v1951, %v1952
      %v1954 = vsel %vm1895, %v1949, %v1953
      %v1955 = vrot.slane %v1596, 2
      %v1956 = vrot.slane %v1599, 3
      %v1957 = vor.u32 %v1955, %v1956
      %v1958 = vsel %vm1895, %v1953, %v1957
      %v1959 = vrot.slane %v1605, 2
      %v1960 = vrot.slane %v1608, 3
      %v1961 = vor.u32 %v1959, %v1960
      %v1962 = vsel %vm1895, %v1957, %v1961
      %v1967 = vunpack.c.l.b16 %v249
      %v1968 = vunpack.c.l.b16 %v250
      %v1969 = vunpack.c.l.b16 %v251
      %v1970 = vunpack.c.l.b16 %v252
      %v1971 = vpack.c.b16 %v1968, %v1967
      %v1972 = vpack.c.b16 %v1970, %v1969
      %v1976 = vsel %vm479, %v1902, 0
      %v1979 = vsel %vm479, %v1906, 0
      %v1982 = vsel %vm479, %v1910, 0
      %v1985 = vsel %vm479, %v1914, 0
      %v1988 = vsel %vm479, %v1918, 0
      %v1991 = vsel %vm479, %v1922, 0
      %v1994 = vsel %vm479, %v1926, 0
      %v1997 = vsel %vm479, %v1930, 0
      %v2000 = vsel %vm479, %v1934, 0
      %v2003 = vsel %vm479, %v1938, 0
      %v2006 = vsel %vm479, %v1942, 0
      %v2009 = vsel %vm479, %v1946, 0
      %v2012 = vsel %vm479, %v1950, 0
      %v2015 = vsel %vm479, %v1954, 0
      %v2018 = vsel %vm479, %v1958, 0
      %v2021 = vsel %vm479, %v1962, 0
      %2023 = vmatpush.bf16.msra.mxu0 0
      %2024 = vmatpush.bf16.msra.mxu0 0
      %2025 = vmatpush.bf16.msra.mxu0 0
      %2026 = vmatpush.bf16.msra.mxu0 0
      %2027 = vmatpush.bf16.msra.mxu0 0
      %2028 = vmatpush.bf16.msra.mxu0 0
      %2029 = vmatpush.bf16.msra.mxu0 %v1972
      %2030 = vmatpush.bf16.msra.mxu0 %v1971
      %2031 = vmatmul.bf16.gmra.mxu0 %v1976
      %v2032 = vpop.f32.mrf.mxu0
      %v2033 = vadd.f32 0.0, %v2032
      %v2034 = vpop.f32.mrf.mxu0
      %v2035 = vadd.f32 0.0, %v2034
      %2036 = vmatmul.bf16.gmra.mxu0 %v1979
      %v2037 = vpop.f32.mrf.mxu0
      %v2038 = vadd.f32 0.0, %v2037
      %v2039 = vpop.f32.mrf.mxu0
      %v2040 = vadd.f32 0.0, %v2039
      %2041 = vmatmul.bf16.gmra.mxu0 %v1982
      %v2042 = vpop.f32.mrf.mxu0
      %v2043 = vadd.f32 0.0, %v2042
      %v2044 = vpop.f32.mrf.mxu0
      %v2045 = vadd.f32 0.0, %v2044
      %2046 = vmatmul.bf16.gmra.mxu0 %v1985
      %v2047 = vpop.f32.mrf.mxu0
      %v2048 = vadd.f32 0.0, %v2047
      %v2049 = vpop.f32.mrf.mxu0
      %v2050 = vadd.f32 0.0, %v2049
      %2051 = vmatmul.bf16.gmra.mxu0 %v1988
      %v2052 = vpop.f32.mrf.mxu0
      %v2053 = vadd.f32 0.0, %v2052
      %v2054 = vpop.f32.mrf.mxu0
      %v2055 = vadd.f32 0.0, %v2054
      %2056 = vmatmul.bf16.gmra.mxu0 %v1991
      %v2057 = vpop.f32.mrf.mxu0
      %v2058 = vadd.f32 0.0, %v2057
      %v2059 = vpop.f32.mrf.mxu0
      %v2060 = vadd.f32 0.0, %v2059
      %2061 = vmatmul.bf16.gmra.mxu0 %v1994
      %v2062 = vpop.f32.mrf.mxu0
      %v2063 = vadd.f32 0.0, %v2062
      %v2064 = vpop.f32.mrf.mxu0
      %v2065 = vadd.f32 0.0, %v2064
      %2066 = vmatmul.bf16.gmra.mxu0 %v1997
      %v2067 = vpop.f32.mrf.mxu0
      %v2068 = vadd.f32 0.0, %v2067
      %v2069 = vpop.f32.mrf.mxu0
      %v2070 = vadd.f32 0.0, %v2069
      %2071 = vmatmul.bf16.gmra.mxu0 %v2000
      %v2072 = vpop.f32.mrf.mxu0
      %v2073 = vadd.f32 0.0, %v2072
      %v2074 = vpop.f32.mrf.mxu0
      %v2075 = vadd.f32 0.0, %v2074
      %2076 = vmatmul.bf16.gmra.mxu0 %v2003
      %v2077 = vpop.f32.mrf.mxu0
      %v2078 = vadd.f32 0.0, %v2077
      %v2079 = vpop.f32.mrf.mxu0
      %v2080 = vadd.f32 0.0, %v2079
      %2081 = vmatmul.bf16.gmra.mxu0 %v2006
      %v2082 = vpop.f32.mrf.mxu0
      %v2083 = vadd.f32 0.0, %v2082
      %v2084 = vpop.f32.mrf.mxu0
      %v2085 = vadd.f32 0.0, %v2084
      %2086 = vmatmul.bf16.gmra.mxu0 %v2009
      %v2087 = vpop.f32.mrf.mxu0
      %v2088 = vadd.f32 0.0, %v2087
      %v2089 = vpop.f32.mrf.mxu0
      %v2090 = vadd.f32 0.0, %v2089
      %2091 = vmatmul.bf16.gmra.mxu0 %v2012
      %v2092 = vpop.f32.mrf.mxu0
      %v2093 = vadd.f32 0.0, %v2092
      %v2094 = vpop.f32.mrf.mxu0
      %v2095 = vadd.f32 0.0, %v2094
      %2096 = vmatmul.bf16.gmra.mxu0 %v2015
      %v2097 = vpop.f32.mrf.mxu0
      %v2098 = vadd.f32 0.0, %v2097
      %v2099 = vpop.f32.mrf.mxu0
      %v2100 = vadd.f32 0.0, %v2099
      %2101 = vmatmul.bf16.gmra.mxu0 %v2018
      %v2102 = vpop.f32.mrf.mxu0
      %v2103 = vadd.f32 0.0, %v2102
      %v2104 = vpop.f32.mrf.mxu0
      %v2105 = vadd.f32 0.0, %v2104
      %2106 = vmatmul.bf16.gmra.mxu0 %v2021
      %v2107 = vpop.f32.mrf.mxu0
      %v2108 = vadd.f32 0.0, %v2107
      %v2109 = vpop.f32.mrf.mxu0
      %v2110 = vadd.f32 0.0, %v2109
      %2111 = vdwg.mxu0
      %v2112 = vadd.f32 %v1863, %v2033
      %v2113 = vadd.f32 %v1864, %v2035
      %v2114 = vadd.f32 %v1865, %v2038
      %v2115 = vadd.f32 %v1866, %v2040
      %v2116 = vadd.f32 %v1867, %v2043
      %v2117 = vadd.f32 %v1868, %v2045
      %v2118 = vadd.f32 %v1869, %v2048
      %v2119 = vadd.f32 %v1870, %v2050
      %v2120 = vadd.f32 %v1871, %v2053
      %v2121 = vadd.f32 %v1872, %v2055
      %v2122 = vadd.f32 %v1873, %v2058
      %v2123 = vadd.f32 %v1874, %v2060
      %v2124 = vadd.f32 %v1875, %v2063
      %v2125 = vadd.f32 %v1876, %v2065
      %v2126 = vadd.f32 %v1877, %v2068
      %v2127 = vadd.f32 %v1878, %v2070
      %v2128 = vadd.f32 %v1879, %v2073
      %v2129 = vadd.f32 %v1880, %v2075
      %v2130 = vadd.f32 %v1881, %v2078
      %v2131 = vadd.f32 %v1882, %v2080
      %v2132 = vadd.f32 %v1883, %v2083
      %v2133 = vadd.f32 %v1884, %v2085
      %v2134 = vadd.f32 %v1885, %v2088
      %v2135 = vadd.f32 %v1886, %v2090
      %v2136 = vadd.f32 %v1887, %v2093
      %v2137 = vadd.f32 %v1888, %v2095
      %v2138 = vadd.f32 %v1889, %v2098
      %v2139 = vadd.f32 %v1890, %v2100
      %v2140 = vadd.f32 %v1891, %v2103
      %v2141 = vadd.f32 %v1892, %v2105
      %v2142 = vadd.f32 %v1893, %v2108
      %v2143 = vadd.f32 %v1894, %v2110
      %vm2144 = vcmask 1044480
      %v2145 = vrot.slane %v318, 3
      %v2146 = vrot.slane %v319, 3
      %v2147 = vsel %vm2144, %v2145, %v2146
      %v2148 = vrot.slane %v320, 3
      %v2149 = vsel %vm2144, %v2146, %v2148
      %v2150 = vrot.slane %v321, 3
      %v2151 = vsel %vm2144, %v2148, %v2150
      %v2152 = vrot.slane %v322, 3
      %v2153 = vsel %vm2144, %v2150, %v2152
      %v2154 = vrot.slane %v323, 3
      %v2155 = vsel %vm2144, %v2152, %v2154
      %v2156 = vrot.slane %v324, 3
      %v2157 = vsel %vm2144, %v2154, %v2156
      %v2158 = vrot.slane %v325, 3
      %v2159 = vsel %vm2144, %v2156, %v2158
      %v2160 = vrot.slane %v326, 3
      %v2161 = vsel %vm2144, %v2158, %v2160
      %v2162 = vrot.slane %v327, 3
      %v2163 = vsel %vm2144, %v2160, %v2162
      %v2164 = vrot.slane %v328, 3
      %v2165 = vsel %vm2144, %v2162, %v2164
      %v2166 = vrot.slane %v329, 3
      %v2167 = vsel %vm2144, %v2164, %v2166
      %v2168 = vrot.slane %v330, 3
      %v2169 = vsel %vm2144, %v2166, %v2168
      %v2170 = vrot.slane %v331, 3
      %v2171 = vsel %vm2144, %v2168, %v2170
      %v2172 = vrot.slane %v332, 3
      %v2173 = vsel %vm2144, %v2170, %v2172
      %v2174 = vrot.slane %v1448, 3
      %v2175 = vsel %vm2144, %v2172, %v2174
      %v2176 = vrot.slane %v1449, 3
      %v2177 = vsel %vm2144, %v2174, %v2176
      %v2182 = vunpack.c.l.b16 %v253
      %v2183 = vunpack.c.l.b16 %v254
      %v2184 = vunpack.c.l.b16 %v255
      %v2185 = vunpack.c.l.b16 %v256
      %v2186 = vpack.c.b16 %v2183, %v2182
      %v2187 = vpack.c.b16 %v2185, %v2184
      %v2191 = vsel %vm479, %v2147, 0
      %v2194 = vsel %vm479, %v2149, 0
      %v2197 = vsel %vm479, %v2151, 0
      %v2200 = vsel %vm479, %v2153, 0
      %v2203 = vsel %vm479, %v2155, 0
      %v2206 = vsel %vm479, %v2157, 0
      %v2209 = vsel %vm479, %v2159, 0
      %v2212 = vsel %vm479, %v2161, 0
      %v2215 = vsel %vm479, %v2163, 0
      %v2218 = vsel %vm479, %v2165, 0
      %v2221 = vsel %vm479, %v2167, 0
      %v2224 = vsel %vm479, %v2169, 0
      %v2227 = vsel %vm479, %v2171, 0
      %v2230 = vsel %vm479, %v2173, 0
      %v2233 = vsel %vm479, %v2175, 0
      %v2236 = vsel %vm479, %v2177, 0
      %2238 = vmatpush.bf16.msra.mxu0 0
      %2239 = vmatpush.bf16.msra.mxu0 0
      %2240 = vmatpush.bf16.msra.mxu0 0
      %2241 = vmatpush.bf16.msra.mxu0 0
      %2242 = vmatpush.bf16.msra.mxu0 0
      %2243 = vmatpush.bf16.msra.mxu0 0
      %2244 = vmatpush.bf16.msra.mxu0 %v2187
      %2245 = vmatpush.bf16.msra.mxu0 %v2186
      %2246 = vmatmul.bf16.gmra.mxu0 %v2191
      %v2247 = vpop.f32.mrf.mxu0
      %v2248 = vadd.f32 0.0, %v2247
      %v2249 = vpop.f32.mrf.mxu0
      %v2250 = vadd.f32 0.0, %v2249
      %2251 = vmatmul.bf16.gmra.mxu0 %v2194
      %v2252 = vpop.f32.mrf.mxu0
      %v2253 = vadd.f32 0.0, %v2252
      %v2254 = vpop.f32.mrf.mxu0
      %v2255 = vadd.f32 0.0, %v2254
      %2256 = vmatmul.bf16.gmra.mxu0 %v2197
      %v2257 = vpop.f32.mrf.mxu0
      %v2258 = vadd.f32 0.0, %v2257
      %v2259 = vpop.f32.mrf.mxu0
      %v2260 = vadd.f32 0.0, %v2259
      %2261 = vmatmul.bf16.gmra.mxu0 %v2200
      %v2262 = vpop.f32.mrf.mxu0
      %v2263 = vadd.f32 0.0, %v2262
      %v2264 = vpop.f32.mrf.mxu0
      %v2265 = vadd.f32 0.0, %v2264
      %2266 = vmatmul.bf16.gmra.mxu0 %v2203
      %v2267 = vpop.f32.mrf.mxu0
      %v2268 = vadd.f32 0.0, %v2267
      %v2269 = vpop.f32.mrf.mxu0
      %v2270 = vadd.f32 0.0, %v2269
      %2271 = vmatmul.bf16.gmra.mxu0 %v2206
      %v2272 = vpop.f32.mrf.mxu0
      %v2273 = vadd.f32 0.0, %v2272
      %v2274 = vpop.f32.mrf.mxu0
      %v2275 = vadd.f32 0.0, %v2274
      %2276 = vmatmul.bf16.gmra.mxu0 %v2209
      %v2277 = vpop.f32.mrf.mxu0
      %v2278 = vadd.f32 0.0, %v2277
      %v2279 = vpop.f32.mrf.mxu0
      %v2280 = vadd.f32 0.0, %v2279
      %2281 = vmatmul.bf16.gmra.mxu0 %v2212
      %v2282 = vpop.f32.mrf.mxu0
      %v2283 = vadd.f32 0.0, %v2282
      %v2284 = vpop.f32.mrf.mxu0
      %v2285 = vadd.f32 0.0, %v2284
      %2286 = vmatmul.bf16.gmra.mxu0 %v2215
      %v2287 = vpop.f32.mrf.mxu0
      %v2288 = vadd.f32 0.0, %v2287
      %v2289 = vpop.f32.mrf.mxu0
      %v2290 = vadd.f32 0.0, %v2289
      %2291 = vmatmul.bf16.gmra.mxu0 %v2218
      %v2292 = vpop.f32.mrf.mxu0
      %v2293 = vadd.f32 0.0, %v2292
      %v2294 = vpop.f32.mrf.mxu0
      %v2295 = vadd.f32 0.0, %v2294
      %2296 = vmatmul.bf16.gmra.mxu0 %v2221
      %v2297 = vpop.f32.mrf.mxu0
      %v2298 = vadd.f32 0.0, %v2297
      %v2299 = vpop.f32.mrf.mxu0
      %v2300 = vadd.f32 0.0, %v2299
      %2301 = vmatmul.bf16.gmra.mxu0 %v2224
      %v2302 = vpop.f32.mrf.mxu0
      %v2303 = vadd.f32 0.0, %v2302
      %v2304 = vpop.f32.mrf.mxu0
      %v2305 = vadd.f32 0.0, %v2304
      %2306 = vmatmul.bf16.gmra.mxu0 %v2227
      %v2307 = vpop.f32.mrf.mxu0
      %v2308 = vadd.f32 0.0, %v2307
      %v2309 = vpop.f32.mrf.mxu0
      %v2310 = vadd.f32 0.0, %v2309
      %2311 = vmatmul.bf16.gmra.mxu0 %v2230
      %v2312 = vpop.f32.mrf.mxu0
      %v2313 = vadd.f32 0.0, %v2312
      %v2314 = vpop.f32.mrf.mxu0
      %v2315 = vadd.f32 0.0, %v2314
      %2316 = vmatmul.bf16.gmra.mxu0 %v2233
      %v2317 = vpop.f32.mrf.mxu0
      %v2318 = vadd.f32 0.0, %v2317
      %v2319 = vpop.f32.mrf.mxu0
      %v2320 = vadd.f32 0.0, %v2319
      %2321 = vmatmul.bf16.gmra.mxu0 %v2236
      %v2322 = vpop.f32.mrf.mxu0
      %v2323 = vadd.f32 0.0, %v2322
      %v2324 = vpop.f32.mrf.mxu0
      %v2325 = vadd.f32 0.0, %v2324
      %2326 = vdwg.mxu0
      %v2327 = vadd.f32 %v2112, %v2248
      %v2328 = vadd.f32 %v2113, %v2250
      %v2329 = vadd.f32 %v2114, %v2253
      %v2330 = vadd.f32 %v2115, %v2255
      %v2331 = vadd.f32 %v2116, %v2258
      %v2332 = vadd.f32 %v2117, %v2260
      %v2333 = vadd.f32 %v2118, %v2263
      %v2334 = vadd.f32 %v2119, %v2265
      %v2335 = vadd.f32 %v2120, %v2268
      %v2336 = vadd.f32 %v2121, %v2270
      %v2337 = vadd.f32 %v2122, %v2273
      %v2338 = vadd.f32 %v2123, %v2275
      %v2339 = vadd.f32 %v2124, %v2278
      %v2340 = vadd.f32 %v2125, %v2280
      %v2341 = vadd.f32 %v2126, %v2283
      %v2342 = vadd.f32 %v2127, %v2285
      %v2343 = vadd.f32 %v2128, %v2288
      %v2344 = vadd.f32 %v2129, %v2290
      %v2345 = vadd.f32 %v2130, %v2293
      %v2346 = vadd.f32 %v2131, %v2295
      %v2347 = vadd.f32 %v2132, %v2298
      %v2348 = vadd.f32 %v2133, %v2300
      %v2349 = vadd.f32 %v2134, %v2303
      %v2350 = vadd.f32 %v2135, %v2305
      %v2351 = vadd.f32 %v2136, %v2308
      %v2352 = vadd.f32 %v2137, %v2310
      %v2353 = vadd.f32 %v2138, %v2313
      %v2354 = vadd.f32 %v2139, %v2315
      %v2355 = vadd.f32 %v2140, %v2318
      %v2356 = vadd.f32 %v2141, %v2320
      %v2357 = vadd.f32 %v2142, %v2323
      %v2358 = vadd.f32 %v2143, %v2325
      %v2359 = vpack.c.bf16 %v210, %v209
      %v2360 = vpack.c.bf16 %v211, %v211
      %v2363 = vrot.slane %v2359, 2
      %v2364 = vsel %vm1233, %v1752, %v2363
      %v2365 = vrot.slane %v2360, 2
      %v2366 = vsel %vm1233, %v2363, %v2365
      %v2371 = vunpack.c.l.b16 %v257
      %v2372 = vunpack.c.l.b16 %v258
      %v2373 = vunpack.c.l.b16 %v259
      %v2374 = vunpack.c.l.b16 %v260
      %v2375 = vpack.c.b16 %v2372, %v2371
      %v2376 = vpack.c.b16 %v2374, %v2373
      %v2380 = vsel %vm479, %v2364, 0
      %v2383 = vsel %vm479, %v2366, 0
      %2385 = vmatpush.bf16.msra.mxu0 0
      %2386 = vmatpush.bf16.msra.mxu0 0
      %2387 = vmatpush.bf16.msra.mxu0 0
      %2388 = vmatpush.bf16.msra.mxu0 0
      %2389 = vmatpush.bf16.msra.mxu0 0
      %2390 = vmatpush.bf16.msra.mxu0 0
      %2391 = vmatpush.bf16.msra.mxu0 %v2376
      %2392 = vmatpush.bf16.msra.mxu0 %v2375
      %2393 = vmatmul.bf16.gmra.mxu0 %v1286
      %v2394 = vpop.f32.mrf.mxu0
      %v2395 = vadd.f32 0.0, %v2394
      %v2396 = vpop.f32.mrf.mxu0
      %v2397 = vadd.f32 0.0, %v2396
      %2398 = vmatmul.bf16.gmra.mxu0 %v1289
      %v2399 = vpop.f32.mrf.mxu0
      %v2400 = vadd.f32 0.0, %v2399
      %v2401 = vpop.f32.mrf.mxu0
      %v2402 = vadd.f32 0.0, %v2401
      %2403 = vmatmul.bf16.gmra.mxu0 %v1292
      %v2404 = vpop.f32.mrf.mxu0
      %v2405 = vadd.f32 0.0, %v2404
      %v2406 = vpop.f32.mrf.mxu0
      %v2407 = vadd.f32 0.0, %v2406
      %2408 = vmatmul.bf16.gmra.mxu0 %v1295
      %v2409 = vpop.f32.mrf.mxu0
      %v2410 = vadd.f32 0.0, %v2409
      %v2411 = vpop.f32.mrf.mxu0
      %v2412 = vadd.f32 0.0, %v2411
      %2413 = vmatmul.bf16.gmra.mxu0 %v1298
      %v2414 = vpop.f32.mrf.mxu0
      %v2415 = vadd.f32 0.0, %v2414
      %v2416 = vpop.f32.mrf.mxu0
      %v2417 = vadd.f32 0.0, %v2416
      %2418 = vmatmul.bf16.gmra.mxu0 %v1301
      %v2419 = vpop.f32.mrf.mxu0
      %v2420 = vadd.f32 0.0, %v2419
      %v2421 = vpop.f32.mrf.mxu0
      %v2422 = vadd.f32 0.0, %v2421
      %2423 = vmatmul.bf16.gmra.mxu0 %v1304
      %v2424 = vpop.f32.mrf.mxu0
      %v2425 = vadd.f32 0.0, %v2424
      %v2426 = vpop.f32.mrf.mxu0
      %v2427 = vadd.f32 0.0, %v2426
      %2428 = vmatmul.bf16.gmra.mxu0 %v1307
      %v2429 = vpop.f32.mrf.mxu0
      %v2430 = vadd.f32 0.0, %v2429
      %v2431 = vpop.f32.mrf.mxu0
      %v2432 = vadd.f32 0.0, %v2431
      %2433 = vmatmul.bf16.gmra.mxu0 %v1310
      %v2434 = vpop.f32.mrf.mxu0
      %v2435 = vadd.f32 0.0, %v2434
      %v2436 = vpop.f32.mrf.mxu0
      %v2437 = vadd.f32 0.0, %v2436
      %2438 = vmatmul.bf16.gmra.mxu0 %v1313
      %v2439 = vpop.f32.mrf.mxu0
      %v2440 = vadd.f32 0.0, %v2439
      %v2441 = vpop.f32.mrf.mxu0
      %v2442 = vadd.f32 0.0, %v2441
      %2443 = vmatmul.bf16.gmra.mxu0 %v1316
      %v2444 = vpop.f32.mrf.mxu0
      %v2445 = vadd.f32 0.0, %v2444
      %v2446 = vpop.f32.mrf.mxu0
      %v2447 = vadd.f32 0.0, %v2446
      %2448 = vmatmul.bf16.gmra.mxu0 %v1319
      %v2449 = vpop.f32.mrf.mxu0
      %v2450 = vadd.f32 0.0, %v2449
      %v2451 = vpop.f32.mrf.mxu0
      %v2452 = vadd.f32 0.0, %v2451
      %2453 = vmatmul.bf16.gmra.mxu0 %v1322
      %v2454 = vpop.f32.mrf.mxu0
      %v2455 = vadd.f32 0.0, %v2454
      %v2456 = vpop.f32.mrf.mxu0
      %v2457 = vadd.f32 0.0, %v2456
      %2458 = vmatmul.bf16.gmra.mxu0 %v1769
      %v2459 = vpop.f32.mrf.mxu0
      %v2460 = vadd.f32 0.0, %v2459
      %v2461 = vpop.f32.mrf.mxu0
      %v2462 = vadd.f32 0.0, %v2461
      %2463 = vmatmul.bf16.gmra.mxu0 %v2380
      %v2464 = vpop.f32.mrf.mxu0
      %v2465 = vadd.f32 0.0, %v2464
      %v2466 = vpop.f32.mrf.mxu0
      %v2467 = vadd.f32 0.0, %v2466
      %2468 = vmatmul.bf16.gmra.mxu0 %v2383
      %v2469 = vpop.f32.mrf.mxu0
      %v2470 = vadd.f32 0.0, %v2469
      %v2471 = vpop.f32.mrf.mxu0
      %v2472 = vadd.f32 0.0, %v2471
      %2473 = vdwg.mxu0
      %v2474 = vadd.f32 %v2327, %v2395
      %v2475 = vadd.f32 %v2328, %v2397
      %v2476 = vadd.f32 %v2329, %v2400
      %v2477 = vadd.f32 %v2330, %v2402
      %v2478 = vadd.f32 %v2331, %v2405
      %v2479 = vadd.f32 %v2332, %v2407
      %v2480 = vadd.f32 %v2333, %v2410
      %v2481 = vadd.f32 %v2334, %v2412
      %v2482 = vadd.f32 %v2335, %v2415
      %v2483 = vadd.f32 %v2336, %v2417
      %v2484 = vadd.f32 %v2337, %v2420
      %v2485 = vadd.f32 %v2338, %v2422
      %v2486 = vadd.f32 %v2339, %v2425
      %v2487 = vadd.f32 %v2340, %v2427
      %v2488 = vadd.f32 %v2341, %v2430
      %v2489 = vadd.f32 %v2342, %v2432
      %v2490 = vadd.f32 %v2343, %v2435
      %v2491 = vadd.f32 %v2344, %v2437
      %v2492 = vadd.f32 %v2345, %v2440
      %v2493 = vadd.f32 %v2346, %v2442
      %v2494 = vadd.f32 %v2347, %v2445
      %v2495 = vadd.f32 %v2348, %v2447
      %v2496 = vadd.f32 %v2349, %v2450
      %v2497 = vadd.f32 %v2350, %v2452
      %v2498 = vadd.f32 %v2351, %v2455
      %v2499 = vadd.f32 %v2352, %v2457
      %v2500 = vadd.f32 %v2353, %v2460
      %v2501 = vadd.f32 %v2354, %v2462
      %v2502 = vadd.f32 %v2355, %v2465
      %v2503 = vadd.f32 %v2356, %v2467
      %v2504 = vadd.f32 %v2357, %v2470
      %v2505 = vadd.f32 %v2358, %v2472
      %v2507 = vshrl.u32 %v2359, 16
      %v2509 = vrot.slane %v2507, 2
      %v2510 = vshll.u32 %v2359, 16
      %v2512 = vrot.slane %v2510, 3
      %v2513 = vor.u32 %v2509, %v2512
      %v2514 = vsel %vm1895, %v1957, %v2513
      %v2516 = vshrl.u32 %v2360, 16
      %v2518 = vrot.slane %v2516, 2
      %v2519 = vshll.u32 %v2360, 16
      %v2521 = vrot.slane %v2519, 3
      %v2522 = vor.u32 %v2518, %v2521
      %v2523 = vsel %vm1895, %v2513, %v2522
      %v2528 = vunpack.c.l.b16 %v261
      %v2529 = vunpack.c.l.b16 %v262
      %v2530 = vunpack.c.l.b16 %v263
      %v2531 = vunpack.c.l.b16 %v264
      %v2532 = vpack.c.b16 %v2529, %v2528
      %v2533 = vpack.c.b16 %v2531, %v2530
      %v2537 = vsel %vm479, %v2514, 0
      %v2540 = vsel %vm479, %v2523, 0
      %2542 = vmatpush.bf16.msra.mxu0 0
      %2543 = vmatpush.bf16.msra.mxu0 0
      %2544 = vmatpush.bf16.msra.mxu0 0
      %2545 = vmatpush.bf16.msra.mxu0 0
      %2546 = vmatpush.bf16.msra.mxu0 0
      %2547 = vmatpush.bf16.msra.mxu0 0
      %2548 = vmatpush.bf16.msra.mxu0 %v2533
      %2549 = vmatpush.bf16.msra.mxu0 %v2532
      %2550 = vmatmul.bf16.gmra.mxu0 %v1979
      %v2551 = vpop.f32.mrf.mxu0
      %v2552 = vadd.f32 0.0, %v2551
      %v2553 = vpop.f32.mrf.mxu0
      %v2554 = vadd.f32 0.0, %v2553
      %2555 = vmatmul.bf16.gmra.mxu0 %v1982
      %v2556 = vpop.f32.mrf.mxu0
      %v2557 = vadd.f32 0.0, %v2556
      %v2558 = vpop.f32.mrf.mxu0
      %v2559 = vadd.f32 0.0, %v2558
      %2560 = vmatmul.bf16.gmra.mxu0 %v1985
      %v2561 = vpop.f32.mrf.mxu0
      %v2562 = vadd.f32 0.0, %v2561
      %v2563 = vpop.f32.mrf.mxu0
      %v2564 = vadd.f32 0.0, %v2563
      %2565 = vmatmul.bf16.gmra.mxu0 %v1988
      %v2566 = vpop.f32.mrf.mxu0
      %v2567 = vadd.f32 0.0, %v2566
      %v2568 = vpop.f32.mrf.mxu0
      %v2569 = vadd.f32 0.0, %v2568
      %2570 = vmatmul.bf16.gmra.mxu0 %v1991
      %v2571 = vpop.f32.mrf.mxu0
      %v2572 = vadd.f32 0.0, %v2571
      %v2573 = vpop.f32.mrf.mxu0
      %v2574 = vadd.f32 0.0, %v2573
      %2575 = vmatmul.bf16.gmra.mxu0 %v1994
      %v2576 = vpop.f32.mrf.mxu0
      %v2577 = vadd.f32 0.0, %v2576
      %v2578 = vpop.f32.mrf.mxu0
      %v2579 = vadd.f32 0.0, %v2578
      %2580 = vmatmul.bf16.gmra.mxu0 %v1997
      %v2581 = vpop.f32.mrf.mxu0
      %v2582 = vadd.f32 0.0, %v2581
      %v2583 = vpop.f32.mrf.mxu0
      %v2584 = vadd.f32 0.0, %v2583
      %2585 = vmatmul.bf16.gmra.mxu0 %v2000
      %v2586 = vpop.f32.mrf.mxu0
      %v2587 = vadd.f32 0.0, %v2586
      %v2588 = vpop.f32.mrf.mxu0
      %v2589 = vadd.f32 0.0, %v2588
      %2590 = vmatmul.bf16.gmra.mxu0 %v2003
      %v2591 = vpop.f32.mrf.mxu0
      %v2592 = vadd.f32 0.0, %v2591
      %v2593 = vpop.f32.mrf.mxu0
      %v2594 = vadd.f32 0.0, %v2593
      %2595 = vmatmul.bf16.gmra.mxu0 %v2006
      %v2596 = vpop.f32.mrf.mxu0
      %v2597 = vadd.f32 0.0, %v2596
      %v2598 = vpop.f32.mrf.mxu0
      %v2599 = vadd.f32 0.0, %v2598
      %2600 = vmatmul.bf16.gmra.mxu0 %v2009
      %v2601 = vpop.f32.mrf.mxu0
      %v2602 = vadd.f32 0.0, %v2601
      %v2603 = vpop.f32.mrf.mxu0
      %v2604 = vadd.f32 0.0, %v2603
      %2605 = vmatmul.bf16.gmra.mxu0 %v2012
      %v2606 = vpop.f32.mrf.mxu0
      %v2607 = vadd.f32 0.0, %v2606
      %v2608 = vpop.f32.mrf.mxu0
      %v2609 = vadd.f32 0.0, %v2608
      %2610 = vmatmul.bf16.gmra.mxu0 %v2015
      %v2611 = vpop.f32.mrf.mxu0
      %v2612 = vadd.f32 0.0, %v2611
      %v2613 = vpop.f32.mrf.mxu0
      %v2614 = vadd.f32 0.0, %v2613
      %2615 = vmatmul.bf16.gmra.mxu0 %v2018
      %v2616 = vpop.f32.mrf.mxu0
      %v2617 = vadd.f32 0.0, %v2616
      %v2618 = vpop.f32.mrf.mxu0
      %v2619 = vadd.f32 0.0, %v2618
      %2620 = vmatmul.bf16.gmra.mxu0 %v2537
      %v2621 = vpop.f32.mrf.mxu0
      %v2622 = vadd.f32 0.0, %v2621
      %v2623 = vpop.f32.mrf.mxu0
      %v2624 = vadd.f32 0.0, %v2623
      %2625 = vmatmul.bf16.gmra.mxu0 %v2540
      %v2626 = vpop.f32.mrf.mxu0
      %v2627 = vadd.f32 0.0, %v2626
      %v2628 = vpop.f32.mrf.mxu0
      %v2629 = vadd.f32 0.0, %v2628
      %2630 = vdwg.mxu0
      %v2631 = vadd.f32 %v2474, %v2552
      %v2632 = vadd.f32 %v2475, %v2554
      %v2633 = vadd.f32 %v2476, %v2557
      %v2634 = vadd.f32 %v2477, %v2559
      %v2635 = vadd.f32 %v2478, %v2562
      %v2636 = vadd.f32 %v2479, %v2564
      %v2637 = vadd.f32 %v2480, %v2567
      %v2638 = vadd.f32 %v2481, %v2569
      %v2639 = vadd.f32 %v2482, %v2572
      %v2640 = vadd.f32 %v2483, %v2574
      %v2641 = vadd.f32 %v2484, %v2577
      %v2642 = vadd.f32 %v2485, %v2579
      %v2643 = vadd.f32 %v2486, %v2582
      %v2644 = vadd.f32 %v2487, %v2584
      %v2645 = vadd.f32 %v2488, %v2587
      %v2646 = vadd.f32 %v2489, %v2589
      %v2647 = vadd.f32 %v2490, %v2592
      %v2648 = vadd.f32 %v2491, %v2594
      %v2649 = vadd.f32 %v2492, %v2597
      %v2650 = vadd.f32 %v2493, %v2599
      %v2651 = vadd.f32 %v2494, %v2602
      %v2652 = vadd.f32 %v2495, %v2604
      %v2653 = vadd.f32 %v2496, %v2607
      %v2654 = vadd.f32 %v2497, %v2609
      %v2655 = vadd.f32 %v2498, %v2612
      %v2656 = vadd.f32 %v2499, %v2614
      %v2657 = vadd.f32 %v2500, %v2617
      %v2658 = vadd.f32 %v2501, %v2619
      %v2659 = vadd.f32 %v2502, %v2622
      %v2660 = vadd.f32 %v2503, %v2624
      %v2661 = vadd.f32 %v2504, %v2627
      %v2662 = vadd.f32 %v2505, %v2629
      %v2663 = vrot.slane %v2359, 3
      %v2664 = vsel %vm2144, %v2174, %v2663
      %v2665 = vrot.slane %v2360, 3
      %v2666 = vsel %vm2144, %v2663, %v2665
      %v2671 = vunpack.c.l.b16 %v265
      %v2672 = vunpack.c.l.b16 %v266
      %v2673 = vunpack.c.l.b16 %v267
      %v2674 = vunpack.c.l.b16 %v268
      %v2675 = vpack.c.b16 %v2672, %v2671
      %v2676 = vpack.c.b16 %v2674, %v2673
      %v2680 = vsel %vm479, %v2664, 0
      %v2683 = vsel %vm479, %v2666, 0
      %2685 = vmatpush.bf16.msra.mxu0 0
      %2686 = vmatpush.bf16.msra.mxu0 0
      %2687 = vmatpush.bf16.msra.mxu0 0
      %2688 = vmatpush.bf16.msra.mxu0 0
      %2689 = vmatpush.bf16.msra.mxu0 0
      %2690 = vmatpush.bf16.msra.mxu0 0
      %2691 = vmatpush.bf16.msra.mxu0 %v2676
      %2692 = vmatpush.bf16.msra.mxu0 %v2675
      %2693 = vmatmul.bf16.gmra.mxu0 %v2194
      %v2694 = vpop.f32.mrf.mxu0
      %v2695 = vadd.f32 0.0, %v2694
      %v2696 = vpop.f32.mrf.mxu0
      %v2697 = vadd.f32 0.0, %v2696
      %2698 = vmatmul.bf16.gmra.mxu0 %v2197
      %v2699 = vpop.f32.mrf.mxu0
      %v2700 = vadd.f32 0.0, %v2699
      %v2701 = vpop.f32.mrf.mxu0
      %v2702 = vadd.f32 0.0, %v2701
      %2703 = vmatmul.bf16.gmra.mxu0 %v2200
      %v2704 = vpop.f32.mrf.mxu0
      %v2705 = vadd.f32 0.0, %v2704
      %v2706 = vpop.f32.mrf.mxu0
      %v2707 = vadd.f32 0.0, %v2706
      %2708 = vmatmul.bf16.gmra.mxu0 %v2203
      %v2709 = vpop.f32.mrf.mxu0
      %v2710 = vadd.f32 0.0, %v2709
      %v2711 = vpop.f32.mrf.mxu0
      %v2712 = vadd.f32 0.0, %v2711
      %2713 = vmatmul.bf16.gmra.mxu0 %v2206
      %v2714 = vpop.f32.mrf.mxu0
      %v2715 = vadd.f32 0.0, %v2714
      %v2716 = vpop.f32.mrf.mxu0
      %v2717 = vadd.f32 0.0, %v2716
      %2718 = vmatmul.bf16.gmra.mxu0 %v2209
      %v2719 = vpop.f32.mrf.mxu0
      %v2720 = vadd.f32 0.0, %v2719
      %v2721 = vpop.f32.mrf.mxu0
      %v2722 = vadd.f32 0.0, %v2721
      %2723 = vmatmul.bf16.gmra.mxu0 %v2212
      %v2724 = vpop.f32.mrf.mxu0
      %v2725 = vadd.f32 0.0, %v2724
      %v2726 = vpop.f32.mrf.mxu0
      %v2727 = vadd.f32 0.0, %v2726
      %2728 = vmatmul.bf16.gmra.mxu0 %v2215
      %v2729 = vpop.f32.mrf.mxu0
      %v2730 = vadd.f32 0.0, %v2729
      %v2731 = vpop.f32.mrf.mxu0
      %v2732 = vadd.f32 0.0, %v2731
      %2733 = vmatmul.bf16.gmra.mxu0 %v2218
      %v2734 = vpop.f32.mrf.mxu0
      %v2735 = vadd.f32 0.0, %v2734
      %v2736 = vpop.f32.mrf.mxu0
      %v2737 = vadd.f32 0.0, %v2736
      %2738 = vmatmul.bf16.gmra.mxu0 %v2221
      %v2739 = vpop.f32.mrf.mxu0
      %v2740 = vadd.f32 0.0, %v2739
      %v2741 = vpop.f32.mrf.mxu0
      %v2742 = vadd.f32 0.0, %v2741
      %2743 = vmatmul.bf16.gmra.mxu0 %v2224
      %v2744 = vpop.f32.mrf.mxu0
      %v2745 = vadd.f32 0.0, %v2744
      %v2746 = vpop.f32.mrf.mxu0
      %v2747 = vadd.f32 0.0, %v2746
      %2748 = vmatmul.bf16.gmra.mxu0 %v2227
      %v2749 = vpop.f32.mrf.mxu0
      %v2750 = vadd.f32 0.0, %v2749
      %v2751 = vpop.f32.mrf.mxu0
      %v2752 = vadd.f32 0.0, %v2751
      %2753 = vmatmul.bf16.gmra.mxu0 %v2230
      %v2754 = vpop.f32.mrf.mxu0
      %v2755 = vadd.f32 0.0, %v2754
      %v2756 = vpop.f32.mrf.mxu0
      %v2757 = vadd.f32 0.0, %v2756
      %2758 = vmatmul.bf16.gmra.mxu0 %v2233
      %v2759 = vpop.f32.mrf.mxu0
      %v2760 = vadd.f32 0.0, %v2759
      %v2761 = vpop.f32.mrf.mxu0
      %v2762 = vadd.f32 0.0, %v2761
      %2763 = vmatmul.bf16.gmra.mxu0 %v2680
      %v2764 = vpop.f32.mrf.mxu0
      %v2765 = vadd.f32 0.0, %v2764
      %v2766 = vpop.f32.mrf.mxu0
      %v2767 = vadd.f32 0.0, %v2766
      %2768 = vmatmul.bf16.gmra.mxu0 %v2683
      %v2769 = vpop.f32.mrf.mxu0
      %v2770 = vadd.f32 0.0, %v2769
      %v2771 = vpop.f32.mrf.mxu0
      %v2772 = vadd.f32 0.0, %v2771
      %2773 = vdwg.mxu0
      %v2774 = vadd.f32 %v2631, %v2695
      %v2775 = vadd.f32 %v2632, %v2697
      %v2776 = vadd.f32 %v2633, %v2700
      %v2777 = vadd.f32 %v2634, %v2702
      %v2778 = vadd.f32 %v2635, %v2705
      %v2779 = vadd.f32 %v2636, %v2707
      %v2780 = vadd.f32 %v2637, %v2710
      %v2781 = vadd.f32 %v2638, %v2712
      %v2782 = vadd.f32 %v2639, %v2715
      %v2783 = vadd.f32 %v2640, %v2717
      %v2784 = vadd.f32 %v2641, %v2720
      %v2785 = vadd.f32 %v2642, %v2722
      %v2786 = vadd.f32 %v2643, %v2725
      %v2787 = vadd.f32 %v2644, %v2727
      %v2788 = vadd.f32 %v2645, %v2730
      %v2789 = vadd.f32 %v2646, %v2732
      %v2790 = vadd.f32 %v2647, %v2735
      %v2791 = vadd.f32 %v2648, %v2737
      %v2792 = vadd.f32 %v2649, %v2740
      %v2793 = vadd.f32 %v2650, %v2742
      %v2794 = vadd.f32 %v2651, %v2745
      %v2795 = vadd.f32 %v2652, %v2747
      %v2796 = vadd.f32 %v2653, %v2750
      %v2797 = vadd.f32 %v2654, %v2752
      %v2798 = vadd.f32 %v2655, %v2755
      %v2799 = vadd.f32 %v2656, %v2757
      %v2800 = vadd.f32 %v2657, %v2760
      %v2801 = vadd.f32 %v2658, %v2762
      %v2802 = vadd.f32 %v2659, %v2765
      %v2803 = vadd.f32 %v2660, %v2767
      %v2804 = vadd.f32 %v2661, %v2770
      %v2805 = vadd.f32 %v2662, %v2772
      %vm2806 = vsmask.f32 4352
      %v2807 = vrot.slane %v355, 3
      %v2808 = vrot.slane %v351, 4
      %v2809 = vor.u32 %v2807, %v2808
      %v2810 = vrot.slane %v363, 3
      %v2811 = vrot.slane %v359, 4
      %v2812 = vor.u32 %v2810, %v2811
      %v2813 = vsel %vm2806, %v2809, %v2812
      %v2814 = vrot.slane %v371, 3
      %v2815 = vrot.slane %v367, 4
      %v2816 = vor.u32 %v2814, %v2815
      %v2817 = vsel %vm2806, %v2812, %v2816
      %v2818 = vrot.slane %v379, 3
      %v2819 = vrot.slane %v375, 4
      %v2820 = vor.u32 %v2818, %v2819
      %v2821 = vsel %vm2806, %v2816, %v2820
      %v2822 = vrot.slane %v387, 3
      %v2823 = vrot.slane %v383, 4
      %v2824 = vor.u32 %v2822, %v2823
      %v2825 = vsel %vm2806, %v2820, %v2824
      %v2826 = vrot.slane %v395, 3
      %v2827 = vrot.slane %v391, 4
      %v2828 = vor.u32 %v2826, %v2827
      %v2829 = vsel %vm2806, %v2824, %v2828
      %v2830 = vrot.slane %v403, 3
      %v2831 = vrot.slane %v399, 4
      %v2832 = vor.u32 %v2830, %v2831
      %v2833 = vsel %vm2806, %v2828, %v2832
      %v2834 = vrot.slane %v411, 3
      %v2835 = vrot.slane %v407, 4
      %v2836 = vor.u32 %v2834, %v2835
      %v2837 = vsel %vm2806, %v2832, %v2836
      %v2838 = vrot.slane %v419, 3
      %v2839 = vrot.slane %v415, 4
      %v2840 = vor.u32 %v2838, %v2839
      %v2841 = vsel %vm2806, %v2836, %v2840
      %v2842 = vrot.slane %v427, 3
      %v2843 = vrot.slane %v423, 4
      %v2844 = vor.u32 %v2842, %v2843
      %v2845 = vsel %vm2806, %v2840, %v2844
      %v2846 = vrot.slane %v435, 3
      %v2847 = vrot.slane %v431, 4
      %v2848 = vor.u32 %v2846, %v2847
      %v2849 = vsel %vm2806, %v2844, %v2848
      %v2850 = vrot.slane %v443, 3
      %v2851 = vrot.slane %v439, 4
      %v2852 = vor.u32 %v2850, %v2851
      %v2853 = vsel %vm2806, %v2848, %v2852
      %v2854 = vrot.slane %v451, 3
      %v2855 = vrot.slane %v447, 4
      %v2856 = vor.u32 %v2854, %v2855
      %v2857 = vsel %vm2806, %v2852, %v2856
      %v2858 = vrot.slane %v459, 3
      %v2859 = vrot.slane %v455, 4
      %v2860 = vor.u32 %v2858, %v2859
      %v2861 = vsel %vm2806, %v2856, %v2860
      %v2862 = vrot.slane %v1596, 3
      %v2863 = vrot.slane %v1599, 4
      %v2864 = vor.u32 %v2862, %v2863
      %v2865 = vsel %vm2806, %v2860, %v2864
      %v2866 = vrot.slane %v2507, 3
      %v2867 = vrot.slane %v2510, 4
      %v2868 = vor.u32 %v2866, %v2867
      %v2869 = vsel %vm2806, %v2864, %v2868
      %v2870 = vrot.slane %v2516, 3
      %v2871 = vrot.slane %v2519, 4
      %v2872 = vor.u32 %v2870, %v2871
      %v2873 = vsel %vm2806, %v2868, %v2872
      %v2878 = vunpack.c.l.b16 %v269
      %v2879 = vunpack.c.l.b16 %v270
      %v2880 = vunpack.c.l.b16 %v271
      %v2881 = vunpack.c.l.b16 %v272
      %v2882 = vpack.c.b16 %v2879, %v2878
      %v2883 = vpack.c.b16 %v2881, %v2880
      %v2887 = vsel %vm479, %v2813, 0
      %v2890 = vsel %vm479, %v2817, 0
      %v2893 = vsel %vm479, %v2821, 0
      %v2896 = vsel %vm479, %v2825, 0
      %v2899 = vsel %vm479, %v2829, 0
      %v2902 = vsel %vm479, %v2833, 0
      %v2905 = vsel %vm479, %v2837, 0
      %v2908 = vsel %vm479, %v2841, 0
      %v2911 = vsel %vm479, %v2845, 0
      %v2914 = vsel %vm479, %v2849, 0
      %v2917 = vsel %vm479, %v2853, 0
      %v2920 = vsel %vm479, %v2857, 0
      %v2923 = vsel %vm479, %v2861, 0
      %v2926 = vsel %vm479, %v2865, 0
      %v2929 = vsel %vm479, %v2869, 0
      %v2932 = vsel %vm479, %v2873, 0
      %2934 = vmatpush.bf16.msra.mxu0 0
      %2935 = vmatpush.bf16.msra.mxu0 0
      %2936 = vmatpush.bf16.msra.mxu0 0
      %2937 = vmatpush.bf16.msra.mxu0 0
      %2938 = vmatpush.bf16.msra.mxu0 0
      %2939 = vmatpush.bf16.msra.mxu0 0
      %2940 = vmatpush.bf16.msra.mxu0 %v2883
      %2941 = vmatpush.bf16.msra.mxu0 %v2882
      %2942 = vmatmul.bf16.gmra.mxu0 %v2887
      %v2943 = vpop.f32.mrf.mxu0
      %v2944 = vadd.f32 0.0, %v2943
      %v2945 = vpop.f32.mrf.mxu0
      %v2946 = vadd.f32 0.0, %v2945
      %2947 = vmatmul.bf16.gmra.mxu0 %v2890
      %v2948 = vpop.f32.mrf.mxu0
      %v2949 = vadd.f32 0.0, %v2948
      %v2950 = vpop.f32.mrf.mxu0
      %v2951 = vadd.f32 0.0, %v2950
      %2952 = vmatmul.bf16.gmra.mxu0 %v2893
      %v2953 = vpop.f32.mrf.mxu0
      %v2954 = vadd.f32 0.0, %v2953
      %v2955 = vpop.f32.mrf.mxu0
      %v2956 = vadd.f32 0.0, %v2955
      %2957 = vmatmul.bf16.gmra.mxu0 %v2896
      %v2958 = vpop.f32.mrf.mxu0
      %v2959 = vadd.f32 0.0, %v2958
      %v2960 = vpop.f32.mrf.mxu0
      %v2961 = vadd.f32 0.0, %v2960
      %2962 = vmatmul.bf16.gmra.mxu0 %v2899
      %v2963 = vpop.f32.mrf.mxu0
      %v2964 = vadd.f32 0.0, %v2963
      %v2965 = vpop.f32.mrf.mxu0
      %v2966 = vadd.f32 0.0, %v2965
      %2967 = vmatmul.bf16.gmra.mxu0 %v2902
      %v2968 = vpop.f32.mrf.mxu0
      %v2969 = vadd.f32 0.0, %v2968
      %v2970 = vpop.f32.mrf.mxu0
      %v2971 = vadd.f32 0.0, %v2970
      %2972 = vmatmul.bf16.gmra.mxu0 %v2905
      %v2973 = vpop.f32.mrf.mxu0
      %v2974 = vadd.f32 0.0, %v2973
      %v2975 = vpop.f32.mrf.mxu0
      %v2976 = vadd.f32 0.0, %v2975
      %2977 = vmatmul.bf16.gmra.mxu0 %v2908
      %v2978 = vpop.f32.mrf.mxu0
      %v2979 = vadd.f32 0.0, %v2978
      %v2980 = vpop.f32.mrf.mxu0
      %v2981 = vadd.f32 0.0, %v2980
      %2982 = vmatmul.bf16.gmra.mxu0 %v2911
      %v2983 = vpop.f32.mrf.mxu0
      %v2984 = vadd.f32 0.0, %v2983
      %v2985 = vpop.f32.mrf.mxu0
      %v2986 = vadd.f32 0.0, %v2985
      %2987 = vmatmul.bf16.gmra.mxu0 %v2914
      %v2988 = vpop.f32.mrf.mxu0
      %v2989 = vadd.f32 0.0, %v2988
      %v2990 = vpop.f32.mrf.mxu0
      %v2991 = vadd.f32 0.0, %v2990
      %2992 = vmatmul.bf16.gmra.mxu0 %v2917
      %v2993 = vpop.f32.mrf.mxu0
      %v2994 = vadd.f32 0.0, %v2993
      %v2995 = vpop.f32.mrf.mxu0
      %v2996 = vadd.f32 0.0, %v2995
      %2997 = vmatmul.bf16.gmra.mxu0 %v2920
      %v2998 = vpop.f32.mrf.mxu0
      %v2999 = vadd.f32 0.0, %v2998
      %v3000 = vpop.f32.mrf.mxu0
      %v3001 = vadd.f32 0.0, %v3000
      %3002 = vmatmul.bf16.gmra.mxu0 %v2923
      %v3003 = vpop.f32.mrf.mxu0
      %v3004 = vadd.f32 0.0, %v3003
      %v3005 = vpop.f32.mrf.mxu0
      %v3006 = vadd.f32 0.0, %v3005
      %3007 = vmatmul.bf16.gmra.mxu0 %v2926
      %v3008 = vpop.f32.mrf.mxu0
      %v3009 = vadd.f32 0.0, %v3008
      %v3010 = vpop.f32.mrf.mxu0
      %v3011 = vadd.f32 0.0, %v3010
      %3012 = vmatmul.bf16.gmra.mxu0 %v2929
      %v3013 = vpop.f32.mrf.mxu0
      %v3014 = vadd.f32 0.0, %v3013
      %v3015 = vpop.f32.mrf.mxu0
      %v3016 = vadd.f32 0.0, %v3015
      %3017 = vmatmul.bf16.gmra.mxu0 %v2932
      %v3018 = vpop.f32.mrf.mxu0
      %v3019 = vadd.f32 0.0, %v3018
      %v3020 = vpop.f32.mrf.mxu0
      %v3021 = vadd.f32 0.0, %v3020
      %3022 = vdwg.mxu0
      %v3023 = vadd.f32 %v2774, %v2944
      %v3024 = vadd.f32 %v2775, %v2946
      %v3025 = vadd.f32 %v2776, %v2949
      %v3026 = vadd.f32 %v2777, %v2951
      %v3027 = vadd.f32 %v2778, %v2954
      %v3028 = vadd.f32 %v2779, %v2956
      %v3029 = vadd.f32 %v2780, %v2959
      %v3030 = vadd.f32 %v2781, %v2961
      %v3031 = vadd.f32 %v2782, %v2964
      %v3032 = vadd.f32 %v2783, %v2966
      %v3033 = vadd.f32 %v2784, %v2969
      %v3034 = vadd.f32 %v2785, %v2971
      %v3035 = vadd.f32 %v2786, %v2974
      %v3036 = vadd.f32 %v2787, %v2976
      %v3037 = vadd.f32 %v2788, %v2979
      %v3038 = vadd.f32 %v2789, %v2981
      %v3039 = vadd.f32 %v2790, %v2984
      %v3040 = vadd.f32 %v2791, %v2986
      %v3041 = vadd.f32 %v2792, %v2989
      %v3042 = vadd.f32 %v2793, %v2991
      %v3043 = vadd.f32 %v2794, %v2994
      %v3044 = vadd.f32 %v2795, %v2996
      %v3045 = vadd.f32 %v2796, %v2999
      %v3046 = vadd.f32 %v2797, %v3001
      %v3047 = vadd.f32 %v2798, %v3004
      %v3048 = vadd.f32 %v2799, %v3006
      %v3049 = vadd.f32 %v2800, %v3009
      %v3050 = vadd.f32 %v2801, %v3011
      %v3051 = vadd.f32 %v2802, %v3014
      %v3052 = vadd.f32 %v2803, %v3016
      %v3053 = vadd.f32 %v2804, %v3019
      %v3054 = vadd.f32 %v2805, %v3021
      %v3055 = vpack.c.bf16 %v181, %v180
      %v3056 = vpack.c.bf16 %v183, %v182
      %v3057 = vpack.c.bf16 %v185, %v184
      %v3058 = vpack.c.bf16 %v187, %v186
      %v3059 = vpack.c.bf16 %v189, %v188
      %v3060 = vpack.c.bf16 %v191, %v190
      %v3061 = vpack.c.bf16 %v193, %v192
      %v3062 = vpack.c.bf16 %v195, %v194
      %v3063 = vpack.c.bf16 %v197, %v196
      %v3064 = vpack.c.bf16 %v199, %v198
      %v3065 = vpack.c.bf16 %v201, %v200
      %v3066 = vpack.c.bf16 %v203, %v202
      %v3067 = vpack.c.bf16 %v205, %v204
      %v3068 = vpack.c.bf16 %v207, %v206
      %v3069 = vpack.c.bf16 %v209, %v208
      %v3070 = vpack.c.bf16 %v211, %v210
      %v3075 = vunpack.c.l.b16 %v273
      %v3076 = vunpack.c.l.b16 %v274
      %v3077 = vunpack.c.l.b16 %v275
      %v3078 = vunpack.c.l.b16 %v276
      %v3079 = vpack.c.b16 %v3076, %v3075
      %v3080 = vpack.c.b16 %v3078, %v3077
      %v3084 = vsel %vm479, %v3055, 0
      %v3087 = vsel %vm479, %v3056, 0
      %v3090 = vsel %vm479, %v3057, 0
      %v3093 = vsel %vm479, %v3058, 0
      %v3096 = vsel %vm479, %v3059, 0
      %v3099 = vsel %vm479, %v3060, 0
      %v3102 = vsel %vm479, %v3061, 0
      %v3105 = vsel %vm479, %v3062, 0
      %v3108 = vsel %vm479, %v3063, 0
      %v3111 = vsel %vm479, %v3064, 0
      %v3114 = vsel %vm479, %v3065, 0
      %v3117 = vsel %vm479, %v3066, 0
      %v3120 = vsel %vm479, %v3067, 0
      %v3123 = vsel %vm479, %v3068, 0
      %v3126 = vsel %vm479, %v3069, 0
      %v3129 = vsel %vm479, %v3070, 0
      %3131 = vmatpush.bf16.msra.mxu0 0
      %3132 = vmatpush.bf16.msra.mxu0 0
      %3133 = vmatpush.bf16.msra.mxu0 0
      %3134 = vmatpush.bf16.msra.mxu0 0
      %3135 = vmatpush.bf16.msra.mxu0 0
      %3136 = vmatpush.bf16.msra.mxu0 0
      %3137 = vmatpush.bf16.msra.mxu0 %v3080
      %3138 = vmatpush.bf16.msra.mxu0 %v3079
      %3139 = vmatmul.bf16.gmra.mxu0 %v3084
      %v3140 = vpop.f32.mrf.mxu0
      %v3141 = vadd.f32 0.0, %v3140
      %v3142 = vpop.f32.mrf.mxu0
      %v3143 = vadd.f32 0.0, %v3142
      %3144 = vmatmul.bf16.gmra.mxu0 %v3087
      %v3145 = vpop.f32.mrf.mxu0
      %v3146 = vadd.f32 0.0, %v3145
      %v3147 = vpop.f32.mrf.mxu0
      %v3148 = vadd.f32 0.0, %v3147
      %3149 = vmatmul.bf16.gmra.mxu0 %v3090
      %v3150 = vpop.f32.mrf.mxu0
      %v3151 = vadd.f32 0.0, %v3150
      %v3152 = vpop.f32.mrf.mxu0
      %v3153 = vadd.f32 0.0, %v3152
      %3154 = vmatmul.bf16.gmra.mxu0 %v3093
      %v3155 = vpop.f32.mrf.mxu0
      %v3156 = vadd.f32 0.0, %v3155
      %v3157 = vpop.f32.mrf.mxu0
      %v3158 = vadd.f32 0.0, %v3157
      %3159 = vmatmul.bf16.gmra.mxu0 %v3096
      %v3160 = vpop.f32.mrf.mxu0
      %v3161 = vadd.f32 0.0, %v3160
      %v3162 = vpop.f32.mrf.mxu0
      %v3163 = vadd.f32 0.0, %v3162
      %3164 = vmatmul.bf16.gmra.mxu0 %v3099
      %v3165 = vpop.f32.mrf.mxu0
      %v3166 = vadd.f32 0.0, %v3165
      %v3167 = vpop.f32.mrf.mxu0
      %v3168 = vadd.f32 0.0, %v3167
      %3169 = vmatmul.bf16.gmra.mxu0 %v3102
      %v3170 = vpop.f32.mrf.mxu0
      %v3171 = vadd.f32 0.0, %v3170
      %v3172 = vpop.f32.mrf.mxu0
      %v3173 = vadd.f32 0.0, %v3172
      %3174 = vmatmul.bf16.gmra.mxu0 %v3105
      %v3175 = vpop.f32.mrf.mxu0
      %v3176 = vadd.f32 0.0, %v3175
      %v3177 = vpop.f32.mrf.mxu0
      %v3178 = vadd.f32 0.0, %v3177
      %3179 = vmatmul.bf16.gmra.mxu0 %v3108
      %v3180 = vpop.f32.mrf.mxu0
      %v3181 = vadd.f32 0.0, %v3180
      %v3182 = vpop.f32.mrf.mxu0
      %v3183 = vadd.f32 0.0, %v3182
      %3184 = vmatmul.bf16.gmra.mxu0 %v3111
      %v3185 = vpop.f32.mrf.mxu0
      %v3186 = vadd.f32 0.0, %v3185
      %v3187 = vpop.f32.mrf.mxu0
      %v3188 = vadd.f32 0.0, %v3187
      %3189 = vmatmul.bf16.gmra.mxu0 %v3114
      %v3190 = vpop.f32.mrf.mxu0
      %v3191 = vadd.f32 0.0, %v3190
      %v3192 = vpop.f32.mrf.mxu0
      %v3193 = vadd.f32 0.0, %v3192
      %3194 = vmatmul.bf16.gmra.mxu0 %v3117
      %v3195 = vpop.f32.mrf.mxu0
      %v3196 = vadd.f32 0.0, %v3195
      %v3197 = vpop.f32.mrf.mxu0
      %v3198 = vadd.f32 0.0, %v3197
      %3199 = vmatmul.bf16.gmra.mxu0 %v3120
      %v3200 = vpop.f32.mrf.mxu0
      %v3201 = vadd.f32 0.0, %v3200
      %v3202 = vpop.f32.mrf.mxu0
      %v3203 = vadd.f32 0.0, %v3202
      %3204 = vmatmul.bf16.gmra.mxu0 %v3123
      %v3205 = vpop.f32.mrf.mxu0
      %v3206 = vadd.f32 0.0, %v3205
      %v3207 = vpop.f32.mrf.mxu0
      %v3208 = vadd.f32 0.0, %v3207
      %3209 = vmatmul.bf16.gmra.mxu0 %v3126
      %v3210 = vpop.f32.mrf.mxu0
      %v3211 = vadd.f32 0.0, %v3210
      %v3212 = vpop.f32.mrf.mxu0
      %v3213 = vadd.f32 0.0, %v3212
      %3214 = vmatmul.bf16.gmra.mxu0 %v3129
      %v3215 = vpop.f32.mrf.mxu0
      %v3216 = vadd.f32 0.0, %v3215
      %v3217 = vpop.f32.mrf.mxu0
      %v3218 = vadd.f32 0.0, %v3217
      %3219 = vdwg.mxu0
      %v3220 = vadd.f32 %v3023, %v3141
      %v3221 = vadd.f32 %v3024, %v3143
      %v3222 = vadd.f32 %v3025, %v3146
      %v3223 = vadd.f32 %v3026, %v3148
      %v3224 = vadd.f32 %v3027, %v3151
      %v3225 = vadd.f32 %v3028, %v3153
      %v3226 = vadd.f32 %v3029, %v3156
      %v3227 = vadd.f32 %v3030, %v3158
      %v3228 = vadd.f32 %v3031, %v3161
      %v3229 = vadd.f32 %v3032, %v3163
      %v3230 = vadd.f32 %v3033, %v3166
      %v3231 = vadd.f32 %v3034, %v3168
      %v3232 = vadd.f32 %v3035, %v3171
      %v3233 = vadd.f32 %v3036, %v3173
      %v3234 = vadd.f32 %v3037, %v3176
      %v3235 = vadd.f32 %v3038, %v3178
      %v3236 = vadd.f32 %v3039, %v3181
      %v3237 = vadd.f32 %v3040, %v3183
      %v3238 = vadd.f32 %v3041, %v3186
      %v3239 = vadd.f32 %v3042, %v3188
      %v3240 = vadd.f32 %v3043, %v3191
      %v3241 = vadd.f32 %v3044, %v3193
      %v3242 = vadd.f32 %v3045, %v3196
      %v3243 = vadd.f32 %v3046, %v3198
      %v3244 = vadd.f32 %v3047, %v3201
      %v3245 = vadd.f32 %v3048, %v3203
      %v3246 = vadd.f32 %v3049, %v3206
      %v3247 = vadd.f32 %v3050, %v3208
      %v3248 = vadd.f32 %v3051, %v3211
      %v3249 = vadd.f32 %v3052, %v3213
      %v3250 = vadd.f32 %v3053, %v3216
      %v3251 = vadd.f32 %v3054, %v3218
      %v3252 = vpack.c.bf16 %v212, %v211
      %v3253 = vpack.c.bf16 %v213, %v213
      %v3256 = vrot.slane %v3252, 3
      %v3257 = vsel %vm2144, %v2663, %v3256
      %v3258 = vrot.slane %v3253, 3
      %v3259 = vsel %vm2144, %v3256, %v3258
      %v3264 = vunpack.c.l.b16 %v277
      %v3265 = vunpack.c.l.b16 %v278
      %v3266 = vunpack.c.l.b16 %v279
      %v3267 = vunpack.c.l.b16 %v280
      %v3268 = vpack.c.b16 %v3265, %v3264
      %v3269 = vpack.c.b16 %v3267, %v3266
      %v3273 = vsel %vm479, %v3257, 0
      %v3276 = vsel %vm479, %v3259, 0
      %3278 = vmatpush.bf16.msra.mxu0 0
      %3279 = vmatpush.bf16.msra.mxu0 0
      %3280 = vmatpush.bf16.msra.mxu0 0
      %3281 = vmatpush.bf16.msra.mxu0 0
      %3282 = vmatpush.bf16.msra.mxu0 0
      %3283 = vmatpush.bf16.msra.mxu0 0
      %3284 = vmatpush.bf16.msra.mxu0 %v3269
      %3285 = vmatpush.bf16.msra.mxu0 %v3268
      %3286 = vmatmul.bf16.gmra.mxu0 %v2197
      %v3287 = vpop.f32.mrf.mxu0
      %v3288 = vadd.f32 0.0, %v3287
      %v3289 = vpop.f32.mrf.mxu0
      %v3290 = vadd.f32 0.0, %v3289
      %3291 = vmatmul.bf16.gmra.mxu0 %v2200
      %v3292 = vpop.f32.mrf.mxu0
      %v3293 = vadd.f32 0.0, %v3292
      %v3294 = vpop.f32.mrf.mxu0
      %v3295 = vadd.f32 0.0, %v3294
      %3296 = vmatmul.bf16.gmra.mxu0 %v2203
      %v3297 = vpop.f32.mrf.mxu0
      %v3298 = vadd.f32 0.0, %v3297
      %v3299 = vpop.f32.mrf.mxu0
      %v3300 = vadd.f32 0.0, %v3299
      %3301 = vmatmul.bf16.gmra.mxu0 %v2206
      %v3302 = vpop.f32.mrf.mxu0
      %v3303 = vadd.f32 0.0, %v3302
      %v3304 = vpop.f32.mrf.mxu0
      %v3305 = vadd.f32 0.0, %v3304
      %3306 = vmatmul.bf16.gmra.mxu0 %v2209
      %v3307 = vpop.f32.mrf.mxu0
      %v3308 = vadd.f32 0.0, %v3307
      %v3309 = vpop.f32.mrf.mxu0
      %v3310 = vadd.f32 0.0, %v3309
      %3311 = vmatmul.bf16.gmra.mxu0 %v2212
      %v3312 = vpop.f32.mrf.mxu0
      %v3313 = vadd.f32 0.0, %v3312
      %v3314 = vpop.f32.mrf.mxu0
      %v3315 = vadd.f32 0.0, %v3314
      %3316 = vmatmul.bf16.gmra.mxu0 %v2215
      %v3317 = vpop.f32.mrf.mxu0
      %v3318 = vadd.f32 0.0, %v3317
      %v3319 = vpop.f32.mrf.mxu0
      %v3320 = vadd.f32 0.0, %v3319
      %3321 = vmatmul.bf16.gmra.mxu0 %v2218
      %v3322 = vpop.f32.mrf.mxu0
      %v3323 = vadd.f32 0.0, %v3322
      %v3324 = vpop.f32.mrf.mxu0
      %v3325 = vadd.f32 0.0, %v3324
      %3326 = vmatmul.bf16.gmra.mxu0 %v2221
      %v3327 = vpop.f32.mrf.mxu0
      %v3328 = vadd.f32 0.0, %v3327
      %v3329 = vpop.f32.mrf.mxu0
      %v3330 = vadd.f32 0.0, %v3329
      %3331 = vmatmul.bf16.gmra.mxu0 %v2224
      %v3332 = vpop.f32.mrf.mxu0
      %v3333 = vadd.f32 0.0, %v3332
      %v3334 = vpop.f32.mrf.mxu0
      %v3335 = vadd.f32 0.0, %v3334
      %3336 = vmatmul.bf16.gmra.mxu0 %v2227
      %v3337 = vpop.f32.mrf.mxu0
      %v3338 = vadd.f32 0.0, %v3337
      %v3339 = vpop.f32.mrf.mxu0
      %v3340 = vadd.f32 0.0, %v3339
      %3341 = vmatmul.bf16.gmra.mxu0 %v2230
      %v3342 = vpop.f32.mrf.mxu0
      %v3343 = vadd.f32 0.0, %v3342
      %v3344 = vpop.f32.mrf.mxu0
      %v3345 = vadd.f32 0.0, %v3344
      %3346 = vmatmul.bf16.gmra.mxu0 %v2233
      %v3347 = vpop.f32.mrf.mxu0
      %v3348 = vadd.f32 0.0, %v3347
      %v3349 = vpop.f32.mrf.mxu0
      %v3350 = vadd.f32 0.0, %v3349
      %3351 = vmatmul.bf16.gmra.mxu0 %v2680
      %v3352 = vpop.f32.mrf.mxu0
      %v3353 = vadd.f32 0.0, %v3352
      %v3354 = vpop.f32.mrf.mxu0
      %v3355 = vadd.f32 0.0, %v3354
      %3356 = vmatmul.bf16.gmra.mxu0 %v3273
      %v3357 = vpop.f32.mrf.mxu0
      %v3358 = vadd.f32 0.0, %v3357
      %v3359 = vpop.f32.mrf.mxu0
      %v3360 = vadd.f32 0.0, %v3359
      %3361 = vmatmul.bf16.gmra.mxu0 %v3276
      %v3362 = vpop.f32.mrf.mxu0
      %v3363 = vadd.f32 0.0, %v3362
      %v3364 = vpop.f32.mrf.mxu0
      %v3365 = vadd.f32 0.0, %v3364
      %3366 = vdwg.mxu0
      %v3367 = vadd.f32 %v3220, %v3288
      %v3368 = vadd.f32 %v3221, %v3290
      %v3369 = vadd.f32 %v3222, %v3293
      %v3370 = vadd.f32 %v3223, %v3295
      %v3371 = vadd.f32 %v3224, %v3298
      %v3372 = vadd.f32 %v3225, %v3300
      %v3373 = vadd.f32 %v3226, %v3303
      %v3374 = vadd.f32 %v3227, %v3305
      %v3375 = vadd.f32 %v3228, %v3308
      %v3376 = vadd.f32 %v3229, %v3310
      %v3377 = vadd.f32 %v3230, %v3313
      %v3378 = vadd.f32 %v3231, %v3315
      %v3379 = vadd.f32 %v3232, %v3318
      %v3380 = vadd.f32 %v3233, %v3320
      %v3381 = vadd.f32 %v3234, %v3323
      %v3382 = vadd.f32 %v3235, %v3325
      %v3383 = vadd.f32 %v3236, %v3328
      %v3384 = vadd.f32 %v3237, %v3330
      %v3385 = vadd.f32 %v3238, %v3333
      %v3386 = vadd.f32 %v3239, %v3335
      %v3387 = vadd.f32 %v3240, %v3338
      %v3388 = vadd.f32 %v3241, %v3340
      %v3389 = vadd.f32 %v3242, %v3343
      %v3390 = vadd.f32 %v3243, %v3345
      %v3391 = vadd.f32 %v3244, %v3348
      %v3392 = vadd.f32 %v3245, %v3350
      %v3393 = vadd.f32 %v3246, %v3353
      %v3394 = vadd.f32 %v3247, %v3355
      %v3395 = vadd.f32 %v3248, %v3358
      %v3396 = vadd.f32 %v3249, %v3360
      %v3397 = vadd.f32 %v3250, %v3363
      %v3398 = vadd.f32 %v3251, %v3365
      %v3400 = vshrl.u32 %v3252, 16
      %v3402 = vrot.slane %v3400, 3
      %v3403 = vshll.u32 %v3252, 16
      %v3405 = vrot.slane %v3403, 4
      %v3406 = vor.u32 %v3402, %v3405
      %v3407 = vsel %vm2806, %v2868, %v3406
      %v3409 = vshrl.u32 %v3253, 16
      %v3411 = vrot.slane %v3409, 3
      %v3412 = vshll.u32 %v3253, 16
      %v3414 = vrot.slane %v3412, 4
      %v3415 = vor.u32 %v3411, %v3414
      %v3416 = vsel %vm2806, %v3406, %v3415
      %v3421 = vunpack.c.l.b16 %v281
      %v3422 = vunpack.c.l.b16 %v282
      %v3423 = vunpack.c.l.b16 %v283
      %v3424 = vunpack.c.l.b16 %v284
      %v3425 = vpack.c.b16 %v3422, %v3421
      %v3426 = vpack.c.b16 %v3424, %v3423
      %v3430 = vsel %vm479, %v3407, 0
      %v3433 = vsel %vm479, %v3416, 0
      %3435 = vmatpush.bf16.msra.mxu0 0
      %3436 = vmatpush.bf16.msra.mxu0 0
      %3437 = vmatpush.bf16.msra.mxu0 0
      %3438 = vmatpush.bf16.msra.mxu0 0
      %3439 = vmatpush.bf16.msra.mxu0 0
      %3440 = vmatpush.bf16.msra.mxu0 0
      %3441 = vmatpush.bf16.msra.mxu0 %v3426
      %3442 = vmatpush.bf16.msra.mxu0 %v3425
      %3443 = vmatmul.bf16.gmra.mxu0 %v2890
      %v3444 = vpop.f32.mrf.mxu0
      %v3445 = vadd.f32 0.0, %v3444
      %v3446 = vpop.f32.mrf.mxu0
      %v3447 = vadd.f32 0.0, %v3446
      %3448 = vmatmul.bf16.gmra.mxu0 %v2893
      %v3449 = vpop.f32.mrf.mxu0
      %v3450 = vadd.f32 0.0, %v3449
      %v3451 = vpop.f32.mrf.mxu0
      %v3452 = vadd.f32 0.0, %v3451
      %3453 = vmatmul.bf16.gmra.mxu0 %v2896
      %v3454 = vpop.f32.mrf.mxu0
      %v3455 = vadd.f32 0.0, %v3454
      %v3456 = vpop.f32.mrf.mxu0
      %v3457 = vadd.f32 0.0, %v3456
      %3458 = vmatmul.bf16.gmra.mxu0 %v2899
      %v3459 = vpop.f32.mrf.mxu0
      %v3460 = vadd.f32 0.0, %v3459
      %v3461 = vpop.f32.mrf.mxu0
      %v3462 = vadd.f32 0.0, %v3461
      %3463 = vmatmul.bf16.gmra.mxu0 %v2902
      %v3464 = vpop.f32.mrf.mxu0
      %v3465 = vadd.f32 0.0, %v3464
      %v3466 = vpop.f32.mrf.mxu0
      %v3467 = vadd.f32 0.0, %v3466
      %3468 = vmatmul.bf16.gmra.mxu0 %v2905
      %v3469 = vpop.f32.mrf.mxu0
      %v3470 = vadd.f32 0.0, %v3469
      %v3471 = vpop.f32.mrf.mxu0
      %v3472 = vadd.f32 0.0, %v3471
      %3473 = vmatmul.bf16.gmra.mxu0 %v2908
      %v3474 = vpop.f32.mrf.mxu0
      %v3475 = vadd.f32 0.0, %v3474
      %v3476 = vpop.f32.mrf.mxu0
      %v3477 = vadd.f32 0.0, %v3476
      %3478 = vmatmul.bf16.gmra.mxu0 %v2911
      %v3479 = vpop.f32.mrf.mxu0
      %v3480 = vadd.f32 0.0, %v3479
      %v3481 = vpop.f32.mrf.mxu0
      %v3482 = vadd.f32 0.0, %v3481
      %3483 = vmatmul.bf16.gmra.mxu0 %v2914
      %v3484 = vpop.f32.mrf.mxu0
      %v3485 = vadd.f32 0.0, %v3484
      %v3486 = vpop.f32.mrf.mxu0
      %v3487 = vadd.f32 0.0, %v3486
      %3488 = vmatmul.bf16.gmra.mxu0 %v2917
      %v3489 = vpop.f32.mrf.mxu0
      %v3490 = vadd.f32 0.0, %v3489
      %v3491 = vpop.f32.mrf.mxu0
      %v3492 = vadd.f32 0.0, %v3491
      %3493 = vmatmul.bf16.gmra.mxu0 %v2920
      %v3494 = vpop.f32.mrf.mxu0
      %v3495 = vadd.f32 0.0, %v3494
      %v3496 = vpop.f32.mrf.mxu0
      %v3497 = vadd.f32 0.0, %v3496
      %3498 = vmatmul.bf16.gmra.mxu0 %v2923
      %v3499 = vpop.f32.mrf.mxu0
      %v3500 = vadd.f32 0.0, %v3499
      %v3501 = vpop.f32.mrf.mxu0
      %v3502 = vadd.f32 0.0, %v3501
      %3503 = vmatmul.bf16.gmra.mxu0 %v2926
      %v3504 = vpop.f32.mrf.mxu0
      %v3505 = vadd.f32 0.0, %v3504
      %v3506 = vpop.f32.mrf.mxu0
      %v3507 = vadd.f32 0.0, %v3506
      %3508 = vmatmul.bf16.gmra.mxu0 %v2929
      %v3509 = vpop.f32.mrf.mxu0
      %v3510 = vadd.f32 0.0, %v3509
      %v3511 = vpop.f32.mrf.mxu0
      %v3512 = vadd.f32 0.0, %v3511
      %3513 = vmatmul.bf16.gmra.mxu0 %v3430
      %v3514 = vpop.f32.mrf.mxu0
      %v3515 = vadd.f32 0.0, %v3514
      %v3516 = vpop.f32.mrf.mxu0
      %v3517 = vadd.f32 0.0, %v3516
      %3518 = vmatmul.bf16.gmra.mxu0 %v3433
      %v3519 = vpop.f32.mrf.mxu0
      %v3520 = vadd.f32 0.0, %v3519
      %v3521 = vpop.f32.mrf.mxu0
      %v3522 = vadd.f32 0.0, %v3521
      %3523 = vdwg.mxu0
      %v3524 = vadd.f32 %v3367, %v3445
      %v3525 = vadd.f32 %v3368, %v3447
      %v3526 = vadd.f32 %v3369, %v3450
      %v3527 = vadd.f32 %v3370, %v3452
      %v3528 = vadd.f32 %v3371, %v3455
      %v3529 = vadd.f32 %v3372, %v3457
      %v3530 = vadd.f32 %v3373, %v3460
      %v3531 = vadd.f32 %v3374, %v3462
      %v3532 = vadd.f32 %v3375, %v3465
      %v3533 = vadd.f32 %v3376, %v3467
      %v3534 = vadd.f32 %v3377, %v3470
      %v3535 = vadd.f32 %v3378, %v3472
      %v3536 = vadd.f32 %v3379, %v3475
      %v3537 = vadd.f32 %v3380, %v3477
      %v3538 = vadd.f32 %v3381, %v3480
      %v3539 = vadd.f32 %v3382, %v3482
      %v3540 = vadd.f32 %v3383, %v3485
      %v3541 = vadd.f32 %v3384, %v3487
      %v3542 = vadd.f32 %v3385, %v3490
      %v3543 = vadd.f32 %v3386, %v3492
      %v3544 = vadd.f32 %v3387, %v3495
      %v3545 = vadd.f32 %v3388, %v3497
      %v3546 = vadd.f32 %v3389, %v3500
      %v3547 = vadd.f32 %v3390, %v3502
      %v3548 = vadd.f32 %v3391, %v3505
      %v3549 = vadd.f32 %v3392, %v3507
      %v3550 = vadd.f32 %v3393, %v3510
      %v3551 = vadd.f32 %v3394, %v3512
      %v3552 = vadd.f32 %v3395, %v3515
      %v3553 = vadd.f32 %v3396, %v3517
      %v3554 = vadd.f32 %v3397, %v3520
      %v3555 = vadd.f32 %v3398, %v3522
      %v3556 = vpack.c.bf16 %v213, %v212
      %v3561 = vunpack.c.l.b16 %v285
      %v3562 = vunpack.c.l.b16 %v286
      %v3563 = vunpack.c.l.b16 %v287
      %v3564 = vunpack.c.l.b16 %v288
      %v3565 = vpack.c.b16 %v3562, %v3561
      %v3566 = vpack.c.b16 %v3564, %v3563
      %v3570 = vsel %vm479, %v3556, 0
      %3572 = vmatpush.bf16.msra.mxu0 0
      %3573 = vmatpush.bf16.msra.mxu0 0
      %3574 = vmatpush.bf16.msra.mxu0 0
      %3575 = vmatpush.bf16.msra.mxu0 0
      %3576 = vmatpush.bf16.msra.mxu0 0
      %3577 = vmatpush.bf16.msra.mxu0 0
      %3578 = vmatpush.bf16.msra.mxu0 %v3566
      %3579 = vmatpush.bf16.msra.mxu0 %v3565
      %3580 = vmatmul.bf16.gmra.mxu0 %v3087
      %v3581 = vpop.f32.mrf.mxu0
      %v3582 = vadd.f32 0.0, %v3581
      %v3583 = vpop.f32.mrf.mxu0
      %v3584 = vadd.f32 0.0, %v3583
      %3585 = vmatmul.bf16.gmra.mxu0 %v3090
      %v3586 = vpop.f32.mrf.mxu0
      %v3587 = vadd.f32 0.0, %v3586
      %v3588 = vpop.f32.mrf.mxu0
      %v3589 = vadd.f32 0.0, %v3588
      %3590 = vmatmul.bf16.gmra.mxu0 %v3093
      %v3591 = vpop.f32.mrf.mxu0
      %v3592 = vadd.f32 0.0, %v3591
      %v3593 = vpop.f32.mrf.mxu0
      %v3594 = vadd.f32 0.0, %v3593
      %3595 = vmatmul.bf16.gmra.mxu0 %v3096
      %v3596 = vpop.f32.mrf.mxu0
      %v3597 = vadd.f32 0.0, %v3596
      %v3598 = vpop.f32.mrf.mxu0
      %v3599 = vadd.f32 0.0, %v3598
      %3600 = vmatmul.bf16.gmra.mxu0 %v3099
      %v3601 = vpop.f32.mrf.mxu0
      %v3602 = vadd.f32 0.0, %v3601
      %v3603 = vpop.f32.mrf.mxu0
      %v3604 = vadd.f32 0.0, %v3603
      %3605 = vmatmul.bf16.gmra.mxu0 %v3102
      %v3606 = vpop.f32.mrf.mxu0
      %v3607 = vadd.f32 0.0, %v3606
      %v3608 = vpop.f32.mrf.mxu0
      %v3609 = vadd.f32 0.0, %v3608
      %3610 = vmatmul.bf16.gmra.mxu0 %v3105
      %v3611 = vpop.f32.mrf.mxu0
      %v3612 = vadd.f32 0.0, %v3611
      %v3613 = vpop.f32.mrf.mxu0
      %v3614 = vadd.f32 0.0, %v3613
      %3615 = vmatmul.bf16.gmra.mxu0 %v3108
      %v3616 = vpop.f32.mrf.mxu0
      %v3617 = vadd.f32 0.0, %v3616
      %v3618 = vpop.f32.mrf.mxu0
      %v3619 = vadd.f32 0.0, %v3618
      %3620 = vmatmul.bf16.gmra.mxu0 %v3111
      %v3621 = vpop.f32.mrf.mxu0
      %v3622 = vadd.f32 0.0, %v3621
      %v3623 = vpop.f32.mrf.mxu0
      %v3624 = vadd.f32 0.0, %v3623
      %3625 = vmatmul.bf16.gmra.mxu0 %v3114
      %v3626 = vpop.f32.mrf.mxu0
      %v3627 = vadd.f32 0.0, %v3626
      %v3628 = vpop.f32.mrf.mxu0
      %v3629 = vadd.f32 0.0, %v3628
      %3630 = vmatmul.bf16.gmra.mxu0 %v3117
      %v3631 = vpop.f32.mrf.mxu0
      %v3632 = vadd.f32 0.0, %v3631
      %v3633 = vpop.f32.mrf.mxu0
      %v3634 = vadd.f32 0.0, %v3633
      %3635 = vmatmul.bf16.gmra.mxu0 %v3120
      %v3636 = vpop.f32.mrf.mxu0
      %v3637 = vadd.f32 0.0, %v3636
      %v3638 = vpop.f32.mrf.mxu0
      %v3639 = vadd.f32 0.0, %v3638
      %3640 = vmatmul.bf16.gmra.mxu0 %v3123
      %v3641 = vpop.f32.mrf.mxu0
      %v3642 = vadd.f32 0.0, %v3641
      %v3643 = vpop.f32.mrf.mxu0
      %v3644 = vadd.f32 0.0, %v3643
      %3645 = vmatmul.bf16.gmra.mxu0 %v3126
      %v3646 = vpop.f32.mrf.mxu0
      %v3647 = vadd.f32 0.0, %v3646
      %v3648 = vpop.f32.mrf.mxu0
      %v3649 = vadd.f32 0.0, %v3648
      %3650 = vmatmul.bf16.gmra.mxu0 %v3129
      %v3651 = vpop.f32.mrf.mxu0
      %v3652 = vadd.f32 0.0, %v3651
      %v3653 = vpop.f32.mrf.mxu0
      %v3654 = vadd.f32 0.0, %v3653
      %3655 = vmatmul.bf16.gmra.mxu0 %v3570
      %v3656 = vpop.f32.mrf.mxu0
      %v3657 = vadd.f32 0.0, %v3656
      %v3658 = vpop.f32.mrf.mxu0
      %v3659 = vadd.f32 0.0, %v3658
      %3660 = vdwg.mxu0
      %v3661 = vadd.f32 %v3524, %v3582
      %v3662 = vadd.f32 %v3525, %v3584
      %v3663 = vadd.f32 %v3526, %v3587
      %v3664 = vadd.f32 %v3527, %v3589
      %v3665 = vadd.f32 %v3528, %v3592
      %v3666 = vadd.f32 %v3529, %v3594
      %v3667 = vadd.f32 %v3530, %v3597
      %v3668 = vadd.f32 %v3531, %v3599
      %v3669 = vadd.f32 %v3532, %v3602
      %v3670 = vadd.f32 %v3533, %v3604
      %v3671 = vadd.f32 %v3534, %v3607
      %v3672 = vadd.f32 %v3535, %v3609
      %v3673 = vadd.f32 %v3536, %v3612
      %v3674 = vadd.f32 %v3537, %v3614
      %v3675 = vadd.f32 %v3538, %v3617
      %v3676 = vadd.f32 %v3539, %v3619
      %v3677 = vadd.f32 %v3540, %v3622
      %v3678 = vadd.f32 %v3541, %v3624
      %v3679 = vadd.f32 %v3542, %v3627
      %v3680 = vadd.f32 %v3543, %v3629
      %v3681 = vadd.f32 %v3544, %v3632
      %v3682 = vadd.f32 %v3545, %v3634
      %v3683 = vadd.f32 %v3546, %v3637
      %v3684 = vadd.f32 %v3547, %v3639
      %v3685 = vadd.f32 %v3548, %v3642
      %v3686 = vadd.f32 %v3549, %v3644
      %v3687 = vadd.f32 %v3550, %v3647
      %v3688 = vadd.f32 %v3551, %v3649
      %v3689 = vadd.f32 %v3552, %v3652
      %v3690 = vadd.f32 %v3553, %v3654
      %v3691 = vadd.f32 %v3554, %v3657
      %v3692 = vadd.f32 %v3555, %v3659
      %v3693 = vpack.c.bf16 %v214, %v214
      %v3694 = vshrl.u32 %v3056, 16
      %v3696 = vshll.u32 %v3056, 16
      %v3698 = vrot.slane %v3696, 1
      %v3699 = vor.u32 %v3694, %v3698
      %v3700 = vshll.u32 %v3057, 16
      %v3702 = vrot.slane %v3700, 1
      %v3703 = vsel %vm334, %v3699, %v3702
      %v3704 = vshrl.u32 %v3057, 16
      %v3706 = vor.u32 %v3704, %v3702
      %v3707 = vshll.u32 %v3058, 16
      %v3709 = vrot.slane %v3707, 1
      %v3710 = vsel %vm334, %v3706, %v3709
      %v3711 = vshrl.u32 %v3058, 16
      %v3713 = vor.u32 %v3711, %v3709
      %v3714 = vshll.u32 %v3059, 16
      %v3716 = vrot.slane %v3714, 1
      %v3717 = vsel %vm334, %v3713, %v3716
      %v3718 = vshrl.u32 %v3059, 16
      %v3720 = vor.u32 %v3718, %v3716
      %v3721 = vshll.u32 %v3060, 16
      %v3723 = vrot.slane %v3721, 1
      %v3724 = vsel %vm334, %v3720, %v3723
      %v3725 = vshrl.u32 %v3060, 16
      %v3727 = vor.u32 %v3725, %v3723
      %v3728 = vshll.u32 %v3061, 16
      %v3730 = vrot.slane %v3728, 1
      %v3731 = vsel %vm334, %v3727, %v3730
      %v3732 = vshrl.u32 %v3061, 16
      %v3734 = vor.u32 %v3732, %v3730
      %v3735 = vshll.u32 %v3062, 16
      %v3737 = vrot.slane %v3735, 1
      %v3738 = vsel %vm334, %v3734, %v3737
      %v3739 = vshrl.u32 %v3062, 16
      %v3741 = vor.u32 %v3739, %v3737
      %v3742 = vshll.u32 %v3063, 16
      %v3744 = vrot.slane %v3742, 1
      %v3745 = vsel %vm334, %v3741, %v3744
      %v3746 = vshrl.u32 %v3063, 16
      %v3748 = vor.u32 %v3746, %v3744
      %v3749 = vshll.u32 %v3064, 16
      %v3751 = vrot.slane %v3749, 1
      %v3752 = vsel %vm334, %v3748, %v3751
      %v3753 = vshrl.u32 %v3064, 16
      %v3755 = vor.u32 %v3753, %v3751
      %v3756 = vshll.u32 %v3065, 16
      %v3758 = vrot.slane %v3756, 1
      %v3759 = vsel %vm334, %v3755, %v3758
      %v3760 = vshrl.u32 %v3065, 16
      %v3762 = vor.u32 %v3760, %v3758
      %v3763 = vshll.u32 %v3066, 16
      %v3765 = vrot.slane %v3763, 1
      %v3766 = vsel %vm334, %v3762, %v3765
      %v3767 = vshrl.u32 %v3066, 16
      %v3769 = vor.u32 %v3767, %v3765
      %v3770 = vshll.u32 %v3067, 16
      %v3772 = vrot.slane %v3770, 1
      %v3773 = vsel %vm334, %v3769, %v3772
      %v3774 = vshrl.u32 %v3067, 16
      %v3776 = vor.u32 %v3774, %v3772
      %v3777 = vshll.u32 %v3068, 16
      %v3779 = vrot.slane %v3777, 1
      %v3780 = vsel %vm334, %v3776, %v3779
      %v3781 = vshrl.u32 %v3068, 16
      %v3783 = vor.u32 %v3781, %v3779
      %v3784 = vshll.u32 %v3069, 16
      %v3786 = vrot.slane %v3784, 1
      %v3787 = vsel %vm334, %v3783, %v3786
      %v3788 = vshrl.u32 %v3069, 16
      %v3790 = vor.u32 %v3788, %v3786
      %v3791 = vshll.u32 %v3070, 16
      %v3793 = vrot.slane %v3791, 1
      %v3794 = vsel %vm334, %v3790, %v3793
      %v3795 = vshrl.u32 %v3070, 16
      %v3797 = vor.u32 %v3795, %v3793
      %v3798 = vshll.u32 %v3556, 16
      %v3800 = vrot.slane %v3798, 1
      %v3801 = vsel %vm334, %v3797, %v3800
      %v3802 = vshrl.u32 %v3556, 16
      %v3804 = vor.u32 %v3802, %v3800
      %v3806 = vshll.u32 %v3693, 16
      %v3808 = vrot.slane %v3806, 1
      %v3809 = vsel %vm334, %v3804, %v3808
      %v3814 = vunpack.c.l.b16 %v289
      %v3815 = vunpack.c.l.b16 %v290
      %v3816 = vunpack.c.l.b16 %v291
      %v3817 = vunpack.c.l.b16 %v292
      %v3818 = vpack.c.b16 %v3815, %v3814
      %v3819 = vpack.c.b16 %v3817, %v3816
      %v3823 = vsel %vm479, %v3703, 0
      %v3826 = vsel %vm479, %v3710, 0
      %v3829 = vsel %vm479, %v3717, 0
      %v3832 = vsel %vm479, %v3724, 0
      %v3835 = vsel %vm479, %v3731, 0
      %v3838 = vsel %vm479, %v3738, 0
      %v3841 = vsel %vm479, %v3745, 0
      %v3844 = vsel %vm479, %v3752, 0
      %v3847 = vsel %vm479, %v3759, 0
      %v3850 = vsel %vm479, %v3766, 0
      %v3853 = vsel %vm479, %v3773, 0
      %v3856 = vsel %vm479, %v3780, 0
      %v3859 = vsel %vm479, %v3787, 0
      %v3862 = vsel %vm479, %v3794, 0
      %v3865 = vsel %vm479, %v3801, 0
      %v3868 = vsel %vm479, %v3809, 0
      %3870 = vmatpush.bf16.msra.mxu0 0
      %3871 = vmatpush.bf16.msra.mxu0 0
      %3872 = vmatpush.bf16.msra.mxu0 0
      %3873 = vmatpush.bf16.msra.mxu0 0
      %3874 = vmatpush.bf16.msra.mxu0 0
      %3875 = vmatpush.bf16.msra.mxu0 0
      %3876 = vmatpush.bf16.msra.mxu0 %v3819
      %3877 = vmatpush.bf16.msra.mxu0 %v3818
      %3878 = vmatmul.bf16.gmra.mxu0 %v3823
      %v3879 = vpop.f32.mrf.mxu0
      %v3880 = vadd.f32 0.0, %v3879
      %v3881 = vpop.f32.mrf.mxu0
      %v3882 = vadd.f32 0.0, %v3881
      %3883 = vmatmul.bf16.gmra.mxu0 %v3826
      %v3884 = vpop.f32.mrf.mxu0
      %v3885 = vadd.f32 0.0, %v3884
      %v3886 = vpop.f32.mrf.mxu0
      %v3887 = vadd.f32 0.0, %v3886
      %3888 = vmatmul.bf16.gmra.mxu0 %v3829
      %v3889 = vpop.f32.mrf.mxu0
      %v3890 = vadd.f32 0.0, %v3889
      %v3891 = vpop.f32.mrf.mxu0
      %v3892 = vadd.f32 0.0, %v3891
      %3893 = vmatmul.bf16.gmra.mxu0 %v3832
      %v3894 = vpop.f32.mrf.mxu0
      %v3895 = vadd.f32 0.0, %v3894
      %v3896 = vpop.f32.mrf.mxu0
      %v3897 = vadd.f32 0.0, %v3896
      %3898 = vmatmul.bf16.gmra.mxu0 %v3835
      %v3899 = vpop.f32.mrf.mxu0
      %v3900 = vadd.f32 0.0, %v3899
      %v3901 = vpop.f32.mrf.mxu0
      %v3902 = vadd.f32 0.0, %v3901
      %3903 = vmatmul.bf16.gmra.mxu0 %v3838
      %v3904 = vpop.f32.mrf.mxu0
      %v3905 = vadd.f32 0.0, %v3904
      %v3906 = vpop.f32.mrf.mxu0
      %v3907 = vadd.f32 0.0, %v3906
      %3908 = vmatmul.bf16.gmra.mxu0 %v3841
      %v3909 = vpop.f32.mrf.mxu0
      %v3910 = vadd.f32 0.0, %v3909
      %v3911 = vpop.f32.mrf.mxu0
      %v3912 = vadd.f32 0.0, %v3911
      %3913 = vmatmul.bf16.gmra.mxu0 %v3844
      %v3914 = vpop.f32.mrf.mxu0
      %v3915 = vadd.f32 0.0, %v3914
      %v3916 = vpop.f32.mrf.mxu0
      %v3917 = vadd.f32 0.0, %v3916
      %3918 = vmatmul.bf16.gmra.mxu0 %v3847
      %v3919 = vpop.f32.mrf.mxu0
      %v3920 = vadd.f32 0.0, %v3919
      %v3921 = vpop.f32.mrf.mxu0
      %v3922 = vadd.f32 0.0, %v3921
      %3923 = vmatmul.bf16.gmra.mxu0 %v3850
      %v3924 = vpop.f32.mrf.mxu0
      %v3925 = vadd.f32 0.0, %v3924
      %v3926 = vpop.f32.mrf.mxu0
      %v3927 = vadd.f32 0.0, %v3926
      %3928 = vmatmul.bf16.gmra.mxu0 %v3853
      %v3929 = vpop.f32.mrf.mxu0
      %v3930 = vadd.f32 0.0, %v3929
      %v3931 = vpop.f32.mrf.mxu0
      %v3932 = vadd.f32 0.0, %v3931
      %3933 = vmatmul.bf16.gmra.mxu0 %v3856
      %v3934 = vpop.f32.mrf.mxu0
      %v3935 = vadd.f32 0.0, %v3934
      %v3936 = vpop.f32.mrf.mxu0
      %v3937 = vadd.f32 0.0, %v3936
      %3938 = vmatmul.bf16.gmra.mxu0 %v3859
      %v3939 = vpop.f32.mrf.mxu0
      %v3940 = vadd.f32 0.0, %v3939
      %v3941 = vpop.f32.mrf.mxu0
      %v3942 = vadd.f32 0.0, %v3941
      %3943 = vmatmul.bf16.gmra.mxu0 %v3862
      %v3944 = vpop.f32.mrf.mxu0
      %v3945 = vadd.f32 0.0, %v3944
      %v3946 = vpop.f32.mrf.mxu0
      %v3947 = vadd.f32 0.0, %v3946
      %3948 = vmatmul.bf16.gmra.mxu0 %v3865
      %v3949 = vpop.f32.mrf.mxu0
      %v3950 = vadd.f32 0.0, %v3949
      %v3951 = vpop.f32.mrf.mxu0
      %v3952 = vadd.f32 0.0, %v3951
      %3953 = vmatmul.bf16.gmra.mxu0 %v3868
      %v3954 = vpop.f32.mrf.mxu0
      %v3955 = vadd.f32 0.0, %v3954
      %v3956 = vpop.f32.mrf.mxu0
      %v3957 = vadd.f32 0.0, %v3956
      %3958 = vdwg.mxu0
      %v3959 = vadd.f32 %v3661, %v3880
      %v3960 = vadd.f32 %v3662, %v3882
      %v3961 = vadd.f32 %v3663, %v3885
      %v3962 = vadd.f32 %v3664, %v3887
      %v3963 = vadd.f32 %v3665, %v3890
      %v3964 = vadd.f32 %v3666, %v3892
      %v3965 = vadd.f32 %v3667, %v3895
      %v3966 = vadd.f32 %v3668, %v3897
      %v3967 = vadd.f32 %v3669, %v3900
      %v3968 = vadd.f32 %v3670, %v3902
      %v3969 = vadd.f32 %v3671, %v3905
      %v3970 = vadd.f32 %v3672, %v3907
      %v3971 = vadd.f32 %v3673, %v3910
      %v3972 = vadd.f32 %v3674, %v3912
      %v3973 = vadd.f32 %v3675, %v3915
      %v3974 = vadd.f32 %v3676, %v3917
      %v3975 = vadd.f32 %v3677, %v3920
      %v3976 = vadd.f32 %v3678, %v3922
      %v3977 = vadd.f32 %v3679, %v3925
      %v3978 = vadd.f32 %v3680, %v3927
      %v3979 = vadd.f32 %v3681, %v3930
      %v3980 = vadd.f32 %v3682, %v3932
      %v3981 = vadd.f32 %v3683, %v3935
      %v3982 = vadd.f32 %v3684, %v3937
      %v3983 = vadd.f32 %v3685, %v3940
      %v3984 = vadd.f32 %v3686, %v3942
      %v3985 = vadd.f32 %v3687, %v3945
      %v3986 = vadd.f32 %v3688, %v3947
      %v3987 = vadd.f32 %v3689, %v3950
      %v3988 = vadd.f32 %v3690, %v3952
      %v3989 = vadd.f32 %v3691, %v3955
      %v3990 = vadd.f32 %v3692, %v3957
      %v4008 = vrot.slane %v3056, 1
      %v4009 = vrot.slane %v3057, 1
      %v4010 = vsel %vm767, %v4008, %v4009
      %v4011 = vrot.slane %v3058, 1
      %v4012 = vsel %vm767, %v4009, %v4011
      %v4013 = vrot.slane %v3059, 1
      %v4014 = vsel %vm767, %v4011, %v4013
      %v4015 = vrot.slane %v3060, 1
      %v4016 = vsel %vm767, %v4013, %v4015
      %v4017 = vrot.slane %v3061, 1
      %v4018 = vsel %vm767, %v4015, %v4017
      %v4019 = vrot.slane %v3062, 1
      %v4020 = vsel %vm767, %v4017, %v4019
      %v4021 = vrot.slane %v3063, 1
      %v4022 = vsel %vm767, %v4019, %v4021
      %v4023 = vrot.slane %v3064, 1
      %v4024 = vsel %vm767, %v4021, %v4023
      %v4025 = vrot.slane %v3065, 1
      %v4026 = vsel %vm767, %v4023, %v4025
      %v4027 = vrot.slane %v3066, 1
      %v4028 = vsel %vm767, %v4025, %v4027
      %v4029 = vrot.slane %v3067, 1
      %v4030 = vsel %vm767, %v4027, %v4029
      %v4031 = vrot.slane %v3068, 1
      %v4032 = vsel %vm767, %v4029, %v4031
      %v4033 = vrot.slane %v3069, 1
      %v4034 = vsel %vm767, %v4031, %v4033
      %v4035 = vrot.slane %v3070, 1
      %v4036 = vsel %vm767, %v4033, %v4035
      %v4037 = vrot.slane %v3556, 1
      %v4038 = vsel %vm767, %v4035, %v4037
      %v4039 = vrot.slane %v3693, 1
      %v4040 = vsel %vm767, %v4037, %v4039
      %v4045 = vunpack.c.l.b16 %v293
      %v4046 = vunpack.c.l.b16 %v294
      %v4047 = vunpack.c.l.b16 %v295
      %v4048 = vunpack.c.l.b16 %v296
      %v4049 = vpack.c.b16 %v4046, %v4045
      %v4050 = vpack.c.b16 %v4048, %v4047
      %v4054 = vsel %vm479, %v4010, 0
      %v4057 = vsel %vm479, %v4012, 0
      %v4060 = vsel %vm479, %v4014, 0
      %v4063 = vsel %vm479, %v4016, 0
      %v4066 = vsel %vm479, %v4018, 0
      %v4069 = vsel %vm479, %v4020, 0
      %v4072 = vsel %vm479, %v4022, 0
      %v4075 = vsel %vm479, %v4024, 0
      %v4078 = vsel %vm479, %v4026, 0
      %v4081 = vsel %vm479, %v4028, 0
      %v4084 = vsel %vm479, %v4030, 0
      %v4087 = vsel %vm479, %v4032, 0
      %v4090 = vsel %vm479, %v4034, 0
      %v4093 = vsel %vm479, %v4036, 0
      %v4096 = vsel %vm479, %v4038, 0
      %v4099 = vsel %vm479, %v4040, 0
      %4101 = vmatpush.bf16.msra.mxu0 0
      %4102 = vmatpush.bf16.msra.mxu0 0
      %4103 = vmatpush.bf16.msra.mxu0 0
      %4104 = vmatpush.bf16.msra.mxu0 0
      %4105 = vmatpush.bf16.msra.mxu0 0
      %4106 = vmatpush.bf16.msra.mxu0 0
      %4107 = vmatpush.bf16.msra.mxu0 %v4050
      %4108 = vmatpush.bf16.msra.mxu0 %v4049
      %4109 = vmatmul.bf16.gmra.mxu0 %v4054
      %v4110 = vpop.f32.mrf.mxu0
      %v4111 = vadd.f32 0.0, %v4110
      %v4112 = vpop.f32.mrf.mxu0
      %v4113 = vadd.f32 0.0, %v4112
      %4114 = vmatmul.bf16.gmra.mxu0 %v4057
      %v4115 = vpop.f32.mrf.mxu0
      %v4116 = vadd.f32 0.0, %v4115
      %v4117 = vpop.f32.mrf.mxu0
      %v4118 = vadd.f32 0.0, %v4117
      %4119 = vmatmul.bf16.gmra.mxu0 %v4060
      %v4120 = vpop.f32.mrf.mxu0
      %v4121 = vadd.f32 0.0, %v4120
      %v4122 = vpop.f32.mrf.mxu0
      %v4123 = vadd.f32 0.0, %v4122
      %4124 = vmatmul.bf16.gmra.mxu0 %v4063
      %v4125 = vpop.f32.mrf.mxu0
      %v4126 = vadd.f32 0.0, %v4125
      %v4127 = vpop.f32.mrf.mxu0
      %v4128 = vadd.f32 0.0, %v4127
      %4129 = vmatmul.bf16.gmra.mxu0 %v4066
      %v4130 = vpop.f32.mrf.mxu0
      %v4131 = vadd.f32 0.0, %v4130
      %v4132 = vpop.f32.mrf.mxu0
      %v4133 = vadd.f32 0.0, %v4132
      %4134 = vmatmul.bf16.gmra.mxu0 %v4069
      %v4135 = vpop.f32.mrf.mxu0
      %v4136 = vadd.f32 0.0, %v4135
      %v4137 = vpop.f32.mrf.mxu0
      %v4138 = vadd.f32 0.0, %v4137
      %4139 = vmatmul.bf16.gmra.mxu0 %v4072
      %v4140 = vpop.f32.mrf.mxu0
      %v4141 = vadd.f32 0.0, %v4140
      %v4142 = vpop.f32.mrf.mxu0
      %v4143 = vadd.f32 0.0, %v4142
      %4144 = vmatmul.bf16.gmra.mxu0 %v4075
      %v4145 = vpop.f32.mrf.mxu0
      %v4146 = vadd.f32 0.0, %v4145
      %v4147 = vpop.f32.mrf.mxu0
      %v4148 = vadd.f32 0.0, %v4147
      %4149 = vmatmul.bf16.gmra.mxu0 %v4078
      %v4150 = vpop.f32.mrf.mxu0
      %v4151 = vadd.f32 0.0, %v4150
      %v4152 = vpop.f32.mrf.mxu0
      %v4153 = vadd.f32 0.0, %v4152
      %4154 = vmatmul.bf16.gmra.mxu0 %v4081
      %v4155 = vpop.f32.mrf.mxu0
      %v4156 = vadd.f32 0.0, %v4155
      %v4157 = vpop.f32.mrf.mxu0
      %v4158 = vadd.f32 0.0, %v4157
      %4159 = vmatmul.bf16.gmra.mxu0 %v4084
      %v4160 = vpop.f32.mrf.mxu0
      %v4161 = vadd.f32 0.0, %v4160
      %v4162 = vpop.f32.mrf.mxu0
      %v4163 = vadd.f32 0.0, %v4162
      %4164 = vmatmul.bf16.gmra.mxu0 %v4087
      %v4165 = vpop.f32.mrf.mxu0
      %v4166 = vadd.f32 0.0, %v4165
      %v4167 = vpop.f32.mrf.mxu0
      %v4168 = vadd.f32 0.0, %v4167
      %4169 = vmatmul.bf16.gmra.mxu0 %v4090
      %v4170 = vpop.f32.mrf.mxu0
      %v4171 = vadd.f32 0.0, %v4170
      %v4172 = vpop.f32.mrf.mxu0
      %v4173 = vadd.f32 0.0, %v4172
      %4174 = vmatmul.bf16.gmra.mxu0 %v4093
      %v4175 = vpop.f32.mrf.mxu0
      %v4176 = vadd.f32 0.0, %v4175
      %v4177 = vpop.f32.mrf.mxu0
      %v4178 = vadd.f32 0.0, %v4177
      %4179 = vmatmul.bf16.gmra.mxu0 %v4096
      %v4180 = vpop.f32.mrf.mxu0
      %v4181 = vadd.f32 0.0, %v4180
      %v4182 = vpop.f32.mrf.mxu0
      %v4183 = vadd.f32 0.0, %v4182
      %4184 = vmatmul.bf16.gmra.mxu0 %v4099
      %v4185 = vpop.f32.mrf.mxu0
      %v4186 = vadd.f32 0.0, %v4185
      %v4187 = vpop.f32.mrf.mxu0
      %v4188 = vadd.f32 0.0, %v4187
      %4189 = vdwg.mxu0
      %v4190 = vadd.f32 %v3959, %v4111
      %v4191 = vadd.f32 %v3960, %v4113
      %v4192 = vadd.f32 %v3961, %v4116
      %v4193 = vadd.f32 %v3962, %v4118
      %v4194 = vadd.f32 %v3963, %v4121
      %v4195 = vadd.f32 %v3964, %v4123
      %v4196 = vadd.f32 %v3965, %v4126
      %v4197 = vadd.f32 %v3966, %v4128
      %v4198 = vadd.f32 %v3967, %v4131
      %v4199 = vadd.f32 %v3968, %v4133
      %v4200 = vadd.f32 %v3969, %v4136
      %v4201 = vadd.f32 %v3970, %v4138
      %v4202 = vadd.f32 %v3971, %v4141
      %v4203 = vadd.f32 %v3972, %v4143
      %v4204 = vadd.f32 %v3973, %v4146
      %v4205 = vadd.f32 %v3974, %v4148
      %v4206 = vadd.f32 %v3975, %v4151
      %v4207 = vadd.f32 %v3976, %v4153
      %v4208 = vadd.f32 %v3977, %v4156
      %v4209 = vadd.f32 %v3978, %v4158
      %v4210 = vadd.f32 %v3979, %v4161
      %v4211 = vadd.f32 %v3980, %v4163
      %v4212 = vadd.f32 %v3981, %v4166
      %v4213 = vadd.f32 %v3982, %v4168
      %v4214 = vadd.f32 %v3983, %v4171
      %v4215 = vadd.f32 %v3984, %v4173
      %v4216 = vadd.f32 %v3985, %v4176
      %v4217 = vadd.f32 %v3986, %v4178
      %v4218 = vadd.f32 %v3987, %v4181
      %v4219 = vadd.f32 %v3988, %v4183
      %v4220 = vadd.f32 %v3989, %v4186
      %v4221 = vadd.f32 %v3990, %v4188
      %v4222 = vpack.c.bf16 %v215, %v214
      %v4227 = vunpack.c.l.b16 %v297
      %v4228 = vunpack.c.l.b16 %v298
      %v4229 = vunpack.c.l.b16 %v299
      %v4230 = vunpack.c.l.b16 %v300
      %v4231 = vpack.c.b16 %v4228, %v4227
      %v4232 = vpack.c.b16 %v4230, %v4229
      %v4236 = vsel %vm479, %v4222, 0
      %4238 = vmatpush.bf16.msra.mxu0 0
      %4239 = vmatpush.bf16.msra.mxu0 0
      %4240 = vmatpush.bf16.msra.mxu0 0
      %4241 = vmatpush.bf16.msra.mxu0 0
      %4242 = vmatpush.bf16.msra.mxu0 0
      %4243 = vmatpush.bf16.msra.mxu0 0
      %4244 = vmatpush.bf16.msra.mxu0 %v4232
      %4245 = vmatpush.bf16.msra.mxu0 %v4231
      %4246 = vmatmul.bf16.gmra.mxu0 %v3090
      %v4247 = vpop.f32.mrf.mxu0
      %v4248 = vadd.f32 0.0, %v4247
      %v4249 = vpop.f32.mrf.mxu0
      %v4250 = vadd.f32 0.0, %v4249
      %4251 = vmatmul.bf16.gmra.mxu0 %v3093
      %v4252 = vpop.f32.mrf.mxu0
      %v4253 = vadd.f32 0.0, %v4252
      %v4254 = vpop.f32.mrf.mxu0
      %v4255 = vadd.f32 0.0, %v4254
      %4256 = vmatmul.bf16.gmra.mxu0 %v3096
      %v4257 = vpop.f32.mrf.mxu0
      %v4258 = vadd.f32 0.0, %v4257
      %v4259 = vpop.f32.mrf.mxu0
      %v4260 = vadd.f32 0.0, %v4259
      %4261 = vmatmul.bf16.gmra.mxu0 %v3099
      %v4262 = vpop.f32.mrf.mxu0
      %v4263 = vadd.f32 0.0, %v4262
      %v4264 = vpop.f32.mrf.mxu0
      %v4265 = vadd.f32 0.0, %v4264
      %4266 = vmatmul.bf16.gmra.mxu0 %v3102
      %v4267 = vpop.f32.mrf.mxu0
      %v4268 = vadd.f32 0.0, %v4267
      %v4269 = vpop.f32.mrf.mxu0
      %v4270 = vadd.f32 0.0, %v4269
      %4271 = vmatmul.bf16.gmra.mxu0 %v3105
      %v4272 = vpop.f32.mrf.mxu0
      %v4273 = vadd.f32 0.0, %v4272
      %v4274 = vpop.f32.mrf.mxu0
      %v4275 = vadd.f32 0.0, %v4274
      %4276 = vmatmul.bf16.gmra.mxu0 %v3108
      %v4277 = vpop.f32.mrf.mxu0
      %v4278 = vadd.f32 0.0, %v4277
      %v4279 = vpop.f32.mrf.mxu0
      %v4280 = vadd.f32 0.0, %v4279
      %4281 = vmatmul.bf16.gmra.mxu0 %v3111
      %v4282 = vpop.f32.mrf.mxu0
      %v4283 = vadd.f32 0.0, %v4282
      %v4284 = vpop.f32.mrf.mxu0
      %v4285 = vadd.f32 0.0, %v4284
      %4286 = vmatmul.bf16.gmra.mxu0 %v3114
      %v4287 = vpop.f32.mrf.mxu0
      %v4288 = vadd.f32 0.0, %v4287
      %v4289 = vpop.f32.mrf.mxu0
      %v4290 = vadd.f32 0.0, %v4289
      %4291 = vmatmul.bf16.gmra.mxu0 %v3117
      %v4292 = vpop.f32.mrf.mxu0
      %v4293 = vadd.f32 0.0, %v4292
      %v4294 = vpop.f32.mrf.mxu0
      %v4295 = vadd.f32 0.0, %v4294
      %4296 = vmatmul.bf16.gmra.mxu0 %v3120
      %v4297 = vpop.f32.mrf.mxu0
      %v4298 = vadd.f32 0.0, %v4297
      %v4299 = vpop.f32.mrf.mxu0
      %v4300 = vadd.f32 0.0, %v4299
      %4301 = vmatmul.bf16.gmra.mxu0 %v3123
      %v4302 = vpop.f32.mrf.mxu0
      %v4303 = vadd.f32 0.0, %v4302
      %v4304 = vpop.f32.mrf.mxu0
      %v4305 = vadd.f32 0.0, %v4304
      %4306 = vmatmul.bf16.gmra.mxu0 %v3126
      %v4307 = vpop.f32.mrf.mxu0
      %v4308 = vadd.f32 0.0, %v4307
      %v4309 = vpop.f32.mrf.mxu0
      %v4310 = vadd.f32 0.0, %v4309
      %4311 = vmatmul.bf16.gmra.mxu0 %v3129
      %v4312 = vpop.f32.mrf.mxu0
      %v4313 = vadd.f32 0.0, %v4312
      %v4314 = vpop.f32.mrf.mxu0
      %v4315 = vadd.f32 0.0, %v4314
      %4316 = vmatmul.bf16.gmra.mxu0 %v3570
      %v4317 = vpop.f32.mrf.mxu0
      %v4318 = vadd.f32 0.0, %v4317
      %v4319 = vpop.f32.mrf.mxu0
      %v4320 = vadd.f32 0.0, %v4319
      %4321 = vmatmul.bf16.gmra.mxu0 %v4236
      %v4322 = vpop.f32.mrf.mxu0
      %v4323 = vadd.f32 0.0, %v4322
      %v4324 = vpop.f32.mrf.mxu0
      %v4325 = vadd.f32 0.0, %v4324
      %4326 = vdwg.mxu0
      %v4327 = vadd.f32 %v4190, %v4248
      %v4328 = vadd.f32 %v4191, %v4250
      %v4329 = vadd.f32 %v4192, %v4253
      %v4330 = vadd.f32 %v4193, %v4255
      %v4331 = vadd.f32 %v4194, %v4258
      %v4332 = vadd.f32 %v4195, %v4260
      %v4333 = vadd.f32 %v4196, %v4263
      %v4334 = vadd.f32 %v4197, %v4265
      %v4335 = vadd.f32 %v4198, %v4268
      %v4336 = vadd.f32 %v4199, %v4270
      %v4337 = vadd.f32 %v4200, %v4273
      %v4338 = vadd.f32 %v4201, %v4275
      %v4339 = vadd.f32 %v4202, %v4278
      %v4340 = vadd.f32 %v4203, %v4280
      %v4341 = vadd.f32 %v4204, %v4283
      %v4342 = vadd.f32 %v4205, %v4285
      %v4343 = vadd.f32 %v4206, %v4288
      %v4344 = vadd.f32 %v4207, %v4290
      %v4345 = vadd.f32 %v4208, %v4293
      %v4346 = vadd.f32 %v4209, %v4295
      %v4347 = vadd.f32 %v4210, %v4298
      %v4348 = vadd.f32 %v4211, %v4300
      %v4349 = vadd.f32 %v4212, %v4303
      %v4350 = vadd.f32 %v4213, %v4305
      %v4351 = vadd.f32 %v4214, %v4308
      %v4352 = vadd.f32 %v4215, %v4310
      %v4353 = vadd.f32 %v4216, %v4313
      %v4354 = vadd.f32 %v4217, %v4315
      %v4355 = vadd.f32 %v4218, %v4318
      %v4356 = vadd.f32 %v4219, %v4320
      %v4357 = vadd.f32 %v4220, %v4323
      %v4358 = vadd.f32 %v4221, %v4325
      %v4359 = vpack.c.bf16 %v216, %v216
      %v4360 = vshll.u32 %v4222, 16
      %v4362 = vrot.slane %v4360, 1
      %v4363 = vsel %vm334, %v3804, %v4362
      %v4364 = vshrl.u32 %v4222, 16
      %v4366 = vor.u32 %v4364, %v4362
      %v4368 = vshll.u32 %v4359, 16
      %v4370 = vrot.slane %v4368, 1
      %v4371 = vsel %vm334, %v4366, %v4370
      %v4376 = vunpack.c.l.b16 %v301
      %v4377 = vunpack.c.l.b16 %v302
      %v4378 = vunpack.c.l.b16 %v303
      %v4379 = vunpack.c.l.b16 %v304
      %v4380 = vpack.c.b16 %v4377, %v4376
      %v4381 = vpack.c.b16 %v4379, %v4378
      %v4385 = vsel %vm479, %v4363, 0
      %v4388 = vsel %vm479, %v4371, 0
      %4390 = vmatpush.bf16.msra.mxu0 0
      %4391 = vmatpush.bf16.msra.mxu0 0
      %4392 = vmatpush.bf16.msra.mxu0 0
      %4393 = vmatpush.bf16.msra.mxu0 0
      %4394 = vmatpush.bf16.msra.mxu0 0
      %4395 = vmatpush.bf16.msra.mxu0 0
      %4396 = vmatpush.bf16.msra.mxu0 %v4381
      %4397 = vmatpush.bf16.msra.mxu0 %v4380
      %4398 = vmatmul.bf16.gmra.mxu0 %v3826
      %v4399 = vpop.f32.mrf.mxu0
      %v4400 = vadd.f32 0.0, %v4399
      %v4401 = vpop.f32.mrf.mxu0
      %v4402 = vadd.f32 0.0, %v4401
      %4403 = vmatmul.bf16.gmra.mxu0 %v3829
      %v4404 = vpop.f32.mrf.mxu0
      %v4405 = vadd.f32 0.0, %v4404
      %v4406 = vpop.f32.mrf.mxu0
      %v4407 = vadd.f32 0.0, %v4406
      %4408 = vmatmul.bf16.gmra.mxu0 %v3832
      %v4409 = vpop.f32.mrf.mxu0
      %v4410 = vadd.f32 0.0, %v4409
      %v4411 = vpop.f32.mrf.mxu0
      %v4412 = vadd.f32 0.0, %v4411
      %4413 = vmatmul.bf16.gmra.mxu0 %v3835
      %v4414 = vpop.f32.mrf.mxu0
      %v4415 = vadd.f32 0.0, %v4414
      %v4416 = vpop.f32.mrf.mxu0
      %v4417 = vadd.f32 0.0, %v4416
      %4418 = vmatmul.bf16.gmra.mxu0 %v3838
      %v4419 = vpop.f32.mrf.mxu0
      %v4420 = vadd.f32 0.0, %v4419
      %v4421 = vpop.f32.mrf.mxu0
      %v4422 = vadd.f32 0.0, %v4421
      %4423 = vmatmul.bf16.gmra.mxu0 %v3841
      %v4424 = vpop.f32.mrf.mxu0
      %v4425 = vadd.f32 0.0, %v4424
      %v4426 = vpop.f32.mrf.mxu0
      %v4427 = vadd.f32 0.0, %v4426
      %4428 = vmatmul.bf16.gmra.mxu0 %v3844
      %v4429 = vpop.f32.mrf.mxu0
      %v4430 = vadd.f32 0.0, %v4429
      %v4431 = vpop.f32.mrf.mxu0
      %v4432 = vadd.f32 0.0, %v4431
      %4433 = vmatmul.bf16.gmra.mxu0 %v3847
      %v4434 = vpop.f32.mrf.mxu0
      %v4435 = vadd.f32 0.0, %v4434
      %v4436 = vpop.f32.mrf.mxu0
      %v4437 = vadd.f32 0.0, %v4436
      %4438 = vmatmul.bf16.gmra.mxu0 %v3850
      %v4439 = vpop.f32.mrf.mxu0
      %v4440 = vadd.f32 0.0, %v4439
      %v4441 = vpop.f32.mrf.mxu0
      %v4442 = vadd.f32 0.0, %v4441
      %4443 = vmatmul.bf16.gmra.mxu0 %v3853
      %v4444 = vpop.f32.mrf.mxu0
      %v4445 = vadd.f32 0.0, %v4444
      %v4446 = vpop.f32.mrf.mxu0
      %v4447 = vadd.f32 0.0, %v4446
      %4448 = vmatmul.bf16.gmra.mxu0 %v3856
      %v4449 = vpop.f32.mrf.mxu0
      %v4450 = vadd.f32 0.0, %v4449
      %v4451 = vpop.f32.mrf.mxu0
      %v4452 = vadd.f32 0.0, %v4451
      %4453 = vmatmul.bf16.gmra.mxu0 %v3859
      %v4454 = vpop.f32.mrf.mxu0
      %v4455 = vadd.f32 0.0, %v4454
      %v4456 = vpop.f32.mrf.mxu0
      %v4457 = vadd.f32 0.0, %v4456
      %4458 = vmatmul.bf16.gmra.mxu0 %v3862
      %v4459 = vpop.f32.mrf.mxu0
      %v4460 = vadd.f32 0.0, %v4459
      %v4461 = vpop.f32.mrf.mxu0
      %v4462 = vadd.f32 0.0, %v4461
      %4463 = vmatmul.bf16.gmra.mxu0 %v3865
      %v4464 = vpop.f32.mrf.mxu0
      %v4465 = vadd.f32 0.0, %v4464
      %v4466 = vpop.f32.mrf.mxu0
      %v4467 = vadd.f32 0.0, %v4466
      %4468 = vmatmul.bf16.gmra.mxu0 %v4385
      %v4469 = vpop.f32.mrf.mxu0
      %v4470 = vadd.f32 0.0, %v4469
      %v4471 = vpop.f32.mrf.mxu0
      %v4472 = vadd.f32 0.0, %v4471
      %4473 = vmatmul.bf16.gmra.mxu0 %v4388
      %v4474 = vpop.f32.mrf.mxu0
      %v4475 = vadd.f32 0.0, %v4474
      %v4476 = vpop.f32.mrf.mxu0
      %v4477 = vadd.f32 0.0, %v4476
      %4478 = vdwg.mxu0
      %v4479 = vadd.f32 %v4327, %v4400
      %v4480 = vadd.f32 %v4328, %v4402
      %v4481 = vadd.f32 %v4329, %v4405
      %v4482 = vadd.f32 %v4330, %v4407
      %v4483 = vadd.f32 %v4331, %v4410
      %v4484 = vadd.f32 %v4332, %v4412
      %v4485 = vadd.f32 %v4333, %v4415
      %v4486 = vadd.f32 %v4334, %v4417
      %v4487 = vadd.f32 %v4335, %v4420
      %v4488 = vadd.f32 %v4336, %v4422
      %v4489 = vadd.f32 %v4337, %v4425
      %v4490 = vadd.f32 %v4338, %v4427
      %v4491 = vadd.f32 %v4339, %v4430
      %v4492 = vadd.f32 %v4340, %v4432
      %v4493 = vadd.f32 %v4341, %v4435
      %v4494 = vadd.f32 %v4342, %v4437
      %v4495 = vadd.f32 %v4343, %v4440
      %v4496 = vadd.f32 %v4344, %v4442
      %v4497 = vadd.f32 %v4345, %v4445
      %v4498 = vadd.f32 %v4346, %v4447
      %v4499 = vadd.f32 %v4347, %v4450
      %v4500 = vadd.f32 %v4348, %v4452
      %v4501 = vadd.f32 %v4349, %v4455
      %v4502 = vadd.f32 %v4350, %v4457
      %v4503 = vadd.f32 %v4351, %v4460
      %v4504 = vadd.f32 %v4352, %v4462
      %v4505 = vadd.f32 %v4353, %v4465
      %v4506 = vadd.f32 %v4354, %v4467
      %v4507 = vadd.f32 %v4355, %v4470
      %v4508 = vadd.f32 %v4356, %v4472
      %v4509 = vadd.f32 %v4357, %v4475
      %v4510 = vadd.f32 %v4358, %v4477
      %v4513 = vrot.slane %v4222, 1
      %v4514 = vsel %vm767, %v4037, %v4513
      %v4515 = vrot.slane %v4359, 1
      %v4516 = vsel %vm767, %v4513, %v4515
      %v4521 = vunpack.c.l.b16 %v305
      %v4522 = vunpack.c.l.b16 %v306
      %v4523 = vunpack.c.l.b16 %v307
      %v4524 = vunpack.c.l.b16 %v308
      %v4525 = vpack.c.b16 %v4522, %v4521
      %v4526 = vpack.c.b16 %v4524, %v4523
      %v4530 = vsel %vm479, %v4514, 0
      %v4533 = vsel %vm479, %v4516, 0
      %4535 = vmatpush.bf16.msra.mxu0 0
      %4536 = vmatpush.bf16.msra.mxu0 0
      %4537 = vmatpush.bf16.msra.mxu0 0
      %4538 = vmatpush.bf16.msra.mxu0 0
      %4539 = vmatpush.bf16.msra.mxu0 0
      %4540 = vmatpush.bf16.msra.mxu0 0
      %4541 = vmatpush.bf16.msra.mxu0 %v4526
      %4542 = vmatpush.bf16.msra.mxu0 %v4525
      %4543 = vmatmul.bf16.gmra.mxu0 %v4057
      %v4544 = vpop.f32.mrf.mxu0
      %v4545 = vadd.f32 0.0, %v4544
      %v4546 = vpop.f32.mrf.mxu0
      %v4547 = vadd.f32 0.0, %v4546
      %4548 = vmatmul.bf16.gmra.mxu0 %v4060
      %v4549 = vpop.f32.mrf.mxu0
      %v4550 = vadd.f32 0.0, %v4549
      %v4551 = vpop.f32.mrf.mxu0
      %v4552 = vadd.f32 0.0, %v4551
      %4553 = vmatmul.bf16.gmra.mxu0 %v4063
      %v4554 = vpop.f32.mrf.mxu0
      %v4555 = vadd.f32 0.0, %v4554
      %v4556 = vpop.f32.mrf.mxu0
      %v4557 = vadd.f32 0.0, %v4556
      %4558 = vmatmul.bf16.gmra.mxu0 %v4066
      %v4559 = vpop.f32.mrf.mxu0
      %v4560 = vadd.f32 0.0, %v4559
      %v4561 = vpop.f32.mrf.mxu0
      %v4562 = vadd.f32 0.0, %v4561
      %4563 = vmatmul.bf16.gmra.mxu0 %v4069
      %v4564 = vpop.f32.mrf.mxu0
      %v4565 = vadd.f32 0.0, %v4564
      %v4566 = vpop.f32.mrf.mxu0
      %v4567 = vadd.f32 0.0, %v4566
      %4568 = vmatmul.bf16.gmra.mxu0 %v4072
      %v4569 = vpop.f32.mrf.mxu0
      %v4570 = vadd.f32 0.0, %v4569
      %v4571 = vpop.f32.mrf.mxu0
      %v4572 = vadd.f32 0.0, %v4571
      %4573 = vmatmul.bf16.gmra.mxu0 %v4075
      %v4574 = vpop.f32.mrf.mxu0
      %v4575 = vadd.f32 0.0, %v4574
      %v4576 = vpop.f32.mrf.mxu0
      %v4577 = vadd.f32 0.0, %v4576
      %4578 = vmatmul.bf16.gmra.mxu0 %v4078
      %v4579 = vpop.f32.mrf.mxu0
      %v4580 = vadd.f32 0.0, %v4579
      %v4581 = vpop.f32.mrf.mxu0
      %v4582 = vadd.f32 0.0, %v4581
      %4583 = vmatmul.bf16.gmra.mxu0 %v4081
      %v4584 = vpop.f32.mrf.mxu0
      %v4585 = vadd.f32 0.0, %v4584
      %v4586 = vpop.f32.mrf.mxu0
      %v4587 = vadd.f32 0.0, %v4586
      %4588 = vmatmul.bf16.gmra.mxu0 %v4084
      %v4589 = vpop.f32.mrf.mxu0
      %v4590 = vadd.f32 0.0, %v4589
      %v4591 = vpop.f32.mrf.mxu0
      %v4592 = vadd.f32 0.0, %v4591
      %4593 = vmatmul.bf16.gmra.mxu0 %v4087
      %v4594 = vpop.f32.mrf.mxu0
      %v4595 = vadd.f32 0.0, %v4594
      %v4596 = vpop.f32.mrf.mxu0
      %v4597 = vadd.f32 0.0, %v4596
      %4598 = vmatmul.bf16.gmra.mxu0 %v4090
      %v4599 = vpop.f32.mrf.mxu0
      %v4600 = vadd.f32 0.0, %v4599
      %v4601 = vpop.f32.mrf.mxu0
      %v4602 = vadd.f32 0.0, %v4601
      %4603 = vmatmul.bf16.gmra.mxu0 %v4093
      %v4604 = vpop.f32.mrf.mxu0
      %v4605 = vadd.f32 0.0, %v4604
      %v4606 = vpop.f32.mrf.mxu0
      %v4607 = vadd.f32 0.0, %v4606
      %4608 = vmatmul.bf16.gmra.mxu0 %v4096
      %v4609 = vpop.f32.mrf.mxu0
      %v4610 = vadd.f32 0.0, %v4609
      %v4611 = vpop.f32.mrf.mxu0
      %v4612 = vadd.f32 0.0, %v4611
      %4613 = vmatmul.bf16.gmra.mxu0 %v4530
      %v4614 = vpop.f32.mrf.mxu0
      %v4615 = vadd.f32 0.0, %v4614
      %v4616 = vpop.f32.mrf.mxu0
      %v4617 = vadd.f32 0.0, %v4616
      %4618 = vmatmul.bf16.gmra.mxu0 %v4533
      %v4619 = vpop.f32.mrf.mxu0
      %v4620 = vadd.f32 0.0, %v4619
      %v4621 = vpop.f32.mrf.mxu0
      %v4622 = vadd.f32 0.0, %v4621
      %4623 = vdwg.mxu0
      %v4624 = vadd.f32 %v4479, %v4545
      %v4625 = vadd.f32 %v4480, %v4547
      %v4626 = vadd.f32 %v4481, %v4550
      %v4627 = vadd.f32 %v4482, %v4552
      %v4628 = vadd.f32 %v4483, %v4555
      %v4629 = vadd.f32 %v4484, %v4557
      %v4630 = vadd.f32 %v4485, %v4560
      %v4631 = vadd.f32 %v4486, %v4562
      %v4632 = vadd.f32 %v4487, %v4565
      %v4633 = vadd.f32 %v4488, %v4567
      %v4634 = vadd.f32 %v4489, %v4570
      %v4635 = vadd.f32 %v4490, %v4572
      %v4636 = vadd.f32 %v4491, %v4575
      %v4637 = vadd.f32 %v4492, %v4577
      %v4638 = vadd.f32 %v4493, %v4580
      %v4639 = vadd.f32 %v4494, %v4582
      %v4640 = vadd.f32 %v4495, %v4585
      %v4641 = vadd.f32 %v4496, %v4587
      %v4642 = vadd.f32 %v4497, %v4590
      %v4643 = vadd.f32 %v4498, %v4592
      %v4644 = vadd.f32 %v4499, %v4595
      %v4645 = vadd.f32 %v4500, %v4597
      %v4646 = vadd.f32 %v4501, %v4600
      %v4647 = vadd.f32 %v4502, %v4602
      %v4648 = vadd.f32 %v4503, %v4605
      %v4649 = vadd.f32 %v4504, %v4607
      %v4650 = vadd.f32 %v4505, %v4610
      %v4651 = vadd.f32 %v4506, %v4612
      %v4652 = vadd.f32 %v4507, %v4615
      %v4653 = vadd.f32 %v4508, %v4617
      %v4654 = vadd.f32 %v4509, %v4620
      %v4655 = vadd.f32 %v4510, %v4622
      %v4656 = vrot.slane %v3704, 1
      %v4657 = vrot.slane %v3700, 2
      %v4658 = vor.u32 %v4656, %v4657
      %v4659 = vrot.slane %v3711, 1
      %v4660 = vrot.slane %v3707, 2
      %v4661 = vor.u32 %v4659, %v4660
      %v4662 = vsel %vm982, %v4658, %v4661
      %v4663 = vrot.slane %v3718, 1
      %v4664 = vrot.slane %v3714, 2
      %v4665 = vor.u32 %v4663, %v4664
      %v4666 = vsel %vm982, %v4661, %v4665
      %v4667 = vrot.slane %v3725, 1
      %v4668 = vrot.slane %v3721, 2
      %v4669 = vor.u32 %v4667, %v4668
      %v4670 = vsel %vm982, %v4665, %v4669
      %v4671 = vrot.slane %v3732, 1
      %v4672 = vrot.slane %v3728, 2
      %v4673 = vor.u32 %v4671, %v4672
      %v4674 = vsel %vm982, %v4669, %v4673
      %v4675 = vrot.slane %v3739, 1
      %v4676 = vrot.slane %v3735, 2
      %v4677 = vor.u32 %v4675, %v4676
      %v4678 = vsel %vm982, %v4673, %v4677
      %v4679 = vrot.slane %v3746, 1
      %v4680 = vrot.slane %v3742, 2
      %v4681 = vor.u32 %v4679, %v4680
      %v4682 = vsel %vm982, %v4677, %v4681
      %v4683 = vrot.slane %v3753, 1
      %v4684 = vrot.slane %v3749, 2
      %v4685 = vor.u32 %v4683, %v4684
      %v4686 = vsel %vm982, %v4681, %v4685
      %v4687 = vrot.slane %v3760, 1
      %v4688 = vrot.slane %v3756, 2
      %v4689 = vor.u32 %v4687, %v4688
      %v4690 = vsel %vm982, %v4685, %v4689
      %v4691 = vrot.slane %v3767, 1
      %v4692 = vrot.slane %v3763, 2
      %v4693 = vor.u32 %v4691, %v4692
      %v4694 = vsel %vm982, %v4689, %v4693
      %v4695 = vrot.slane %v3774, 1
      %v4696 = vrot.slane %v3770, 2
      %v4697 = vor.u32 %v4695, %v4696
      %v4698 = vsel %vm982, %v4693, %v4697
      %v4699 = vrot.slane %v3781, 1
      %v4700 = vrot.slane %v3777, 2
      %v4701 = vor.u32 %v4699, %v4700
      %v4702 = vsel %vm982, %v4697, %v4701
      %v4703 = vrot.slane %v3788, 1
      %v4704 = vrot.slane %v3784, 2
      %v4705 = vor.u32 %v4703, %v4704
      %v4706 = vsel %vm982, %v4701, %v4705
      %v4707 = vrot.slane %v3795, 1
      %v4708 = vrot.slane %v3791, 2
      %v4709 = vor.u32 %v4707, %v4708
      %v4710 = vsel %vm982, %v4705, %v4709
      %v4711 = vrot.slane %v3802, 1
      %v4712 = vrot.slane %v3798, 2
      %v4713 = vor.u32 %v4711, %v4712
      %v4714 = vsel %vm982, %v4709, %v4713
      %v4715 = vrot.slane %v4364, 1
      %v4716 = vrot.slane %v4360, 2
      %v4717 = vor.u32 %v4715, %v4716
      %v4718 = vsel %vm982, %v4713, %v4717
      %v4719 = vshrl.u32 %v4359, 16
      %v4721 = vrot.slane %v4719, 1
      %v4722 = vrot.slane %v4368, 2
      %v4723 = vor.u32 %v4721, %v4722
      %v4724 = vsel %vm982, %v4717, %v4723
      %v4729 = vunpack.c.l.b16 %v309
      %v4730 = vunpack.c.l.b16 %v310
      %v4731 = vunpack.c.l.b16 %v311
      %v4732 = vunpack.c.l.b16 %v312
      %v4733 = vpack.c.b16 %v4730, %v4729
      %v4734 = vpack.c.b16 %v4732, %v4731
      %v4738 = vsel %vm479, %v4662, 0
      %v4741 = vsel %vm479, %v4666, 0
      %v4744 = vsel %vm479, %v4670, 0
      %v4747 = vsel %vm479, %v4674, 0
      %v4750 = vsel %vm479, %v4678, 0
      %v4753 = vsel %vm479, %v4682, 0
      %v4756 = vsel %vm479, %v4686, 0
      %v4759 = vsel %vm479, %v4690, 0
      %v4762 = vsel %vm479, %v4694, 0
      %v4765 = vsel %vm479, %v4698, 0
      %v4768 = vsel %vm479, %v4702, 0
      %v4771 = vsel %vm479, %v4706, 0
      %v4774 = vsel %vm479, %v4710, 0
      %v4777 = vsel %vm479, %v4714, 0
      %v4780 = vsel %vm479, %v4718, 0
      %v4783 = vsel %vm479, %v4724, 0
      %4785 = vmatpush.bf16.msra.mxu0 0
      %4786 = vmatpush.bf16.msra.mxu0 0
      %4787 = vmatpush.bf16.msra.mxu0 0
      %4788 = vmatpush.bf16.msra.mxu0 0
      %4789 = vmatpush.bf16.msra.mxu0 0
      %4790 = vmatpush.bf16.msra.mxu0 0
      %4791 = vmatpush.bf16.msra.mxu0 %v4734
      %4792 = vmatpush.bf16.msra.mxu0 %v4733
      %4793 = vmatmul.bf16.gmra.mxu0 %v4738
      %v4794 = vpop.f32.mrf.mxu0
      %v4795 = vadd.f32 0.0, %v4794
      %v4796 = vpop.f32.mrf.mxu0
      %v4797 = vadd.f32 0.0, %v4796
      %4798 = vmatmul.bf16.gmra.mxu0 %v4741
      %v4799 = vpop.f32.mrf.mxu0
      %v4800 = vadd.f32 0.0, %v4799
      %v4801 = vpop.f32.mrf.mxu0
      %v4802 = vadd.f32 0.0, %v4801
      %4803 = vmatmul.bf16.gmra.mxu0 %v4744
      %v4804 = vpop.f32.mrf.mxu0
      %v4805 = vadd.f32 0.0, %v4804
      %v4806 = vpop.f32.mrf.mxu0
      %v4807 = vadd.f32 0.0, %v4806
      %4808 = vmatmul.bf16.gmra.mxu0 %v4747
      %v4809 = vpop.f32.mrf.mxu0
      %v4810 = vadd.f32 0.0, %v4809
      %v4811 = vpop.f32.mrf.mxu0
      %v4812 = vadd.f32 0.0, %v4811
      %4813 = vmatmul.bf16.gmra.mxu0 %v4750
      %v4814 = vpop.f32.mrf.mxu0
      %v4815 = vadd.f32 0.0, %v4814
      %v4816 = vpop.f32.mrf.mxu0
      %v4817 = vadd.f32 0.0, %v4816
      %4818 = vmatmul.bf16.gmra.mxu0 %v4753
      %v4819 = vpop.f32.mrf.mxu0
      %v4820 = vadd.f32 0.0, %v4819
      %v4821 = vpop.f32.mrf.mxu0
      %v4822 = vadd.f32 0.0, %v4821
      %4823 = vmatmul.bf16.gmra.mxu0 %v4756
      %v4824 = vpop.f32.mrf.mxu0
      %v4825 = vadd.f32 0.0, %v4824
      %v4826 = vpop.f32.mrf.mxu0
      %v4827 = vadd.f32 0.0, %v4826
      %4828 = vmatmul.bf16.gmra.mxu0 %v4759
      %v4829 = vpop.f32.mrf.mxu0
      %v4830 = vadd.f32 0.0, %v4829
      %v4831 = vpop.f32.mrf.mxu0
      %v4832 = vadd.f32 0.0, %v4831
      %4833 = vmatmul.bf16.gmra.mxu0 %v4762
      %v4834 = vpop.f32.mrf.mxu0
      %v4835 = vadd.f32 0.0, %v4834
      %v4836 = vpop.f32.mrf.mxu0
      %v4837 = vadd.f32 0.0, %v4836
      %4838 = vmatmul.bf16.gmra.mxu0 %v4765
      %v4839 = vpop.f32.mrf.mxu0
      %v4840 = vadd.f32 0.0, %v4839
      %v4841 = vpop.f32.mrf.mxu0
      %v4842 = vadd.f32 0.0, %v4841
      %4843 = vmatmul.bf16.gmra.mxu0 %v4768
      %v4844 = vpop.f32.mrf.mxu0
      %v4845 = vadd.f32 0.0, %v4844
      %v4846 = vpop.f32.mrf.mxu0
      %v4847 = vadd.f32 0.0, %v4846
      %4848 = vmatmul.bf16.gmra.mxu0 %v4771
      %v4849 = vpop.f32.mrf.mxu0
      %v4850 = vadd.f32 0.0, %v4849
      %v4851 = vpop.f32.mrf.mxu0
      %v4852 = vadd.f32 0.0, %v4851
      %4853 = vmatmul.bf16.gmra.mxu0 %v4774
      %v4854 = vpop.f32.mrf.mxu0
      %v4855 = vadd.f32 0.0, %v4854
      %v4856 = vpop.f32.mrf.mxu0
      %v4857 = vadd.f32 0.0, %v4856
      %4858 = vmatmul.bf16.gmra.mxu0 %v4777
      %v4859 = vpop.f32.mrf.mxu0
      %v4860 = vadd.f32 0.0, %v4859
      %v4861 = vpop.f32.mrf.mxu0
      %v4862 = vadd.f32 0.0, %v4861
      %4863 = vmatmul.bf16.gmra.mxu0 %v4780
      %v4864 = vpop.f32.mrf.mxu0
      %v4865 = vadd.f32 0.0, %v4864
      %v4866 = vpop.f32.mrf.mxu0
      %v4867 = vadd.f32 0.0, %v4866
      %4868 = vmatmul.bf16.gmra.mxu0 %v4783
      %v4869 = vpop.f32.mrf.mxu0
      %v4870 = vadd.f32 0.0, %v4869
      %v4871 = vpop.f32.mrf.mxu0
      %v4872 = vadd.f32 0.0, %v4871
      %4873 = vdwg.mxu0
      %v4874 = vadd.f32 %v4624, %v4795
      %v4875 = vadd.f32 %v4625, %v4797
      %v4876 = vadd.f32 %v4626, %v4800
      %v4877 = vadd.f32 %v4627, %v4802
      %v4878 = vadd.f32 %v4628, %v4805
      %v4879 = vadd.f32 %v4629, %v4807
      %v4880 = vadd.f32 %v4630, %v4810
      %v4881 = vadd.f32 %v4631, %v4812
      %v4882 = vadd.f32 %v4632, %v4815
      %v4883 = vadd.f32 %v4633, %v4817
      %v4884 = vadd.f32 %v4634, %v4820
      %v4885 = vadd.f32 %v4635, %v4822
      %v4886 = vadd.f32 %v4636, %v4825
      %v4887 = vadd.f32 %v4637, %v4827
      %v4888 = vadd.f32 %v4638, %v4830
      %v4889 = vadd.f32 %v4639, %v4832
      %v4890 = vadd.f32 %v4640, %v4835
      %v4891 = vadd.f32 %v4641, %v4837
      %v4892 = vadd.f32 %v4642, %v4840
      %v4893 = vadd.f32 %v4643, %v4842
      %v4894 = vadd.f32 %v4644, %v4845
      %v4895 = vadd.f32 %v4645, %v4847
      %v4896 = vadd.f32 %v4646, %v4850
      %v4897 = vadd.f32 %v4647, %v4852
      %v4898 = vadd.f32 %v4648, %v4855
      %v4899 = vadd.f32 %v4649, %v4857
      %v4900 = vadd.f32 %v4650, %v4860
      %v4901 = vadd.f32 %v4651, %v4862
      %v4902 = vadd.f32 %v4652, %v4865
      %v4903 = vadd.f32 %v4653, %v4867
      %v4904 = vadd.f32 %v4654, %v4870
      %v4905 = vadd.f32 %v4655, %v4872
      %v4906 = vrot.slane %v3057, 2
      %v4907 = vrot.slane %v3058, 2
      %v4908 = vsel %vm1233, %v4906, %v4907
      %v4909 = vrot.slane %v3059, 2
      %v4910 = vsel %vm1233, %v4907, %v4909
      %v4911 = vrot.slane %v3060, 2
      %v4912 = vsel %vm1233, %v4909, %v4911
      %v4913 = vrot.slane %v3061, 2
      %v4914 = vsel %vm1233, %v4911, %v4913
      %v4915 = vrot.slane %v3062, 2
      %v4916 = vsel %vm1233, %v4913, %v4915
      %v4917 = vrot.slane %v3063, 2
      %v4918 = vsel %vm1233, %v4915, %v4917
      %v4919 = vrot.slane %v3064, 2
      %v4920 = vsel %vm1233, %v4917, %v4919
      %v4921 = vrot.slane %v3065, 2
      %v4922 = vsel %vm1233, %v4919, %v4921
      %v4923 = vrot.slane %v3066, 2
      %v4924 = vsel %vm1233, %v4921, %v4923
      %v4925 = vrot.slane %v3067, 2
      %v4926 = vsel %vm1233, %v4923, %v4925
      %v4927 = vrot.slane %v3068, 2
      %v4928 = vsel %vm1233, %v4925, %v4927
      %v4929 = vrot.slane %v3069, 2
      %v4930 = vsel %vm1233, %v4927, %v4929
      %v4931 = vrot.slane %v3070, 2
      %v4932 = vsel %vm1233, %v4929, %v4931
      %v4933 = vrot.slane %v3556, 2
      %v4934 = vsel %vm1233, %v4931, %v4933
      %v4935 = vrot.slane %v4222, 2
      %v4936 = vsel %vm1233, %v4933, %v4935
      %v4937 = vrot.slane %v4359, 2
      %v4938 = vsel %vm1233, %v4935, %v4937
      %v4943 = vunpack.c.l.b16 %v313
      %v4944 = vunpack.c.l.b16 %v314
      %v4945 = vunpack.c.l.b16 %v315
      %v4946 = vunpack.c.l.b16 %v316
      %v4947 = vpack.c.b16 %v4944, %v4943
      %v4948 = vpack.c.b16 %v4946, %v4945
      %v4952 = vsel %vm479, %v4908, 0
      %v4955 = vsel %vm479, %v4910, 0
      %v4958 = vsel %vm479, %v4912, 0
      %v4961 = vsel %vm479, %v4914, 0
      %v4964 = vsel %vm479, %v4916, 0
      %v4967 = vsel %vm479, %v4918, 0
      %v4970 = vsel %vm479, %v4920, 0
      %v4973 = vsel %vm479, %v4922, 0
      %v4976 = vsel %vm479, %v4924, 0
      %v4979 = vsel %vm479, %v4926, 0
      %v4982 = vsel %vm479, %v4928, 0
      %v4985 = vsel %vm479, %v4930, 0
      %v4988 = vsel %vm479, %v4932, 0
      %v4991 = vsel %vm479, %v4934, 0
      %v4994 = vsel %vm479, %v4936, 0
      %v4997 = vsel %vm479, %v4938, 0
      %4999 = vmatpush.bf16.msra.mxu0 0
      %5000 = vmatpush.bf16.msra.mxu0 0
      %5001 = vmatpush.bf16.msra.mxu0 0
      %5002 = vmatpush.bf16.msra.mxu0 0
      %5003 = vmatpush.bf16.msra.mxu0 0
      %5004 = vmatpush.bf16.msra.mxu0 0
      %5005 = vmatpush.bf16.msra.mxu0 %v4948
      %5006 = vmatpush.bf16.msra.mxu0 %v4947
      %5007 = vmatmul.bf16.gmra.mxu0 %v4952
      %v5008 = vpop.f32.mrf.mxu0
      %v5009 = vadd.f32 0.0, %v5008
      %v5010 = vpop.f32.mrf.mxu0
      %v5011 = vadd.f32 0.0, %v5010
      %5012 = vmatmul.bf16.gmra.mxu0 %v4955
      %v5013 = vpop.f32.mrf.mxu0
      %v5014 = vadd.f32 0.0, %v5013
      %v5015 = vpop.f32.mrf.mxu0
      %v5016 = vadd.f32 0.0, %v5015
      %5017 = vmatmul.bf16.gmra.mxu0 %v4958
      %v5018 = vpop.f32.mrf.mxu0
      %v5019 = vadd.f32 0.0, %v5018
      %v5020 = vpop.f32.mrf.mxu0
      %v5021 = vadd.f32 0.0, %v5020
      %5022 = vmatmul.bf16.gmra.mxu0 %v4961
      %v5023 = vpop.f32.mrf.mxu0
      %v5024 = vadd.f32 0.0, %v5023
      %v5025 = vpop.f32.mrf.mxu0
      %v5026 = vadd.f32 0.0, %v5025
      %5027 = vmatmul.bf16.gmra.mxu0 %v4964
      %v5028 = vpop.f32.mrf.mxu0
      %v5029 = vadd.f32 0.0, %v5028
      %v5030 = vpop.f32.mrf.mxu0
      %v5031 = vadd.f32 0.0, %v5030
      %5032 = vmatmul.bf16.gmra.mxu0 %v4967
      %v5033 = vpop.f32.mrf.mxu0
      %v5034 = vadd.f32 0.0, %v5033
      %v5035 = vpop.f32.mrf.mxu0
      %v5036 = vadd.f32 0.0, %v5035
      %5037 = vmatmul.bf16.gmra.mxu0 %v4970
      %v5038 = vpop.f32.mrf.mxu0
      %v5039 = vadd.f32 0.0, %v5038
      %v5040 = vpop.f32.mrf.mxu0
      %v5041 = vadd.f32 0.0, %v5040
      %5042 = vmatmul.bf16.gmra.mxu0 %v4973
      %v5043 = vpop.f32.mrf.mxu0
      %v5044 = vadd.f32 0.0, %v5043
      %v5045 = vpop.f32.mrf.mxu0
      %v5046 = vadd.f32 0.0, %v5045
      %5047 = vmatmul.bf16.gmra.mxu0 %v4976
      %v5048 = vpop.f32.mrf.mxu0
      %v5049 = vadd.f32 0.0, %v5048
      %v5050 = vpop.f32.mrf.mxu0
      %v5051 = vadd.f32 0.0, %v5050
      %5052 = vmatmul.bf16.gmra.mxu0 %v4979
      %v5053 = vpop.f32.mrf.mxu0
      %v5054 = vadd.f32 0.0, %v5053
      %v5055 = vpop.f32.mrf.mxu0
      %v5056 = vadd.f32 0.0, %v5055
      %5057 = vmatmul.bf16.gmra.mxu0 %v4982
      %v5058 = vpop.f32.mrf.mxu0
      %v5059 = vadd.f32 0.0, %v5058
      %v5060 = vpop.f32.mrf.mxu0
      %v5061 = vadd.f32 0.0, %v5060
      %5062 = vmatmul.bf16.gmra.mxu0 %v4985
      %v5063 = vpop.f32.mrf.mxu0
      %v5064 = vadd.f32 0.0, %v5063
      %v5065 = vpop.f32.mrf.mxu0
      %v5066 = vadd.f32 0.0, %v5065
      %5067 = vmatmul.bf16.gmra.mxu0 %v4988
      %v5068 = vpop.f32.mrf.mxu0
      %v5069 = vadd.f32 0.0, %v5068
      %v5070 = vpop.f32.mrf.mxu0
      %v5071 = vadd.f32 0.0, %v5070
      %5072 = vmatmul.bf16.gmra.mxu0 %v4991
      %v5073 = vpop.f32.mrf.mxu0
      %v5074 = vadd.f32 0.0, %v5073
      %v5075 = vpop.f32.mrf.mxu0
      %v5076 = vadd.f32 0.0, %v5075
      %5077 = vmatmul.bf16.gmra.mxu0 %v4994
      %v5078 = vpop.f32.mrf.mxu0
      %v5079 = vadd.f32 0.0, %v5078
      %v5080 = vpop.f32.mrf.mxu0
      %v5081 = vadd.f32 0.0, %v5080
      %5082 = vmatmul.bf16.gmra.mxu0 %v4997
      %v5083 = vpop.f32.mrf.mxu0
      %v5084 = vadd.f32 0.0, %v5083
      %v5085 = vpop.f32.mrf.mxu0
      %v5086 = vadd.f32 0.0, %v5085
      %5087 = vdwg.mxu0
      %v5088 = vadd.f32 %v4874, %v5009
      %v5089 = vadd.f32 %v4875, %v5011
      %v5090 = vadd.f32 %v4876, %v5014
      %v5091 = vadd.f32 %v4877, %v5016
      %v5092 = vadd.f32 %v4878, %v5019
      %v5093 = vadd.f32 %v4879, %v5021
      %v5094 = vadd.f32 %v4880, %v5024
      %v5095 = vadd.f32 %v4881, %v5026
      %v5096 = vadd.f32 %v4882, %v5029
      %v5097 = vadd.f32 %v4883, %v5031
      %v5098 = vadd.f32 %v4884, %v5034
      %v5099 = vadd.f32 %v4885, %v5036
      %v5100 = vadd.f32 %v4886, %v5039
      %v5101 = vadd.f32 %v4887, %v5041
      %v5102 = vadd.f32 %v4888, %v5044
      %v5103 = vadd.f32 %v4889, %v5046
      %v5104 = vadd.f32 %v4890, %v5049
      %v5105 = vadd.f32 %v4891, %v5051
      %v5106 = vadd.f32 %v4892, %v5054
      %v5107 = vadd.f32 %v4893, %v5056
      %v5108 = vadd.f32 %v4894, %v5059
      %v5109 = vadd.f32 %v4895, %v5061
      %v5110 = vadd.f32 %v4896, %v5064
      %v5111 = vadd.f32 %v4897, %v5066
      %v5112 = vadd.f32 %v4898, %v5069
      %v5113 = vadd.f32 %v4899, %v5071
      %v5114 = vadd.f32 %v4900, %v5074
      %v5115 = vadd.f32 %v4901, %v5076
      %v5116 = vadd.f32 %v4902, %v5079
      %v5117 = vadd.f32 %v4903, %v5081
      %v5118 = vadd.f32 %v4904, %v5084
      %v5119 = vadd.f32 %v4905, %v5086
      %v5120 = vld [vmem:[%s2] sm:$0x1]
      %v5122 = vperm.slane %v5120, 0
      %v5124 = vadd.f32 %v5088, %v5122
      %v5125 = vadd.f32 %v5089, %v5122
      %v5126 = vadd.f32 %v5090, %v5122
      %v5127 = vadd.f32 %v5091, %v5122
      %v5128 = vadd.f32 %v5092, %v5122
      %v5129 = vadd.f32 %v5093, %v5122
      %v5130 = vadd.f32 %v5094, %v5122
      %v5131 = vadd.f32 %v5095, %v5122
      %v5132 = vadd.f32 %v5096, %v5122
      %v5133 = vadd.f32 %v5097, %v5122
      %v5134 = vadd.f32 %v5098, %v5122
      %v5135 = vadd.f32 %v5099, %v5122
      %v5136 = vadd.f32 %v5100, %v5122
      %v5137 = vadd.f32 %v5101, %v5122
      %v5138 = vadd.f32 %v5102, %v5122
      %v5139 = vadd.f32 %v5103, %v5122
      %v5140 = vadd.f32 %v5104, %v5122
      %v5141 = vadd.f32 %v5105, %v5122
      %v5142 = vadd.f32 %v5106, %v5122
      %v5143 = vadd.f32 %v5107, %v5122
      %v5144 = vadd.f32 %v5108, %v5122
      %v5145 = vadd.f32 %v5109, %v5122
      %v5146 = vadd.f32 %v5110, %v5122
      %v5147 = vadd.f32 %v5111, %v5122
      %v5148 = vadd.f32 %v5112, %v5122
      %v5149 = vadd.f32 %v5113, %v5122
      %v5150 = vadd.f32 %v5114, %v5122
      %v5151 = vadd.f32 %v5115, %v5122
      %v5152 = vadd.f32 %v5116, %v5122
      %v5153 = vadd.f32 %v5117, %v5122
      %v5154 = vadd.f32 %v5118, %v5122
      %v5155 = vadd.f32 %v5119, %v5122
      %v5156 = vmax.f32 %v5124, 0.0
      %v5157 = vmax.f32 %v5125, 0.0
      %v5158 = vmax.f32 %v5126, 0.0
      %v5159 = vmax.f32 %v5127, 0.0
      %v5160 = vmax.f32 %v5128, 0.0
      %v5161 = vmax.f32 %v5129, 0.0
      %v5162 = vmax.f32 %v5130, 0.0
      %v5163 = vmax.f32 %v5131, 0.0
      %v5164 = vmax.f32 %v5132, 0.0
      %v5165 = vmax.f32 %v5133, 0.0
      %v5166 = vmax.f32 %v5134, 0.0
      %v5167 = vmax.f32 %v5135, 0.0
      %v5168 = vmax.f32 %v5136, 0.0
      %v5169 = vmax.f32 %v5137, 0.0
      %v5170 = vmax.f32 %v5138, 0.0
      %v5171 = vmax.f32 %v5139, 0.0
      %v5172 = vmax.f32 %v5140, 0.0
      %v5173 = vmax.f32 %v5141, 0.0
      %v5174 = vmax.f32 %v5142, 0.0
      %v5175 = vmax.f32 %v5143, 0.0
      %v5176 = vmax.f32 %v5144, 0.0
      %v5177 = vmax.f32 %v5145, 0.0
      %v5178 = vmax.f32 %v5146, 0.0
      %v5179 = vmax.f32 %v5147, 0.0
      %v5180 = vmax.f32 %v5148, 0.0
      %v5181 = vmax.f32 %v5149, 0.0
      %v5182 = vmax.f32 %v5150, 0.0
      %v5183 = vmax.f32 %v5151, 0.0
      %v5184 = vmax.f32 %v5152, 0.0
      %v5185 = vmax.f32 %v5153, 0.0
      %v5186 = vmax.f32 %v5154, 0.0
      %v5187 = vmax.f32 %v5155, 0.0
      %vm5188 = vcmask 523264
      %5189 = vst.msk [vmem:[%s172] sm:$0xff] %vm5188, %v5156
      %5190 = vst.msk [vmem:[%s172 + $0x8] sm:$0xff] %vm5188, %v5157
      %5191 = vst.msk [vmem:[%s172 + $0x10] sm:$0xff] %vm5188, %v5158
      %5192 = vst.msk [vmem:[%s172 + $0x18] sm:$0xff] %vm5188, %v5159
      %5193 = vst.msk [vmem:[%s172 + $0x20] sm:$0xff] %vm5188, %v5160
      %5194 = vst.msk [vmem:[%s172 + $0x28] sm:$0xff] %vm5188, %v5161
      %5195 = vst.msk [vmem:[%s172 + $0x30] sm:$0xff] %vm5188, %v5162
      %5196 = vst.msk [vmem:[%s172 + $0x38] sm:$0xff] %vm5188, %v5163
      %5197 = vst.msk [vmem:[%s172 + $0x40] sm:$0xff] %vm5188, %v5164
      %5198 = vst.msk [vmem:[%s172 + $0x48] sm:$0xff] %vm5188, %v5165
      %5199 = vst.msk [vmem:[%s172 + $0x50] sm:$0xff] %vm5188, %v5166
      %5200 = vst.msk [vmem:[%s172 + $0x58] sm:$0xff] %vm5188, %v5167
      %5201 = vst.msk [vmem:[%s172 + $0x60] sm:$0xff] %vm5188, %v5168
      %5202 = vst.msk [vmem:[%s172 + $0x68] sm:$0xff] %vm5188, %v5169
      %5203 = vst.msk [vmem:[%s172 + $0x70] sm:$0xff] %vm5188, %v5170
      %5204 = vst.msk [vmem:[%s172 + $0x78] sm:$0xff] %vm5188, %v5171
      %5205 = vst.msk [vmem:[%s172 + $0x80] sm:$0xff] %vm5188, %v5172
      %5206 = vst.msk [vmem:[%s172 + $0x88] sm:$0xff] %vm5188, %v5173
      %5207 = vst.msk [vmem:[%s172 + $0x90] sm:$0xff] %vm5188, %v5174
      %5208 = vst.msk [vmem:[%s172 + $0x98] sm:$0xff] %vm5188, %v5175
      %5209 = vst.msk [vmem:[%s172 + $0xa0] sm:$0xff] %vm5188, %v5176
      %5210 = vst.msk [vmem:[%s172 + $0xa8] sm:$0xff] %vm5188, %v5177
      %5211 = vst.msk [vmem:[%s172 + $0xb0] sm:$0xff] %vm5188, %v5178
      %5212 = vst.msk [vmem:[%s172 + $0xb8] sm:$0xff] %vm5188, %v5179
      %5213 = vst.msk [vmem:[%s172 + $0xc0] sm:$0xff] %vm5188, %v5180
      %5214 = vst.msk [vmem:[%s172 + $0xc8] sm:$0xff] %vm5188, %v5181
      %5215 = vst.msk [vmem:[%s172 + $0xd0] sm:$0xff] %vm5188, %v5182
      %5216 = vst.msk [vmem:[%s172 + $0xd8] sm:$0xff] %vm5188, %v5183
      %5217 = vst.msk [vmem:[%s172 + $0xe0] sm:$0xff] %vm5188, %v5184
      %5218 = vst.msk [vmem:[%s172 + $0xe8] sm:$0xff] %vm5188, %v5185
      %5219 = vst.msk [vmem:[%s172 + $0xf0] sm:$0xff] %vm5188, %v5186
      %5220 = vst.msk [vmem:[%s172 + $0xf8] sm:$0xff] %vm5188, %v5187
      %s5221 = smul.u32 32, %s14
      %p5222 = scmp.lt.s32.totalorder %s5221, 63
      %s5223 = scalar_select %p5222, %s5221, 63
      %s5224 = smul.addr %s5223, 8
      %s5225 = scalar_lea.vmem %s3, %s5224
      // Predicated region
      $region33: #{cnn_forward.4} parent=31 // pred_check
        %p5226 = pneg %p100
      $region34: #{cnn_forward.4} parent=31 // pred_check_branch
        %5228 = sbr.rel (%p5226) target = $region36
      $region35: #{cnn_forward.4} parent=31 // pred_region
        %s5229 = smul.u32 32, %s14
      $region36: #{cnn_forward.4} parent=31 // pred_fallthru
        _
    $region32: #{cnn_forward.4} parent=5 // pred_fallthru
      _
    %p5230 = scmp.le.s32.totalorder 2, %s9
    // Predicated region
    $region37: #{cnn_forward.4} parent=5 // pred_check
      %p5231 = pneg %p5230
    $region38: #{cnn_forward.4} parent=5 // pred_check_branch
      %5233 = sbr.rel (%p5231) target = $region40
    $region39: #{cnn_forward.4} parent=5 // pred_region
      %s5234 = ssub.s32 %s9, 2
      // Predicated region
      $region41: #{cnn_forward.4} parent=39 // pred_check
        %p5235 = pneg %p106
      $region42: #{cnn_forward.4} parent=39 // pred_check_branch
        %5237 = sbr.rel (%p5235) target = $region44
      $region43: #{cnn_forward.4} parent=39 // pred_region
        %s5238 = smul.u32 32, %s15
        %p5239 = scmp.lt.s32.totalorder %s5238, 63
        %s5240 = scalar_select %p5239, %s5238, 63
        %s5241 = smul.addr %s5240, 8
        %s5242 = scalar_lea.vmem %s3, %s5241
      $region44: #{cnn_forward.4} parent=39 // pred_fallthru
        _
    $region40: #{cnn_forward.4} parent=5 // pred_fallthru
      _
  $region6: #{cnn_forward.4} parent=0 // loop_footer
    %s13 = sadd.s32 1, %s9
  $region7: #{cnn_forward.4} parent=0 // loop_footer_branch
    %8 = sbr.rel target = $region3
  $region8: #{cnn_forward.4} parent=0 // loop_exit
    _

</llo_original>
